<compile_context>
chip_gen: v6e
topology: v6e:2x2x1
jax: 0.10.0
libtpu: 0.0.40
codegen_flags: <defaults>
</compile_context>

<pallas_src>
import jax
import jax.numpy as jnp
from jax import lax
from jax.experimental import pallas as pl
from jax.experimental.pallas import tpu as pltpu

LANE = 128


def _round_up(x, m):
    return (x + m - 1) // m * m


def _double_conv_kernel(x_ref, w1_ref, s1_ref, b1_ref, w2_ref, s2_ref, b2_ref,
                        o_ref, xpad_ref, hpad_ref):
    """Fused (3x3 conv + folded-BN affine + ReLU) x 2 on one batch element.

    x_ref:    (1, H, W, C1)   bf16  input tile (channels padded to 128)
    w1_ref:   (9*C1, C2)      bf16  conv1 weights, rows ordered (ky, kx, cin)
    s1/b1:    (1, C2)         f32   folded BN scale / shift (incl. conv bias)
    w2_ref:   (9*C2, C3)      bf16
    s2/b2:    (1, C3)         f32
    o_ref:    (1, H, W, C3)   f32   lane-dense output
    xpad_ref: (H+2, W+2, C1)  f32   VMEM scratch: zero-padded input
    hpad_ref: (H+2, W+2, C2)  f32   VMEM scratch: zero-padded intermediate
    """
    _, H, W, _ = o_ref.shape
    c_mid = hpad_ref.shape[-1]

    # Build the zero-padded input in VMEM (halo handled here, not in HBM).
    xpad_ref[...] = jnp.zeros_like(xpad_ref)
    xpad_ref[pl.ds(1, H), pl.ds(1, W), :] = x_ref[0].astype(xpad_ref.dtype)
    hpad_ref[...] = jnp.zeros_like(hpad_ref)

    def conv_bn_relu(src_ref, w_ref, s_ref, b_ref):
        """3x3 conv as 9 accumulating per-tap MXU dots + fused BN/ReLU."""
        c = src_ref.shape[-1]
        acc = None
        for ky in range(3):
            for kx in range(3):
                t = ky * 3 + kx
                # ky offset hits the (cheap) major dim; kx offset hits the
                # sublane dim of the f32 scratch (well-supported relayout).
                col = (src_ref[pl.ds(ky, H), pl.ds(kx, W), :]
                       .reshape(H * W, c).astype(jnp.bfloat16))
                w_tap = w_ref[pl.ds(t * c, c), :]          # (c, cout) bf16
                part = jnp.dot(col, w_tap,
                               preferred_element_type=jnp.float32)
                acc = part if acc is None else acc + part
        # Folded BN affine + ReLU epilogue in f32.
        return jnp.maximum(acc * s_ref[...] + b_ref[...], 0.0)

    h = conv_bn_relu(xpad_ref, w1_ref, s1_ref, b1_ref)           # (H*W, C2)
    hpad_ref[pl.ds(1, H), pl.ds(1, W), :] = (
        h.reshape(H, W, c_mid).astype(hpad_ref.dtype))

    y = conv_bn_relu(hpad_ref, w2_ref, s2_ref, b2_ref)           # (H*W, C3)
    o_ref[0] = y.reshape(H, W, o_ref.shape[-1]).astype(o_ref.dtype)


def double_conv_fused(x_nhwc, w1, s1, b1, w2, s2, b2):
    """x_nhwc: (N, H, W, C1) bf16 with channels already padded to 128."""
    N, H, W, C1 = x_nhwc.shape
    K1, C2 = w1.shape
    K2, C3 = w2.shape
    assert K1 == 9 * C1 and K2 == 9 * C2

    flops = 2 * N * (H * W) * (K1 * C2 + K2 * C3)
    bytes_accessed = (x_nhwc.size * 2 + w1.size * 2 + w2.size * 2
                      + (s1.size + b1.size + s2.size + b2.size) * 4
                      + N * H * W * C3 * 4)

    return pl.pallas_call(
        _double_conv_kernel,
        out_shape=jax.ShapeDtypeStruct((N, H, W, C3), jnp.float32),
        grid_spec=pltpu.PrefetchScalarGridSpec(
            num_scalar_prefetch=0,
            grid=(N,),
            in_specs=[
                pl.BlockSpec((1, H, W, C1), lambda n: (n, 0, 0, 0)),
                pl.BlockSpec((K1, C2), lambda n: (0, 0)),
                pl.BlockSpec((1, C2), lambda n: (0, 0)),
                pl.BlockSpec((1, C2), lambda n: (0, 0)),
                pl.BlockSpec((K2, C3), lambda n: (0, 0)),
                pl.BlockSpec((1, C3), lambda n: (0, 0)),
                pl.BlockSpec((1, C3), lambda n: (0, 0)),
            ],
            out_specs=pl.BlockSpec((1, H, W, C3), lambda n: (n, 0, 0, 0)),
            scratch_shapes=[
                pltpu.VMEM((H + 2, W + 2, C1), jnp.float32),
                pltpu.VMEM((H + 2, W + 2, C2), jnp.float32),
            ],
        ),
        compiler_params=pltpu.CompilerParams(
            dimension_semantics=("parallel",),
            vmem_limit_bytes=32 * 1024 * 1024,
        ),
        cost_estimate=pl.CostEstimate(flops=flops, transcendentals=0,
                                      bytes_accessed=bytes_accessed),
    )(x_nhwc, w1, s1, b1, w2, s2, b2)


def _fold_bn(conv_bias, gamma, beta, running_mean, running_var, eps=1e-5):
    scale = gamma / jnp.sqrt(running_var + eps)
    shift = beta - scale * running_mean + scale * conv_bias
    return scale, shift


class DoubleConvPallas:
    """(conv3x3 => BN(eval) => ReLU) * 2, matching nn.Sequential in DoubleConv."""

    def __init__(self, in_channels, out_channels, mid_channels=None, key=None):
        if not mid_channels:
            mid_channels = out_channels
        if key is None:
            key = jax.random.PRNGKey(0)
        ks = jax.random.split(key, 12)

        self.in_channels = in_channels
        self.mid_channels = mid_channels
        self.out_channels = out_channels
        self.cin_p = _round_up(in_channels, LANE)
        self.cmid_p = _round_up(mid_channels, LANE)
        self.cout_p = _round_up(out_channels, LANE)

        def conv_w(k, cin, cout):
            # PyTorch layout (Cout, Cin, 3, 3) -> HWIO (3, 3, Cin, Cout)
            w = jax.random.normal(k, (cout, cin, 3, 3), jnp.float32) * 0.1
            return jnp.transpose(w, (2, 3, 1, 0))

        # ---- layer 1: conv + BN (running stats), distinct keys ----
        self.w1_hwio = conv_w(ks[0], in_channels, mid_channels)
        b1 = 0.1 * jax.random.normal(ks[1], (mid_channels,), jnp.float32)
        g1 = 1.0 + 0.1 * jax.random.normal(ks[2], (mid_channels,), jnp.float32)
        beta1 = 0.1 * jax.random.normal(ks[3], (mid_channels,), jnp.float32)
        mean1 = 0.05 * jax.random.normal(ks[4], (mid_channels,), jnp.float32)
        var1 = 1.0 + 0.1 * jnp.abs(
            jax.random.normal(ks[5], (mid_channels,), jnp.float32))
        self.scale1, self.bias1 = _fold_bn(b1, g1, beta1, mean1, var1)

        # ---- layer 2: conv + BN (running stats) ----
        self.w2_hwio = conv_w(ks[6], mid_channels, out_channels)
        b2 = 0.1 * jax.random.normal(ks[7], (out_channels,), jnp.float32)
        g2 = 1.0 + 0.1 * jax.random.normal(ks[8], (out_channels,), jnp.float32)
        beta2 = 0.1 * jax.random.normal(ks[9], (out_channels,), jnp.float32)
        mean2 = 0.05 * jax.random.normal(ks[10], (out_channels,), jnp.float32)
        var2 = 1.0 + 0.1 * jnp.abs(
            jax.random.normal(ks[11], (out_channels,), jnp.float32))
        self.scale2, self.bias2 = _fold_bn(b2, g2, beta2, mean2, var2)

        # ---- lane-pad, flatten taps (ky,kx,cin)->rows, bf16 cast (once) ----
        self.w1_flat = self._pack_w(self.w1_hwio, self.cin_p, self.cmid_p)
        self.w2_flat = self._pack_w(self.w2_hwio, self.cmid_p, self.cout_p)
        self.s1 = self._pack_vec(self.scale1, self.cmid_p, 1.0)
        self.b1 = self._pack_vec(self.bias1, self.cmid_p, 0.0)
        self.s2 = self._pack_vec(self.scale2, self.cout_p, 1.0)
        self.b2 = self._pack_vec(self.bias2, self.cout_p, 0.0)

    @staticmethod
    def _pack_w(w_hwio, cin_p, cout_p):
        _, _, cin, cout = w_hwio.shape
        wp = jnp.zeros((3, 3, cin_p, cout_p), jnp.float32)
        wp = wp.at[:, :, :cin, :cout].set(w_hwio)
        return wp.reshape(9 * cin_p, cout_p).astype(jnp.bfloat16)

    @staticmethod
    def _pack_vec(v, c_p, fill):
        out = jnp.full((c_p,), fill, jnp.float32).at[: v.shape[0]].set(v)
        return out.reshape(1, c_p)

    def __call__(self, x_nchw):
        N, C, H, W = x_nchw.shape
        assert C == self.in_channels
        # NCHW (PyTorch convention) -> NHWC, lane-pad channels, bf16 operands.
        x = jnp.transpose(x_nchw, (0, 2, 3, 1))
        x = jnp.pad(x, ((0, 0), (0, 0), (0, 0), (0, self.cin_p - C)))
        x = x.astype(jnp.bfloat16)
        y = double_conv_fused(x, self.w1_flat, self.s1, self.b1,
                              self.w2_flat, self.s2, self.b2)
        y = y[..., : self.out_channels]
        return jnp.transpose(y, (0, 3, 1, 2))  # back to NCHW


def _reference(x_nchw, m: DoubleConvPallas):
    """Pure-JAX reference with matching precision (bf16 operands, f32 accum)."""
    def one(x, w, scale, bias):
        y = lax.conv_general_dilated(
            x.astype(jnp.bfloat16), w.astype(jnp.bfloat16),
            window_strides=(1, 1), padding="SAME",
            dimension_numbers=("NCHW", "HWIO", "NCHW"),
            preferred_element_type=jnp.float32)
        y = y * scale[None, :, None, None] + bias[None, :, None, None]
        return jnp.maximum(y, 0.0)

    h = one(x_nchw, m.w1_hwio, m.scale1, m.bias1)
    h = h.astype(jnp.bfloat16).astype(jnp.float32)  # kernel feeds conv2 bf16
    return one(h, m.w2_hwio, m.scale2, m.bias2)


if __name__ == "__main__":
    key = jax.random.PRNGKey(0)
    k_x, k_p = jax.random.split(key)

    N, Cin, H, W = 2, 4, 16, 16
    Cout = 8
    x = jax.random.normal(k_x, (N, Cin, H, W), jnp.float32)

    model = DoubleConvPallas(Cin, Cout, key=k_p)

    out = jax.block_until_ready(model(x))
    ref = jax.block_until_ready(_reference(x, model))

    assert out.shape == (N, Cout, H, W), out.shape
    max_err = float(jnp.max(jnp.abs(out - ref)))
    assert jnp.allclose(out, ref, atol=2e-3, rtol=2e-3), max_err

    print("KERNEL_OK")
</pallas_src>

<mosaic_0001>
module attributes {stable_mosaic.version = 11 : i64} {
  func.func @_double_conv_kernel(%arg0: i32, %arg1: memref<1x16x16x128xbf16, #tpu.memory_space<vmem>>, %arg2: memref<1152x128xbf16, #tpu.memory_space<vmem>>, %arg3: memref<1x128xf32, #tpu.memory_space<vmem>>, %arg4: memref<1x128xf32, #tpu.memory_space<vmem>>, %arg5: memref<1152x128xbf16, #tpu.memory_space<vmem>>, %arg6: memref<1x128xf32, #tpu.memory_space<vmem>>, %arg7: memref<1x128xf32, #tpu.memory_space<vmem>>, %arg8: memref<1x16x16x128xf32, #tpu.memory_space<vmem>>, %arg9: memref<18x18x128xf32, #tpu.memory_space<vmem>>, %arg10: memref<18x18x128xf32, #tpu.memory_space<vmem>>) attributes {dimension_semantics = [#tpu.dimension_semantics<parallel>], iteration_bounds = array<i64: 2>, scalar_prefetch = 0 : i64, scratch_operands = 2 : i64, tpu.core_type = #tpu.core_type<tc>, window_params = [{transform_indices = @transform_0, window_bounds = array<i64: 1, 16, 16, 128>}, {pipeline_mode = #tpu.pipeline_mode<synchronous>, transform_indices = @transform_1, window_bounds = array<i64: 1152, 128>}, {pipeline_mode = #tpu.pipeline_mode<synchronous>, transform_indices = @transform_2, window_bounds = array<i64: 1, 128>}, {pipeline_mode = #tpu.pipeline_mode<synchronous>, transform_indices = @transform_3, window_bounds = array<i64: 1, 128>}, {pipeline_mode = #tpu.pipeline_mode<synchronous>, transform_indices = @transform_4, window_bounds = array<i64: 1152, 128>}, {pipeline_mode = #tpu.pipeline_mode<synchronous>, transform_indices = @transform_5, window_bounds = array<i64: 1, 128>}, {pipeline_mode = #tpu.pipeline_mode<synchronous>, transform_indices = @transform_6, window_bounds = array<i64: 1, 128>}, {transform_indices = @transform_7, window_bounds = array<i64: 1, 16, 16, 128>}]} {
    %cst = arith.constant 0.000000e+00 : f32
    %0 = vector.broadcast %cst : f32 to vector<18x18x128xf32>
    %c0 = arith.constant 0 : index
    %c0_0 = arith.constant 0 : index
    %c0_1 = arith.constant 0 : index
    %1 = vector.load %arg9[%c0, %c0_0, %c0_1] : memref<18x18x128xf32, #tpu.memory_space<vmem>>, vector<18x18x128xf32>
    tpu.vector_store %arg9[%c0, %c0_0, %c0_1], %0 {strides = array<i32>} : memref<18x18x128xf32, #tpu.memory_space<vmem>>, vector<18x18x128xf32>,
    %c0_2 = arith.constant 0 : index
    %c0_3 = arith.constant 0 : index
    %c0_4 = arith.constant 0 : index
    %c0_5 = arith.constant 0 : index
    %2 = vector.load %arg1[%c0_2, %c0_3, %c0_4, %c0_5] : memref<1x16x16x128xbf16, #tpu.memory_space<vmem>>, vector<1x16x16x128xbf16>
    %3 = vector.shape_cast %2 : vector<1x16x16x128xbf16> to vector<16x16x128xbf16>
    %4 = arith.extf %3 : vector<16x16x128xbf16> to vector<16x16x128xf32>
    %c1 = arith.constant 1 : index
    %c1_6 = arith.constant 1 : index
    %c0_7 = arith.constant 0 : index
    %5 = vector.load %arg9[%c1, %c1_6, %c0_7] : memref<18x18x128xf32, #tpu.memory_space<vmem>>, vector<16x16x128xf32>
    tpu.vector_store %arg9[%c1, %c1_6, %c0_7], %4 {strides = array<i32>} : memref<18x18x128xf32, #tpu.memory_space<vmem>>, vector<16x16x128xf32>,
    %cst_8 = arith.constant 0.000000e+00 : f32
    %6 = vector.broadcast %cst_8 : f32 to vector<18x18x128xf32>
    %c0_9 = arith.constant 0 : index
    %c0_10 = arith.constant 0 : index
    %c0_11 = arith.constant 0 : index
    %7 = vector.load %arg10[%c0_9, %c0_10, %c0_11] : memref<18x18x128xf32, #tpu.memory_space<vmem>>, vector<18x18x128xf32>
    tpu.vector_store %arg10[%c0_9, %c0_10, %c0_11], %6 {strides = array<i32>} : memref<18x18x128xf32, #tpu.memory_space<vmem>>, vector<18x18x128xf32>,
    %c0_12 = arith.constant 0 : index
    %c0_13 = arith.constant 0 : index
    %c0_14 = arith.constant 0 : index
    %8 = vector.load %arg9[%c0_12, %c0_13, %c0_14] : memref<18x18x128xf32, #tpu.memory_space<vmem>>, vector<16x16x128xf32>
    %9 = vector.shape_cast %8 : vector<16x16x128xf32> to vector<256x128xf32>
    %10 = arith.truncf %9 : vector<256x128xf32> to vector<256x128xbf16>
    %c0_15 = arith.constant 0 : index
    %c0_16 = arith.constant 0 : index
    %11 = vector.load %arg2[%c0_15, %c0_16] : memref<1152x128xbf16, #tpu.memory_space<vmem>>, vector<128x128xbf16>
    %cst_17 = arith.constant dense<0.000000e+00> : vector<256x128xf32>
    %12 = tpu.matmul %10, %11, %cst_17 {dimension_numbers = #tpu.dot_dimension_numbers<[1], [0], [0], [1], [0, 0, 1, 1], [], []>} : vector<256x128xbf16>, vector<128x128xbf16>, vector<256x128xf32> -> vector<256x128xf32>
    %c0_18 = arith.constant 0 : index
    %c1_19 = arith.constant 1 : index
    %c0_20 = arith.constant 0 : index
    %13 = vector.load %arg9[%c0_18, %c1_19, %c0_20] : memref<18x18x128xf32, #tpu.memory_space<vmem>>, vector<16x16x128xf32>
    %14 = vector.shape_cast %13 : vector<16x16x128xf32> to vector<256x128xf32>
    %15 = arith.truncf %14 : vector<256x128xf32> to vector<256x128xbf16>
    %c128 = arith.constant 128 : index
    %c0_21 = arith.constant 0 : index
    %16 = vector.load %arg2[%c128, %c0_21] : memref<1152x128xbf16, #tpu.memory_space<vmem>>, vector<128x128xbf16>
    %cst_22 = arith.constant dense<0.000000e+00> : vector<256x128xf32>
    %17 = tpu.matmul %15, %16, %cst_22 {dimension_numbers = #tpu.dot_dimension_numbers<[1], [0], [0], [1], [0, 0, 1, 1], [], []>} : vector<256x128xbf16>, vector<128x128xbf16>, vector<256x128xf32> -> vector<256x128xf32>
    %18 = arith.addf %12, %17 : vector<256x128xf32>
    %c0_23 = arith.constant 0 : index
    %c2 = arith.constant 2 : index
    %c0_24 = arith.constant 0 : index
    %19 = vector.load %arg9[%c0_23, %c2, %c0_24] : memref<18x18x128xf32, #tpu.memory_space<vmem>>, vector<16x16x128xf32>
    %20 = vector.shape_cast %19 : vector<16x16x128xf32> to vector<256x128xf32>
    %21 = arith.truncf %20 : vector<256x128xf32> to vector<256x128xbf16>
    %c256 = arith.constant 256 : index
    %c0_25 = arith.constant 0 : index
    %22 = vector.load %arg2[%c256, %c0_25] : memref<1152x128xbf16, #tpu.memory_space<vmem>>, vector<128x128xbf16>
    %cst_26 = arith.constant dense<0.000000e+00> : vector<256x128xf32>
    %23 = tpu.matmul %21, %22, %cst_26 {dimension_numbers = #tpu.dot_dimension_numbers<[1], [0], [0], [1], [0, 0, 1, 1], [], []>} : vector<256x128xbf16>, vector<128x128xbf16>, vector<256x128xf32> -> vector<256x128xf32>
    %24 = arith.addf %18, %23 : vector<256x128xf32>
    %c1_27 = arith.constant 1 : index
    %c0_28 = arith.constant 0 : index
    %c0_29 = arith.constant 0 : index
    %25 = vector.load %arg9[%c1_27, %c0_28, %c0_29] : memref<18x18x128xf32, #tpu.memory_space<vmem>>, vector<16x16x128xf32>
    %26 = vector.shape_cast %25 : vector<16x16x128xf32> to vector<256x128xf32>
    %27 = arith.truncf %26 : vector<256x128xf32> to vector<256x128xbf16>
    %c384 = arith.constant 384 : index
    %c0_30 = arith.constant 0 : index
    %28 = vector.load %arg2[%c384, %c0_30] : memref<1152x128xbf16, #tpu.memory_space<vmem>>, vector<128x128xbf16>
    %cst_31 = arith.constant dense<0.000000e+00> : vector<256x128xf32>
    %29 = tpu.matmul %27, %28, %cst_31 {dimension_numbers = #tpu.dot_dimension_numbers<[1], [0], [0], [1], [0, 0, 1, 1], [], []>} : vector<256x128xbf16>, vector<128x128xbf16>, vector<256x128xf32> -> vector<256x128xf32>
    %30 = arith.addf %24, %29 : vector<256x128xf32>
    %c1_32 = arith.constant 1 : index
    %c1_33 = arith.constant 1 : index
    %c0_34 = arith.constant 0 : index
    %31 = vector.load %arg9[%c1_32, %c1_33, %c0_34] : memref<18x18x128xf32, #tpu.memory_space<vmem>>, vector<16x16x128xf32>
    %32 = vector.shape_cast %31 : vector<16x16x128xf32> to vector<256x128xf32>
    %33 = arith.truncf %32 : vector<256x128xf32> to vector<256x128xbf16>
    %c512 = arith.constant 512 : index
    %c0_35 = arith.constant 0 : index
    %34 = vector.load %arg2[%c512, %c0_35] : memref<1152x128xbf16, #tpu.memory_space<vmem>>, vector<128x128xbf16>
    %cst_36 = arith.constant dense<0.000000e+00> : vector<256x128xf32>
    %35 = tpu.matmul %33, %34, %cst_36 {dimension_numbers = #tpu.dot_dimension_numbers<[1], [0], [0], [1], [0, 0, 1, 1], [], []>} : vector<256x128xbf16>, vector<128x128xbf16>, vector<256x128xf32> -> vector<256x128xf32>
    %36 = arith.addf %30, %35 : vector<256x128xf32>
    %c1_37 = arith.constant 1 : index
    %c2_38 = arith.constant 2 : index
    %c0_39 = arith.constant 0 : index
    %37 = vector.load %arg9[%c1_37, %c2_38, %c0_39] : memref<18x18x128xf32, #tpu.memory_space<vmem>>, vector<16x16x128xf32>
    %38 = vector.shape_cast %37 : vector<16x16x128xf32> to vector<256x128xf32>
    %39 = arith.truncf %38 : vector<256x128xf32> to vector<256x128xbf16>
    %c640 = arith.constant 640 : index
    %c0_40 = arith.constant 0 : index
    %40 = vector.load %arg2[%c640, %c0_40] : memref<1152x128xbf16, #tpu.memory_space<vmem>>, vector<128x128xbf16>
    %cst_41 = arith.constant dense<0.000000e+00> : vector<256x128xf32>
    %41 = tpu.matmul %39, %40, %cst_41 {dimension_numbers = #tpu.dot_dimension_numbers<[1], [0], [0], [1], [0, 0, 1, 1], [], []>} : vector<256x128xbf16>, vector<128x128xbf16>, vector<256x128xf32> -> vector<256x128xf32>
    %42 = arith.addf %36, %41 : vector<256x128xf32>
    %c2_42 = arith.constant 2 : index
    %c0_43 = arith.constant 0 : index
    %c0_44 = arith.constant 0 : index
    %43 = vector.load %arg9[%c2_42, %c0_43, %c0_44] : memref<18x18x128xf32, #tpu.memory_space<vmem>>, vector<16x16x128xf32>
    %44 = vector.shape_cast %43 : vector<16x16x128xf32> to vector<256x128xf32>
    %45 = arith.truncf %44 : vector<256x128xf32> to vector<256x128xbf16>
    %c768 = arith.constant 768 : index
    %c0_45 = arith.constant 0 : index
    %46 = vector.load %arg2[%c768, %c0_45] : memref<1152x128xbf16, #tpu.memory_space<vmem>>, vector<128x128xbf16>
    %cst_46 = arith.constant dense<0.000000e+00> : vector<256x128xf32>
    %47 = tpu.matmul %45, %46, %cst_46 {dimension_numbers = #tpu.dot_dimension_numbers<[1], [0], [0], [1], [0, 0, 1, 1], [], []>} : vector<256x128xbf16>, vector<128x128xbf16>, vector<256x128xf32> -> vector<256x128xf32>
    %48 = arith.addf %42, %47 : vector<256x128xf32>
    %c2_47 = arith.constant 2 : index
    %c1_48 = arith.constant 1 : index
    %c0_49 = arith.constant 0 : index
    %49 = vector.load %arg9[%c2_47, %c1_48, %c0_49] : memref<18x18x128xf32, #tpu.memory_space<vmem>>, vector<16x16x128xf32>
    %50 = vector.shape_cast %49 : vector<16x16x128xf32> to vector<256x128xf32>
    %51 = arith.truncf %50 : vector<256x128xf32> to vector<256x128xbf16>
    %c896 = arith.constant 896 : index
    %c0_50 = arith.constant 0 : index
    %52 = vector.load %arg2[%c896, %c0_50] : memref<1152x128xbf16, #tpu.memory_space<vmem>>, vector<128x128xbf16>
    %cst_51 = arith.constant dense<0.000000e+00> : vector<256x128xf32>
    %53 = tpu.matmul %51, %52, %cst_51 {dimension_numbers = #tpu.dot_dimension_numbers<[1], [0], [0], [1], [0, 0, 1, 1], [], []>} : vector<256x128xbf16>, vector<128x128xbf16>, vector<256x128xf32> -> vector<256x128xf32>
    %54 = arith.addf %48, %53 : vector<256x128xf32>
    %c2_52 = arith.constant 2 : index
    %c2_53 = arith.constant 2 : index
    %c0_54 = arith.constant 0 : index
    %55 = vector.load %arg9[%c2_52, %c2_53, %c0_54] : memref<18x18x128xf32, #tpu.memory_space<vmem>>, vector<16x16x128xf32>
    %56 = vector.shape_cast %55 : vector<16x16x128xf32> to vector<256x128xf32>
    %57 = arith.truncf %56 : vector<256x128xf32> to vector<256x128xbf16>
    %c1024 = arith.constant 1024 : index
    %c0_55 = arith.constant 0 : index
    %58 = vector.load %arg2[%c1024, %c0_55] : memref<1152x128xbf16, #tpu.memory_space<vmem>>, vector<128x128xbf16>
    %cst_56 = arith.constant dense<0.000000e+00> : vector<256x128xf32>
    %59 = tpu.matmul %57, %58, %cst_56 {dimension_numbers = #tpu.dot_dimension_numbers<[1], [0], [0], [1], [0, 0, 1, 1], [], []>} : vector<256x128xbf16>, vector<128x128xbf16>, vector<256x128xf32> -> vector<256x128xf32>
    %60 = arith.addf %54, %59 : vector<256x128xf32>
    %c0_57 = arith.constant 0 : index
    %c0_58 = arith.constant 0 : index
    %61 = vector.load %arg3[%c0_57, %c0_58] : memref<1x128xf32, #tpu.memory_space<vmem>>, vector<1x128xf32>
    %62 = vector.broadcast %61 : vector<1x128xf32> to vector<256x128xf32>
    %63 = arith.mulf %60, %62 : vector<256x128xf32>
    %c0_59 = arith.constant 0 : index
    %c0_60 = arith.constant 0 : index
    %64 = vector.load %arg4[%c0_59, %c0_60] : memref<1x128xf32, #tpu.memory_space<vmem>>, vector<1x128xf32>
    %65 = vector.broadcast %64 : vector<1x128xf32> to vector<256x128xf32>
    %66 = arith.addf %63, %65 : vector<256x128xf32>
    %cst_61 = arith.constant 0.000000e+00 : f32
    %67 = vector.broadcast %cst_61 : f32 to vector<256x128xf32>
    %68 = arith.maximumf %66, %67 : vector<256x128xf32>
    %69 = vector.shape_cast %68 : vector<256x128xf32> to vector<16x16x128xf32>
    %c1_62 = arith.constant 1 : index
    %c1_63 = arith.constant 1 : index
    %c0_64 = arith.constant 0 : index
    %70 = vector.load %arg10[%c1_62, %c1_63, %c0_64] : memref<18x18x128xf32, #tpu.memory_space<vmem>>, vector<16x16x128xf32>
    tpu.vector_store %arg10[%c1_62, %c1_63, %c0_64], %69 {strides = array<i32>} : memref<18x18x128xf32, #tpu.memory_space<vmem>>, vector<16x16x128xf32>,
    %c0_65 = arith.constant 0 : index
    %c0_66 = arith.constant 0 : index
    %c0_67 = arith.constant 0 : index
    %71 = vector.load %arg10[%c0_65, %c0_66, %c0_67] : memref<18x18x128xf32, #tpu.memory_space<vmem>>, vector<16x16x128xf32>
    %72 = vector.shape_cast %71 : vector<16x16x128xf32> to vector<256x128xf32>
    %73 = arith.truncf %72 : vector<256x128xf32> to vector<256x128xbf16>
    %c0_68 = arith.constant 0 : index
    %c0_69 = arith.constant 0 : index
    %74 = vector.load %arg5[%c0_68, %c0_69] : memref<1152x128xbf16, #tpu.memory_space<vmem>>, vector<128x128xbf16>
    %cst_70 = arith.constant dense<0.000000e+00> : vector<256x128xf32>
    %75 = tpu.matmul %73, %74, %cst_70 {dimension_numbers = #tpu.dot_dimension_numbers<[1], [0], [0], [1], [0, 0, 1, 1], [], []>} : vector<256x128xbf16>, vector<128x128xbf16>, vector<256x128xf32> -> vector<256x128xf32>
    %c0_71 = arith.constant 0 : index
    %c1_72 = arith.constant 1 : index
    %c0_73 = arith.constant 0 : index
    %76 = vector.load %arg10[%c0_71, %c1_72, %c0_73] : memref<18x18x128xf32, #tpu.memory_space<vmem>>, vector<16x16x128xf32>
    %77 = vector.shape_cast %76 : vector<16x16x128xf32> to vector<256x128xf32>
    %78 = arith.truncf %77 : vector<256x128xf32> to vector<256x128xbf16>
    %c128_74 = arith.constant 128 : index
    %c0_75 = arith.constant 0 : index
    %79 = vector.load %arg5[%c128_74, %c0_75] : memref<1152x128xbf16, #tpu.memory_space<vmem>>, vector<128x128xbf16>
    %cst_76 = arith.constant dense<0.000000e+00> : vector<256x128xf32>
    %80 = tpu.matmul %78, %79, %cst_76 {dimension_numbers = #tpu.dot_dimension_numbers<[1], [0], [0], [1], [0, 0, 1, 1], [], []>} : vector<256x128xbf16>, vector<128x128xbf16>, vector<256x128xf32> -> vector<256x128xf32>
    %81 = arith.addf %75, %80 : vector<256x128xf32>
    %c0_77 = arith.constant 0 : index
    %c2_78 = arith.constant 2 : index
    %c0_79 = arith.constant 0 : index
    %82 = vector.load %arg10[%c0_77, %c2_78, %c0_79] : memref<18x18x128xf32, #tpu.memory_space<vmem>>, vector<16x16x128xf32>
    %83 = vector.shape_cast %82 : vector<16x16x128xf32> to vector<256x128xf32>
    %84 = arith.truncf %83 : vector<256x128xf32> to vector<256x128xbf16>
    %c256_80 = arith.constant 256 : index
    %c0_81 = arith.constant 0 : index
    %85 = vector.load %arg5[%c256_80, %c0_81] : memref<1152x128xbf16, #tpu.memory_space<vmem>>, vector<128x128xbf16>
    %cst_82 = arith.constant dense<0.000000e+00> : vector<256x128xf32>
    %86 = tpu.matmul %84, %85, %cst_82 {dimension_numbers = #tpu.dot_dimension_numbers<[1], [0], [0], [1], [0, 0, 1, 1], [], []>} : vector<256x128xbf16>, vector<128x128xbf16>, vector<256x128xf32> -> vector<256x128xf32>
    %87 = arith.addf %81, %86 : vector<256x128xf32>
    %c1_83 = arith.constant 1 : index
    %c0_84 = arith.constant 0 : index
    %c0_85 = arith.constant 0 : index
    %88 = vector.load %arg10[%c1_83, %c0_84, %c0_85] : memref<18x18x128xf32, #tpu.memory_space<vmem>>, vector<16x16x128xf32>
    %89 = vector.shape_cast %88 : vector<16x16x128xf32> to vector<256x128xf32>
    %90 = arith.truncf %89 : vector<256x128xf32> to vector<256x128xbf16>
    %c384_86 = arith.constant 384 : index
    %c0_87 = arith.constant 0 : index
    %91 = vector.load %arg5[%c384_86, %c0_87] : memref<1152x128xbf16, #tpu.memory_space<vmem>>, vector<128x128xbf16>
    %cst_88 = arith.constant dense<0.000000e+00> : vector<256x128xf32>
    %92 = tpu.matmul %90, %91, %cst_88 {dimension_numbers = #tpu.dot_dimension_numbers<[1], [0], [0], [1], [0, 0, 1, 1], [], []>} : vector<256x128xbf16>, vector<128x128xbf16>, vector<256x128xf32> -> vector<256x128xf32>
    %93 = arith.addf %87, %92 : vector<256x128xf32>
    %c1_89 = arith.constant 1 : index
    %c1_90 = arith.constant 1 : index
    %c0_91 = arith.constant 0 : index
    %94 = vector.load %arg10[%c1_89, %c1_90, %c0_91] : memref<18x18x128xf32, #tpu.memory_space<vmem>>, vector<16x16x128xf32>
    %95 = vector.shape_cast %94 : vector<16x16x128xf32> to vector<256x128xf32>
    %96 = arith.truncf %95 : vector<256x128xf32> to vector<256x128xbf16>
    %c512_92 = arith.constant 512 : index
    %c0_93 = arith.constant 0 : index
    %97 = vector.load %arg5[%c512_92, %c0_93] : memref<1152x128xbf16, #tpu.memory_space<vmem>>, vector<128x128xbf16>
    %cst_94 = arith.constant dense<0.000000e+00> : vector<256x128xf32>
    %98 = tpu.matmul %96, %97, %cst_94 {dimension_numbers = #tpu.dot_dimension_numbers<[1], [0], [0], [1], [0, 0, 1, 1], [], []>} : vector<256x128xbf16>, vector<128x128xbf16>, vector<256x128xf32> -> vector<256x128xf32>
    %99 = arith.addf %93, %98 : vector<256x128xf32>
    %c1_95 = arith.constant 1 : index
    %c2_96 = arith.constant 2 : index
    %c0_97 = arith.constant 0 : index
    %100 = vector.load %arg10[%c1_95, %c2_96, %c0_97] : memref<18x18x128xf32, #tpu.memory_space<vmem>>, vector<16x16x128xf32>
    %101 = vector.shape_cast %100 : vector<16x16x128xf32> to vector<256x128xf32>
    %102 = arith.truncf %101 : vector<256x128xf32> to vector<256x128xbf16>
    %c640_98 = arith.constant 640 : index
    %c0_99 = arith.constant 0 : index
    %103 = vector.load %arg5[%c640_98, %c0_99] : memref<1152x128xbf16, #tpu.memory_space<vmem>>, vector<128x128xbf16>
    %cst_100 = arith.constant dense<0.000000e+00> : vector<256x128xf32>
    %104 = tpu.matmul %102, %103, %cst_100 {dimension_numbers = #tpu.dot_dimension_numbers<[1], [0], [0], [1], [0, 0, 1, 1], [], []>} : vector<256x128xbf16>, vector<128x128xbf16>, vector<256x128xf32> -> vector<256x128xf32>
    %105 = arith.addf %99, %104 : vector<256x128xf32>
    %c2_101 = arith.constant 2 : index
    %c0_102 = arith.constant 0 : index
    %c0_103 = arith.constant 0 : index
    %106 = vector.load %arg10[%c2_101, %c0_102, %c0_103] : memref<18x18x128xf32, #tpu.memory_space<vmem>>, vector<16x16x128xf32>
    %107 = vector.shape_cast %106 : vector<16x16x128xf32> to vector<256x128xf32>
    %108 = arith.truncf %107 : vector<256x128xf32> to vector<256x128xbf16>
    %c768_104 = arith.constant 768 : index
    %c0_105 = arith.constant 0 : index
    %109 = vector.load %arg5[%c768_104, %c0_105] : memref<1152x128xbf16, #tpu.memory_space<vmem>>, vector<128x128xbf16>
    %cst_106 = arith.constant dense<0.000000e+00> : vector<256x128xf32>
    %110 = tpu.matmul %108, %109, %cst_106 {dimension_numbers = #tpu.dot_dimension_numbers<[1], [0], [0], [1], [0, 0, 1, 1], [], []>} : vector<256x128xbf16>, vector<128x128xbf16>, vector<256x128xf32> -> vector<256x128xf32>
    %111 = arith.addf %105, %110 : vector<256x128xf32>
    %c2_107 = arith.constant 2 : index
    %c1_108 = arith.constant 1 : index
    %c0_109 = arith.constant 0 : index
    %112 = vector.load %arg10[%c2_107, %c1_108, %c0_109] : memref<18x18x128xf32, #tpu.memory_space<vmem>>, vector<16x16x128xf32>
    %113 = vector.shape_cast %112 : vector<16x16x128xf32> to vector<256x128xf32>
    %114 = arith.truncf %113 : vector<256x128xf32> to vector<256x128xbf16>
    %c896_110 = arith.constant 896 : index
    %c0_111 = arith.constant 0 : index
    %115 = vector.load %arg5[%c896_110, %c0_111] : memref<1152x128xbf16, #tpu.memory_space<vmem>>, vector<128x128xbf16>
    %cst_112 = arith.constant dense<0.000000e+00> : vector<256x128xf32>
    %116 = tpu.matmul %114, %115, %cst_112 {dimension_numbers = #tpu.dot_dimension_numbers<[1], [0], [0], [1], [0, 0, 1, 1], [], []>} : vector<256x128xbf16>, vector<128x128xbf16>, vector<256x128xf32> -> vector<256x128xf32>
    %117 = arith.addf %111, %116 : vector<256x128xf32>
    %c2_113 = arith.constant 2 : index
    %c2_114 = arith.constant 2 : index
    %c0_115 = arith.constant 0 : index
    %118 = vector.load %arg10[%c2_113, %c2_114, %c0_115] : memref<18x18x128xf32, #tpu.memory_space<vmem>>, vector<16x16x128xf32>
    %119 = vector.shape_cast %118 : vector<16x16x128xf32> to vector<256x128xf32>
    %120 = arith.truncf %119 : vector<256x128xf32> to vector<256x128xbf16>
    %c1024_116 = arith.constant 1024 : index
    %c0_117 = arith.constant 0 : index
    %121 = vector.load %arg5[%c1024_116, %c0_117] : memref<1152x128xbf16, #tpu.memory_space<vmem>>, vector<128x128xbf16>
    %cst_118 = arith.constant dense<0.000000e+00> : vector<256x128xf32>
    %122 = tpu.matmul %120, %121, %cst_118 {dimension_numbers = #tpu.dot_dimension_numbers<[1], [0], [0], [1], [0, 0, 1, 1], [], []>} : vector<256x128xbf16>, vector<128x128xbf16>, vector<256x128xf32> -> vector<256x128xf32>
    %123 = arith.addf %117, %122 : vector<256x128xf32>
    %c0_119 = arith.constant 0 : index
    %c0_120 = arith.constant 0 : index
    %124 = vector.load %arg6[%c0_119, %c0_120] : memref<1x128xf32, #tpu.memory_space<vmem>>, vector<1x128xf32>
    %125 = vector.broadcast %124 : vector<1x128xf32> to vector<256x128xf32>
    %126 = arith.mulf %123, %125 : vector<256x128xf32>
    %c0_121 = arith.constant 0 : index
    %c0_122 = arith.constant 0 : index
    %127 = vector.load %arg7[%c0_121, %c0_122] : memref<1x128xf32, #tpu.memory_space<vmem>>, vector<1x128xf32>
    %128 = vector.broadcast %127 : vector<1x128xf32> to vector<256x128xf32>
    %129 = arith.addf %126, %128 : vector<256x128xf32>
    %cst_123 = arith.constant 0.000000e+00 : f32
    %130 = vector.broadcast %cst_123 : f32 to vector<256x128xf32>
    %131 = arith.maximumf %129, %130 : vector<256x128xf32>
    %132 = vector.shape_cast %131 : vector<256x128xf32> to vector<16x16x128xf32>
    %c0_124 = arith.constant 0 : index
    %c0_125 = arith.constant 0 : index
    %c0_126 = arith.constant 0 : index
    %c0_127 = arith.constant 0 : index
    %133 = vector.load %arg8[%c0_124, %c0_125, %c0_126, %c0_127] : memref<1x16x16x128xf32, #tpu.memory_space<vmem>>, vector<1x16x16x128xf32>
    %134 = vector.shape_cast %133 : vector<1x16x16x128xf32> to vector<16x16x128xf32>
    %135 = vector.shape_cast %132 : vector<16x16x128xf32> to vector<1x16x16x128xf32>
    tpu.vector_store %arg8[%c0_124, %c0_125, %c0_126, %c0_127], %135 {strides = array<i32>} : memref<1x16x16x128xf32, #tpu.memory_space<vmem>>, vector<1x16x16x128xf32>,
    return
  }
  func.func @transform_0(%arg0: i32) -> (i32, i32, i32, i32) {
    %c0_i32 = arith.constant 0 : i32
    %c0_i32_0 = arith.constant 0 : i32
    %c0_i32_1 = arith.constant 0 : i32
    %c0_i32_2 = arith.constant 0 : i32
    return %arg0, %c0_i32, %c0_i32_0, %c0_i32_1 : i32, i32, i32, i32
  }
  func.func @transform_1(%arg0: i32) -> (i32, i32) {
    %c0_i32 = arith.constant 0 : i32
    %c0_i32_0 = arith.constant 0 : i32
    %c0_i32_1 = arith.constant 0 : i32
    return %c0_i32, %c0_i32_0 : i32, i32
  }
  func.func @transform_2(%arg0: i32) -> (i32, i32) {
    %c0_i32 = arith.constant 0 : i32
    %c0_i32_0 = arith.constant 0 : i32
    %c0_i32_1 = arith.constant 0 : i32
    return %c0_i32, %c0_i32_0 : i32, i32
  }
  func.func @transform_3(%arg0: i32) -> (i32, i32) {
    %c0_i32 = arith.constant 0 : i32
    %c0_i32_0 = arith.constant 0 : i32
    %c0_i32_1 = arith.constant 0 : i32
    return %c0_i32, %c0_i32_0 : i32, i32
  }
  func.func @transform_4(%arg0: i32) -> (i32, i32) {
    %c0_i32 = arith.constant 0 : i32
    %c0_i32_0 = arith.constant 0 : i32
    %c0_i32_1 = arith.constant 0 : i32
    return %c0_i32, %c0_i32_0 : i32, i32
  }
  func.func @transform_5(%arg0: i32) -> (i32, i32) {
    %c0_i32 = arith.constant 0 : i32
    %c0_i32_0 = arith.constant 0 : i32
    %c0_i32_1 = arith.constant 0 : i32
    return %c0_i32, %c0_i32_0 : i32, i32
  }
  func.func @transform_6(%arg0: i32) -> (i32, i32) {
    %c0_i32 = arith.constant 0 : i32
    %c0_i32_0 = arith.constant 0 : i32
    %c0_i32_1 = arith.constant 0 : i32
    return %c0_i32, %c0_i32_0 : i32, i32
  }
  func.func @transform_7(%arg0: i32) -> (i32, i32, i32, i32) {
    %c0_i32 = arith.constant 0 : i32
    %c0_i32_0 = arith.constant 0 : i32
    %c0_i32_1 = arith.constant 0 : i32
    %c0_i32_2 = arith.constant 0 : i32
    return %arg0, %c0_i32, %c0_i32_0, %c0_i32_1 : i32, i32, i32, i32
  }
}

</mosaic_0001>

<llo_original>
// kernel: tpu_custom_call.1
$region0: #{tpu_custom_call.1}
  #allocation0 [shape = 'u32[]', space=smem, size = 0x4, offset = 0x4, fixed_abs, tag = 'smem constant byte address 0x4 - core index']
  #allocation1 [shape = 'u32[144,128]{1,0:T(1,128)}', space=vmem, size = 0x12000, scoped, tag = 'internal scratch']
  #allocation2 [shape = 'f32[18,18,128]{2,1,0:T(8,128)}', space=vmem, size = 0x36000, scoped, tag = 'scratch operand']
  #allocation3 [shape = 'f32[18,18,128]{2,1,0:T(8,128)}', space=vmem, size = 0x36000, scoped, tag = 'scratch operand']
  %s0 = inlined_call_operand.hbm [shape: bf16[2,16,16,128], index: 0, kind: input, shape index: {}]
  %s1 = inlined_call_operand.hbm [shape: bf16[1152,128], index: 1, kind: input, shape index: {}]
  %s2 = inlined_call_operand.vmem [shape: f32[1,128], index: 2, kind: input, shape index: {}]
  %s3 = inlined_call_operand.vmem [shape: f32[1,128], index: 3, kind: input, shape index: {}]
  %s4 = inlined_call_operand.hbm [shape: bf16[1152,128], index: 4, kind: input, shape index: {}]
  %s5 = inlined_call_operand.vmem [shape: f32[1,128], index: 5, kind: input, shape index: {}]
  %s6 = inlined_call_operand.vmem [shape: f32[1,128], index: 6, kind: input, shape index: {}]
  %s7 = inlined_call_operand.hbm [shape: f32[2,16,16,128], index: 7, kind: output, shape index: {}]
  %s8 = sld [smem:[#allocation0]]
  $region73: #{tpu_custom_call.1} parent=0
    _
  %s10 = ssub.s32 1, %s8
  %s11 = scalar_select 0, %s10, %s8
  $region1: #{tpu_custom_call.1} parent=0
    #allocation4 [shape = 'u8[131072]{0}', space=vmem, size = 0x20000, scoped, tag = 'input window, operand 0']
    #allocation5 [shape = 's32[2]{0}', space=sflag, size = 0x8, scoped, tag = 'scoped memory for tpu_custom_call.1']
    #allocation6 [shape = 's32[2]{0}', space=sflag, size = 0x8, scoped, tag = 'scoped memory for tpu_custom_call.1']
    #allocation7 [shape = 'u8[294912]{0}', space=vmem, size = 0x48000, scoped, tag = 'input window, operand 1, single buffered']
    #allocation8 [shape = 's32[1]{0}', space=sflag, size = 0x4, scoped, tag = 'scoped memory for tpu_custom_call.1']
    #allocation9 [shape = 'u8[294912]{0}', space=vmem, size = 0x48000, scoped, tag = 'input window, operand 4, single buffered']
    #allocation10 [shape = 'u8[262144]{0}', space=vmem, size = 0x40000, scoped, tag = 'output window, operand 0']
    %12 = vsyncpa [#allocation5], 0
    %s13 = scalar_lea.sflag [#allocation5], 1
    %14 = vsyncpa %s13, 0
    %15 = vsyncpa [#allocation8], 0
    %16 = vsyncpa [#allocation6], 0
    %s17 = scalar_lea.sflag [#allocation6], 1
    %18 = vsyncpa %s17, 0
    loop: start=0, step=1, limit=4
    $region2: #{tpu_custom_call.1} parent=1 // loop_pre_header
      _
    $region3: #{tpu_custom_call.1} parent=1 // loop_header
      %s20 = sphi 0, %s24
      %p21 = scmp.ge.s32.totalorder %s20, 4
      %s30 = sphi 0, %s32
      %s33 = sphi 0, %s30
      %s34 = sphi 0, %s33
      %s50 = sphi 0, %s34
      %s54 = sphi 0, %s54
      %s56 = sphi 0, %s54
      %s57 = sphi 0, %s56
      %s71 = sphi 0, %s57
      %s75 = sphi 0, %s75
      %s77 = sphi 0, %s75
      %s78 = sphi 0, %s77
      %s92 = sphi 0, %s78
      %s96 = sphi 0, %s96
      %s98 = sphi 0, %s96
      %s99 = sphi 0, %s98
      %s113 = sphi 0, %s99
      %s117 = sphi 0, %s117
      %s119 = sphi 0, %s117
      %s120 = sphi 0, %s119
      %s134 = sphi 0, %s120
      %s138 = sphi 0, %s138
      %s140 = sphi 0, %s138
      %s141 = sphi 0, %s140
      %s155 = sphi 0, %s141
      %s159 = sphi 0, %s159
      %s161 = sphi 0, %s159
      %s162 = sphi 0, %s161
      %s176 = sphi 0, %s162
      %s182 = sphi 0, %s184
      %s185 = sphi 0, %s182
      %s186 = sphi 0, %s185
      %s202 = sphi 0, %s186
    $region4: #{tpu_custom_call.1} parent=1 // loop_header_branch
      %23 = sbr.rel (%p21) target = $region8
    $region5: #{tpu_custom_call.1} parent=1 // loop_body
      %s25 = ssub.s32 %s20, 1
      %s26 = ssub.s32 %s20, 2
      %s27 = sadd.s32 %s20, 1
      %s28 = ssub.s32 %s20, %s27
      %p29 = scmp.eq.s32.totalorder %s28, 0
      %s31 = sadd.s32 %s30, 1
      %s32 = scalar_select %p29, %s30, %s31
      %p35 = pneg %p29
      %p36 = scmp.eq.s32.totalorder %s20, 1
      %p37 = por %p35, %p36
      %p38 = scmp.ne.s32.totalorder %s30, %s33
      %p39 = scmp.eq.s32.totalorder %s20, 0
      %p40 = por %p38, %p39
      %p41 = scmp.ne.s32.totalorder %s30, %s33
      %p42 = scmp.eq.s32.totalorder %s25, 1
      %p43 = por %p41, %p42
      %p44 = scmp.ne.s32.totalorder %s33, %s34
      %p45 = scmp.eq.s32.totalorder %s25, 0
      %p46 = por %p44, %p45
      %p47 = scmp.ne.s32.totalorder %s33, %s34
      %p48 = scmp.eq.s32.totalorder %s26, 1
      %p49 = por %p47, %p48
      %p51 = scmp.ne.s32.totalorder %s34, %s50
      %p52 = scmp.eq.s32.totalorder %s26, 0
      %p53 = por %p51, %p52
      %s55 = sadd.s32 %s54, 1
      %p58 = scmp.eq.s32.totalorder %s20, 1
      %p59 = scmp.ne.s32.totalorder %s54, %s56
      %p60 = scmp.eq.s32.totalorder %s20, 0
      %p61 = por %p59, %p60
      %p62 = scmp.ne.s32.totalorder %s54, %s56
      %p63 = scmp.eq.s32.totalorder %s25, 1
      %p64 = por %p62, %p63
      %p65 = scmp.ne.s32.totalorder %s56, %s57
      %p66 = scmp.eq.s32.totalorder %s25, 0
      %p67 = por %p65, %p66
      %p68 = scmp.ne.s32.totalorder %s56, %s57
      %p69 = scmp.eq.s32.totalorder %s26, 1
      %p70 = por %p68, %p69
      %p72 = scmp.ne.s32.totalorder %s57, %s71
      %p73 = scmp.eq.s32.totalorder %s26, 0
      %p74 = por %p72, %p73
      %s76 = sadd.s32 %s75, 1
      %p79 = scmp.eq.s32.totalorder %s20, 1
      %p80 = scmp.ne.s32.totalorder %s75, %s77
      %p81 = scmp.eq.s32.totalorder %s20, 0
      %p82 = por %p80, %p81
      %p83 = scmp.ne.s32.totalorder %s75, %s77
      %p84 = scmp.eq.s32.totalorder %s25, 1
      %p85 = por %p83, %p84
      %p86 = scmp.ne.s32.totalorder %s77, %s78
      %p87 = scmp.eq.s32.totalorder %s25, 0
      %p88 = por %p86, %p87
      %p89 = scmp.ne.s32.totalorder %s77, %s78
      %p90 = scmp.eq.s32.totalorder %s26, 1
      %p91 = por %p89, %p90
      %p93 = scmp.ne.s32.totalorder %s78, %s92
      %p94 = scmp.eq.s32.totalorder %s26, 0
      %p95 = por %p93, %p94
      %s97 = sadd.s32 %s96, 1
      %p100 = scmp.eq.s32.totalorder %s20, 1
      %p101 = scmp.ne.s32.totalorder %s96, %s98
      %p102 = scmp.eq.s32.totalorder %s20, 0
      %p103 = por %p101, %p102
      %p104 = scmp.ne.s32.totalorder %s96, %s98
      %p105 = scmp.eq.s32.totalorder %s25, 1
      %p106 = por %p104, %p105
      %p107 = scmp.ne.s32.totalorder %s98, %s99
      %p108 = scmp.eq.s32.totalorder %s25, 0
      %p109 = por %p107, %p108
      %p110 = scmp.ne.s32.totalorder %s98, %s99
      %p111 = scmp.eq.s32.totalorder %s26, 1
      %p112 = por %p110, %p111
      %p114 = scmp.ne.s32.totalorder %s99, %s113
      %p115 = scmp.eq.s32.totalorder %s26, 0
      %p116 = por %p114, %p115
      %s118 = sadd.s32 %s117, 1
      %p121 = scmp.eq.s32.totalorder %s20, 1
      %p122 = scmp.ne.s32.totalorder %s117, %s119
      %p123 = scmp.eq.s32.totalorder %s20, 0
      %p124 = por %p122, %p123
      %p125 = scmp.ne.s32.totalorder %s117, %s119
      %p126 = scmp.eq.s32.totalorder %s25, 1
      %p127 = por %p125, %p126
      %p128 = scmp.ne.s32.totalorder %s119, %s120
      %p129 = scmp.eq.s32.totalorder %s25, 0
      %p130 = por %p128, %p129
      %p131 = scmp.ne.s32.totalorder %s119, %s120
      %p132 = scmp.eq.s32.totalorder %s26, 1
      %p133 = por %p131, %p132
      %p135 = scmp.ne.s32.totalorder %s120, %s134
      %p136 = scmp.eq.s32.totalorder %s26, 0
      %p137 = por %p135, %p136
      %s139 = sadd.s32 %s138, 1
      %p142 = scmp.eq.s32.totalorder %s20, 1
      %p143 = scmp.ne.s32.totalorder %s138, %s140
      %p144 = scmp.eq.s32.totalorder %s20, 0
      %p145 = por %p143, %p144
      %p146 = scmp.ne.s32.totalorder %s138, %s140
      %p147 = scmp.eq.s32.totalorder %s25, 1
      %p148 = por %p146, %p147
      %p149 = scmp.ne.s32.totalorder %s140, %s141
      %p150 = scmp.eq.s32.totalorder %s25, 0
      %p151 = por %p149, %p150
      %p152 = scmp.ne.s32.totalorder %s140, %s141
      %p153 = scmp.eq.s32.totalorder %s26, 1
      %p154 = por %p152, %p153
      %p156 = scmp.ne.s32.totalorder %s141, %s155
      %p157 = scmp.eq.s32.totalorder %s26, 0
      %p158 = por %p156, %p157
      %s160 = sadd.s32 %s159, 1
      %p163 = scmp.eq.s32.totalorder %s20, 1
      %p164 = scmp.ne.s32.totalorder %s159, %s161
      %p165 = scmp.eq.s32.totalorder %s20, 0
      %p166 = por %p164, %p165
      %p167 = scmp.ne.s32.totalorder %s159, %s161
      %p168 = scmp.eq.s32.totalorder %s25, 1
      %p169 = por %p167, %p168
      %p170 = scmp.ne.s32.totalorder %s161, %s162
      %p171 = scmp.eq.s32.totalorder %s25, 0
      %p172 = por %p170, %p171
      %p173 = scmp.ne.s32.totalorder %s161, %s162
      %p174 = scmp.eq.s32.totalorder %s26, 1
      %p175 = por %p173, %p174
      %p177 = scmp.ne.s32.totalorder %s162, %s176
      %p178 = scmp.eq.s32.totalorder %s26, 0
      %p179 = por %p177, %p178
      %s180 = ssub.s32 %s20, %s27
      %p181 = scmp.eq.s32.totalorder %s180, 0
      %s183 = sadd.s32 %s182, 1
      %s184 = scalar_select %p181, %s182, %s183
      %p187 = pneg %p181
      %p188 = scmp.eq.s32.totalorder %s20, 1
      %p189 = por %p187, %p188
      %p190 = scmp.ne.s32.totalorder %s182, %s185
      %p191 = scmp.eq.s32.totalorder %s20, 0
      %p192 = por %p190, %p191
      %p193 = scmp.ne.s32.totalorder %s182, %s185
      %p194 = scmp.eq.s32.totalorder %s25, 1
      %p195 = por %p193, %p194
      %p196 = scmp.ne.s32.totalorder %s185, %s186
      %p197 = scmp.eq.s32.totalorder %s25, 0
      %p198 = por %p196, %p197
      %p199 = scmp.ne.s32.totalorder %s185, %s186
      %p200 = scmp.eq.s32.totalorder %s26, 1
      %p201 = por %p199, %p200
      %p203 = scmp.ne.s32.totalorder %s186, %s202
      %p204 = scmp.eq.s32.totalorder %s26, 0
      %p205 = por %p203, %p204
      %p206 = scmp.le.s32.totalorder 1, %s20
      %p207 = scmp.lt.s32.totalorder %s20, 3
      %p208 = pnand %p206, %p207
      %p209 = pneg %p208
      // Predicated region
      $region9: #{tpu_custom_call.1} parent=5 // pred_check
        _
      $region10: #{tpu_custom_call.1} parent=5 // pred_check_branch
        %211 = sbr.rel (%p208) target = $region12
      $region11: #{tpu_custom_call.1} parent=5 // pred_region
        %s212 = ssub.s32 %s20, 1
        // Predicated region
        $region13: #{tpu_custom_call.1} parent=11 // pred_check
          %p213 = pneg %p67
        $region14: #{tpu_custom_call.1} parent=11 // pred_check_branch
          %215 = sbr.rel (%p213) target = $region16
        $region15: #{tpu_custom_call.1} parent=11 // pred_region
          %s217 = ssub.s32 9216, 9216
          %218 = vsyncadd [#allocation8], %s217
          %s219 = sshll.u32 [#allocation7], 4
          %s220 = int_to_ptr.vmem [resolvable:$true] %s219
          %225 = dma.hbm_to_vmem [thread:$0]  %s1, 9216, %s220, [#allocation8], 64, 64, 4
        $region16: #{tpu_custom_call.1} parent=11 // pred_fallthru
          _
        // Predicated region
        $region17: #{tpu_custom_call.1} parent=11 // pred_check
          %p226 = pneg %p88
        $region18: #{tpu_custom_call.1} parent=11 // pred_check_branch
          %228 = sbr.rel (%p226) target = $region20
        $region19: #{tpu_custom_call.1} parent=11 // pred_region
          _
        $region20: #{tpu_custom_call.1} parent=11 // pred_fallthru
          _
        // Predicated region
        $region21: #{tpu_custom_call.1} parent=11 // pred_check
          %p229 = pneg %p109
        $region22: #{tpu_custom_call.1} parent=11 // pred_check_branch
          %231 = sbr.rel (%p229) target = $region24
        $region23: #{tpu_custom_call.1} parent=11 // pred_region
          _
        $region24: #{tpu_custom_call.1} parent=11 // pred_fallthru
          _
        // Predicated region
        $region25: #{tpu_custom_call.1} parent=11 // pred_check
          %p232 = pneg %p130
        $region26: #{tpu_custom_call.1} parent=11 // pred_check_branch
          %234 = sbr.rel (%p232) target = $region28
        $region27: #{tpu_custom_call.1} parent=11 // pred_region
          %s236 = ssub.s32 9216, 9216
          %237 = vsyncadd [#allocation8], %s236
          %s238 = sshll.u32 [#allocation9], 4
          %s239 = int_to_ptr.vmem [resolvable:$true] %s238
          %244 = dma.hbm_to_vmem [thread:$0]  %s4, 9216, %s239, [#allocation8], 64, 64, 4
        $region28: #{tpu_custom_call.1} parent=11 // pred_fallthru
          _
        // Predicated region
        $region29: #{tpu_custom_call.1} parent=11 // pred_check
          %p245 = pneg %p151
        $region30: #{tpu_custom_call.1} parent=11 // pred_check_branch
          %247 = sbr.rel (%p245) target = $region32
        $region31: #{tpu_custom_call.1} parent=11 // pred_region
          _
        $region32: #{tpu_custom_call.1} parent=11 // pred_fallthru
          _
        // Predicated region
        $region33: #{tpu_custom_call.1} parent=11 // pred_check
          %p248 = pneg %p172
        $region34: #{tpu_custom_call.1} parent=11 // pred_check_branch
          %250 = sbr.rel (%p248) target = $region36
        $region35: #{tpu_custom_call.1} parent=11 // pred_region
          _
        $region36: #{tpu_custom_call.1} parent=11 // pred_fallthru
          _
      $region12: #{tpu_custom_call.1} parent=5 // pred_fallthru
        _
      %p251 = scmp.lt.s32.totalorder %s20, 2
      // Predicated region
      $region37: #{tpu_custom_call.1} parent=5 // pred_check
        %p252 = pneg %p251
      $region38: #{tpu_custom_call.1} parent=5 // pred_check_branch
        %254 = sbr.rel (%p252) target = $region40
      $region39: #{tpu_custom_call.1} parent=5 // pred_region
        // Predicated region
        $region41: #{tpu_custom_call.1} parent=39 // pred_check
          %p255 = pneg %p40
        $region42: #{tpu_custom_call.1} parent=39 // pred_check_branch
          %257 = sbr.rel (%p255) target = $region44
        $region43: #{tpu_custom_call.1} parent=39 // pred_region
          %s258 = sand.u32 %s30, 1
          %s259 = scalar_lea.sflag [#allocation5], %s258
          %s260 = sand.u32 %s30, 1
          %s261 = smul.addr %s260, 128
          %s262 = scalar_lea.vmem [#allocation4], %s261
          %s264 = ssub.s32 2048, 2048
          %265 = vsyncadd %s259, %s264
          %s266 = smul.addr %s20, 32
          %s267 = smul.addr %s266, 64
          %s268 = scalar_lea.hbm %s0, %s267
          %s269 = sshll.u32 %s262, 4
          %s270 = int_to_ptr.vmem [resolvable:$true] %s269
          %275 = dma.hbm_to_vmem [thread:$0]  %s268, 2048, %s270, %s259, 64, 64, 4
        $region44: #{tpu_custom_call.1} parent=39 // pred_fallthru
          _
      $region40: #{tpu_custom_call.1} parent=5 // pred_fallthru
        _
      %p276 = scmp.le.s32.totalorder 1, %s20
      %p277 = scmp.lt.s32.totalorder %s20, 3
      %p278 = pnand %p276, %p277
      %p279 = pneg %p278
      // Predicated region
      $region45: #{tpu_custom_call.1} parent=5 // pred_check
        _
      $region46: #{tpu_custom_call.1} parent=5 // pred_check_branch
        %281 = sbr.rel (%p278) target = $region48
      $region47: #{tpu_custom_call.1} parent=5 // pred_region
        %s282 = ssub.s32 %s20, 1
        %s283 = sand.u32 %s33, 1
        %s284 = scalar_lea.sflag [#allocation5], %s283
        %s285 = sand.u32 %s33, 1
        %s286 = smul.addr %s285, 128
        %s287 = scalar_lea.vmem [#allocation4], %s286
        // Predicated region
        $region49: #{tpu_custom_call.1} parent=47 // pred_check
          %p288 = pneg %p46
        $region50: #{tpu_custom_call.1} parent=47 // pred_check_branch
          %290 = sbr.rel (%p288) target = $region52
        $region51: #{tpu_custom_call.1} parent=47 // pred_region
          %291 = dma.done %s284, 2048
        $region52: #{tpu_custom_call.1} parent=47 // pred_fallthru
          _
        // Predicated region
        $region53: #{tpu_custom_call.1} parent=47 // pred_check
          %p292 = pneg %p67
        $region54: #{tpu_custom_call.1} parent=47 // pred_check_branch
          %294 = sbr.rel (%p292) target = $region56
        $region55: #{tpu_custom_call.1} parent=47 // pred_region
          %295 = dma.done [#allocation8], 9216
        $region56: #{tpu_custom_call.1} parent=47 // pred_fallthru
          _
        // Predicated region
        $region57: #{tpu_custom_call.1} parent=47 // pred_check
          %p296 = pneg %p130
        $region58: #{tpu_custom_call.1} parent=47 // pred_check_branch
          %298 = sbr.rel (%p296) target = $region60
        $region59: #{tpu_custom_call.1} parent=47 // pred_region
          %299 = dma.done [#allocation8], 9216
        $region60: #{tpu_custom_call.1} parent=47 // pred_fallthru
          _
        %s300 = sand.u32 %s33, 1
        %s301 = scalar_lea.sflag [#allocation5], %s300
        %s302 = sand.u32 %s33, 1
        %s303 = smul.addr %s302, 128
        %s304 = scalar_lea.vmem [#allocation4], %s303
        %p305 = pneg %p46
        %p306 = pneg %p43
        %p307 = pneg %p67
        %p308 = pneg %p64
        %p309 = pneg %p88
        %p310 = pneg %p85
        %p311 = pneg %p109
        %p312 = pneg %p106
        %p313 = pneg %p130
        %p314 = pneg %p127
        %p315 = pneg %p151
        %p316 = pneg %p148
        %p317 = pneg %p172
        %p318 = pneg %p169
        %p319 = pneg %p198
        %p320 = pneg %p195
        %s321 = sand.u32 %s185, 1
        %s322 = scalar_lea.sflag [#allocation6], %s321
        %s323 = sand.u32 %s185, 1
        %s324 = smul.addr %s323, 256
        %s325 = scalar_lea.vmem [#allocation10], %s324
        %327 = vst [vmem:[#allocation2] sm:$0xff] 0.0
        %328 = vst [vmem:[#allocation2 + $0x8] sm:$0xff] 0.0
        %329 = vst [vmem:[#allocation2 + $0x10] sm:$0x3] 0.0
        %330 = vst [vmem:[#allocation2 + $0x18] sm:$0xff] 0.0
        %331 = vst [vmem:[#allocation2 + $0x20] sm:$0xff] 0.0
        %332 = vst [vmem:[#allocation2 + $0x28] sm:$0x3] 0.0
        %333 = vst [vmem:[#allocation2 + $0x30] sm:$0xff] 0.0
        %334 = vst [vmem:[#allocation2 + $0x38] sm:$0xff] 0.0
        %335 = vst [vmem:[#allocation2 + $0x40] sm:$0x3] 0.0
        %336 = vst [vmem:[#allocation2 + $0x48] sm:$0xff] 0.0
        %337 = vst [vmem:[#allocation2 + $0x50] sm:$0xff] 0.0
        %338 = vst [vmem:[#allocation2 + $0x58] sm:$0x3] 0.0
        %339 = vst [vmem:[#allocation2 + $0x60] sm:$0xff] 0.0
        %340 = vst [vmem:[#allocation2 + $0x68] sm:$0xff] 0.0
        %341 = vst [vmem:[#allocation2 + $0x70] sm:$0x3] 0.0
        %342 = vst [vmem:[#allocation2 + $0x78] sm:$0xff] 0.0
        %343 = vst [vmem:[#allocation2 + $0x80] sm:$0xff] 0.0
        %344 = vst [vmem:[#allocation2 + $0x88] sm:$0x3] 0.0
        %345 = vst [vmem:[#allocation2 + $0x90] sm:$0xff] 0.0
        %346 = vst [vmem:[#allocation2 + $0x98] sm:$0xff] 0.0
        %347 = vst [vmem:[#allocation2 + $0xa0] sm:$0x3] 0.0
        %348 = vst [vmem:[#allocation2 + $0xa8] sm:$0xff] 0.0
        %349 = vst [vmem:[#allocation2 + $0xb0] sm:$0xff] 0.0
        %350 = vst [vmem:[#allocation2 + $0xb8] sm:$0x3] 0.0
        %351 = vst [vmem:[#allocation2 + $0xc0] sm:$0xff] 0.0
        %352 = vst [vmem:[#allocation2 + $0xc8] sm:$0xff] 0.0
        %353 = vst [vmem:[#allocation2 + $0xd0] sm:$0x3] 0.0
        %354 = vst [vmem:[#allocation2 + $0xd8] sm:$0xff] 0.0
        %355 = vst [vmem:[#allocation2 + $0xe0] sm:$0xff] 0.0
        %356 = vst [vmem:[#allocation2 + $0xe8] sm:$0x3] 0.0
        %357 = vst [vmem:[#allocation2 + $0xf0] sm:$0xff] 0.0
        %358 = vst [vmem:[#allocation2 + $0xf8] sm:$0xff] 0.0
        %359 = vst [vmem:[#allocation2 + $0x100] sm:$0x3] 0.0
        %360 = vst [vmem:[#allocation2 + $0x108] sm:$0xff] 0.0
        %361 = vst [vmem:[#allocation2 + $0x110] sm:$0xff] 0.0
        %362 = vst [vmem:[#allocation2 + $0x118] sm:$0x3] 0.0
        %363 = vst [vmem:[#allocation2 + $0x120] sm:$0xff] 0.0
        %364 = vst [vmem:[#allocation2 + $0x128] sm:$0xff] 0.0
        %365 = vst [vmem:[#allocation2 + $0x130] sm:$0x3] 0.0
        %366 = vst [vmem:[#allocation2 + $0x138] sm:$0xff] 0.0
        %367 = vst [vmem:[#allocation2 + $0x140] sm:$0xff] 0.0
        %368 = vst [vmem:[#allocation2 + $0x148] sm:$0x3] 0.0
        %369 = vst [vmem:[#allocation2 + $0x150] sm:$0xff] 0.0
        %370 = vst [vmem:[#allocation2 + $0x158] sm:$0xff] 0.0
        %371 = vst [vmem:[#allocation2 + $0x160] sm:$0x3] 0.0
        %372 = vst [vmem:[#allocation2 + $0x168] sm:$0xff] 0.0
        %373 = vst [vmem:[#allocation2 + $0x170] sm:$0xff] 0.0
        %374 = vst [vmem:[#allocation2 + $0x178] sm:$0x3] 0.0
        %375 = vst [vmem:[#allocation2 + $0x180] sm:$0xff] 0.0
        %376 = vst [vmem:[#allocation2 + $0x188] sm:$0xff] 0.0
        %377 = vst [vmem:[#allocation2 + $0x190] sm:$0x3] 0.0
        %378 = vst [vmem:[#allocation2 + $0x198] sm:$0xff] 0.0
        %379 = vst [vmem:[#allocation2 + $0x1a0] sm:$0xff] 0.0
        %380 = vst [vmem:[#allocation2 + $0x1a8] sm:$0x3] 0.0
        %v381 = vld [vmem:[%s287] sm:$0xf]
        %v382 = vld [vmem:[%s287 + $0x4] sm:$0xf]
        %v383 = vld [vmem:[%s287 + $0x8] sm:$0xf]
        %v384 = vld [vmem:[%s287 + $0xc] sm:$0xf]
        %v385 = vld [vmem:[%s287 + $0x10] sm:$0xf]
        %v386 = vld [vmem:[%s287 + $0x14] sm:$0xf]
        %v387 = vld [vmem:[%s287 + $0x18] sm:$0xf]
        %v388 = vld [vmem:[%s287 + $0x1c] sm:$0xf]
        %v389 = vld [vmem:[%s287 + $0x20] sm:$0xf]
        %v390 = vld [vmem:[%s287 + $0x24] sm:$0xf]
        %v391 = vld [vmem:[%s287 + $0x28] sm:$0xf]
        %v392 = vld [vmem:[%s287 + $0x2c] sm:$0xf]
        %v393 = vld [vmem:[%s287 + $0x30] sm:$0xf]
        %v394 = vld [vmem:[%s287 + $0x34] sm:$0xf]
        %v395 = vld [vmem:[%s287 + $0x38] sm:$0xf]
        %v396 = vld [vmem:[%s287 + $0x3c] sm:$0xf]
        %v397 = vld [vmem:[%s287 + $0x40] sm:$0xf]
        %v398 = vld [vmem:[%s287 + $0x44] sm:$0xf]
        %v399 = vld [vmem:[%s287 + $0x48] sm:$0xf]
        %v400 = vld [vmem:[%s287 + $0x4c] sm:$0xf]
        %v401 = vld [vmem:[%s287 + $0x50] sm:$0xf]
        %v402 = vld [vmem:[%s287 + $0x54] sm:$0xf]
        %v403 = vld [vmem:[%s287 + $0x58] sm:$0xf]
        %v404 = vld [vmem:[%s287 + $0x5c] sm:$0xf]
        %v405 = vld [vmem:[%s287 + $0x60] sm:$0xf]
        %v406 = vld [vmem:[%s287 + $0x64] sm:$0xf]
        %v407 = vld [vmem:[%s287 + $0x68] sm:$0xf]
        %v408 = vld [vmem:[%s287 + $0x6c] sm:$0xf]
        %v409 = vld [vmem:[%s287 + $0x70] sm:$0xf]
        %v410 = vld [vmem:[%s287 + $0x74] sm:$0xf]
        %v411 = vld [vmem:[%s287 + $0x78] sm:$0xf]
        %v412 = vld [vmem:[%s287 + $0x7c] sm:$0xf]
        %v413 = vunpack.c.l.bf16 %v381
        %v414 = vunpack.c.l.bf16 %v382
        %v415 = vunpack.c.l.bf16 %v383
        %v416 = vunpack.c.l.bf16 %v384
        %v417 = vunpack.c.l.bf16 %v385
        %v418 = vunpack.c.l.bf16 %v386
        %v419 = vunpack.c.l.bf16 %v387
        %v420 = vunpack.c.l.bf16 %v388
        %v421 = vunpack.c.l.bf16 %v389
        %v422 = vunpack.c.l.bf16 %v390
        %v423 = vunpack.c.l.bf16 %v391
        %v424 = vunpack.c.l.bf16 %v392
        %v425 = vunpack.c.l.bf16 %v393
        %v426 = vunpack.c.l.bf16 %v394
        %v427 = vunpack.c.l.bf16 %v395
        %v428 = vunpack.c.l.bf16 %v396
        %v429 = vunpack.c.l.bf16 %v397
        %v430 = vunpack.c.l.bf16 %v398
        %v431 = vunpack.c.l.bf16 %v399
        %v432 = vunpack.c.l.bf16 %v400
        %v433 = vunpack.c.l.bf16 %v401
        %v434 = vunpack.c.l.bf16 %v402
        %v435 = vunpack.c.l.bf16 %v403
        %v436 = vunpack.c.l.bf16 %v404
        %v437 = vunpack.c.l.bf16 %v405
        %v438 = vunpack.c.l.bf16 %v406
        %v439 = vunpack.c.l.bf16 %v407
        %v440 = vunpack.c.l.bf16 %v408
        %v441 = vunpack.c.l.bf16 %v409
        %v442 = vunpack.c.l.bf16 %v410
        %v443 = vunpack.c.l.bf16 %v411
        %v444 = vunpack.c.l.bf16 %v412
        %s445 = scalar_lea.vmem [#allocation2], 24
        %446 = vst [vmem:[%s445 + $0x1] sm:$0xff] %v413
        %447 = vst [vmem:[%s445 + $0x9] sm:$0xff] %v414
        %448 = vst [vmem:[%s445 + $0x19] sm:$0xff] %v415
        %449 = vst [vmem:[%s445 + $0x21] sm:$0xff] %v416
        %450 = vst [vmem:[%s445 + $0x31] sm:$0xff] %v417
        %451 = vst [vmem:[%s445 + $0x39] sm:$0xff] %v418
        %452 = vst [vmem:[%s445 + $0x49] sm:$0xff] %v419
        %453 = vst [vmem:[%s445 + $0x51] sm:$0xff] %v420
        %454 = vst [vmem:[%s445 + $0x61] sm:$0xff] %v421
        %455 = vst [vmem:[%s445 + $0x69] sm:$0xff] %v422
        %456 = vst [vmem:[%s445 + $0x79] sm:$0xff] %v423
        %457 = vst [vmem:[%s445 + $0x81] sm:$0xff] %v424
        %458 = vst [vmem:[%s445 + $0x91] sm:$0xff] %v425
        %459 = vst [vmem:[%s445 + $0x99] sm:$0xff] %v426
        %460 = vst [vmem:[%s445 + $0xa9] sm:$0xff] %v427
        %461 = vst [vmem:[%s445 + $0xb1] sm:$0xff] %v428
        %462 = vst [vmem:[%s445 + $0xc1] sm:$0xff] %v429
        %463 = vst [vmem:[%s445 + $0xc9] sm:$0xff] %v430
        %464 = vst [vmem:[%s445 + $0xd9] sm:$0xff] %v431
        %465 = vst [vmem:[%s445 + $0xe1] sm:$0xff] %v432
        %466 = vst [vmem:[%s445 + $0xf1] sm:$0xff] %v433
        %467 = vst [vmem:[%s445 + $0xf9] sm:$0xff] %v434
        %468 = vst [vmem:[%s445 + $0x109] sm:$0xff] %v435
        %469 = vst [vmem:[%s445 + $0x111] sm:$0xff] %v436
        %470 = vst [vmem:[%s445 + $0x121] sm:$0xff] %v437
        %471 = vst [vmem:[%s445 + $0x129] sm:$0xff] %v438
        %472 = vst [vmem:[%s445 + $0x139] sm:$0xff] %v439
        %473 = vst [vmem:[%s445 + $0x141] sm:$0xff] %v440
        %474 = vst [vmem:[%s445 + $0x151] sm:$0xff] %v441
        %475 = vst [vmem:[%s445 + $0x159] sm:$0xff] %v442
        %476 = vst [vmem:[%s445 + $0x169] sm:$0xff] %v443
        %477 = vst [vmem:[%s445 + $0x171] sm:$0xff] %v444
        %478 = vst [vmem:[#allocation3] sm:$0xff] 0.0
        %479 = vst [vmem:[#allocation3 + $0x8] sm:$0xff] 0.0
        %480 = vst [vmem:[#allocation3 + $0x10] sm:$0x3] 0.0
        %481 = vst [vmem:[#allocation3 + $0x18] sm:$0xff] 0.0
        %482 = vst [vmem:[#allocation3 + $0x20] sm:$0xff] 0.0
        %483 = vst [vmem:[#allocation3 + $0x28] sm:$0x3] 0.0
        %484 = vst [vmem:[#allocation3 + $0x30] sm:$0xff] 0.0
        %485 = vst [vmem:[#allocation3 + $0x38] sm:$0xff] 0.0
        %486 = vst [vmem:[#allocation3 + $0x40] sm:$0x3] 0.0
        %487 = vst [vmem:[#allocation3 + $0x48] sm:$0xff] 0.0
        %488 = vst [vmem:[#allocation3 + $0x50] sm:$0xff] 0.0
        %489 = vst [vmem:[#allocation3 + $0x58] sm:$0x3] 0.0
        %490 = vst [vmem:[#allocation3 + $0x60] sm:$0xff] 0.0
        %491 = vst [vmem:[#allocation3 + $0x68] sm:$0xff] 0.0
        %492 = vst [vmem:[#allocation3 + $0x70] sm:$0x3] 0.0
        %493 = vst [vmem:[#allocation3 + $0x78] sm:$0xff] 0.0
        %494 = vst [vmem:[#allocation3 + $0x80] sm:$0xff] 0.0
        %495 = vst [vmem:[#allocation3 + $0x88] sm:$0x3] 0.0
        %496 = vst [vmem:[#allocation3 + $0x90] sm:$0xff] 0.0
        %497 = vst [vmem:[#allocation3 + $0x98] sm:$0xff] 0.0
        %498 = vst [vmem:[#allocation3 + $0xa0] sm:$0x3] 0.0
        %499 = vst [vmem:[#allocation3 + $0xa8] sm:$0xff] 0.0
        %500 = vst [vmem:[#allocation3 + $0xb0] sm:$0xff] 0.0
        %501 = vst [vmem:[#allocation3 + $0xb8] sm:$0x3] 0.0
        %502 = vst [vmem:[#allocation3 + $0xc0] sm:$0xff] 0.0
        %503 = vst [vmem:[#allocation3 + $0xc8] sm:$0xff] 0.0
        %504 = vst [vmem:[#allocation3 + $0xd0] sm:$0x3] 0.0
        %505 = vst [vmem:[#allocation3 + $0xd8] sm:$0xff] 0.0
        %506 = vst [vmem:[#allocation3 + $0xe0] sm:$0xff] 0.0
        %507 = vst [vmem:[#allocation3 + $0xe8] sm:$0x3] 0.0
        %508 = vst [vmem:[#allocation3 + $0xf0] sm:$0xff] 0.0
        %509 = vst [vmem:[#allocation3 + $0xf8] sm:$0xff] 0.0
        %510 = vst [vmem:[#allocation3 + $0x100] sm:$0x3] 0.0
        %511 = vst [vmem:[#allocation3 + $0x108] sm:$0xff] 0.0
        %512 = vst [vmem:[#allocation3 + $0x110] sm:$0xff] 0.0
        %513 = vst [vmem:[#allocation3 + $0x118] sm:$0x3] 0.0
        %514 = vst [vmem:[#allocation3 + $0x120] sm:$0xff] 0.0
        %515 = vst [vmem:[#allocation3 + $0x128] sm:$0xff] 0.0
        %516 = vst [vmem:[#allocation3 + $0x130] sm:$0x3] 0.0
        %517 = vst [vmem:[#allocation3 + $0x138] sm:$0xff] 0.0
        %518 = vst [vmem:[#allocation3 + $0x140] sm:$0xff] 0.0
        %519 = vst [vmem:[#allocation3 + $0x148] sm:$0x3] 0.0
        %520 = vst [vmem:[#allocation3 + $0x150] sm:$0xff] 0.0
        %521 = vst [vmem:[#allocation3 + $0x158] sm:$0xff] 0.0
        %522 = vst [vmem:[#allocation3 + $0x160] sm:$0x3] 0.0
        %523 = vst [vmem:[#allocation3 + $0x168] sm:$0xff] 0.0
        %524 = vst [vmem:[#allocation3 + $0x170] sm:$0xff] 0.0
        %525 = vst [vmem:[#allocation3 + $0x178] sm:$0x3] 0.0
        %526 = vst [vmem:[#allocation3 + $0x180] sm:$0xff] 0.0
        %527 = vst [vmem:[#allocation3 + $0x188] sm:$0xff] 0.0
        %528 = vst [vmem:[#allocation3 + $0x190] sm:$0x3] 0.0
        %529 = vst [vmem:[#allocation3 + $0x198] sm:$0xff] 0.0
        %530 = vst [vmem:[#allocation3 + $0x1a0] sm:$0xff] 0.0
        %531 = vst [vmem:[#allocation3 + $0x1a8] sm:$0x3] 0.0
        %v532 = vld [vmem:[#allocation2] sm:$0xff]
        %v533 = vld [vmem:[#allocation2 + $0x8] sm:$0xff]
        %v534 = vld [vmem:[#allocation2 + $0x18] sm:$0xff]
        %v535 = vld [vmem:[#allocation2 + $0x20] sm:$0xff]
        %v536 = vld [vmem:[#allocation2 + $0x30] sm:$0xff]
        %v537 = vld [vmem:[#allocation2 + $0x38] sm:$0xff]
        %v538 = vld [vmem:[#allocation2 + $0x48] sm:$0xff]
        %v539 = vld [vmem:[#allocation2 + $0x50] sm:$0xff]
        %v540 = vld [vmem:[#allocation2 + $0x60] sm:$0xff]
        %v541 = vld [vmem:[#allocation2 + $0x68] sm:$0xff]
        %v542 = vld [vmem:[#allocation2 + $0x78] sm:$0xff]
        %v543 = vld [vmem:[#allocation2 + $0x80] sm:$0xff]
        %v544 = vld [vmem:[#allocation2 + $0x90] sm:$0xff]
        %v545 = vld [vmem:[#allocation2 + $0x98] sm:$0xff]
        %v546 = vld [vmem:[#allocation2 + $0xa8] sm:$0xff]
        %v547 = vld [vmem:[#allocation2 + $0xb0] sm:$0xff]
        %v548 = vld [vmem:[#allocation2 + $0xc0] sm:$0xff]
        %v549 = vld [vmem:[#allocation2 + $0xc8] sm:$0xff]
        %v550 = vld [vmem:[#allocation2 + $0xd8] sm:$0xff]
        %v551 = vld [vmem:[#allocation2 + $0xe0] sm:$0xff]
        %v552 = vld [vmem:[#allocation2 + $0xf0] sm:$0xff]
        %v553 = vld [vmem:[#allocation2 + $0xf8] sm:$0xff]
        %v554 = vld [vmem:[#allocation2 + $0x108] sm:$0xff]
        %v555 = vld [vmem:[#allocation2 + $0x110] sm:$0xff]
        %v556 = vld [vmem:[#allocation2 + $0x120] sm:$0xff]
        %v557 = vld [vmem:[#allocation2 + $0x128] sm:$0xff]
        %v558 = vld [vmem:[#allocation2 + $0x138] sm:$0xff]
        %v559 = vld [vmem:[#allocation2 + $0x140] sm:$0xff]
        %v560 = vld [vmem:[#allocation2 + $0x150] sm:$0xff]
        %v561 = vld [vmem:[#allocation2 + $0x158] sm:$0xff]
        %v562 = vld [vmem:[#allocation2 + $0x168] sm:$0xff]
        %v563 = vld [vmem:[#allocation2 + $0x170] sm:$0xff]
        %v564 = vpack.c.bf16 %v533, %v532
        %v565 = vpack.c.bf16 %v535, %v534
        %v566 = vpack.c.bf16 %v537, %v536
        %v567 = vpack.c.bf16 %v539, %v538
        %v568 = vpack.c.bf16 %v541, %v540
        %v569 = vpack.c.bf16 %v543, %v542
        %v570 = vpack.c.bf16 %v545, %v544
        %v571 = vpack.c.bf16 %v547, %v546
        %v572 = vpack.c.bf16 %v549, %v548
        %v573 = vpack.c.bf16 %v551, %v550
        %v574 = vpack.c.bf16 %v553, %v552
        %v575 = vpack.c.bf16 %v555, %v554
        %v576 = vpack.c.bf16 %v557, %v556
        %v577 = vpack.c.bf16 %v559, %v558
        %v578 = vpack.c.bf16 %v561, %v560
        %v579 = vpack.c.bf16 %v563, %v562
        %v580 = vld [vmem:[#allocation7] sm:$0xf]
        %v581 = vld [vmem:[#allocation7 + $0x4] sm:$0xf]
        %v582 = vld [vmem:[#allocation7 + $0x8] sm:$0xf]
        %v583 = vld [vmem:[#allocation7 + $0xc] sm:$0xf]
        %v584 = vld [vmem:[#allocation7 + $0x10] sm:$0xf]
        %v585 = vld [vmem:[#allocation7 + $0x14] sm:$0xf]
        %v586 = vld [vmem:[#allocation7 + $0x18] sm:$0xf]
        %v587 = vld [vmem:[#allocation7 + $0x1c] sm:$0xf]
        %v588 = vld [vmem:[#allocation7 + $0x20] sm:$0xf]
        %v589 = vld [vmem:[#allocation7 + $0x24] sm:$0xf]
        %v590 = vld [vmem:[#allocation7 + $0x28] sm:$0xf]
        %v591 = vld [vmem:[#allocation7 + $0x2c] sm:$0xf]
        %v592 = vld [vmem:[#allocation7 + $0x30] sm:$0xf]
        %v593 = vld [vmem:[#allocation7 + $0x34] sm:$0xf]
        %v594 = vld [vmem:[#allocation7 + $0x38] sm:$0xf]
        %v595 = vld [vmem:[#allocation7 + $0x3c] sm:$0xf]
        %v596 = vld [vmem:[#allocation2 + $0x1] sm:$0xff]
        %v597 = vld [vmem:[#allocation2 + $0x9] sm:$0xff]
        %v598 = vld [vmem:[#allocation2 + $0x19] sm:$0xff]
        %v599 = vld [vmem:[#allocation2 + $0x21] sm:$0xff]
        %v600 = vld [vmem:[#allocation2 + $0x31] sm:$0xff]
        %v601 = vld [vmem:[#allocation2 + $0x39] sm:$0xff]
        %v602 = vld [vmem:[#allocation2 + $0x49] sm:$0xff]
        %v603 = vld [vmem:[#allocation2 + $0x51] sm:$0xff]
        %v604 = vld [vmem:[#allocation2 + $0x61] sm:$0xff]
        %v605 = vld [vmem:[#allocation2 + $0x69] sm:$0xff]
        %v606 = vld [vmem:[#allocation2 + $0x79] sm:$0xff]
        %v607 = vld [vmem:[#allocation2 + $0x81] sm:$0xff]
        %v608 = vld [vmem:[#allocation2 + $0x91] sm:$0xff]
        %v609 = vld [vmem:[#allocation2 + $0x99] sm:$0xff]
        %v610 = vld [vmem:[#allocation2 + $0xa9] sm:$0xff]
        %v611 = vld [vmem:[#allocation2 + $0xb1] sm:$0xff]
        %v612 = vld [vmem:[#allocation2 + $0xc1] sm:$0xff]
        %v613 = vld [vmem:[#allocation2 + $0xc9] sm:$0xff]
        %v614 = vld [vmem:[#allocation2 + $0xd9] sm:$0xff]
        %v615 = vld [vmem:[#allocation2 + $0xe1] sm:$0xff]
        %v616 = vld [vmem:[#allocation2 + $0xf1] sm:$0xff]
        %v617 = vld [vmem:[#allocation2 + $0xf9] sm:$0xff]
        %v618 = vld [vmem:[#allocation2 + $0x109] sm:$0xff]
        %v619 = vld [vmem:[#allocation2 + $0x111] sm:$0xff]
        %v620 = vld [vmem:[#allocation2 + $0x121] sm:$0xff]
        %v621 = vld [vmem:[#allocation2 + $0x129] sm:$0xff]
        %v622 = vld [vmem:[#allocation2 + $0x139] sm:$0xff]
        %v623 = vld [vmem:[#allocation2 + $0x141] sm:$0xff]
        %v624 = vld [vmem:[#allocation2 + $0x151] sm:$0xff]
        %v625 = vld [vmem:[#allocation2 + $0x159] sm:$0xff]
        %v626 = vld [vmem:[#allocation2 + $0x169] sm:$0xff]
        %v627 = vld [vmem:[#allocation2 + $0x171] sm:$0xff]
        %v628 = vpack.c.bf16 %v597, %v596
        %v629 = vpack.c.bf16 %v599, %v598
        %v630 = vpack.c.bf16 %v601, %v600
        %v631 = vpack.c.bf16 %v603, %v602
        %v632 = vpack.c.bf16 %v605, %v604
        %v633 = vpack.c.bf16 %v607, %v606
        %v634 = vpack.c.bf16 %v609, %v608
        %v635 = vpack.c.bf16 %v611, %v610
        %v636 = vpack.c.bf16 %v613, %v612
        %v637 = vpack.c.bf16 %v615, %v614
        %v638 = vpack.c.bf16 %v617, %v616
        %v639 = vpack.c.bf16 %v619, %v618
        %v640 = vpack.c.bf16 %v621, %v620
        %v641 = vpack.c.bf16 %v623, %v622
        %v642 = vpack.c.bf16 %v625, %v624
        %v643 = vpack.c.bf16 %v627, %v626
        %v644 = vld [vmem:[#allocation7 + $0x40] sm:$0xf]
        %v645 = vld [vmem:[#allocation7 + $0x44] sm:$0xf]
        %v646 = vld [vmem:[#allocation7 + $0x48] sm:$0xf]
        %v647 = vld [vmem:[#allocation7 + $0x4c] sm:$0xf]
        %v648 = vld [vmem:[#allocation7 + $0x50] sm:$0xf]
        %v649 = vld [vmem:[#allocation7 + $0x54] sm:$0xf]
        %v650 = vld [vmem:[#allocation7 + $0x58] sm:$0xf]
        %v651 = vld [vmem:[#allocation7 + $0x5c] sm:$0xf]
        %v652 = vld [vmem:[#allocation7 + $0x60] sm:$0xf]
        %v653 = vld [vmem:[#allocation7 + $0x64] sm:$0xf]
        %v654 = vld [vmem:[#allocation7 + $0x68] sm:$0xf]
        %v655 = vld [vmem:[#allocation7 + $0x6c] sm:$0xf]
        %v656 = vld [vmem:[#allocation7 + $0x70] sm:$0xf]
        %v657 = vld [vmem:[#allocation7 + $0x74] sm:$0xf]
        %v658 = vld [vmem:[#allocation7 + $0x78] sm:$0xf]
        %v659 = vld [vmem:[#allocation7 + $0x7c] sm:$0xf]
        %v676 = vunpack.c.l.b16 %v644
        %v677 = vunpack.c.l.b16 %v645
        %v678 = vunpack.c.l.b16 %v646
        %v679 = vunpack.c.l.b16 %v647
        %v680 = vunpack.c.l.b16 %v648
        %v681 = vunpack.c.l.b16 %v649
        %v682 = vunpack.c.l.b16 %v650
        %v683 = vunpack.c.l.b16 %v651
        %v684 = vunpack.c.l.b16 %v652
        %v685 = vunpack.c.l.b16 %v653
        %v686 = vunpack.c.l.b16 %v654
        %v687 = vunpack.c.l.b16 %v655
        %v688 = vunpack.c.l.b16 %v656
        %v689 = vunpack.c.l.b16 %v657
        %v690 = vunpack.c.l.b16 %v658
        %v691 = vunpack.c.l.b16 %v659
        %v692 = vpack.c.b16 %v677, %v676
        %v693 = vpack.c.b16 %v679, %v678
        %v694 = vpack.c.b16 %v681, %v680
        %v695 = vpack.c.b16 %v683, %v682
        %v696 = vpack.c.b16 %v685, %v684
        %v697 = vpack.c.b16 %v687, %v686
        %v698 = vpack.c.b16 %v689, %v688
        %v699 = vpack.c.b16 %v691, %v690
        %708 = vmatprep.subr.bf16.mxu0 0
        %709 = vmatpush1.bf16.msra.mxu0 %v699
        %710 = vmatprep.subr.bf16.mxu0 0
        %711 = vmatpush1.bf16.msra.mxu0 %v698
        %712 = vmatprep.subr.bf16.mxu0 0
        %713 = vmatpush1.bf16.msra.mxu0 %v697
        %714 = vmatprep.subr.bf16.mxu0 0
        %715 = vmatpush1.bf16.msra.mxu0 %v696
        %716 = vmatprep.subr.bf16.mxu0 0
        %717 = vmatpush1.bf16.msra.mxu0 %v695
        %718 = vmatprep.subr.bf16.mxu0 0
        %719 = vmatpush1.bf16.msra.mxu0 %v694
        %720 = vmatprep.subr.bf16.mxu0 0
        %721 = vmatpush1.bf16.msra.mxu0 %v693
        %722 = vmatprep.subr.bf16.mxu0 0
        %723 = vmatpush1.bf16.msra.mxu0 %v692
        %724 = vmatprep.subr.bf16.mxu0 0
        %725 = vmatpush2.bf16.msra.mxu0 0
        %726 = vmatprep.subr.bf16.mxu0 0
        %727 = vmatpush2.bf16.msra.mxu0 0
        %728 = vmatprep.subr.bf16.mxu0 0
        %729 = vmatpush2.bf16.msra.mxu0 0
        %730 = vmatprep.subr.bf16.mxu0 0
        %731 = vmatpush2.bf16.msra.mxu0 0
        %732 = vmatprep.subr.bf16.mxu0 0
        %733 = vmatpush2.bf16.msra.mxu0 0
        %734 = vmatprep.subr.bf16.mxu0 0
        %735 = vmatpush2.bf16.msra.mxu0 0
        %736 = vmatprep.subr.bf16.mxu0 0
        %737 = vmatpush2.bf16.msra.mxu0 0
        %738 = vmatprep.subr.bf16.mxu0 0
        %739 = vmatpush2.bf16.msra.mxu0 0
        %740 = vmatprep.mubr.bf16.mxu0 0
        %741 = vmatmul.mubr.bf16.gmra.mxu0 %v628
        %v742 = vpop.f32.mrf.mxu0
        %v743 = vadd.f32 0.0, %v742
        %v744 = vpop.f32.mrf.mxu0
        %v745 = vpop.f32.mrf.mxu0
        %v746 = vadd.f32 0.0, %v745
        %v747 = vpop.f32.mrf.mxu0
        %748 = vmatprep.mubr.bf16.mxu0 0
        %749 = vmatmul.mubr.bf16.gmra.mxu0 %v629
        %v750 = vpop.f32.mrf.mxu0
        %v751 = vadd.f32 0.0, %v750
        %v752 = vpop.f32.mrf.mxu0
        %v753 = vpop.f32.mrf.mxu0
        %v754 = vadd.f32 0.0, %v753
        %v755 = vpop.f32.mrf.mxu0
        %756 = vmatprep.mubr.bf16.mxu0 0
        %757 = vmatmul.mubr.bf16.gmra.mxu0 %v630
        %v758 = vpop.f32.mrf.mxu0
        %v759 = vadd.f32 0.0, %v758
        %v760 = vpop.f32.mrf.mxu0
        %v761 = vpop.f32.mrf.mxu0
        %v762 = vadd.f32 0.0, %v761
        %v763 = vpop.f32.mrf.mxu0
        %764 = vmatprep.mubr.bf16.mxu0 0
        %765 = vmatmul.mubr.bf16.gmra.mxu0 %v631
        %v766 = vpop.f32.mrf.mxu0
        %v767 = vadd.f32 0.0, %v766
        %v768 = vpop.f32.mrf.mxu0
        %v769 = vpop.f32.mrf.mxu0
        %v770 = vadd.f32 0.0, %v769
        %v771 = vpop.f32.mrf.mxu0
        %772 = vmatprep.mubr.bf16.mxu0 0
        %773 = vmatmul.mubr.bf16.gmra.mxu0 %v632
        %v774 = vpop.f32.mrf.mxu0
        %v775 = vadd.f32 0.0, %v774
        %v776 = vpop.f32.mrf.mxu0
        %v777 = vpop.f32.mrf.mxu0
        %v778 = vadd.f32 0.0, %v777
        %v779 = vpop.f32.mrf.mxu0
        %780 = vmatprep.mubr.bf16.mxu0 0
        %781 = vmatmul.mubr.bf16.gmra.mxu0 %v633
        %v782 = vpop.f32.mrf.mxu0
        %v783 = vadd.f32 0.0, %v782
        %v784 = vpop.f32.mrf.mxu0
        %v785 = vpop.f32.mrf.mxu0
        %v786 = vadd.f32 0.0, %v785
        %v787 = vpop.f32.mrf.mxu0
        %788 = vmatprep.mubr.bf16.mxu0 0
        %789 = vmatmul.mubr.bf16.gmra.mxu0 %v634
        %v790 = vpop.f32.mrf.mxu0
        %v791 = vadd.f32 0.0, %v790
        %v792 = vpop.f32.mrf.mxu0
        %v793 = vpop.f32.mrf.mxu0
        %v794 = vadd.f32 0.0, %v793
        %v795 = vpop.f32.mrf.mxu0
        %796 = vmatprep.mubr.bf16.mxu0 0
        %797 = vmatmul.mubr.bf16.gmra.mxu0 %v635
        %v798 = vpop.f32.mrf.mxu0
        %v799 = vadd.f32 0.0, %v798
        %v800 = vpop.f32.mrf.mxu0
        %v801 = vpop.f32.mrf.mxu0
        %v802 = vadd.f32 0.0, %v801
        %v803 = vpop.f32.mrf.mxu0
        %804 = vmatprep.mubr.bf16.mxu0 0
        %805 = vmatmul.mubr.bf16.gmra.mxu0 %v636
        %v806 = vpop.f32.mrf.mxu0
        %v807 = vadd.f32 0.0, %v806
        %v808 = vpop.f32.mrf.mxu0
        %v809 = vpop.f32.mrf.mxu0
        %v810 = vadd.f32 0.0, %v809
        %v811 = vpop.f32.mrf.mxu0
        %812 = vmatprep.mubr.bf16.mxu0 0
        %813 = vmatmul.mubr.bf16.gmra.mxu0 %v637
        %v814 = vpop.f32.mrf.mxu0
        %v815 = vadd.f32 0.0, %v814
        %v816 = vpop.f32.mrf.mxu0
        %v817 = vpop.f32.mrf.mxu0
        %v818 = vadd.f32 0.0, %v817
        %v819 = vpop.f32.mrf.mxu0
        %820 = vmatprep.mubr.bf16.mxu0 0
        %821 = vmatmul.mubr.bf16.gmra.mxu0 %v638
        %v822 = vpop.f32.mrf.mxu0
        %v823 = vadd.f32 0.0, %v822
        %v824 = vpop.f32.mrf.mxu0
        %v825 = vpop.f32.mrf.mxu0
        %v826 = vadd.f32 0.0, %v825
        %v827 = vpop.f32.mrf.mxu0
        %828 = vmatprep.mubr.bf16.mxu0 0
        %829 = vmatmul.mubr.bf16.gmra.mxu0 %v639
        %v830 = vpop.f32.mrf.mxu0
        %v831 = vadd.f32 0.0, %v830
        %v832 = vpop.f32.mrf.mxu0
        %v833 = vpop.f32.mrf.mxu0
        %v834 = vadd.f32 0.0, %v833
        %v835 = vpop.f32.mrf.mxu0
        %836 = vmatprep.mubr.bf16.mxu0 0
        %837 = vmatmul.mubr.bf16.gmra.mxu0 %v640
        %v838 = vpop.f32.mrf.mxu0
        %v839 = vadd.f32 0.0, %v838
        %v840 = vpop.f32.mrf.mxu0
        %v841 = vpop.f32.mrf.mxu0
        %v842 = vadd.f32 0.0, %v841
        %v843 = vpop.f32.mrf.mxu0
        %844 = vmatprep.mubr.bf16.mxu0 0
        %845 = vmatmul.mubr.bf16.gmra.mxu0 %v641
        %v846 = vpop.f32.mrf.mxu0
        %v847 = vadd.f32 0.0, %v846
        %v848 = vpop.f32.mrf.mxu0
        %v849 = vpop.f32.mrf.mxu0
        %v850 = vadd.f32 0.0, %v849
        %v851 = vpop.f32.mrf.mxu0
        %852 = vmatprep.mubr.bf16.mxu0 0
        %853 = vmatmul.mubr.bf16.gmra.mxu0 %v642
        %v854 = vpop.f32.mrf.mxu0
        %v855 = vadd.f32 0.0, %v854
        %v856 = vpop.f32.mrf.mxu0
        %v857 = vpop.f32.mrf.mxu0
        %v858 = vadd.f32 0.0, %v857
        %v859 = vpop.f32.mrf.mxu0
        %860 = vmatprep.mubr.bf16.mxu0 0
        %861 = vmatmul.mubr.bf16.gmra.mxu0 %v643
        %v862 = vpop.f32.mrf.mxu0
        %v863 = vadd.f32 0.0, %v862
        %v864 = vpop.f32.mrf.mxu0
        %v865 = vpop.f32.mrf.mxu0
        %v866 = vadd.f32 0.0, %v865
        %v867 = vpop.f32.mrf.mxu0
        %868 = vdwg.mxu0
        %v885 = vunpack.c.l.b16 %v580
        %v886 = vunpack.c.l.b16 %v581
        %v887 = vunpack.c.l.b16 %v582
        %v888 = vunpack.c.l.b16 %v583
        %v889 = vunpack.c.l.b16 %v584
        %v890 = vunpack.c.l.b16 %v585
        %v891 = vunpack.c.l.b16 %v586
        %v892 = vunpack.c.l.b16 %v587
        %v893 = vunpack.c.l.b16 %v588
        %v894 = vunpack.c.l.b16 %v589
        %v895 = vunpack.c.l.b16 %v590
        %v896 = vunpack.c.l.b16 %v591
        %v897 = vunpack.c.l.b16 %v592
        %v898 = vunpack.c.l.b16 %v593
        %v899 = vunpack.c.l.b16 %v594
        %v900 = vunpack.c.l.b16 %v595
        %v901 = vpack.c.b16 %v886, %v885
        %v902 = vpack.c.b16 %v888, %v887
        %v903 = vpack.c.b16 %v890, %v889
        %v904 = vpack.c.b16 %v892, %v891
        %v905 = vpack.c.b16 %v894, %v893
        %v906 = vpack.c.b16 %v896, %v895
        %v907 = vpack.c.b16 %v898, %v897
        %v908 = vpack.c.b16 %v900, %v899
        %917 = vmatprep.subr.bf16.mxu0 0
        %918 = vmatpush1.bf16.msra.mxu0 %v908
        %919 = vmatprep.subr.bf16.mxu0 0
        %920 = vmatpush1.bf16.msra.mxu0 %v907
        %921 = vmatprep.subr.bf16.mxu0 0
        %922 = vmatpush1.bf16.msra.mxu0 %v906
        %923 = vmatprep.subr.bf16.mxu0 0
        %924 = vmatpush1.bf16.msra.mxu0 %v905
        %925 = vmatprep.subr.bf16.mxu0 0
        %926 = vmatpush1.bf16.msra.mxu0 %v904
        %927 = vmatprep.subr.bf16.mxu0 0
        %928 = vmatpush1.bf16.msra.mxu0 %v903
        %929 = vmatprep.subr.bf16.mxu0 0
        %930 = vmatpush1.bf16.msra.mxu0 %v902
        %931 = vmatprep.subr.bf16.mxu0 0
        %932 = vmatpush1.bf16.msra.mxu0 %v901
        %933 = vmatprep.subr.bf16.mxu0 0
        %934 = vmatpush2.bf16.msra.mxu0 0
        %935 = vmatprep.subr.bf16.mxu0 0
        %936 = vmatpush2.bf16.msra.mxu0 0
        %937 = vmatprep.subr.bf16.mxu0 0
        %938 = vmatpush2.bf16.msra.mxu0 0
        %939 = vmatprep.subr.bf16.mxu0 0
        %940 = vmatpush2.bf16.msra.mxu0 0
        %941 = vmatprep.subr.bf16.mxu0 0
        %942 = vmatpush2.bf16.msra.mxu0 0
        %943 = vmatprep.subr.bf16.mxu0 0
        %944 = vmatpush2.bf16.msra.mxu0 0
        %945 = vmatprep.subr.bf16.mxu0 0
        %946 = vmatpush2.bf16.msra.mxu0 0
        %947 = vmatprep.subr.bf16.mxu0 0
        %948 = vmatpush2.bf16.msra.mxu0 0
        %949 = vmatprep.mubr.bf16.mxu0 0
        %950 = vmatmul.mubr.bf16.gmra.mxu0 %v564
        %v951 = vpop.f32.mrf.mxu0
        %v952 = vadd.f32 %v743, %v951
        %v953 = vpop.f32.mrf.mxu0
        %v954 = vpop.f32.mrf.mxu0
        %v955 = vadd.f32 %v746, %v954
        %v956 = vpop.f32.mrf.mxu0
        %957 = vmatprep.mubr.bf16.mxu0 0
        %958 = vmatmul.mubr.bf16.gmra.mxu0 %v565
        %v959 = vpop.f32.mrf.mxu0
        %v960 = vadd.f32 %v751, %v959
        %v961 = vpop.f32.mrf.mxu0
        %v962 = vpop.f32.mrf.mxu0
        %v963 = vadd.f32 %v754, %v962
        %v964 = vpop.f32.mrf.mxu0
        %965 = vmatprep.mubr.bf16.mxu0 0
        %966 = vmatmul.mubr.bf16.gmra.mxu0 %v566
        %v967 = vpop.f32.mrf.mxu0
        %v968 = vadd.f32 %v759, %v967
        %v969 = vpop.f32.mrf.mxu0
        %v970 = vpop.f32.mrf.mxu0
        %v971 = vadd.f32 %v762, %v970
        %v972 = vpop.f32.mrf.mxu0
        %973 = vmatprep.mubr.bf16.mxu0 0
        %974 = vmatmul.mubr.bf16.gmra.mxu0 %v567
        %v975 = vpop.f32.mrf.mxu0
        %v976 = vadd.f32 %v767, %v975
        %v977 = vpop.f32.mrf.mxu0
        %v978 = vpop.f32.mrf.mxu0
        %v979 = vadd.f32 %v770, %v978
        %v980 = vpop.f32.mrf.mxu0
        %981 = vmatprep.mubr.bf16.mxu0 0
        %982 = vmatmul.mubr.bf16.gmra.mxu0 %v568
        %v983 = vpop.f32.mrf.mxu0
        %v984 = vadd.f32 %v775, %v983
        %v985 = vpop.f32.mrf.mxu0
        %v986 = vpop.f32.mrf.mxu0
        %v987 = vadd.f32 %v778, %v986
        %v988 = vpop.f32.mrf.mxu0
        %989 = vmatprep.mubr.bf16.mxu0 0
        %990 = vmatmul.mubr.bf16.gmra.mxu0 %v569
        %v991 = vpop.f32.mrf.mxu0
        %v992 = vadd.f32 %v783, %v991
        %v993 = vpop.f32.mrf.mxu0
        %v994 = vpop.f32.mrf.mxu0
        %v995 = vadd.f32 %v786, %v994
        %v996 = vpop.f32.mrf.mxu0
        %997 = vmatprep.mubr.bf16.mxu0 0
        %998 = vmatmul.mubr.bf16.gmra.mxu0 %v570
        %v999 = vpop.f32.mrf.mxu0
        %v1000 = vadd.f32 %v791, %v999
        %v1001 = vpop.f32.mrf.mxu0
        %v1002 = vpop.f32.mrf.mxu0
        %v1003 = vadd.f32 %v794, %v1002
        %v1004 = vpop.f32.mrf.mxu0
        %1005 = vmatprep.mubr.bf16.mxu0 0
        %1006 = vmatmul.mubr.bf16.gmra.mxu0 %v571
        %v1007 = vpop.f32.mrf.mxu0
        %v1008 = vadd.f32 %v799, %v1007
        %v1009 = vpop.f32.mrf.mxu0
        %v1010 = vpop.f32.mrf.mxu0
        %v1011 = vadd.f32 %v802, %v1010
        %v1012 = vpop.f32.mrf.mxu0
        %1013 = vmatprep.mubr.bf16.mxu0 0
        %1014 = vmatmul.mubr.bf16.gmra.mxu0 %v572
        %v1015 = vpop.f32.mrf.mxu0
        %v1016 = vadd.f32 %v807, %v1015
        %v1017 = vpop.f32.mrf.mxu0
        %v1018 = vpop.f32.mrf.mxu0
        %v1019 = vadd.f32 %v810, %v1018
        %v1020 = vpop.f32.mrf.mxu0
        %1021 = vmatprep.mubr.bf16.mxu0 0
        %1022 = vmatmul.mubr.bf16.gmra.mxu0 %v573
        %v1023 = vpop.f32.mrf.mxu0
        %v1024 = vadd.f32 %v815, %v1023
        %v1025 = vpop.f32.mrf.mxu0
        %v1026 = vpop.f32.mrf.mxu0
        %v1027 = vadd.f32 %v818, %v1026
        %v1028 = vpop.f32.mrf.mxu0
        %1029 = vmatprep.mubr.bf16.mxu0 0
        %1030 = vmatmul.mubr.bf16.gmra.mxu0 %v574
        %v1031 = vpop.f32.mrf.mxu0
        %v1032 = vadd.f32 %v823, %v1031
        %v1033 = vpop.f32.mrf.mxu0
        %v1034 = vpop.f32.mrf.mxu0
        %v1035 = vadd.f32 %v826, %v1034
        %v1036 = vpop.f32.mrf.mxu0
        %1037 = vmatprep.mubr.bf16.mxu0 0
        %1038 = vmatmul.mubr.bf16.gmra.mxu0 %v575
        %v1039 = vpop.f32.mrf.mxu0
        %v1040 = vadd.f32 %v831, %v1039
        %v1041 = vpop.f32.mrf.mxu0
        %v1042 = vpop.f32.mrf.mxu0
        %v1043 = vadd.f32 %v834, %v1042
        %v1044 = vpop.f32.mrf.mxu0
        %1045 = vmatprep.mubr.bf16.mxu0 0
        %1046 = vmatmul.mubr.bf16.gmra.mxu0 %v576
        %v1047 = vpop.f32.mrf.mxu0
        %v1048 = vadd.f32 %v839, %v1047
        %v1049 = vpop.f32.mrf.mxu0
        %v1050 = vpop.f32.mrf.mxu0
        %v1051 = vadd.f32 %v842, %v1050
        %v1052 = vpop.f32.mrf.mxu0
        %1053 = vmatprep.mubr.bf16.mxu0 0
        %1054 = vmatmul.mubr.bf16.gmra.mxu0 %v577
        %v1055 = vpop.f32.mrf.mxu0
        %v1056 = vadd.f32 %v847, %v1055
        %v1057 = vpop.f32.mrf.mxu0
        %v1058 = vpop.f32.mrf.mxu0
        %v1059 = vadd.f32 %v850, %v1058
        %v1060 = vpop.f32.mrf.mxu0
        %1061 = vmatprep.mubr.bf16.mxu0 0
        %1062 = vmatmul.mubr.bf16.gmra.mxu0 %v578
        %v1063 = vpop.f32.mrf.mxu0
        %v1064 = vadd.f32 %v855, %v1063
        %v1065 = vpop.f32.mrf.mxu0
        %v1066 = vpop.f32.mrf.mxu0
        %v1067 = vadd.f32 %v858, %v1066
        %v1068 = vpop.f32.mrf.mxu0
        %1069 = vmatprep.mubr.bf16.mxu0 0
        %1070 = vmatmul.mubr.bf16.gmra.mxu0 %v579
        %v1071 = vpop.f32.mrf.mxu0
        %v1072 = vadd.f32 %v863, %v1071
        %v1073 = vpop.f32.mrf.mxu0
        %v1074 = vpop.f32.mrf.mxu0
        %v1075 = vadd.f32 %v866, %v1074
        %v1076 = vpop.f32.mrf.mxu0
        %1077 = vdwg.mxu0
        %v1078 = vld [vmem:[#allocation2 + $0x2] sm:$0xff]
        %v1079 = vld [vmem:[#allocation2 + $0xa] sm:$0xff]
        %v1080 = vld [vmem:[#allocation2 + $0x1a] sm:$0xff]
        %v1081 = vld [vmem:[#allocation2 + $0x22] sm:$0xff]
        %v1082 = vld [vmem:[#allocation2 + $0x32] sm:$0xff]
        %v1083 = vld [vmem:[#allocation2 + $0x3a] sm:$0xff]
        %v1084 = vld [vmem:[#allocation2 + $0x4a] sm:$0xff]
        %v1085 = vld [vmem:[#allocation2 + $0x52] sm:$0xff]
        %v1086 = vld [vmem:[#allocation2 + $0x62] sm:$0xff]
        %v1087 = vld [vmem:[#allocation2 + $0x6a] sm:$0xff]
        %v1088 = vld [vmem:[#allocation2 + $0x7a] sm:$0xff]
        %v1089 = vld [vmem:[#allocation2 + $0x82] sm:$0xff]
        %v1090 = vld [vmem:[#allocation2 + $0x92] sm:$0xff]
        %v1091 = vld [vmem:[#allocation2 + $0x9a] sm:$0xff]
        %v1092 = vld [vmem:[#allocation2 + $0xaa] sm:$0xff]
        %v1093 = vld [vmem:[#allocation2 + $0xb2] sm:$0xff]
        %v1094 = vld [vmem:[#allocation2 + $0xc2] sm:$0xff]
        %v1095 = vld [vmem:[#allocation2 + $0xca] sm:$0xff]
        %v1096 = vld [vmem:[#allocation2 + $0xda] sm:$0xff]
        %v1097 = vld [vmem:[#allocation2 + $0xe2] sm:$0xff]
        %v1098 = vld [vmem:[#allocation2 + $0xf2] sm:$0xff]
        %v1099 = vld [vmem:[#allocation2 + $0xfa] sm:$0xff]
        %v1100 = vld [vmem:[#allocation2 + $0x10a] sm:$0xff]
        %v1101 = vld [vmem:[#allocation2 + $0x112] sm:$0xff]
        %v1102 = vld [vmem:[#allocation2 + $0x122] sm:$0xff]
        %v1103 = vld [vmem:[#allocation2 + $0x12a] sm:$0xff]
        %v1104 = vld [vmem:[#allocation2 + $0x13a] sm:$0xff]
        %v1105 = vld [vmem:[#allocation2 + $0x142] sm:$0xff]
        %v1106 = vld [vmem:[#allocation2 + $0x152] sm:$0xff]
        %v1107 = vld [vmem:[#allocation2 + $0x15a] sm:$0xff]
        %v1108 = vld [vmem:[#allocation2 + $0x16a] sm:$0xff]
        %v1109 = vld [vmem:[#allocation2 + $0x172] sm:$0xff]
        %v1110 = vpack.c.bf16 %v1079, %v1078
        %v1111 = vpack.c.bf16 %v1081, %v1080
        %v1112 = vpack.c.bf16 %v1083, %v1082
        %v1113 = vpack.c.bf16 %v1085, %v1084
        %v1114 = vpack.c.bf16 %v1087, %v1086
        %v1115 = vpack.c.bf16 %v1089, %v1088
        %v1116 = vpack.c.bf16 %v1091, %v1090
        %v1117 = vpack.c.bf16 %v1093, %v1092
        %v1118 = vpack.c.bf16 %v1095, %v1094
        %v1119 = vpack.c.bf16 %v1097, %v1096
        %v1120 = vpack.c.bf16 %v1099, %v1098
        %v1121 = vpack.c.bf16 %v1101, %v1100
        %v1122 = vpack.c.bf16 %v1103, %v1102
        %v1123 = vpack.c.bf16 %v1105, %v1104
        %v1124 = vpack.c.bf16 %v1107, %v1106
        %v1125 = vpack.c.bf16 %v1109, %v1108
        %v1126 = vld [vmem:[#allocation7 + $0x80] sm:$0xf]
        %v1127 = vld [vmem:[#allocation7 + $0x84] sm:$0xf]
        %v1128 = vld [vmem:[#allocation7 + $0x88] sm:$0xf]
        %v1129 = vld [vmem:[#allocation7 + $0x8c] sm:$0xf]
        %v1130 = vld [vmem:[#allocation7 + $0x90] sm:$0xf]
        %v1131 = vld [vmem:[#allocation7 + $0x94] sm:$0xf]
        %v1132 = vld [vmem:[#allocation7 + $0x98] sm:$0xf]
        %v1133 = vld [vmem:[#allocation7 + $0x9c] sm:$0xf]
        %v1134 = vld [vmem:[#allocation7 + $0xa0] sm:$0xf]
        %v1135 = vld [vmem:[#allocation7 + $0xa4] sm:$0xf]
        %v1136 = vld [vmem:[#allocation7 + $0xa8] sm:$0xf]
        %v1137 = vld [vmem:[#allocation7 + $0xac] sm:$0xf]
        %v1138 = vld [vmem:[#allocation7 + $0xb0] sm:$0xf]
        %v1139 = vld [vmem:[#allocation7 + $0xb4] sm:$0xf]
        %v1140 = vld [vmem:[#allocation7 + $0xb8] sm:$0xf]
        %v1141 = vld [vmem:[#allocation7 + $0xbc] sm:$0xf]
        %v1158 = vunpack.c.l.b16 %v1126
        %v1159 = vunpack.c.l.b16 %v1127
        %v1160 = vunpack.c.l.b16 %v1128
        %v1161 = vunpack.c.l.b16 %v1129
        %v1162 = vunpack.c.l.b16 %v1130
        %v1163 = vunpack.c.l.b16 %v1131
        %v1164 = vunpack.c.l.b16 %v1132
        %v1165 = vunpack.c.l.b16 %v1133
        %v1166 = vunpack.c.l.b16 %v1134
        %v1167 = vunpack.c.l.b16 %v1135
        %v1168 = vunpack.c.l.b16 %v1136
        %v1169 = vunpack.c.l.b16 %v1137
        %v1170 = vunpack.c.l.b16 %v1138
        %v1171 = vunpack.c.l.b16 %v1139
        %v1172 = vunpack.c.l.b16 %v1140
        %v1173 = vunpack.c.l.b16 %v1141
        %v1174 = vpack.c.b16 %v1159, %v1158
        %v1175 = vpack.c.b16 %v1161, %v1160
        %v1176 = vpack.c.b16 %v1163, %v1162
        %v1177 = vpack.c.b16 %v1165, %v1164
        %v1178 = vpack.c.b16 %v1167, %v1166
        %v1179 = vpack.c.b16 %v1169, %v1168
        %v1180 = vpack.c.b16 %v1171, %v1170
        %v1181 = vpack.c.b16 %v1173, %v1172
        %1190 = vmatprep.subr.bf16.mxu0 0
        %1191 = vmatpush1.bf16.msra.mxu0 %v1181
        %1192 = vmatprep.subr.bf16.mxu0 0
        %1193 = vmatpush1.bf16.msra.mxu0 %v1180
        %1194 = vmatprep.subr.bf16.mxu0 0
        %1195 = vmatpush1.bf16.msra.mxu0 %v1179
        %1196 = vmatprep.subr.bf16.mxu0 0
        %1197 = vmatpush1.bf16.msra.mxu0 %v1178
        %1198 = vmatprep.subr.bf16.mxu0 0
        %1199 = vmatpush1.bf16.msra.mxu0 %v1177
        %1200 = vmatprep.subr.bf16.mxu0 0
        %1201 = vmatpush1.bf16.msra.mxu0 %v1176
        %1202 = vmatprep.subr.bf16.mxu0 0
        %1203 = vmatpush1.bf16.msra.mxu0 %v1175
        %1204 = vmatprep.subr.bf16.mxu0 0
        %1205 = vmatpush1.bf16.msra.mxu0 %v1174
        %1206 = vmatprep.subr.bf16.mxu0 0
        %1207 = vmatpush2.bf16.msra.mxu0 0
        %1208 = vmatprep.subr.bf16.mxu0 0
        %1209 = vmatpush2.bf16.msra.mxu0 0
        %1210 = vmatprep.subr.bf16.mxu0 0
        %1211 = vmatpush2.bf16.msra.mxu0 0
        %1212 = vmatprep.subr.bf16.mxu0 0
        %1213 = vmatpush2.bf16.msra.mxu0 0
        %1214 = vmatprep.subr.bf16.mxu0 0
        %1215 = vmatpush2.bf16.msra.mxu0 0
        %1216 = vmatprep.subr.bf16.mxu0 0
        %1217 = vmatpush2.bf16.msra.mxu0 0
        %1218 = vmatprep.subr.bf16.mxu0 0
        %1219 = vmatpush2.bf16.msra.mxu0 0
        %1220 = vmatprep.subr.bf16.mxu0 0
        %1221 = vmatpush2.bf16.msra.mxu0 0
        %1222 = vmatprep.mubr.bf16.mxu0 0
        %1223 = vmatmul.mubr.bf16.gmra.mxu0 %v1110
        %v1224 = vpop.f32.mrf.mxu0
        %v1225 = vadd.f32 0.0, %v1224
        %v1226 = vpop.f32.mrf.mxu0
        %v1227 = vpop.f32.mrf.mxu0
        %v1228 = vadd.f32 0.0, %v1227
        %v1229 = vpop.f32.mrf.mxu0
        %1230 = vmatprep.mubr.bf16.mxu0 0
        %1231 = vmatmul.mubr.bf16.gmra.mxu0 %v1111
        %v1232 = vpop.f32.mrf.mxu0
        %v1233 = vadd.f32 0.0, %v1232
        %v1234 = vpop.f32.mrf.mxu0
        %v1235 = vpop.f32.mrf.mxu0
        %v1236 = vadd.f32 0.0, %v1235
        %v1237 = vpop.f32.mrf.mxu0
        %1238 = vmatprep.mubr.bf16.mxu0 0
        %1239 = vmatmul.mubr.bf16.gmra.mxu0 %v1112
        %v1240 = vpop.f32.mrf.mxu0
        %v1241 = vadd.f32 0.0, %v1240
        %v1242 = vpop.f32.mrf.mxu0
        %v1243 = vpop.f32.mrf.mxu0
        %v1244 = vadd.f32 0.0, %v1243
        %v1245 = vpop.f32.mrf.mxu0
        %1246 = vmatprep.mubr.bf16.mxu0 0
        %1247 = vmatmul.mubr.bf16.gmra.mxu0 %v1113
        %v1248 = vpop.f32.mrf.mxu0
        %v1249 = vadd.f32 0.0, %v1248
        %v1250 = vpop.f32.mrf.mxu0
        %v1251 = vpop.f32.mrf.mxu0
        %v1252 = vadd.f32 0.0, %v1251
        %v1253 = vpop.f32.mrf.mxu0
        %1254 = vmatprep.mubr.bf16.mxu0 0
        %1255 = vmatmul.mubr.bf16.gmra.mxu0 %v1114
        %v1256 = vpop.f32.mrf.mxu0
        %v1257 = vadd.f32 0.0, %v1256
        %v1258 = vpop.f32.mrf.mxu0
        %v1259 = vpop.f32.mrf.mxu0
        %v1260 = vadd.f32 0.0, %v1259
        %v1261 = vpop.f32.mrf.mxu0
        %1262 = vmatprep.mubr.bf16.mxu0 0
        %1263 = vmatmul.mubr.bf16.gmra.mxu0 %v1115
        %v1264 = vpop.f32.mrf.mxu0
        %v1265 = vadd.f32 0.0, %v1264
        %v1266 = vpop.f32.mrf.mxu0
        %v1267 = vpop.f32.mrf.mxu0
        %v1268 = vadd.f32 0.0, %v1267
        %v1269 = vpop.f32.mrf.mxu0
        %1270 = vmatprep.mubr.bf16.mxu0 0
        %1271 = vmatmul.mubr.bf16.gmra.mxu0 %v1116
        %v1272 = vpop.f32.mrf.mxu0
        %v1273 = vadd.f32 0.0, %v1272
        %v1274 = vpop.f32.mrf.mxu0
        %v1275 = vpop.f32.mrf.mxu0
        %v1276 = vadd.f32 0.0, %v1275
        %v1277 = vpop.f32.mrf.mxu0
        %1278 = vmatprep.mubr.bf16.mxu0 0
        %1279 = vmatmul.mubr.bf16.gmra.mxu0 %v1117
        %v1280 = vpop.f32.mrf.mxu0
        %v1281 = vadd.f32 0.0, %v1280
        %v1282 = vpop.f32.mrf.mxu0
        %v1283 = vpop.f32.mrf.mxu0
        %v1284 = vadd.f32 0.0, %v1283
        %v1285 = vpop.f32.mrf.mxu0
        %1286 = vmatprep.mubr.bf16.mxu0 0
        %1287 = vmatmul.mubr.bf16.gmra.mxu0 %v1118
        %v1288 = vpop.f32.mrf.mxu0
        %v1289 = vadd.f32 0.0, %v1288
        %v1290 = vpop.f32.mrf.mxu0
        %v1291 = vpop.f32.mrf.mxu0
        %v1292 = vadd.f32 0.0, %v1291
        %v1293 = vpop.f32.mrf.mxu0
        %1294 = vmatprep.mubr.bf16.mxu0 0
        %1295 = vmatmul.mubr.bf16.gmra.mxu0 %v1119
        %v1296 = vpop.f32.mrf.mxu0
        %v1297 = vadd.f32 0.0, %v1296
        %v1298 = vpop.f32.mrf.mxu0
        %v1299 = vpop.f32.mrf.mxu0
        %v1300 = vadd.f32 0.0, %v1299
        %v1301 = vpop.f32.mrf.mxu0
        %1302 = vmatprep.mubr.bf16.mxu0 0
        %1303 = vmatmul.mubr.bf16.gmra.mxu0 %v1120
        %v1304 = vpop.f32.mrf.mxu0
        %v1305 = vadd.f32 0.0, %v1304
        %v1306 = vpop.f32.mrf.mxu0
        %v1307 = vpop.f32.mrf.mxu0
        %v1308 = vadd.f32 0.0, %v1307
        %v1309 = vpop.f32.mrf.mxu0
        %1310 = vmatprep.mubr.bf16.mxu0 0
        %1311 = vmatmul.mubr.bf16.gmra.mxu0 %v1121
        %v1312 = vpop.f32.mrf.mxu0
        %v1313 = vadd.f32 0.0, %v1312
        %v1314 = vpop.f32.mrf.mxu0
        %v1315 = vpop.f32.mrf.mxu0
        %v1316 = vadd.f32 0.0, %v1315
        %v1317 = vpop.f32.mrf.mxu0
        %1318 = vmatprep.mubr.bf16.mxu0 0
        %1319 = vmatmul.mubr.bf16.gmra.mxu0 %v1122
        %v1320 = vpop.f32.mrf.mxu0
        %v1321 = vadd.f32 0.0, %v1320
        %v1322 = vpop.f32.mrf.mxu0
        %v1323 = vpop.f32.mrf.mxu0
        %v1324 = vadd.f32 0.0, %v1323
        %v1325 = vpop.f32.mrf.mxu0
        %1326 = vmatprep.mubr.bf16.mxu0 0
        %1327 = vmatmul.mubr.bf16.gmra.mxu0 %v1123
        %v1328 = vpop.f32.mrf.mxu0
        %v1329 = vadd.f32 0.0, %v1328
        %v1330 = vpop.f32.mrf.mxu0
        %v1331 = vpop.f32.mrf.mxu0
        %v1332 = vadd.f32 0.0, %v1331
        %v1333 = vpop.f32.mrf.mxu0
        %1334 = vmatprep.mubr.bf16.mxu0 0
        %1335 = vmatmul.mubr.bf16.gmra.mxu0 %v1124
        %v1336 = vpop.f32.mrf.mxu0
        %v1337 = vadd.f32 0.0, %v1336
        %v1338 = vpop.f32.mrf.mxu0
        %v1339 = vpop.f32.mrf.mxu0
        %v1340 = vadd.f32 0.0, %v1339
        %v1341 = vpop.f32.mrf.mxu0
        %1342 = vmatprep.mubr.bf16.mxu0 0
        %1343 = vmatmul.mubr.bf16.gmra.mxu0 %v1125
        %v1344 = vpop.f32.mrf.mxu0
        %v1345 = vadd.f32 0.0, %v1344
        %v1346 = vpop.f32.mrf.mxu0
        %v1347 = vpop.f32.mrf.mxu0
        %v1348 = vadd.f32 0.0, %v1347
        %v1349 = vpop.f32.mrf.mxu0
        %1350 = vdwg.mxu0
        %v1351 = vadd.f32 %v952, %v1225
        %v1352 = vadd.f32 %v955, %v1228
        %v1353 = vadd.f32 %v960, %v1233
        %v1354 = vadd.f32 %v963, %v1236
        %v1355 = vadd.f32 %v968, %v1241
        %v1356 = vadd.f32 %v971, %v1244
        %v1357 = vadd.f32 %v976, %v1249
        %v1358 = vadd.f32 %v979, %v1252
        %v1359 = vadd.f32 %v984, %v1257
        %v1360 = vadd.f32 %v987, %v1260
        %v1361 = vadd.f32 %v992, %v1265
        %v1362 = vadd.f32 %v995, %v1268
        %v1363 = vadd.f32 %v1000, %v1273
        %v1364 = vadd.f32 %v1003, %v1276
        %v1365 = vadd.f32 %v1008, %v1281
        %v1366 = vadd.f32 %v1011, %v1284
        %v1367 = vadd.f32 %v1016, %v1289
        %v1368 = vadd.f32 %v1019, %v1292
        %v1369 = vadd.f32 %v1024, %v1297
        %v1370 = vadd.f32 %v1027, %v1300
        %v1371 = vadd.f32 %v1032, %v1305
        %v1372 = vadd.f32 %v1035, %v1308
        %v1373 = vadd.f32 %v1040, %v1313
        %v1374 = vadd.f32 %v1043, %v1316
        %v1375 = vadd.f32 %v1048, %v1321
        %v1376 = vadd.f32 %v1051, %v1324
        %v1377 = vadd.f32 %v1056, %v1329
        %v1378 = vadd.f32 %v1059, %v1332
        %v1379 = vadd.f32 %v1064, %v1337
        %v1380 = vadd.f32 %v1067, %v1340
        %v1381 = vadd.f32 %v1072, %v1345
        %v1382 = vadd.f32 %v1075, %v1348
        %v1383 = vld [vmem:[%s445] sm:$0xff]
        %v1384 = vld [vmem:[%s445 + $0x8] sm:$0xff]
        %v1385 = vld [vmem:[%s445 + $0x18] sm:$0xff]
        %v1386 = vld [vmem:[%s445 + $0x20] sm:$0xff]
        %v1387 = vld [vmem:[%s445 + $0x30] sm:$0xff]
        %v1388 = vld [vmem:[%s445 + $0x38] sm:$0xff]
        %v1389 = vld [vmem:[%s445 + $0x48] sm:$0xff]
        %v1390 = vld [vmem:[%s445 + $0x50] sm:$0xff]
        %v1391 = vld [vmem:[%s445 + $0x60] sm:$0xff]
        %v1392 = vld [vmem:[%s445 + $0x68] sm:$0xff]
        %v1393 = vld [vmem:[%s445 + $0x78] sm:$0xff]
        %v1394 = vld [vmem:[%s445 + $0x80] sm:$0xff]
        %v1395 = vld [vmem:[%s445 + $0x90] sm:$0xff]
        %v1396 = vld [vmem:[%s445 + $0x98] sm:$0xff]
        %v1397 = vld [vmem:[%s445 + $0xa8] sm:$0xff]
        %v1398 = vld [vmem:[%s445 + $0xb0] sm:$0xff]
        %v1399 = vld [vmem:[%s445 + $0xc0] sm:$0xff]
        %v1400 = vld [vmem:[%s445 + $0xc8] sm:$0xff]
        %v1401 = vld [vmem:[%s445 + $0xd8] sm:$0xff]
        %v1402 = vld [vmem:[%s445 + $0xe0] sm:$0xff]
        %v1403 = vld [vmem:[%s445 + $0xf0] sm:$0xff]
        %v1404 = vld [vmem:[%s445 + $0xf8] sm:$0xff]
        %v1405 = vld [vmem:[%s445 + $0x108] sm:$0xff]
        %v1406 = vld [vmem:[%s445 + $0x110] sm:$0xff]
        %v1407 = vld [vmem:[%s445 + $0x120] sm:$0xff]
        %v1408 = vld [vmem:[%s445 + $0x128] sm:$0xff]
        %v1409 = vld [vmem:[%s445 + $0x138] sm:$0xff]
        %v1410 = vld [vmem:[%s445 + $0x140] sm:$0xff]
        %v1411 = vld [vmem:[%s445 + $0x150] sm:$0xff]
        %v1412 = vld [vmem:[%s445 + $0x158] sm:$0xff]
        %v1413 = vld [vmem:[%s445 + $0x168] sm:$0xff]
        %v1414 = vld [vmem:[%s445 + $0x170] sm:$0xff]
        %v1415 = vpack.c.bf16 %v1384, %v1383
        %v1416 = vpack.c.bf16 %v1386, %v1385
        %v1417 = vpack.c.bf16 %v1388, %v1387
        %v1418 = vpack.c.bf16 %v1390, %v1389
        %v1419 = vpack.c.bf16 %v1392, %v1391
        %v1420 = vpack.c.bf16 %v1394, %v1393
        %v1421 = vpack.c.bf16 %v1396, %v1395
        %v1422 = vpack.c.bf16 %v1398, %v1397
        %v1423 = vpack.c.bf16 %v1400, %v1399
        %v1424 = vpack.c.bf16 %v1402, %v1401
        %v1425 = vpack.c.bf16 %v1404, %v1403
        %v1426 = vpack.c.bf16 %v1406, %v1405
        %v1427 = vpack.c.bf16 %v1408, %v1407
        %v1428 = vpack.c.bf16 %v1410, %v1409
        %v1429 = vpack.c.bf16 %v1412, %v1411
        %v1430 = vpack.c.bf16 %v1414, %v1413
        %v1431 = vld [vmem:[#allocation7 + $0xc0] sm:$0xf]
        %v1432 = vld [vmem:[#allocation7 + $0xc4] sm:$0xf]
        %v1433 = vld [vmem:[#allocation7 + $0xc8] sm:$0xf]
        %v1434 = vld [vmem:[#allocation7 + $0xcc] sm:$0xf]
        %v1435 = vld [vmem:[#allocation7 + $0xd0] sm:$0xf]
        %v1436 = vld [vmem:[#allocation7 + $0xd4] sm:$0xf]
        %v1437 = vld [vmem:[#allocation7 + $0xd8] sm:$0xf]
        %v1438 = vld [vmem:[#allocation7 + $0xdc] sm:$0xf]
        %v1439 = vld [vmem:[#allocation7 + $0xe0] sm:$0xf]
        %v1440 = vld [vmem:[#allocation7 + $0xe4] sm:$0xf]
        %v1441 = vld [vmem:[#allocation7 + $0xe8] sm:$0xf]
        %v1442 = vld [vmem:[#allocation7 + $0xec] sm:$0xf]
        %v1443 = vld [vmem:[#allocation7 + $0xf0] sm:$0xf]
        %v1444 = vld [vmem:[#allocation7 + $0xf4] sm:$0xf]
        %v1445 = vld [vmem:[#allocation7 + $0xf8] sm:$0xf]
        %v1446 = vld [vmem:[#allocation7 + $0xfc] sm:$0xf]
        %v1463 = vunpack.c.l.b16 %v1431
        %v1464 = vunpack.c.l.b16 %v1432
        %v1465 = vunpack.c.l.b16 %v1433
        %v1466 = vunpack.c.l.b16 %v1434
        %v1467 = vunpack.c.l.b16 %v1435
        %v1468 = vunpack.c.l.b16 %v1436
        %v1469 = vunpack.c.l.b16 %v1437
        %v1470 = vunpack.c.l.b16 %v1438
        %v1471 = vunpack.c.l.b16 %v1439
        %v1472 = vunpack.c.l.b16 %v1440
        %v1473 = vunpack.c.l.b16 %v1441
        %v1474 = vunpack.c.l.b16 %v1442
        %v1475 = vunpack.c.l.b16 %v1443
        %v1476 = vunpack.c.l.b16 %v1444
        %v1477 = vunpack.c.l.b16 %v1445
        %v1478 = vunpack.c.l.b16 %v1446
        %v1479 = vpack.c.b16 %v1464, %v1463
        %v1480 = vpack.c.b16 %v1466, %v1465
        %v1481 = vpack.c.b16 %v1468, %v1467
        %v1482 = vpack.c.b16 %v1470, %v1469
        %v1483 = vpack.c.b16 %v1472, %v1471
        %v1484 = vpack.c.b16 %v1474, %v1473
        %v1485 = vpack.c.b16 %v1476, %v1475
        %v1486 = vpack.c.b16 %v1478, %v1477
        %1495 = vmatprep.subr.bf16.mxu0 0
        %1496 = vmatpush1.bf16.msra.mxu0 %v1486
        %1497 = vmatprep.subr.bf16.mxu0 0
        %1498 = vmatpush1.bf16.msra.mxu0 %v1485
        %1499 = vmatprep.subr.bf16.mxu0 0
        %1500 = vmatpush1.bf16.msra.mxu0 %v1484
        %1501 = vmatprep.subr.bf16.mxu0 0
        %1502 = vmatpush1.bf16.msra.mxu0 %v1483
        %1503 = vmatprep.subr.bf16.mxu0 0
        %1504 = vmatpush1.bf16.msra.mxu0 %v1482
        %1505 = vmatprep.subr.bf16.mxu0 0
        %1506 = vmatpush1.bf16.msra.mxu0 %v1481
        %1507 = vmatprep.subr.bf16.mxu0 0
        %1508 = vmatpush1.bf16.msra.mxu0 %v1480
        %1509 = vmatprep.subr.bf16.mxu0 0
        %1510 = vmatpush1.bf16.msra.mxu0 %v1479
        %1511 = vmatprep.subr.bf16.mxu0 0
        %1512 = vmatpush2.bf16.msra.mxu0 0
        %1513 = vmatprep.subr.bf16.mxu0 0
        %1514 = vmatpush2.bf16.msra.mxu0 0
        %1515 = vmatprep.subr.bf16.mxu0 0
        %1516 = vmatpush2.bf16.msra.mxu0 0
        %1517 = vmatprep.subr.bf16.mxu0 0
        %1518 = vmatpush2.bf16.msra.mxu0 0
        %1519 = vmatprep.subr.bf16.mxu0 0
        %1520 = vmatpush2.bf16.msra.mxu0 0
        %1521 = vmatprep.subr.bf16.mxu0 0
        %1522 = vmatpush2.bf16.msra.mxu0 0
        %1523 = vmatprep.subr.bf16.mxu0 0
        %1524 = vmatpush2.bf16.msra.mxu0 0
        %1525 = vmatprep.subr.bf16.mxu0 0
        %1526 = vmatpush2.bf16.msra.mxu0 0
        %1527 = vmatprep.mubr.bf16.mxu0 0
        %1528 = vmatmul.mubr.bf16.gmra.mxu0 %v1415
        %v1529 = vpop.f32.mrf.mxu0
        %v1530 = vadd.f32 0.0, %v1529
        %v1531 = vpop.f32.mrf.mxu0
        %v1532 = vpop.f32.mrf.mxu0
        %v1533 = vadd.f32 0.0, %v1532
        %v1534 = vpop.f32.mrf.mxu0
        %1535 = vmatprep.mubr.bf16.mxu0 0
        %1536 = vmatmul.mubr.bf16.gmra.mxu0 %v1416
        %v1537 = vpop.f32.mrf.mxu0
        %v1538 = vadd.f32 0.0, %v1537
        %v1539 = vpop.f32.mrf.mxu0
        %v1540 = vpop.f32.mrf.mxu0
        %v1541 = vadd.f32 0.0, %v1540
        %v1542 = vpop.f32.mrf.mxu0
        %1543 = vmatprep.mubr.bf16.mxu0 0
        %1544 = vmatmul.mubr.bf16.gmra.mxu0 %v1417
        %v1545 = vpop.f32.mrf.mxu0
        %v1546 = vadd.f32 0.0, %v1545
        %v1547 = vpop.f32.mrf.mxu0
        %v1548 = vpop.f32.mrf.mxu0
        %v1549 = vadd.f32 0.0, %v1548
        %v1550 = vpop.f32.mrf.mxu0
        %1551 = vmatprep.mubr.bf16.mxu0 0
        %1552 = vmatmul.mubr.bf16.gmra.mxu0 %v1418
        %v1553 = vpop.f32.mrf.mxu0
        %v1554 = vadd.f32 0.0, %v1553
        %v1555 = vpop.f32.mrf.mxu0
        %v1556 = vpop.f32.mrf.mxu0
        %v1557 = vadd.f32 0.0, %v1556
        %v1558 = vpop.f32.mrf.mxu0
        %1559 = vmatprep.mubr.bf16.mxu0 0
        %1560 = vmatmul.mubr.bf16.gmra.mxu0 %v1419
        %v1561 = vpop.f32.mrf.mxu0
        %v1562 = vadd.f32 0.0, %v1561
        %v1563 = vpop.f32.mrf.mxu0
        %v1564 = vpop.f32.mrf.mxu0
        %v1565 = vadd.f32 0.0, %v1564
        %v1566 = vpop.f32.mrf.mxu0
        %1567 = vmatprep.mubr.bf16.mxu0 0
        %1568 = vmatmul.mubr.bf16.gmra.mxu0 %v1420
        %v1569 = vpop.f32.mrf.mxu0
        %v1570 = vadd.f32 0.0, %v1569
        %v1571 = vpop.f32.mrf.mxu0
        %v1572 = vpop.f32.mrf.mxu0
        %v1573 = vadd.f32 0.0, %v1572
        %v1574 = vpop.f32.mrf.mxu0
        %1575 = vmatprep.mubr.bf16.mxu0 0
        %1576 = vmatmul.mubr.bf16.gmra.mxu0 %v1421
        %v1577 = vpop.f32.mrf.mxu0
        %v1578 = vadd.f32 0.0, %v1577
        %v1579 = vpop.f32.mrf.mxu0
        %v1580 = vpop.f32.mrf.mxu0
        %v1581 = vadd.f32 0.0, %v1580
        %v1582 = vpop.f32.mrf.mxu0
        %1583 = vmatprep.mubr.bf16.mxu0 0
        %1584 = vmatmul.mubr.bf16.gmra.mxu0 %v1422
        %v1585 = vpop.f32.mrf.mxu0
        %v1586 = vadd.f32 0.0, %v1585
        %v1587 = vpop.f32.mrf.mxu0
        %v1588 = vpop.f32.mrf.mxu0
        %v1589 = vadd.f32 0.0, %v1588
        %v1590 = vpop.f32.mrf.mxu0
        %1591 = vmatprep.mubr.bf16.mxu0 0
        %1592 = vmatmul.mubr.bf16.gmra.mxu0 %v1423
        %v1593 = vpop.f32.mrf.mxu0
        %v1594 = vadd.f32 0.0, %v1593
        %v1595 = vpop.f32.mrf.mxu0
        %v1596 = vpop.f32.mrf.mxu0
        %v1597 = vadd.f32 0.0, %v1596
        %v1598 = vpop.f32.mrf.mxu0
        %1599 = vmatprep.mubr.bf16.mxu0 0
        %1600 = vmatmul.mubr.bf16.gmra.mxu0 %v1424
        %v1601 = vpop.f32.mrf.mxu0
        %v1602 = vadd.f32 0.0, %v1601
        %v1603 = vpop.f32.mrf.mxu0
        %v1604 = vpop.f32.mrf.mxu0
        %v1605 = vadd.f32 0.0, %v1604
        %v1606 = vpop.f32.mrf.mxu0
        %1607 = vmatprep.mubr.bf16.mxu0 0
        %1608 = vmatmul.mubr.bf16.gmra.mxu0 %v1425
        %v1609 = vpop.f32.mrf.mxu0
        %v1610 = vadd.f32 0.0, %v1609
        %v1611 = vpop.f32.mrf.mxu0
        %v1612 = vpop.f32.mrf.mxu0
        %v1613 = vadd.f32 0.0, %v1612
        %v1614 = vpop.f32.mrf.mxu0
        %1615 = vmatprep.mubr.bf16.mxu0 0
        %1616 = vmatmul.mubr.bf16.gmra.mxu0 %v1426
        %v1617 = vpop.f32.mrf.mxu0
        %v1618 = vadd.f32 0.0, %v1617
        %v1619 = vpop.f32.mrf.mxu0
        %v1620 = vpop.f32.mrf.mxu0
        %v1621 = vadd.f32 0.0, %v1620
        %v1622 = vpop.f32.mrf.mxu0
        %1623 = vmatprep.mubr.bf16.mxu0 0
        %1624 = vmatmul.mubr.bf16.gmra.mxu0 %v1427
        %v1625 = vpop.f32.mrf.mxu0
        %v1626 = vadd.f32 0.0, %v1625
        %v1627 = vpop.f32.mrf.mxu0
        %v1628 = vpop.f32.mrf.mxu0
        %v1629 = vadd.f32 0.0, %v1628
        %v1630 = vpop.f32.mrf.mxu0
        %1631 = vmatprep.mubr.bf16.mxu0 0
        %1632 = vmatmul.mubr.bf16.gmra.mxu0 %v1428
        %v1633 = vpop.f32.mrf.mxu0
        %v1634 = vadd.f32 0.0, %v1633
        %v1635 = vpop.f32.mrf.mxu0
        %v1636 = vpop.f32.mrf.mxu0
        %v1637 = vadd.f32 0.0, %v1636
        %v1638 = vpop.f32.mrf.mxu0
        %1639 = vmatprep.mubr.bf16.mxu0 0
        %1640 = vmatmul.mubr.bf16.gmra.mxu0 %v1429
        %v1641 = vpop.f32.mrf.mxu0
        %v1642 = vadd.f32 0.0, %v1641
        %v1643 = vpop.f32.mrf.mxu0
        %v1644 = vpop.f32.mrf.mxu0
        %v1645 = vadd.f32 0.0, %v1644
        %v1646 = vpop.f32.mrf.mxu0
        %1647 = vmatprep.mubr.bf16.mxu0 0
        %1648 = vmatmul.mubr.bf16.gmra.mxu0 %v1430
        %v1649 = vpop.f32.mrf.mxu0
        %v1650 = vadd.f32 0.0, %v1649
        %v1651 = vpop.f32.mrf.mxu0
        %v1652 = vpop.f32.mrf.mxu0
        %v1653 = vadd.f32 0.0, %v1652
        %v1654 = vpop.f32.mrf.mxu0
        %1655 = vdwg.mxu0
        %v1656 = vadd.f32 %v1351, %v1530
        %v1657 = vadd.f32 %v1352, %v1533
        %v1658 = vadd.f32 %v1353, %v1538
        %v1659 = vadd.f32 %v1354, %v1541
        %v1660 = vadd.f32 %v1355, %v1546
        %v1661 = vadd.f32 %v1356, %v1549
        %v1662 = vadd.f32 %v1357, %v1554
        %v1663 = vadd.f32 %v1358, %v1557
        %v1664 = vadd.f32 %v1359, %v1562
        %v1665 = vadd.f32 %v1360, %v1565
        %v1666 = vadd.f32 %v1361, %v1570
        %v1667 = vadd.f32 %v1362, %v1573
        %v1668 = vadd.f32 %v1363, %v1578
        %v1669 = vadd.f32 %v1364, %v1581
        %v1670 = vadd.f32 %v1365, %v1586
        %v1671 = vadd.f32 %v1366, %v1589
        %v1672 = vadd.f32 %v1367, %v1594
        %v1673 = vadd.f32 %v1368, %v1597
        %v1674 = vadd.f32 %v1369, %v1602
        %v1675 = vadd.f32 %v1370, %v1605
        %v1676 = vadd.f32 %v1371, %v1610
        %v1677 = vadd.f32 %v1372, %v1613
        %v1678 = vadd.f32 %v1373, %v1618
        %v1679 = vadd.f32 %v1374, %v1621
        %v1680 = vadd.f32 %v1375, %v1626
        %v1681 = vadd.f32 %v1376, %v1629
        %v1682 = vadd.f32 %v1377, %v1634
        %v1683 = vadd.f32 %v1378, %v1637
        %v1684 = vadd.f32 %v1379, %v1642
        %v1685 = vadd.f32 %v1380, %v1645
        %v1686 = vadd.f32 %v1381, %v1650
        %v1687 = vadd.f32 %v1382, %v1653
        %v1688 = vld [vmem:[%s445 + $0x1] sm:$0xff]
        %v1689 = vld [vmem:[%s445 + $0x9] sm:$0xff]
        %v1690 = vld [vmem:[%s445 + $0x19] sm:$0xff]
        %v1691 = vld [vmem:[%s445 + $0x21] sm:$0xff]
        %v1692 = vld [vmem:[%s445 + $0x31] sm:$0xff]
        %v1693 = vld [vmem:[%s445 + $0x39] sm:$0xff]
        %v1694 = vld [vmem:[%s445 + $0x49] sm:$0xff]
        %v1695 = vld [vmem:[%s445 + $0x51] sm:$0xff]
        %v1696 = vld [vmem:[%s445 + $0x61] sm:$0xff]
        %v1697 = vld [vmem:[%s445 + $0x69] sm:$0xff]
        %v1698 = vld [vmem:[%s445 + $0x79] sm:$0xff]
        %v1699 = vld [vmem:[%s445 + $0x81] sm:$0xff]
        %v1700 = vld [vmem:[%s445 + $0x91] sm:$0xff]
        %v1701 = vld [vmem:[%s445 + $0x99] sm:$0xff]
        %v1702 = vld [vmem:[%s445 + $0xa9] sm:$0xff]
        %v1703 = vld [vmem:[%s445 + $0xb1] sm:$0xff]
        %v1704 = vld [vmem:[%s445 + $0xc1] sm:$0xff]
        %v1705 = vld [vmem:[%s445 + $0xc9] sm:$0xff]
        %v1706 = vld [vmem:[%s445 + $0xd9] sm:$0xff]
        %v1707 = vld [vmem:[%s445 + $0xe1] sm:$0xff]
        %v1708 = vld [vmem:[%s445 + $0xf1] sm:$0xff]
        %v1709 = vld [vmem:[%s445 + $0xf9] sm:$0xff]
        %v1710 = vld [vmem:[%s445 + $0x109] sm:$0xff]
        %v1711 = vld [vmem:[%s445 + $0x111] sm:$0xff]
        %v1712 = vld [vmem:[%s445 + $0x121] sm:$0xff]
        %v1713 = vld [vmem:[%s445 + $0x129] sm:$0xff]
        %v1714 = vld [vmem:[%s445 + $0x139] sm:$0xff]
        %v1715 = vld [vmem:[%s445 + $0x141] sm:$0xff]
        %v1716 = vld [vmem:[%s445 + $0x151] sm:$0xff]
        %v1717 = vld [vmem:[%s445 + $0x159] sm:$0xff]
        %v1718 = vld [vmem:[%s445 + $0x169] sm:$0xff]
        %v1719 = vld [vmem:[%s445 + $0x171] sm:$0xff]
        %v1720 = vpack.c.bf16 %v1689, %v1688
        %v1721 = vpack.c.bf16 %v1691, %v1690
        %v1722 = vpack.c.bf16 %v1693, %v1692
        %v1723 = vpack.c.bf16 %v1695, %v1694
        %v1724 = vpack.c.bf16 %v1697, %v1696
        %v1725 = vpack.c.bf16 %v1699, %v1698
        %v1726 = vpack.c.bf16 %v1701, %v1700
        %v1727 = vpack.c.bf16 %v1703, %v1702
        %v1728 = vpack.c.bf16 %v1705, %v1704
        %v1729 = vpack.c.bf16 %v1707, %v1706
        %v1730 = vpack.c.bf16 %v1709, %v1708
        %v1731 = vpack.c.bf16 %v1711, %v1710
        %v1732 = vpack.c.bf16 %v1713, %v1712
        %v1733 = vpack.c.bf16 %v1715, %v1714
        %v1734 = vpack.c.bf16 %v1717, %v1716
        %v1735 = vpack.c.bf16 %v1719, %v1718
        %v1736 = vld [vmem:[#allocation7 + $0x100] sm:$0xf]
        %v1737 = vld [vmem:[#allocation7 + $0x104] sm:$0xf]
        %v1738 = vld [vmem:[#allocation7 + $0x108] sm:$0xf]
        %v1739 = vld [vmem:[#allocation7 + $0x10c] sm:$0xf]
        %v1740 = vld [vmem:[#allocation7 + $0x110] sm:$0xf]
        %v1741 = vld [vmem:[#allocation7 + $0x114] sm:$0xf]
        %v1742 = vld [vmem:[#allocation7 + $0x118] sm:$0xf]
        %v1743 = vld [vmem:[#allocation7 + $0x11c] sm:$0xf]
        %v1744 = vld [vmem:[#allocation7 + $0x120] sm:$0xf]
        %v1745 = vld [vmem:[#allocation7 + $0x124] sm:$0xf]
        %v1746 = vld [vmem:[#allocation7 + $0x128] sm:$0xf]
        %v1747 = vld [vmem:[#allocation7 + $0x12c] sm:$0xf]
        %v1748 = vld [vmem:[#allocation7 + $0x130] sm:$0xf]
        %v1749 = vld [vmem:[#allocation7 + $0x134] sm:$0xf]
        %v1750 = vld [vmem:[#allocation7 + $0x138] sm:$0xf]
        %v1751 = vld [vmem:[#allocation7 + $0x13c] sm:$0xf]
        %v1768 = vunpack.c.l.b16 %v1736
        %v1769 = vunpack.c.l.b16 %v1737
        %v1770 = vunpack.c.l.b16 %v1738
        %v1771 = vunpack.c.l.b16 %v1739
        %v1772 = vunpack.c.l.b16 %v1740
        %v1773 = vunpack.c.l.b16 %v1741
        %v1774 = vunpack.c.l.b16 %v1742
        %v1775 = vunpack.c.l.b16 %v1743
        %v1776 = vunpack.c.l.b16 %v1744
        %v1777 = vunpack.c.l.b16 %v1745
        %v1778 = vunpack.c.l.b16 %v1746
        %v1779 = vunpack.c.l.b16 %v1747
        %v1780 = vunpack.c.l.b16 %v1748
        %v1781 = vunpack.c.l.b16 %v1749
        %v1782 = vunpack.c.l.b16 %v1750
        %v1783 = vunpack.c.l.b16 %v1751
        %v1784 = vpack.c.b16 %v1769, %v1768
        %v1785 = vpack.c.b16 %v1771, %v1770
        %v1786 = vpack.c.b16 %v1773, %v1772
        %v1787 = vpack.c.b16 %v1775, %v1774
        %v1788 = vpack.c.b16 %v1777, %v1776
        %v1789 = vpack.c.b16 %v1779, %v1778
        %v1790 = vpack.c.b16 %v1781, %v1780
        %v1791 = vpack.c.b16 %v1783, %v1782
        %1800 = vmatprep.subr.bf16.mxu0 0
        %1801 = vmatpush1.bf16.msra.mxu0 %v1791
        %1802 = vmatprep.subr.bf16.mxu0 0
        %1803 = vmatpush1.bf16.msra.mxu0 %v1790
        %1804 = vmatprep.subr.bf16.mxu0 0
        %1805 = vmatpush1.bf16.msra.mxu0 %v1789
        %1806 = vmatprep.subr.bf16.mxu0 0
        %1807 = vmatpush1.bf16.msra.mxu0 %v1788
        %1808 = vmatprep.subr.bf16.mxu0 0
        %1809 = vmatpush1.bf16.msra.mxu0 %v1787
        %1810 = vmatprep.subr.bf16.mxu0 0
        %1811 = vmatpush1.bf16.msra.mxu0 %v1786
        %1812 = vmatprep.subr.bf16.mxu0 0
        %1813 = vmatpush1.bf16.msra.mxu0 %v1785
        %1814 = vmatprep.subr.bf16.mxu0 0
        %1815 = vmatpush1.bf16.msra.mxu0 %v1784
        %1816 = vmatprep.subr.bf16.mxu0 0
        %1817 = vmatpush2.bf16.msra.mxu0 0
        %1818 = vmatprep.subr.bf16.mxu0 0
        %1819 = vmatpush2.bf16.msra.mxu0 0
        %1820 = vmatprep.subr.bf16.mxu0 0
        %1821 = vmatpush2.bf16.msra.mxu0 0
        %1822 = vmatprep.subr.bf16.mxu0 0
        %1823 = vmatpush2.bf16.msra.mxu0 0
        %1824 = vmatprep.subr.bf16.mxu0 0
        %1825 = vmatpush2.bf16.msra.mxu0 0
        %1826 = vmatprep.subr.bf16.mxu0 0
        %1827 = vmatpush2.bf16.msra.mxu0 0
        %1828 = vmatprep.subr.bf16.mxu0 0
        %1829 = vmatpush2.bf16.msra.mxu0 0
        %1830 = vmatprep.subr.bf16.mxu0 0
        %1831 = vmatpush2.bf16.msra.mxu0 0
        %1832 = vmatprep.mubr.bf16.mxu0 0
        %1833 = vmatmul.mubr.bf16.gmra.mxu0 %v1720
        %v1834 = vpop.f32.mrf.mxu0
        %v1835 = vadd.f32 0.0, %v1834
        %v1836 = vpop.f32.mrf.mxu0
        %v1837 = vpop.f32.mrf.mxu0
        %v1838 = vadd.f32 0.0, %v1837
        %v1839 = vpop.f32.mrf.mxu0
        %1840 = vmatprep.mubr.bf16.mxu0 0
        %1841 = vmatmul.mubr.bf16.gmra.mxu0 %v1721
        %v1842 = vpop.f32.mrf.mxu0
        %v1843 = vadd.f32 0.0, %v1842
        %v1844 = vpop.f32.mrf.mxu0
        %v1845 = vpop.f32.mrf.mxu0
        %v1846 = vadd.f32 0.0, %v1845
        %v1847 = vpop.f32.mrf.mxu0
        %1848 = vmatprep.mubr.bf16.mxu0 0
        %1849 = vmatmul.mubr.bf16.gmra.mxu0 %v1722
        %v1850 = vpop.f32.mrf.mxu0
        %v1851 = vadd.f32 0.0, %v1850
        %v1852 = vpop.f32.mrf.mxu0
        %v1853 = vpop.f32.mrf.mxu0
        %v1854 = vadd.f32 0.0, %v1853
        %v1855 = vpop.f32.mrf.mxu0
        %1856 = vmatprep.mubr.bf16.mxu0 0
        %1857 = vmatmul.mubr.bf16.gmra.mxu0 %v1723
        %v1858 = vpop.f32.mrf.mxu0
        %v1859 = vadd.f32 0.0, %v1858
        %v1860 = vpop.f32.mrf.mxu0
        %v1861 = vpop.f32.mrf.mxu0
        %v1862 = vadd.f32 0.0, %v1861
        %v1863 = vpop.f32.mrf.mxu0
        %1864 = vmatprep.mubr.bf16.mxu0 0
        %1865 = vmatmul.mubr.bf16.gmra.mxu0 %v1724
        %v1866 = vpop.f32.mrf.mxu0
        %v1867 = vadd.f32 0.0, %v1866
        %v1868 = vpop.f32.mrf.mxu0
        %v1869 = vpop.f32.mrf.mxu0
        %v1870 = vadd.f32 0.0, %v1869
        %v1871 = vpop.f32.mrf.mxu0
        %1872 = vmatprep.mubr.bf16.mxu0 0
        %1873 = vmatmul.mubr.bf16.gmra.mxu0 %v1725
        %v1874 = vpop.f32.mrf.mxu0
        %v1875 = vadd.f32 0.0, %v1874
        %v1876 = vpop.f32.mrf.mxu0
        %v1877 = vpop.f32.mrf.mxu0
        %v1878 = vadd.f32 0.0, %v1877
        %v1879 = vpop.f32.mrf.mxu0
        %1880 = vmatprep.mubr.bf16.mxu0 0
        %1881 = vmatmul.mubr.bf16.gmra.mxu0 %v1726
        %v1882 = vpop.f32.mrf.mxu0
        %v1883 = vadd.f32 0.0, %v1882
        %v1884 = vpop.f32.mrf.mxu0
        %v1885 = vpop.f32.mrf.mxu0
        %v1886 = vadd.f32 0.0, %v1885
        %v1887 = vpop.f32.mrf.mxu0
        %1888 = vmatprep.mubr.bf16.mxu0 0
        %1889 = vmatmul.mubr.bf16.gmra.mxu0 %v1727
        %v1890 = vpop.f32.mrf.mxu0
        %v1891 = vadd.f32 0.0, %v1890
        %v1892 = vpop.f32.mrf.mxu0
        %v1893 = vpop.f32.mrf.mxu0
        %v1894 = vadd.f32 0.0, %v1893
        %v1895 = vpop.f32.mrf.mxu0
        %1896 = vmatprep.mubr.bf16.mxu0 0
        %1897 = vmatmul.mubr.bf16.gmra.mxu0 %v1728
        %v1898 = vpop.f32.mrf.mxu0
        %v1899 = vadd.f32 0.0, %v1898
        %v1900 = vpop.f32.mrf.mxu0
        %v1901 = vpop.f32.mrf.mxu0
        %v1902 = vadd.f32 0.0, %v1901
        %v1903 = vpop.f32.mrf.mxu0
        %1904 = vmatprep.mubr.bf16.mxu0 0
        %1905 = vmatmul.mubr.bf16.gmra.mxu0 %v1729
        %v1906 = vpop.f32.mrf.mxu0
        %v1907 = vadd.f32 0.0, %v1906
        %v1908 = vpop.f32.mrf.mxu0
        %v1909 = vpop.f32.mrf.mxu0
        %v1910 = vadd.f32 0.0, %v1909
        %v1911 = vpop.f32.mrf.mxu0
        %1912 = vmatprep.mubr.bf16.mxu0 0
        %1913 = vmatmul.mubr.bf16.gmra.mxu0 %v1730
        %v1914 = vpop.f32.mrf.mxu0
        %v1915 = vadd.f32 0.0, %v1914
        %v1916 = vpop.f32.mrf.mxu0
        %v1917 = vpop.f32.mrf.mxu0
        %v1918 = vadd.f32 0.0, %v1917
        %v1919 = vpop.f32.mrf.mxu0
        %1920 = vmatprep.mubr.bf16.mxu0 0
        %1921 = vmatmul.mubr.bf16.gmra.mxu0 %v1731
        %v1922 = vpop.f32.mrf.mxu0
        %v1923 = vadd.f32 0.0, %v1922
        %v1924 = vpop.f32.mrf.mxu0
        %v1925 = vpop.f32.mrf.mxu0
        %v1926 = vadd.f32 0.0, %v1925
        %v1927 = vpop.f32.mrf.mxu0
        %1928 = vmatprep.mubr.bf16.mxu0 0
        %1929 = vmatmul.mubr.bf16.gmra.mxu0 %v1732
        %v1930 = vpop.f32.mrf.mxu0
        %v1931 = vadd.f32 0.0, %v1930
        %v1932 = vpop.f32.mrf.mxu0
        %v1933 = vpop.f32.mrf.mxu0
        %v1934 = vadd.f32 0.0, %v1933
        %v1935 = vpop.f32.mrf.mxu0
        %1936 = vmatprep.mubr.bf16.mxu0 0
        %1937 = vmatmul.mubr.bf16.gmra.mxu0 %v1733
        %v1938 = vpop.f32.mrf.mxu0
        %v1939 = vadd.f32 0.0, %v1938
        %v1940 = vpop.f32.mrf.mxu0
        %v1941 = vpop.f32.mrf.mxu0
        %v1942 = vadd.f32 0.0, %v1941
        %v1943 = vpop.f32.mrf.mxu0
        %1944 = vmatprep.mubr.bf16.mxu0 0
        %1945 = vmatmul.mubr.bf16.gmra.mxu0 %v1734
        %v1946 = vpop.f32.mrf.mxu0
        %v1947 = vadd.f32 0.0, %v1946
        %v1948 = vpop.f32.mrf.mxu0
        %v1949 = vpop.f32.mrf.mxu0
        %v1950 = vadd.f32 0.0, %v1949
        %v1951 = vpop.f32.mrf.mxu0
        %1952 = vmatprep.mubr.bf16.mxu0 0
        %1953 = vmatmul.mubr.bf16.gmra.mxu0 %v1735
        %v1954 = vpop.f32.mrf.mxu0
        %v1955 = vadd.f32 0.0, %v1954
        %v1956 = vpop.f32.mrf.mxu0
        %v1957 = vpop.f32.mrf.mxu0
        %v1958 = vadd.f32 0.0, %v1957
        %v1959 = vpop.f32.mrf.mxu0
        %1960 = vdwg.mxu0
        %v1961 = vadd.f32 %v1656, %v1835
        %v1962 = vadd.f32 %v1657, %v1838
        %v1963 = vadd.f32 %v1658, %v1843
        %v1964 = vadd.f32 %v1659, %v1846
        %v1965 = vadd.f32 %v1660, %v1851
        %v1966 = vadd.f32 %v1661, %v1854
        %v1967 = vadd.f32 %v1662, %v1859
        %v1968 = vadd.f32 %v1663, %v1862
        %v1969 = vadd.f32 %v1664, %v1867
        %v1970 = vadd.f32 %v1665, %v1870
        %v1971 = vadd.f32 %v1666, %v1875
        %v1972 = vadd.f32 %v1667, %v1878
        %v1973 = vadd.f32 %v1668, %v1883
        %v1974 = vadd.f32 %v1669, %v1886
        %v1975 = vadd.f32 %v1670, %v1891
        %v1976 = vadd.f32 %v1671, %v1894
        %v1977 = vadd.f32 %v1672, %v1899
        %v1978 = vadd.f32 %v1673, %v1902
        %v1979 = vadd.f32 %v1674, %v1907
        %v1980 = vadd.f32 %v1675, %v1910
        %v1981 = vadd.f32 %v1676, %v1915
        %v1982 = vadd.f32 %v1677, %v1918
        %v1983 = vadd.f32 %v1678, %v1923
        %v1984 = vadd.f32 %v1679, %v1926
        %v1985 = vadd.f32 %v1680, %v1931
        %v1986 = vadd.f32 %v1681, %v1934
        %v1987 = vadd.f32 %v1682, %v1939
        %v1988 = vadd.f32 %v1683, %v1942
        %v1989 = vadd.f32 %v1684, %v1947
        %v1990 = vadd.f32 %v1685, %v1950
        %v1991 = vadd.f32 %v1686, %v1955
        %v1992 = vadd.f32 %v1687, %v1958
        %v1993 = vld [vmem:[%s445 + $0x2] sm:$0xff]
        %v1994 = vld [vmem:[%s445 + $0xa] sm:$0xff]
        %v1995 = vld [vmem:[%s445 + $0x1a] sm:$0xff]
        %v1996 = vld [vmem:[%s445 + $0x22] sm:$0xff]
        %v1997 = vld [vmem:[%s445 + $0x32] sm:$0xff]
        %v1998 = vld [vmem:[%s445 + $0x3a] sm:$0xff]
        %v1999 = vld [vmem:[%s445 + $0x4a] sm:$0xff]
        %v2000 = vld [vmem:[%s445 + $0x52] sm:$0xff]
        %v2001 = vld [vmem:[%s445 + $0x62] sm:$0xff]
        %v2002 = vld [vmem:[%s445 + $0x6a] sm:$0xff]
        %v2003 = vld [vmem:[%s445 + $0x7a] sm:$0xff]
        %v2004 = vld [vmem:[%s445 + $0x82] sm:$0xff]
        %v2005 = vld [vmem:[%s445 + $0x92] sm:$0xff]
        %v2006 = vld [vmem:[%s445 + $0x9a] sm:$0xff]
        %v2007 = vld [vmem:[%s445 + $0xaa] sm:$0xff]
        %v2008 = vld [vmem:[%s445 + $0xb2] sm:$0xff]
        %v2009 = vld [vmem:[%s445 + $0xc2] sm:$0xff]
        %v2010 = vld [vmem:[%s445 + $0xca] sm:$0xff]
        %v2011 = vld [vmem:[%s445 + $0xda] sm:$0xff]
        %v2012 = vld [vmem:[%s445 + $0xe2] sm:$0xff]
        %v2013 = vld [vmem:[%s445 + $0xf2] sm:$0xff]
        %v2014 = vld [vmem:[%s445 + $0xfa] sm:$0xff]
        %v2015 = vld [vmem:[%s445 + $0x10a] sm:$0xff]
        %v2016 = vld [vmem:[%s445 + $0x112] sm:$0xff]
        %v2017 = vld [vmem:[%s445 + $0x122] sm:$0xff]
        %v2018 = vld [vmem:[%s445 + $0x12a] sm:$0xff]
        %v2019 = vld [vmem:[%s445 + $0x13a] sm:$0xff]
        %v2020 = vld [vmem:[%s445 + $0x142] sm:$0xff]
        %v2021 = vld [vmem:[%s445 + $0x152] sm:$0xff]
        %v2022 = vld [vmem:[%s445 + $0x15a] sm:$0xff]
        %v2023 = vld [vmem:[%s445 + $0x16a] sm:$0xff]
        %v2024 = vld [vmem:[%s445 + $0x172] sm:$0xff]
        %v2025 = vpack.c.bf16 %v1994, %v1993
        %v2026 = vpack.c.bf16 %v1996, %v1995
        %v2027 = vpack.c.bf16 %v1998, %v1997
        %v2028 = vpack.c.bf16 %v2000, %v1999
        %v2029 = vpack.c.bf16 %v2002, %v2001
        %v2030 = vpack.c.bf16 %v2004, %v2003
        %v2031 = vpack.c.bf16 %v2006, %v2005
        %v2032 = vpack.c.bf16 %v2008, %v2007
        %v2033 = vpack.c.bf16 %v2010, %v2009
        %v2034 = vpack.c.bf16 %v2012, %v2011
        %v2035 = vpack.c.bf16 %v2014, %v2013
        %v2036 = vpack.c.bf16 %v2016, %v2015
        %v2037 = vpack.c.bf16 %v2018, %v2017
        %v2038 = vpack.c.bf16 %v2020, %v2019
        %v2039 = vpack.c.bf16 %v2022, %v2021
        %v2040 = vpack.c.bf16 %v2024, %v2023
        %v2041 = vld [vmem:[#allocation7 + $0x140] sm:$0xf]
        %v2042 = vld [vmem:[#allocation7 + $0x144] sm:$0xf]
        %v2043 = vld [vmem:[#allocation7 + $0x148] sm:$0xf]
        %v2044 = vld [vmem:[#allocation7 + $0x14c] sm:$0xf]
        %v2045 = vld [vmem:[#allocation7 + $0x150] sm:$0xf]
        %v2046 = vld [vmem:[#allocation7 + $0x154] sm:$0xf]
        %v2047 = vld [vmem:[#allocation7 + $0x158] sm:$0xf]
        %v2048 = vld [vmem:[#allocation7 + $0x15c] sm:$0xf]
        %v2049 = vld [vmem:[#allocation7 + $0x160] sm:$0xf]
        %v2050 = vld [vmem:[#allocation7 + $0x164] sm:$0xf]
        %v2051 = vld [vmem:[#allocation7 + $0x168] sm:$0xf]
        %v2052 = vld [vmem:[#allocation7 + $0x16c] sm:$0xf]
        %v2053 = vld [vmem:[#allocation7 + $0x170] sm:$0xf]
        %v2054 = vld [vmem:[#allocation7 + $0x174] sm:$0xf]
        %v2055 = vld [vmem:[#allocation7 + $0x178] sm:$0xf]
        %v2056 = vld [vmem:[#allocation7 + $0x17c] sm:$0xf]
        %v2073 = vunpack.c.l.b16 %v2041
        %v2074 = vunpack.c.l.b16 %v2042
        %v2075 = vunpack.c.l.b16 %v2043
        %v2076 = vunpack.c.l.b16 %v2044
        %v2077 = vunpack.c.l.b16 %v2045
        %v2078 = vunpack.c.l.b16 %v2046
        %v2079 = vunpack.c.l.b16 %v2047
        %v2080 = vunpack.c.l.b16 %v2048
        %v2081 = vunpack.c.l.b16 %v2049
        %v2082 = vunpack.c.l.b16 %v2050
        %v2083 = vunpack.c.l.b16 %v2051
        %v2084 = vunpack.c.l.b16 %v2052
        %v2085 = vunpack.c.l.b16 %v2053
        %v2086 = vunpack.c.l.b16 %v2054
        %v2087 = vunpack.c.l.b16 %v2055
        %v2088 = vunpack.c.l.b16 %v2056
        %v2089 = vpack.c.b16 %v2074, %v2073
        %v2090 = vpack.c.b16 %v2076, %v2075
        %v2091 = vpack.c.b16 %v2078, %v2077
        %v2092 = vpack.c.b16 %v2080, %v2079
        %v2093 = vpack.c.b16 %v2082, %v2081
        %v2094 = vpack.c.b16 %v2084, %v2083
        %v2095 = vpack.c.b16 %v2086, %v2085
        %v2096 = vpack.c.b16 %v2088, %v2087
        %2105 = vmatprep.subr.bf16.mxu0 0
        %2106 = vmatpush1.bf16.msra.mxu0 %v2096
        %2107 = vmatprep.subr.bf16.mxu0 0
        %2108 = vmatpush1.bf16.msra.mxu0 %v2095
        %2109 = vmatprep.subr.bf16.mxu0 0
        %2110 = vmatpush1.bf16.msra.mxu0 %v2094
        %2111 = vmatprep.subr.bf16.mxu0 0
        %2112 = vmatpush1.bf16.msra.mxu0 %v2093
        %2113 = vmatprep.subr.bf16.mxu0 0
        %2114 = vmatpush1.bf16.msra.mxu0 %v2092
        %2115 = vmatprep.subr.bf16.mxu0 0
        %2116 = vmatpush1.bf16.msra.mxu0 %v2091
        %2117 = vmatprep.subr.bf16.mxu0 0
        %2118 = vmatpush1.bf16.msra.mxu0 %v2090
        %2119 = vmatprep.subr.bf16.mxu0 0
        %2120 = vmatpush1.bf16.msra.mxu0 %v2089
        %2121 = vmatprep.subr.bf16.mxu0 0
        %2122 = vmatpush2.bf16.msra.mxu0 0
        %2123 = vmatprep.subr.bf16.mxu0 0
        %2124 = vmatpush2.bf16.msra.mxu0 0
        %2125 = vmatprep.subr.bf16.mxu0 0
        %2126 = vmatpush2.bf16.msra.mxu0 0
        %2127 = vmatprep.subr.bf16.mxu0 0
        %2128 = vmatpush2.bf16.msra.mxu0 0
        %2129 = vmatprep.subr.bf16.mxu0 0
        %2130 = vmatpush2.bf16.msra.mxu0 0
        %2131 = vmatprep.subr.bf16.mxu0 0
        %2132 = vmatpush2.bf16.msra.mxu0 0
        %2133 = vmatprep.subr.bf16.mxu0 0
        %2134 = vmatpush2.bf16.msra.mxu0 0
        %2135 = vmatprep.subr.bf16.mxu0 0
        %2136 = vmatpush2.bf16.msra.mxu0 0
        %2137 = vmatprep.mubr.bf16.mxu0 0
        %2138 = vmatmul.mubr.bf16.gmra.mxu0 %v2025
        %v2139 = vpop.f32.mrf.mxu0
        %v2140 = vadd.f32 0.0, %v2139
        %v2141 = vpop.f32.mrf.mxu0
        %v2142 = vpop.f32.mrf.mxu0
        %v2143 = vadd.f32 0.0, %v2142
        %v2144 = vpop.f32.mrf.mxu0
        %2145 = vmatprep.mubr.bf16.mxu0 0
        %2146 = vmatmul.mubr.bf16.gmra.mxu0 %v2026
        %v2147 = vpop.f32.mrf.mxu0
        %v2148 = vadd.f32 0.0, %v2147
        %v2149 = vpop.f32.mrf.mxu0
        %v2150 = vpop.f32.mrf.mxu0
        %v2151 = vadd.f32 0.0, %v2150
        %v2152 = vpop.f32.mrf.mxu0
        %2153 = vmatprep.mubr.bf16.mxu0 0
        %2154 = vmatmul.mubr.bf16.gmra.mxu0 %v2027
        %v2155 = vpop.f32.mrf.mxu0
        %v2156 = vadd.f32 0.0, %v2155
        %v2157 = vpop.f32.mrf.mxu0
        %v2158 = vpop.f32.mrf.mxu0
        %v2159 = vadd.f32 0.0, %v2158
        %v2160 = vpop.f32.mrf.mxu0
        %2161 = vmatprep.mubr.bf16.mxu0 0
        %2162 = vmatmul.mubr.bf16.gmra.mxu0 %v2028
        %v2163 = vpop.f32.mrf.mxu0
        %v2164 = vadd.f32 0.0, %v2163
        %v2165 = vpop.f32.mrf.mxu0
        %v2166 = vpop.f32.mrf.mxu0
        %v2167 = vadd.f32 0.0, %v2166
        %v2168 = vpop.f32.mrf.mxu0
        %2169 = vmatprep.mubr.bf16.mxu0 0
        %2170 = vmatmul.mubr.bf16.gmra.mxu0 %v2029
        %v2171 = vpop.f32.mrf.mxu0
        %v2172 = vadd.f32 0.0, %v2171
        %v2173 = vpop.f32.mrf.mxu0
        %v2174 = vpop.f32.mrf.mxu0
        %v2175 = vadd.f32 0.0, %v2174
        %v2176 = vpop.f32.mrf.mxu0
        %2177 = vmatprep.mubr.bf16.mxu0 0
        %2178 = vmatmul.mubr.bf16.gmra.mxu0 %v2030
        %v2179 = vpop.f32.mrf.mxu0
        %v2180 = vadd.f32 0.0, %v2179
        %v2181 = vpop.f32.mrf.mxu0
        %v2182 = vpop.f32.mrf.mxu0
        %v2183 = vadd.f32 0.0, %v2182
        %v2184 = vpop.f32.mrf.mxu0
        %2185 = vmatprep.mubr.bf16.mxu0 0
        %2186 = vmatmul.mubr.bf16.gmra.mxu0 %v2031
        %v2187 = vpop.f32.mrf.mxu0
        %v2188 = vadd.f32 0.0, %v2187
        %v2189 = vpop.f32.mrf.mxu0
        %v2190 = vpop.f32.mrf.mxu0
        %v2191 = vadd.f32 0.0, %v2190
        %v2192 = vpop.f32.mrf.mxu0
        %2193 = vmatprep.mubr.bf16.mxu0 0
        %2194 = vmatmul.mubr.bf16.gmra.mxu0 %v2032
        %v2195 = vpop.f32.mrf.mxu0
        %v2196 = vadd.f32 0.0, %v2195
        %v2197 = vpop.f32.mrf.mxu0
        %v2198 = vpop.f32.mrf.mxu0
        %v2199 = vadd.f32 0.0, %v2198
        %v2200 = vpop.f32.mrf.mxu0
        %2201 = vmatprep.mubr.bf16.mxu0 0
        %2202 = vmatmul.mubr.bf16.gmra.mxu0 %v2033
        %v2203 = vpop.f32.mrf.mxu0
        %v2204 = vadd.f32 0.0, %v2203
        %v2205 = vpop.f32.mrf.mxu0
        %v2206 = vpop.f32.mrf.mxu0
        %v2207 = vadd.f32 0.0, %v2206
        %v2208 = vpop.f32.mrf.mxu0
        %2209 = vmatprep.mubr.bf16.mxu0 0
        %2210 = vmatmul.mubr.bf16.gmra.mxu0 %v2034
        %v2211 = vpop.f32.mrf.mxu0
        %v2212 = vadd.f32 0.0, %v2211
        %v2213 = vpop.f32.mrf.mxu0
        %v2214 = vpop.f32.mrf.mxu0
        %v2215 = vadd.f32 0.0, %v2214
        %v2216 = vpop.f32.mrf.mxu0
        %2217 = vmatprep.mubr.bf16.mxu0 0
        %2218 = vmatmul.mubr.bf16.gmra.mxu0 %v2035
        %v2219 = vpop.f32.mrf.mxu0
        %v2220 = vadd.f32 0.0, %v2219
        %v2221 = vpop.f32.mrf.mxu0
        %v2222 = vpop.f32.mrf.mxu0
        %v2223 = vadd.f32 0.0, %v2222
        %v2224 = vpop.f32.mrf.mxu0
        %2225 = vmatprep.mubr.bf16.mxu0 0
        %2226 = vmatmul.mubr.bf16.gmra.mxu0 %v2036
        %v2227 = vpop.f32.mrf.mxu0
        %v2228 = vadd.f32 0.0, %v2227
        %v2229 = vpop.f32.mrf.mxu0
        %v2230 = vpop.f32.mrf.mxu0
        %v2231 = vadd.f32 0.0, %v2230
        %v2232 = vpop.f32.mrf.mxu0
        %2233 = vmatprep.mubr.bf16.mxu0 0
        %2234 = vmatmul.mubr.bf16.gmra.mxu0 %v2037
        %v2235 = vpop.f32.mrf.mxu0
        %v2236 = vadd.f32 0.0, %v2235
        %v2237 = vpop.f32.mrf.mxu0
        %v2238 = vpop.f32.mrf.mxu0
        %v2239 = vadd.f32 0.0, %v2238
        %v2240 = vpop.f32.mrf.mxu0
        %2241 = vmatprep.mubr.bf16.mxu0 0
        %2242 = vmatmul.mubr.bf16.gmra.mxu0 %v2038
        %v2243 = vpop.f32.mrf.mxu0
        %v2244 = vadd.f32 0.0, %v2243
        %v2245 = vpop.f32.mrf.mxu0
        %v2246 = vpop.f32.mrf.mxu0
        %v2247 = vadd.f32 0.0, %v2246
        %v2248 = vpop.f32.mrf.mxu0
        %2249 = vmatprep.mubr.bf16.mxu0 0
        %2250 = vmatmul.mubr.bf16.gmra.mxu0 %v2039
        %v2251 = vpop.f32.mrf.mxu0
        %v2252 = vadd.f32 0.0, %v2251
        %v2253 = vpop.f32.mrf.mxu0
        %v2254 = vpop.f32.mrf.mxu0
        %v2255 = vadd.f32 0.0, %v2254
        %v2256 = vpop.f32.mrf.mxu0
        %2257 = vmatprep.mubr.bf16.mxu0 0
        %2258 = vmatmul.mubr.bf16.gmra.mxu0 %v2040
        %v2259 = vpop.f32.mrf.mxu0
        %v2260 = vadd.f32 0.0, %v2259
        %v2261 = vpop.f32.mrf.mxu0
        %v2262 = vpop.f32.mrf.mxu0
        %v2263 = vadd.f32 0.0, %v2262
        %v2264 = vpop.f32.mrf.mxu0
        %2265 = vdwg.mxu0
        %v2266 = vadd.f32 %v1961, %v2140
        %v2267 = vadd.f32 %v1962, %v2143
        %v2268 = vadd.f32 %v1963, %v2148
        %v2269 = vadd.f32 %v1964, %v2151
        %v2270 = vadd.f32 %v1965, %v2156
        %v2271 = vadd.f32 %v1966, %v2159
        %v2272 = vadd.f32 %v1967, %v2164
        %v2273 = vadd.f32 %v1968, %v2167
        %v2274 = vadd.f32 %v1969, %v2172
        %v2275 = vadd.f32 %v1970, %v2175
        %v2276 = vadd.f32 %v1971, %v2180
        %v2277 = vadd.f32 %v1972, %v2183
        %v2278 = vadd.f32 %v1973, %v2188
        %v2279 = vadd.f32 %v1974, %v2191
        %v2280 = vadd.f32 %v1975, %v2196
        %v2281 = vadd.f32 %v1976, %v2199
        %v2282 = vadd.f32 %v1977, %v2204
        %v2283 = vadd.f32 %v1978, %v2207
        %v2284 = vadd.f32 %v1979, %v2212
        %v2285 = vadd.f32 %v1980, %v2215
        %v2286 = vadd.f32 %v1981, %v2220
        %v2287 = vadd.f32 %v1982, %v2223
        %v2288 = vadd.f32 %v1983, %v2228
        %v2289 = vadd.f32 %v1984, %v2231
        %v2290 = vadd.f32 %v1985, %v2236
        %v2291 = vadd.f32 %v1986, %v2239
        %v2292 = vadd.f32 %v1987, %v2244
        %v2293 = vadd.f32 %v1988, %v2247
        %v2294 = vadd.f32 %v1989, %v2252
        %v2295 = vadd.f32 %v1990, %v2255
        %v2296 = vadd.f32 %v1991, %v2260
        %v2297 = vadd.f32 %v1992, %v2263
        %s2298 = scalar_lea.vmem [#allocation2], 48
        %v2299 = vld [vmem:[%s2298] sm:$0xff]
        %v2300 = vld [vmem:[%s2298 + $0x8] sm:$0xff]
        %v2301 = vld [vmem:[%s2298 + $0x18] sm:$0xff]
        %v2302 = vld [vmem:[%s2298 + $0x20] sm:$0xff]
        %v2303 = vld [vmem:[%s2298 + $0x30] sm:$0xff]
        %v2304 = vld [vmem:[%s2298 + $0x38] sm:$0xff]
        %v2305 = vld [vmem:[%s2298 + $0x48] sm:$0xff]
        %v2306 = vld [vmem:[%s2298 + $0x50] sm:$0xff]
        %v2307 = vld [vmem:[%s2298 + $0x60] sm:$0xff]
        %v2308 = vld [vmem:[%s2298 + $0x68] sm:$0xff]
        %v2309 = vld [vmem:[%s2298 + $0x78] sm:$0xff]
        %v2310 = vld [vmem:[%s2298 + $0x80] sm:$0xff]
        %v2311 = vld [vmem:[%s2298 + $0x90] sm:$0xff]
        %v2312 = vld [vmem:[%s2298 + $0x98] sm:$0xff]
        %v2313 = vld [vmem:[%s2298 + $0xa8] sm:$0xff]
        %v2314 = vld [vmem:[%s2298 + $0xb0] sm:$0xff]
        %v2315 = vld [vmem:[%s2298 + $0xc0] sm:$0xff]
        %v2316 = vld [vmem:[%s2298 + $0xc8] sm:$0xff]
        %v2317 = vld [vmem:[%s2298 + $0xd8] sm:$0xff]
        %v2318 = vld [vmem:[%s2298 + $0xe0] sm:$0xff]
        %v2319 = vld [vmem:[%s2298 + $0xf0] sm:$0xff]
        %v2320 = vld [vmem:[%s2298 + $0xf8] sm:$0xff]
        %v2321 = vld [vmem:[%s2298 + $0x108] sm:$0xff]
        %v2322 = vld [vmem:[%s2298 + $0x110] sm:$0xff]
        %v2323 = vld [vmem:[%s2298 + $0x120] sm:$0xff]
        %v2324 = vld [vmem:[%s2298 + $0x128] sm:$0xff]
        %v2325 = vld [vmem:[%s2298 + $0x138] sm:$0xff]
        %v2326 = vld [vmem:[%s2298 + $0x140] sm:$0xff]
        %v2327 = vld [vmem:[%s2298 + $0x150] sm:$0xff]
        %v2328 = vld [vmem:[%s2298 + $0x158] sm:$0xff]
        %v2329 = vld [vmem:[%s2298 + $0x168] sm:$0xff]
        %v2330 = vld [vmem:[%s2298 + $0x170] sm:$0xff]
        %v2331 = vpack.c.bf16 %v2300, %v2299
        %v2332 = vpack.c.bf16 %v2302, %v2301
        %v2333 = vpack.c.bf16 %v2304, %v2303
        %v2334 = vpack.c.bf16 %v2306, %v2305
        %v2335 = vpack.c.bf16 %v2308, %v2307
        %v2336 = vpack.c.bf16 %v2310, %v2309
        %v2337 = vpack.c.bf16 %v2312, %v2311
        %v2338 = vpack.c.bf16 %v2314, %v2313
        %v2339 = vpack.c.bf16 %v2316, %v2315
        %v2340 = vpack.c.bf16 %v2318, %v2317
        %v2341 = vpack.c.bf16 %v2320, %v2319
        %v2342 = vpack.c.bf16 %v2322, %v2321
        %v2343 = vpack.c.bf16 %v2324, %v2323
        %v2344 = vpack.c.bf16 %v2326, %v2325
        %v2345 = vpack.c.bf16 %v2328, %v2327
        %v2346 = vpack.c.bf16 %v2330, %v2329
        %v2347 = vld [vmem:[#allocation7 + $0x180] sm:$0xf]
        %v2348 = vld [vmem:[#allocation7 + $0x184] sm:$0xf]
        %v2349 = vld [vmem:[#allocation7 + $0x188] sm:$0xf]
        %v2350 = vld [vmem:[#allocation7 + $0x18c] sm:$0xf]
        %v2351 = vld [vmem:[#allocation7 + $0x190] sm:$0xf]
        %v2352 = vld [vmem:[#allocation7 + $0x194] sm:$0xf]
        %v2353 = vld [vmem:[#allocation7 + $0x198] sm:$0xf]
        %v2354 = vld [vmem:[#allocation7 + $0x19c] sm:$0xf]
        %v2355 = vld [vmem:[#allocation7 + $0x1a0] sm:$0xf]
        %v2356 = vld [vmem:[#allocation7 + $0x1a4] sm:$0xf]
        %v2357 = vld [vmem:[#allocation7 + $0x1a8] sm:$0xf]
        %v2358 = vld [vmem:[#allocation7 + $0x1ac] sm:$0xf]
        %v2359 = vld [vmem:[#allocation7 + $0x1b0] sm:$0xf]
        %v2360 = vld [vmem:[#allocation7 + $0x1b4] sm:$0xf]
        %v2361 = vld [vmem:[#allocation7 + $0x1b8] sm:$0xf]
        %v2362 = vld [vmem:[#allocation7 + $0x1bc] sm:$0xf]
        %v2379 = vunpack.c.l.b16 %v2347
        %v2380 = vunpack.c.l.b16 %v2348
        %v2381 = vunpack.c.l.b16 %v2349
        %v2382 = vunpack.c.l.b16 %v2350
        %v2383 = vunpack.c.l.b16 %v2351
        %v2384 = vunpack.c.l.b16 %v2352
        %v2385 = vunpack.c.l.b16 %v2353
        %v2386 = vunpack.c.l.b16 %v2354
        %v2387 = vunpack.c.l.b16 %v2355
        %v2388 = vunpack.c.l.b16 %v2356
        %v2389 = vunpack.c.l.b16 %v2357
        %v2390 = vunpack.c.l.b16 %v2358
        %v2391 = vunpack.c.l.b16 %v2359
        %v2392 = vunpack.c.l.b16 %v2360
        %v2393 = vunpack.c.l.b16 %v2361
        %v2394 = vunpack.c.l.b16 %v2362
        %v2395 = vpack.c.b16 %v2380, %v2379
        %v2396 = vpack.c.b16 %v2382, %v2381
        %v2397 = vpack.c.b16 %v2384, %v2383
        %v2398 = vpack.c.b16 %v2386, %v2385
        %v2399 = vpack.c.b16 %v2388, %v2387
        %v2400 = vpack.c.b16 %v2390, %v2389
        %v2401 = vpack.c.b16 %v2392, %v2391
        %v2402 = vpack.c.b16 %v2394, %v2393
        %2411 = vmatprep.subr.bf16.mxu0 0
        %2412 = vmatpush1.bf16.msra.mxu0 %v2402
        %2413 = vmatprep.subr.bf16.mxu0 0
        %2414 = vmatpush1.bf16.msra.mxu0 %v2401
        %2415 = vmatprep.subr.bf16.mxu0 0
        %2416 = vmatpush1.bf16.msra.mxu0 %v2400
        %2417 = vmatprep.subr.bf16.mxu0 0
        %2418 = vmatpush1.bf16.msra.mxu0 %v2399
        %2419 = vmatprep.subr.bf16.mxu0 0
        %2420 = vmatpush1.bf16.msra.mxu0 %v2398
        %2421 = vmatprep.subr.bf16.mxu0 0
        %2422 = vmatpush1.bf16.msra.mxu0 %v2397
        %2423 = vmatprep.subr.bf16.mxu0 0
        %2424 = vmatpush1.bf16.msra.mxu0 %v2396
        %2425 = vmatprep.subr.bf16.mxu0 0
        %2426 = vmatpush1.bf16.msra.mxu0 %v2395
        %2427 = vmatprep.subr.bf16.mxu0 0
        %2428 = vmatpush2.bf16.msra.mxu0 0
        %2429 = vmatprep.subr.bf16.mxu0 0
        %2430 = vmatpush2.bf16.msra.mxu0 0
        %2431 = vmatprep.subr.bf16.mxu0 0
        %2432 = vmatpush2.bf16.msra.mxu0 0
        %2433 = vmatprep.subr.bf16.mxu0 0
        %2434 = vmatpush2.bf16.msra.mxu0 0
        %2435 = vmatprep.subr.bf16.mxu0 0
        %2436 = vmatpush2.bf16.msra.mxu0 0
        %2437 = vmatprep.subr.bf16.mxu0 0
        %2438 = vmatpush2.bf16.msra.mxu0 0
        %2439 = vmatprep.subr.bf16.mxu0 0
        %2440 = vmatpush2.bf16.msra.mxu0 0
        %2441 = vmatprep.subr.bf16.mxu0 0
        %2442 = vmatpush2.bf16.msra.mxu0 0
        %2443 = vmatprep.mubr.bf16.mxu0 0
        %2444 = vmatmul.mubr.bf16.gmra.mxu0 %v2331
        %v2445 = vpop.f32.mrf.mxu0
        %v2446 = vadd.f32 0.0, %v2445
        %v2447 = vpop.f32.mrf.mxu0
        %v2448 = vpop.f32.mrf.mxu0
        %v2449 = vadd.f32 0.0, %v2448
        %v2450 = vpop.f32.mrf.mxu0
        %2451 = vmatprep.mubr.bf16.mxu0 0
        %2452 = vmatmul.mubr.bf16.gmra.mxu0 %v2332
        %v2453 = vpop.f32.mrf.mxu0
        %v2454 = vadd.f32 0.0, %v2453
        %v2455 = vpop.f32.mrf.mxu0
        %v2456 = vpop.f32.mrf.mxu0
        %v2457 = vadd.f32 0.0, %v2456
        %v2458 = vpop.f32.mrf.mxu0
        %2459 = vmatprep.mubr.bf16.mxu0 0
        %2460 = vmatmul.mubr.bf16.gmra.mxu0 %v2333
        %v2461 = vpop.f32.mrf.mxu0
        %v2462 = vadd.f32 0.0, %v2461
        %v2463 = vpop.f32.mrf.mxu0
        %v2464 = vpop.f32.mrf.mxu0
        %v2465 = vadd.f32 0.0, %v2464
        %v2466 = vpop.f32.mrf.mxu0
        %2467 = vmatprep.mubr.bf16.mxu0 0
        %2468 = vmatmul.mubr.bf16.gmra.mxu0 %v2334
        %v2469 = vpop.f32.mrf.mxu0
        %v2470 = vadd.f32 0.0, %v2469
        %v2471 = vpop.f32.mrf.mxu0
        %v2472 = vpop.f32.mrf.mxu0
        %v2473 = vadd.f32 0.0, %v2472
        %v2474 = vpop.f32.mrf.mxu0
        %2475 = vmatprep.mubr.bf16.mxu0 0
        %2476 = vmatmul.mubr.bf16.gmra.mxu0 %v2335
        %v2477 = vpop.f32.mrf.mxu0
        %v2478 = vadd.f32 0.0, %v2477
        %v2479 = vpop.f32.mrf.mxu0
        %v2480 = vpop.f32.mrf.mxu0
        %v2481 = vadd.f32 0.0, %v2480
        %v2482 = vpop.f32.mrf.mxu0
        %2483 = vmatprep.mubr.bf16.mxu0 0
        %2484 = vmatmul.mubr.bf16.gmra.mxu0 %v2336
        %v2485 = vpop.f32.mrf.mxu0
        %v2486 = vadd.f32 0.0, %v2485
        %v2487 = vpop.f32.mrf.mxu0
        %v2488 = vpop.f32.mrf.mxu0
        %v2489 = vadd.f32 0.0, %v2488
        %v2490 = vpop.f32.mrf.mxu0
        %2491 = vmatprep.mubr.bf16.mxu0 0
        %2492 = vmatmul.mubr.bf16.gmra.mxu0 %v2337
        %v2493 = vpop.f32.mrf.mxu0
        %v2494 = vadd.f32 0.0, %v2493
        %v2495 = vpop.f32.mrf.mxu0
        %v2496 = vpop.f32.mrf.mxu0
        %v2497 = vadd.f32 0.0, %v2496
        %v2498 = vpop.f32.mrf.mxu0
        %2499 = vmatprep.mubr.bf16.mxu0 0
        %2500 = vmatmul.mubr.bf16.gmra.mxu0 %v2338
        %v2501 = vpop.f32.mrf.mxu0
        %v2502 = vadd.f32 0.0, %v2501
        %v2503 = vpop.f32.mrf.mxu0
        %v2504 = vpop.f32.mrf.mxu0
        %v2505 = vadd.f32 0.0, %v2504
        %v2506 = vpop.f32.mrf.mxu0
        %2507 = vmatprep.mubr.bf16.mxu0 0
        %2508 = vmatmul.mubr.bf16.gmra.mxu0 %v2339
        %v2509 = vpop.f32.mrf.mxu0
        %v2510 = vadd.f32 0.0, %v2509
        %v2511 = vpop.f32.mrf.mxu0
        %v2512 = vpop.f32.mrf.mxu0
        %v2513 = vadd.f32 0.0, %v2512
        %v2514 = vpop.f32.mrf.mxu0
        %2515 = vmatprep.mubr.bf16.mxu0 0
        %2516 = vmatmul.mubr.bf16.gmra.mxu0 %v2340
        %v2517 = vpop.f32.mrf.mxu0
        %v2518 = vadd.f32 0.0, %v2517
        %v2519 = vpop.f32.mrf.mxu0
        %v2520 = vpop.f32.mrf.mxu0
        %v2521 = vadd.f32 0.0, %v2520
        %v2522 = vpop.f32.mrf.mxu0
        %2523 = vmatprep.mubr.bf16.mxu0 0
        %2524 = vmatmul.mubr.bf16.gmra.mxu0 %v2341
        %v2525 = vpop.f32.mrf.mxu0
        %v2526 = vadd.f32 0.0, %v2525
        %v2527 = vpop.f32.mrf.mxu0
        %v2528 = vpop.f32.mrf.mxu0
        %v2529 = vadd.f32 0.0, %v2528
        %v2530 = vpop.f32.mrf.mxu0
        %2531 = vmatprep.mubr.bf16.mxu0 0
        %2532 = vmatmul.mubr.bf16.gmra.mxu0 %v2342
        %v2533 = vpop.f32.mrf.mxu0
        %v2534 = vadd.f32 0.0, %v2533
        %v2535 = vpop.f32.mrf.mxu0
        %v2536 = vpop.f32.mrf.mxu0
        %v2537 = vadd.f32 0.0, %v2536
        %v2538 = vpop.f32.mrf.mxu0
        %2539 = vmatprep.mubr.bf16.mxu0 0
        %2540 = vmatmul.mubr.bf16.gmra.mxu0 %v2343
        %v2541 = vpop.f32.mrf.mxu0
        %v2542 = vadd.f32 0.0, %v2541
        %v2543 = vpop.f32.mrf.mxu0
        %v2544 = vpop.f32.mrf.mxu0
        %v2545 = vadd.f32 0.0, %v2544
        %v2546 = vpop.f32.mrf.mxu0
        %2547 = vmatprep.mubr.bf16.mxu0 0
        %2548 = vmatmul.mubr.bf16.gmra.mxu0 %v2344
        %v2549 = vpop.f32.mrf.mxu0
        %v2550 = vadd.f32 0.0, %v2549
        %v2551 = vpop.f32.mrf.mxu0
        %v2552 = vpop.f32.mrf.mxu0
        %v2553 = vadd.f32 0.0, %v2552
        %v2554 = vpop.f32.mrf.mxu0
        %2555 = vmatprep.mubr.bf16.mxu0 0
        %2556 = vmatmul.mubr.bf16.gmra.mxu0 %v2345
        %v2557 = vpop.f32.mrf.mxu0
        %v2558 = vadd.f32 0.0, %v2557
        %v2559 = vpop.f32.mrf.mxu0
        %v2560 = vpop.f32.mrf.mxu0
        %v2561 = vadd.f32 0.0, %v2560
        %v2562 = vpop.f32.mrf.mxu0
        %2563 = vmatprep.mubr.bf16.mxu0 0
        %2564 = vmatmul.mubr.bf16.gmra.mxu0 %v2346
        %v2565 = vpop.f32.mrf.mxu0
        %v2566 = vadd.f32 0.0, %v2565
        %v2567 = vpop.f32.mrf.mxu0
        %v2568 = vpop.f32.mrf.mxu0
        %v2569 = vadd.f32 0.0, %v2568
        %v2570 = vpop.f32.mrf.mxu0
        %2571 = vdwg.mxu0
        %v2572 = vadd.f32 %v2266, %v2446
        %v2573 = vadd.f32 %v2267, %v2449
        %v2574 = vadd.f32 %v2268, %v2454
        %v2575 = vadd.f32 %v2269, %v2457
        %v2576 = vadd.f32 %v2270, %v2462
        %v2577 = vadd.f32 %v2271, %v2465
        %v2578 = vadd.f32 %v2272, %v2470
        %v2579 = vadd.f32 %v2273, %v2473
        %v2580 = vadd.f32 %v2274, %v2478
        %v2581 = vadd.f32 %v2275, %v2481
        %v2582 = vadd.f32 %v2276, %v2486
        %v2583 = vadd.f32 %v2277, %v2489
        %v2584 = vadd.f32 %v2278, %v2494
        %v2585 = vadd.f32 %v2279, %v2497
        %v2586 = vadd.f32 %v2280, %v2502
        %v2587 = vadd.f32 %v2281, %v2505
        %v2588 = vadd.f32 %v2282, %v2510
        %v2589 = vadd.f32 %v2283, %v2513
        %v2590 = vadd.f32 %v2284, %v2518
        %v2591 = vadd.f32 %v2285, %v2521
        %v2592 = vadd.f32 %v2286, %v2526
        %v2593 = vadd.f32 %v2287, %v2529
        %v2594 = vadd.f32 %v2288, %v2534
        %v2595 = vadd.f32 %v2289, %v2537
        %v2596 = vadd.f32 %v2290, %v2542
        %v2597 = vadd.f32 %v2291, %v2545
        %v2598 = vadd.f32 %v2292, %v2550
        %v2599 = vadd.f32 %v2293, %v2553
        %v2600 = vadd.f32 %v2294, %v2558
        %v2601 = vadd.f32 %v2295, %v2561
        %v2602 = vadd.f32 %v2296, %v2566
        %v2603 = vadd.f32 %v2297, %v2569
        %v2604 = vld [vmem:[%s2298 + $0x1] sm:$0xff]
        %v2605 = vld [vmem:[%s2298 + $0x9] sm:$0xff]
        %v2606 = vld [vmem:[%s2298 + $0x19] sm:$0xff]
        %v2607 = vld [vmem:[%s2298 + $0x21] sm:$0xff]
        %v2608 = vld [vmem:[%s2298 + $0x31] sm:$0xff]
        %v2609 = vld [vmem:[%s2298 + $0x39] sm:$0xff]
        %v2610 = vld [vmem:[%s2298 + $0x49] sm:$0xff]
        %v2611 = vld [vmem:[%s2298 + $0x51] sm:$0xff]
        %v2612 = vld [vmem:[%s2298 + $0x61] sm:$0xff]
        %v2613 = vld [vmem:[%s2298 + $0x69] sm:$0xff]
        %v2614 = vld [vmem:[%s2298 + $0x79] sm:$0xff]
        %v2615 = vld [vmem:[%s2298 + $0x81] sm:$0xff]
        %v2616 = vld [vmem:[%s2298 + $0x91] sm:$0xff]
        %v2617 = vld [vmem:[%s2298 + $0x99] sm:$0xff]
        %v2618 = vld [vmem:[%s2298 + $0xa9] sm:$0xff]
        %v2619 = vld [vmem:[%s2298 + $0xb1] sm:$0xff]
        %v2620 = vld [vmem:[%s2298 + $0xc1] sm:$0xff]
        %v2621 = vld [vmem:[%s2298 + $0xc9] sm:$0xff]
        %v2622 = vld [vmem:[%s2298 + $0xd9] sm:$0xff]
        %v2623 = vld [vmem:[%s2298 + $0xe1] sm:$0xff]
        %v2624 = vld [vmem:[%s2298 + $0xf1] sm:$0xff]
        %v2625 = vld [vmem:[%s2298 + $0xf9] sm:$0xff]
        %v2626 = vld [vmem:[%s2298 + $0x109] sm:$0xff]
        %v2627 = vld [vmem:[%s2298 + $0x111] sm:$0xff]
        %v2628 = vld [vmem:[%s2298 + $0x121] sm:$0xff]
        %v2629 = vld [vmem:[%s2298 + $0x129] sm:$0xff]
        %v2630 = vld [vmem:[%s2298 + $0x139] sm:$0xff]
        %v2631 = vld [vmem:[%s2298 + $0x141] sm:$0xff]
        %v2632 = vld [vmem:[%s2298 + $0x151] sm:$0xff]
        %v2633 = vld [vmem:[%s2298 + $0x159] sm:$0xff]
        %v2634 = vld [vmem:[%s2298 + $0x169] sm:$0xff]
        %v2635 = vld [vmem:[%s2298 + $0x171] sm:$0xff]
        %v2636 = vpack.c.bf16 %v2605, %v2604
        %v2637 = vpack.c.bf16 %v2607, %v2606
        %v2638 = vpack.c.bf16 %v2609, %v2608
        %v2639 = vpack.c.bf16 %v2611, %v2610
        %v2640 = vpack.c.bf16 %v2613, %v2612
        %v2641 = vpack.c.bf16 %v2615, %v2614
        %v2642 = vpack.c.bf16 %v2617, %v2616
        %v2643 = vpack.c.bf16 %v2619, %v2618
        %v2644 = vpack.c.bf16 %v2621, %v2620
        %v2645 = vpack.c.bf16 %v2623, %v2622
        %v2646 = vpack.c.bf16 %v2625, %v2624
        %v2647 = vpack.c.bf16 %v2627, %v2626
        %v2648 = vpack.c.bf16 %v2629, %v2628
        %v2649 = vpack.c.bf16 %v2631, %v2630
        %v2650 = vpack.c.bf16 %v2633, %v2632
        %v2651 = vpack.c.bf16 %v2635, %v2634
        %v2652 = vld [vmem:[#allocation7 + $0x1c0] sm:$0xf]
        %v2653 = vld [vmem:[#allocation7 + $0x1c4] sm:$0xf]
        %v2654 = vld [vmem:[#allocation7 + $0x1c8] sm:$0xf]
        %v2655 = vld [vmem:[#allocation7 + $0x1cc] sm:$0xf]
        %v2656 = vld [vmem:[#allocation7 + $0x1d0] sm:$0xf]
        %v2657 = vld [vmem:[#allocation7 + $0x1d4] sm:$0xf]
        %v2658 = vld [vmem:[#allocation7 + $0x1d8] sm:$0xf]
        %v2659 = vld [vmem:[#allocation7 + $0x1dc] sm:$0xf]
        %v2660 = vld [vmem:[#allocation7 + $0x1e0] sm:$0xf]
        %v2661 = vld [vmem:[#allocation7 + $0x1e4] sm:$0xf]
        %v2662 = vld [vmem:[#allocation7 + $0x1e8] sm:$0xf]
        %v2663 = vld [vmem:[#allocation7 + $0x1ec] sm:$0xf]
        %v2664 = vld [vmem:[#allocation7 + $0x1f0] sm:$0xf]
        %v2665 = vld [vmem:[#allocation7 + $0x1f4] sm:$0xf]
        %v2666 = vld [vmem:[#allocation7 + $0x1f8] sm:$0xf]
        %v2667 = vld [vmem:[#allocation7 + $0x1fc] sm:$0xf]
        %v2684 = vunpack.c.l.b16 %v2652
        %v2685 = vunpack.c.l.b16 %v2653
        %v2686 = vunpack.c.l.b16 %v2654
        %v2687 = vunpack.c.l.b16 %v2655
        %v2688 = vunpack.c.l.b16 %v2656
        %v2689 = vunpack.c.l.b16 %v2657
        %v2690 = vunpack.c.l.b16 %v2658
        %v2691 = vunpack.c.l.b16 %v2659
        %v2692 = vunpack.c.l.b16 %v2660
        %v2693 = vunpack.c.l.b16 %v2661
        %v2694 = vunpack.c.l.b16 %v2662
        %v2695 = vunpack.c.l.b16 %v2663
        %v2696 = vunpack.c.l.b16 %v2664
        %v2697 = vunpack.c.l.b16 %v2665
        %v2698 = vunpack.c.l.b16 %v2666
        %v2699 = vunpack.c.l.b16 %v2667
        %v2700 = vpack.c.b16 %v2685, %v2684
        %v2701 = vpack.c.b16 %v2687, %v2686
        %v2702 = vpack.c.b16 %v2689, %v2688
        %v2703 = vpack.c.b16 %v2691, %v2690
        %v2704 = vpack.c.b16 %v2693, %v2692
        %v2705 = vpack.c.b16 %v2695, %v2694
        %v2706 = vpack.c.b16 %v2697, %v2696
        %v2707 = vpack.c.b16 %v2699, %v2698
        %2716 = vmatprep.subr.bf16.mxu0 0
        %2717 = vmatpush1.bf16.msra.mxu0 %v2707
        %2718 = vmatprep.subr.bf16.mxu0 0
        %2719 = vmatpush1.bf16.msra.mxu0 %v2706
        %2720 = vmatprep.subr.bf16.mxu0 0
        %2721 = vmatpush1.bf16.msra.mxu0 %v2705
        %2722 = vmatprep.subr.bf16.mxu0 0
        %2723 = vmatpush1.bf16.msra.mxu0 %v2704
        %2724 = vmatprep.subr.bf16.mxu0 0
        %2725 = vmatpush1.bf16.msra.mxu0 %v2703
        %2726 = vmatprep.subr.bf16.mxu0 0
        %2727 = vmatpush1.bf16.msra.mxu0 %v2702
        %2728 = vmatprep.subr.bf16.mxu0 0
        %2729 = vmatpush1.bf16.msra.mxu0 %v2701
        %2730 = vmatprep.subr.bf16.mxu0 0
        %2731 = vmatpush1.bf16.msra.mxu0 %v2700
        %2732 = vmatprep.subr.bf16.mxu0 0
        %2733 = vmatpush2.bf16.msra.mxu0 0
        %2734 = vmatprep.subr.bf16.mxu0 0
        %2735 = vmatpush2.bf16.msra.mxu0 0
        %2736 = vmatprep.subr.bf16.mxu0 0
        %2737 = vmatpush2.bf16.msra.mxu0 0
        %2738 = vmatprep.subr.bf16.mxu0 0
        %2739 = vmatpush2.bf16.msra.mxu0 0
        %2740 = vmatprep.subr.bf16.mxu0 0
        %2741 = vmatpush2.bf16.msra.mxu0 0
        %2742 = vmatprep.subr.bf16.mxu0 0
        %2743 = vmatpush2.bf16.msra.mxu0 0
        %2744 = vmatprep.subr.bf16.mxu0 0
        %2745 = vmatpush2.bf16.msra.mxu0 0
        %2746 = vmatprep.subr.bf16.mxu0 0
        %2747 = vmatpush2.bf16.msra.mxu0 0
        %2748 = vmatprep.mubr.bf16.mxu0 0
        %2749 = vmatmul.mubr.bf16.gmra.mxu0 %v2636
        %v2750 = vpop.f32.mrf.mxu0
        %v2751 = vadd.f32 0.0, %v2750
        %v2752 = vpop.f32.mrf.mxu0
        %v2753 = vpop.f32.mrf.mxu0
        %v2754 = vadd.f32 0.0, %v2753
        %v2755 = vpop.f32.mrf.mxu0
        %2756 = vmatprep.mubr.bf16.mxu0 0
        %2757 = vmatmul.mubr.bf16.gmra.mxu0 %v2637
        %v2758 = vpop.f32.mrf.mxu0
        %v2759 = vadd.f32 0.0, %v2758
        %v2760 = vpop.f32.mrf.mxu0
        %v2761 = vpop.f32.mrf.mxu0
        %v2762 = vadd.f32 0.0, %v2761
        %v2763 = vpop.f32.mrf.mxu0
        %2764 = vmatprep.mubr.bf16.mxu0 0
        %2765 = vmatmul.mubr.bf16.gmra.mxu0 %v2638
        %v2766 = vpop.f32.mrf.mxu0
        %v2767 = vadd.f32 0.0, %v2766
        %v2768 = vpop.f32.mrf.mxu0
        %v2769 = vpop.f32.mrf.mxu0
        %v2770 = vadd.f32 0.0, %v2769
        %v2771 = vpop.f32.mrf.mxu0
        %2772 = vmatprep.mubr.bf16.mxu0 0
        %2773 = vmatmul.mubr.bf16.gmra.mxu0 %v2639
        %v2774 = vpop.f32.mrf.mxu0
        %v2775 = vadd.f32 0.0, %v2774
        %v2776 = vpop.f32.mrf.mxu0
        %v2777 = vpop.f32.mrf.mxu0
        %v2778 = vadd.f32 0.0, %v2777
        %v2779 = vpop.f32.mrf.mxu0
        %2780 = vmatprep.mubr.bf16.mxu0 0
        %2781 = vmatmul.mubr.bf16.gmra.mxu0 %v2640
        %v2782 = vpop.f32.mrf.mxu0
        %v2783 = vadd.f32 0.0, %v2782
        %v2784 = vpop.f32.mrf.mxu0
        %v2785 = vpop.f32.mrf.mxu0
        %v2786 = vadd.f32 0.0, %v2785
        %v2787 = vpop.f32.mrf.mxu0
        %2788 = vmatprep.mubr.bf16.mxu0 0
        %2789 = vmatmul.mubr.bf16.gmra.mxu0 %v2641
        %v2790 = vpop.f32.mrf.mxu0
        %v2791 = vadd.f32 0.0, %v2790
        %v2792 = vpop.f32.mrf.mxu0
        %v2793 = vpop.f32.mrf.mxu0
        %v2794 = vadd.f32 0.0, %v2793
        %v2795 = vpop.f32.mrf.mxu0
        %2796 = vmatprep.mubr.bf16.mxu0 0
        %2797 = vmatmul.mubr.bf16.gmra.mxu0 %v2642
        %v2798 = vpop.f32.mrf.mxu0
        %v2799 = vadd.f32 0.0, %v2798
        %v2800 = vpop.f32.mrf.mxu0
        %v2801 = vpop.f32.mrf.mxu0
        %v2802 = vadd.f32 0.0, %v2801
        %v2803 = vpop.f32.mrf.mxu0
        %2804 = vmatprep.mubr.bf16.mxu0 0
        %2805 = vmatmul.mubr.bf16.gmra.mxu0 %v2643
        %v2806 = vpop.f32.mrf.mxu0
        %v2807 = vadd.f32 0.0, %v2806
        %v2808 = vpop.f32.mrf.mxu0
        %v2809 = vpop.f32.mrf.mxu0
        %v2810 = vadd.f32 0.0, %v2809
        %v2811 = vpop.f32.mrf.mxu0
        %2812 = vmatprep.mubr.bf16.mxu0 0
        %2813 = vmatmul.mubr.bf16.gmra.mxu0 %v2644
        %v2814 = vpop.f32.mrf.mxu0
        %v2815 = vadd.f32 0.0, %v2814
        %v2816 = vpop.f32.mrf.mxu0
        %v2817 = vpop.f32.mrf.mxu0
        %v2818 = vadd.f32 0.0, %v2817
        %v2819 = vpop.f32.mrf.mxu0
        %2820 = vmatprep.mubr.bf16.mxu0 0
        %2821 = vmatmul.mubr.bf16.gmra.mxu0 %v2645
        %v2822 = vpop.f32.mrf.mxu0
        %v2823 = vadd.f32 0.0, %v2822
        %v2824 = vpop.f32.mrf.mxu0
        %v2825 = vpop.f32.mrf.mxu0
        %v2826 = vadd.f32 0.0, %v2825
        %v2827 = vpop.f32.mrf.mxu0
        %2828 = vmatprep.mubr.bf16.mxu0 0
        %2829 = vmatmul.mubr.bf16.gmra.mxu0 %v2646
        %v2830 = vpop.f32.mrf.mxu0
        %v2831 = vadd.f32 0.0, %v2830
        %v2832 = vpop.f32.mrf.mxu0
        %v2833 = vpop.f32.mrf.mxu0
        %v2834 = vadd.f32 0.0, %v2833
        %v2835 = vpop.f32.mrf.mxu0
        %2836 = vmatprep.mubr.bf16.mxu0 0
        %2837 = vmatmul.mubr.bf16.gmra.mxu0 %v2647
        %v2838 = vpop.f32.mrf.mxu0
        %v2839 = vadd.f32 0.0, %v2838
        %v2840 = vpop.f32.mrf.mxu0
        %v2841 = vpop.f32.mrf.mxu0
        %v2842 = vadd.f32 0.0, %v2841
        %v2843 = vpop.f32.mrf.mxu0
        %2844 = vmatprep.mubr.bf16.mxu0 0
        %2845 = vmatmul.mubr.bf16.gmra.mxu0 %v2648
        %v2846 = vpop.f32.mrf.mxu0
        %v2847 = vadd.f32 0.0, %v2846
        %v2848 = vpop.f32.mrf.mxu0
        %v2849 = vpop.f32.mrf.mxu0
        %v2850 = vadd.f32 0.0, %v2849
        %v2851 = vpop.f32.mrf.mxu0
        %2852 = vmatprep.mubr.bf16.mxu0 0
        %2853 = vmatmul.mubr.bf16.gmra.mxu0 %v2649
        %v2854 = vpop.f32.mrf.mxu0
        %v2855 = vadd.f32 0.0, %v2854
        %v2856 = vpop.f32.mrf.mxu0
        %v2857 = vpop.f32.mrf.mxu0
        %v2858 = vadd.f32 0.0, %v2857
        %v2859 = vpop.f32.mrf.mxu0
        %2860 = vmatprep.mubr.bf16.mxu0 0
        %2861 = vmatmul.mubr.bf16.gmra.mxu0 %v2650
        %v2862 = vpop.f32.mrf.mxu0
        %v2863 = vadd.f32 0.0, %v2862
        %v2864 = vpop.f32.mrf.mxu0
        %v2865 = vpop.f32.mrf.mxu0
        %v2866 = vadd.f32 0.0, %v2865
        %v2867 = vpop.f32.mrf.mxu0
        %2868 = vmatprep.mubr.bf16.mxu0 0
        %2869 = vmatmul.mubr.bf16.gmra.mxu0 %v2651
        %v2870 = vpop.f32.mrf.mxu0
        %v2871 = vadd.f32 0.0, %v2870
        %v2872 = vpop.f32.mrf.mxu0
        %v2873 = vpop.f32.mrf.mxu0
        %v2874 = vadd.f32 0.0, %v2873
        %v2875 = vpop.f32.mrf.mxu0
        %2876 = vdwg.mxu0
        %v2877 = vadd.f32 %v2572, %v2751
        %v2878 = vadd.f32 %v2573, %v2754
        %v2879 = vadd.f32 %v2574, %v2759
        %v2880 = vadd.f32 %v2575, %v2762
        %v2881 = vadd.f32 %v2576, %v2767
        %v2882 = vadd.f32 %v2577, %v2770
        %v2883 = vadd.f32 %v2578, %v2775
        %v2884 = vadd.f32 %v2579, %v2778
        %v2885 = vadd.f32 %v2580, %v2783
        %v2886 = vadd.f32 %v2581, %v2786
        %v2887 = vadd.f32 %v2582, %v2791
        %v2888 = vadd.f32 %v2583, %v2794
        %v2889 = vadd.f32 %v2584, %v2799
        %v2890 = vadd.f32 %v2585, %v2802
        %v2891 = vadd.f32 %v2586, %v2807
        %v2892 = vadd.f32 %v2587, %v2810
        %v2893 = vadd.f32 %v2588, %v2815
        %v2894 = vadd.f32 %v2589, %v2818
        %v2895 = vadd.f32 %v2590, %v2823
        %v2896 = vadd.f32 %v2591, %v2826
        %v2897 = vadd.f32 %v2592, %v2831
        %v2898 = vadd.f32 %v2593, %v2834
        %v2899 = vadd.f32 %v2594, %v2839
        %v2900 = vadd.f32 %v2595, %v2842
        %v2901 = vadd.f32 %v2596, %v2847
        %v2902 = vadd.f32 %v2597, %v2850
        %v2903 = vadd.f32 %v2598, %v2855
        %v2904 = vadd.f32 %v2599, %v2858
        %v2905 = vadd.f32 %v2600, %v2863
        %v2906 = vadd.f32 %v2601, %v2866
        %v2907 = vadd.f32 %v2602, %v2871
        %v2908 = vadd.f32 %v2603, %v2874
        %v2909 = vld [vmem:[%s2298 + $0x2] sm:$0xff]
        %v2910 = vld [vmem:[%s2298 + $0xa] sm:$0xff]
        %v2911 = vld [vmem:[%s2298 + $0x1a] sm:$0xff]
        %v2912 = vld [vmem:[%s2298 + $0x22] sm:$0xff]
        %v2913 = vld [vmem:[%s2298 + $0x32] sm:$0xff]
        %v2914 = vld [vmem:[%s2298 + $0x3a] sm:$0xff]
        %v2915 = vld [vmem:[%s2298 + $0x4a] sm:$0xff]
        %v2916 = vld [vmem:[%s2298 + $0x52] sm:$0xff]
        %v2917 = vld [vmem:[%s2298 + $0x62] sm:$0xff]
        %v2918 = vld [vmem:[%s2298 + $0x6a] sm:$0xff]
        %v2919 = vld [vmem:[%s2298 + $0x7a] sm:$0xff]
        %v2920 = vld [vmem:[%s2298 + $0x82] sm:$0xff]
        %v2921 = vld [vmem:[%s2298 + $0x92] sm:$0xff]
        %v2922 = vld [vmem:[%s2298 + $0x9a] sm:$0xff]
        %v2923 = vld [vmem:[%s2298 + $0xaa] sm:$0xff]
        %v2924 = vld [vmem:[%s2298 + $0xb2] sm:$0xff]
        %v2925 = vld [vmem:[%s2298 + $0xc2] sm:$0xff]
        %v2926 = vld [vmem:[%s2298 + $0xca] sm:$0xff]
        %v2927 = vld [vmem:[%s2298 + $0xda] sm:$0xff]
        %v2928 = vld [vmem:[%s2298 + $0xe2] sm:$0xff]
        %v2929 = vld [vmem:[%s2298 + $0xf2] sm:$0xff]
        %v2930 = vld [vmem:[%s2298 + $0xfa] sm:$0xff]
        %v2931 = vld [vmem:[%s2298 + $0x10a] sm:$0xff]
        %v2932 = vld [vmem:[%s2298 + $0x112] sm:$0xff]
        %v2933 = vld [vmem:[%s2298 + $0x122] sm:$0xff]
        %v2934 = vld [vmem:[%s2298 + $0x12a] sm:$0xff]
        %v2935 = vld [vmem:[%s2298 + $0x13a] sm:$0xff]
        %v2936 = vld [vmem:[%s2298 + $0x142] sm:$0xff]
        %v2937 = vld [vmem:[%s2298 + $0x152] sm:$0xff]
        %v2938 = vld [vmem:[%s2298 + $0x15a] sm:$0xff]
        %v2939 = vld [vmem:[%s2298 + $0x16a] sm:$0xff]
        %v2940 = vld [vmem:[%s2298 + $0x172] sm:$0xff]
        %v2941 = vpack.c.bf16 %v2910, %v2909
        %v2942 = vpack.c.bf16 %v2912, %v2911
        %v2943 = vpack.c.bf16 %v2914, %v2913
        %v2944 = vpack.c.bf16 %v2916, %v2915
        %v2945 = vpack.c.bf16 %v2918, %v2917
        %v2946 = vpack.c.bf16 %v2920, %v2919
        %v2947 = vpack.c.bf16 %v2922, %v2921
        %v2948 = vpack.c.bf16 %v2924, %v2923
        %v2949 = vpack.c.bf16 %v2926, %v2925
        %v2950 = vpack.c.bf16 %v2928, %v2927
        %v2951 = vpack.c.bf16 %v2930, %v2929
        %v2952 = vpack.c.bf16 %v2932, %v2931
        %v2953 = vpack.c.bf16 %v2934, %v2933
        %v2954 = vpack.c.bf16 %v2936, %v2935
        %v2955 = vpack.c.bf16 %v2938, %v2937
        %v2956 = vpack.c.bf16 %v2940, %v2939
        %v2957 = vld [vmem:[#allocation7 + $0x200] sm:$0xf]
        %v2958 = vld [vmem:[#allocation7 + $0x204] sm:$0xf]
        %v2959 = vld [vmem:[#allocation7 + $0x208] sm:$0xf]
        %v2960 = vld [vmem:[#allocation7 + $0x20c] sm:$0xf]
        %v2961 = vld [vmem:[#allocation7 + $0x210] sm:$0xf]
        %v2962 = vld [vmem:[#allocation7 + $0x214] sm:$0xf]
        %v2963 = vld [vmem:[#allocation7 + $0x218] sm:$0xf]
        %v2964 = vld [vmem:[#allocation7 + $0x21c] sm:$0xf]
        %v2965 = vld [vmem:[#allocation7 + $0x220] sm:$0xf]
        %v2966 = vld [vmem:[#allocation7 + $0x224] sm:$0xf]
        %v2967 = vld [vmem:[#allocation7 + $0x228] sm:$0xf]
        %v2968 = vld [vmem:[#allocation7 + $0x22c] sm:$0xf]
        %v2969 = vld [vmem:[#allocation7 + $0x230] sm:$0xf]
        %v2970 = vld [vmem:[#allocation7 + $0x234] sm:$0xf]
        %v2971 = vld [vmem:[#allocation7 + $0x238] sm:$0xf]
        %v2972 = vld [vmem:[#allocation7 + $0x23c] sm:$0xf]
        %v2989 = vunpack.c.l.b16 %v2957
        %v2990 = vunpack.c.l.b16 %v2958
        %v2991 = vunpack.c.l.b16 %v2959
        %v2992 = vunpack.c.l.b16 %v2960
        %v2993 = vunpack.c.l.b16 %v2961
        %v2994 = vunpack.c.l.b16 %v2962
        %v2995 = vunpack.c.l.b16 %v2963
        %v2996 = vunpack.c.l.b16 %v2964
        %v2997 = vunpack.c.l.b16 %v2965
        %v2998 = vunpack.c.l.b16 %v2966
        %v2999 = vunpack.c.l.b16 %v2967
        %v3000 = vunpack.c.l.b16 %v2968
        %v3001 = vunpack.c.l.b16 %v2969
        %v3002 = vunpack.c.l.b16 %v2970
        %v3003 = vunpack.c.l.b16 %v2971
        %v3004 = vunpack.c.l.b16 %v2972
        %v3005 = vpack.c.b16 %v2990, %v2989
        %v3006 = vpack.c.b16 %v2992, %v2991
        %v3007 = vpack.c.b16 %v2994, %v2993
        %v3008 = vpack.c.b16 %v2996, %v2995
        %v3009 = vpack.c.b16 %v2998, %v2997
        %v3010 = vpack.c.b16 %v3000, %v2999
        %v3011 = vpack.c.b16 %v3002, %v3001
        %v3012 = vpack.c.b16 %v3004, %v3003
        %3021 = vmatprep.subr.bf16.mxu0 0
        %3022 = vmatpush1.bf16.msra.mxu0 %v3012
        %3023 = vmatprep.subr.bf16.mxu0 0
        %3024 = vmatpush1.bf16.msra.mxu0 %v3011
        %3025 = vmatprep.subr.bf16.mxu0 0
        %3026 = vmatpush1.bf16.msra.mxu0 %v3010
        %3027 = vmatprep.subr.bf16.mxu0 0
        %3028 = vmatpush1.bf16.msra.mxu0 %v3009
        %3029 = vmatprep.subr.bf16.mxu0 0
        %3030 = vmatpush1.bf16.msra.mxu0 %v3008
        %3031 = vmatprep.subr.bf16.mxu0 0
        %3032 = vmatpush1.bf16.msra.mxu0 %v3007
        %3033 = vmatprep.subr.bf16.mxu0 0
        %3034 = vmatpush1.bf16.msra.mxu0 %v3006
        %3035 = vmatprep.subr.bf16.mxu0 0
        %3036 = vmatpush1.bf16.msra.mxu0 %v3005
        %3037 = vmatprep.subr.bf16.mxu0 0
        %3038 = vmatpush2.bf16.msra.mxu0 0
        %3039 = vmatprep.subr.bf16.mxu0 0
        %3040 = vmatpush2.bf16.msra.mxu0 0
        %3041 = vmatprep.subr.bf16.mxu0 0
        %3042 = vmatpush2.bf16.msra.mxu0 0
        %3043 = vmatprep.subr.bf16.mxu0 0
        %3044 = vmatpush2.bf16.msra.mxu0 0
        %3045 = vmatprep.subr.bf16.mxu0 0
        %3046 = vmatpush2.bf16.msra.mxu0 0
        %3047 = vmatprep.subr.bf16.mxu0 0
        %3048 = vmatpush2.bf16.msra.mxu0 0
        %3049 = vmatprep.subr.bf16.mxu0 0
        %3050 = vmatpush2.bf16.msra.mxu0 0
        %3051 = vmatprep.subr.bf16.mxu0 0
        %3052 = vmatpush2.bf16.msra.mxu0 0
        %3053 = vmatprep.mubr.bf16.mxu0 0
        %3054 = vmatmul.mubr.bf16.gmra.mxu0 %v2941
        %v3055 = vpop.f32.mrf.mxu0
        %v3056 = vadd.f32 0.0, %v3055
        %v3057 = vpop.f32.mrf.mxu0
        %v3058 = vpop.f32.mrf.mxu0
        %v3059 = vadd.f32 0.0, %v3058
        %v3060 = vpop.f32.mrf.mxu0
        %3061 = vmatprep.mubr.bf16.mxu0 0
        %3062 = vmatmul.mubr.bf16.gmra.mxu0 %v2942
        %v3063 = vpop.f32.mrf.mxu0
        %v3064 = vadd.f32 0.0, %v3063
        %v3065 = vpop.f32.mrf.mxu0
        %v3066 = vpop.f32.mrf.mxu0
        %v3067 = vadd.f32 0.0, %v3066
        %v3068 = vpop.f32.mrf.mxu0
        %3069 = vmatprep.mubr.bf16.mxu0 0
        %3070 = vmatmul.mubr.bf16.gmra.mxu0 %v2943
        %v3071 = vpop.f32.mrf.mxu0
        %v3072 = vadd.f32 0.0, %v3071
        %v3073 = vpop.f32.mrf.mxu0
        %v3074 = vpop.f32.mrf.mxu0
        %v3075 = vadd.f32 0.0, %v3074
        %v3076 = vpop.f32.mrf.mxu0
        %3077 = vmatprep.mubr.bf16.mxu0 0
        %3078 = vmatmul.mubr.bf16.gmra.mxu0 %v2944
        %v3079 = vpop.f32.mrf.mxu0
        %v3080 = vadd.f32 0.0, %v3079
        %v3081 = vpop.f32.mrf.mxu0
        %v3082 = vpop.f32.mrf.mxu0
        %v3083 = vadd.f32 0.0, %v3082
        %v3084 = vpop.f32.mrf.mxu0
        %3085 = vmatprep.mubr.bf16.mxu0 0
        %3086 = vmatmul.mubr.bf16.gmra.mxu0 %v2945
        %v3087 = vpop.f32.mrf.mxu0
        %v3088 = vadd.f32 0.0, %v3087
        %v3089 = vpop.f32.mrf.mxu0
        %v3090 = vpop.f32.mrf.mxu0
        %v3091 = vadd.f32 0.0, %v3090
        %v3092 = vpop.f32.mrf.mxu0
        %3093 = vmatprep.mubr.bf16.mxu0 0
        %3094 = vmatmul.mubr.bf16.gmra.mxu0 %v2946
        %v3095 = vpop.f32.mrf.mxu0
        %v3096 = vadd.f32 0.0, %v3095
        %v3097 = vpop.f32.mrf.mxu0
        %v3098 = vpop.f32.mrf.mxu0
        %v3099 = vadd.f32 0.0, %v3098
        %v3100 = vpop.f32.mrf.mxu0
        %3101 = vmatprep.mubr.bf16.mxu0 0
        %3102 = vmatmul.mubr.bf16.gmra.mxu0 %v2947
        %v3103 = vpop.f32.mrf.mxu0
        %v3104 = vadd.f32 0.0, %v3103
        %v3105 = vpop.f32.mrf.mxu0
        %v3106 = vpop.f32.mrf.mxu0
        %v3107 = vadd.f32 0.0, %v3106
        %v3108 = vpop.f32.mrf.mxu0
        %3109 = vmatprep.mubr.bf16.mxu0 0
        %3110 = vmatmul.mubr.bf16.gmra.mxu0 %v2948
        %v3111 = vpop.f32.mrf.mxu0
        %v3112 = vadd.f32 0.0, %v3111
        %v3113 = vpop.f32.mrf.mxu0
        %v3114 = vpop.f32.mrf.mxu0
        %v3115 = vadd.f32 0.0, %v3114
        %v3116 = vpop.f32.mrf.mxu0
        %3117 = vmatprep.mubr.bf16.mxu0 0
        %3118 = vmatmul.mubr.bf16.gmra.mxu0 %v2949
        %v3119 = vpop.f32.mrf.mxu0
        %v3120 = vadd.f32 0.0, %v3119
        %v3121 = vpop.f32.mrf.mxu0
        %v3122 = vpop.f32.mrf.mxu0
        %v3123 = vadd.f32 0.0, %v3122
        %v3124 = vpop.f32.mrf.mxu0
        %3125 = vmatprep.mubr.bf16.mxu0 0
        %3126 = vmatmul.mubr.bf16.gmra.mxu0 %v2950
        %v3127 = vpop.f32.mrf.mxu0
        %v3128 = vadd.f32 0.0, %v3127
        %v3129 = vpop.f32.mrf.mxu0
        %v3130 = vpop.f32.mrf.mxu0
        %v3131 = vadd.f32 0.0, %v3130
        %v3132 = vpop.f32.mrf.mxu0
        %3133 = vmatprep.mubr.bf16.mxu0 0
        %3134 = vmatmul.mubr.bf16.gmra.mxu0 %v2951
        %v3135 = vpop.f32.mrf.mxu0
        %v3136 = vadd.f32 0.0, %v3135
        %v3137 = vpop.f32.mrf.mxu0
        %v3138 = vpop.f32.mrf.mxu0
        %v3139 = vadd.f32 0.0, %v3138
        %v3140 = vpop.f32.mrf.mxu0
        %3141 = vmatprep.mubr.bf16.mxu0 0
        %3142 = vmatmul.mubr.bf16.gmra.mxu0 %v2952
        %v3143 = vpop.f32.mrf.mxu0
        %v3144 = vadd.f32 0.0, %v3143
        %v3145 = vpop.f32.mrf.mxu0
        %v3146 = vpop.f32.mrf.mxu0
        %v3147 = vadd.f32 0.0, %v3146
        %v3148 = vpop.f32.mrf.mxu0
        %3149 = vmatprep.mubr.bf16.mxu0 0
        %3150 = vmatmul.mubr.bf16.gmra.mxu0 %v2953
        %v3151 = vpop.f32.mrf.mxu0
        %v3152 = vadd.f32 0.0, %v3151
        %v3153 = vpop.f32.mrf.mxu0
        %v3154 = vpop.f32.mrf.mxu0
        %v3155 = vadd.f32 0.0, %v3154
        %v3156 = vpop.f32.mrf.mxu0
        %3157 = vmatprep.mubr.bf16.mxu0 0
        %3158 = vmatmul.mubr.bf16.gmra.mxu0 %v2954
        %v3159 = vpop.f32.mrf.mxu0
        %v3160 = vadd.f32 0.0, %v3159
        %v3161 = vpop.f32.mrf.mxu0
        %v3162 = vpop.f32.mrf.mxu0
        %v3163 = vadd.f32 0.0, %v3162
        %v3164 = vpop.f32.mrf.mxu0
        %3165 = vmatprep.mubr.bf16.mxu0 0
        %3166 = vmatmul.mubr.bf16.gmra.mxu0 %v2955
        %v3167 = vpop.f32.mrf.mxu0
        %v3168 = vadd.f32 0.0, %v3167
        %v3169 = vpop.f32.mrf.mxu0
        %v3170 = vpop.f32.mrf.mxu0
        %v3171 = vadd.f32 0.0, %v3170
        %v3172 = vpop.f32.mrf.mxu0
        %3173 = vmatprep.mubr.bf16.mxu0 0
        %3174 = vmatmul.mubr.bf16.gmra.mxu0 %v2956
        %v3175 = vpop.f32.mrf.mxu0
        %v3176 = vadd.f32 0.0, %v3175
        %v3177 = vpop.f32.mrf.mxu0
        %v3178 = vpop.f32.mrf.mxu0
        %v3179 = vadd.f32 0.0, %v3178
        %v3180 = vpop.f32.mrf.mxu0
        %3181 = vdwg.mxu0
        %v3182 = vadd.f32 %v2877, %v3056
        %v3183 = vadd.f32 %v2878, %v3059
        %v3184 = vadd.f32 %v2879, %v3064
        %v3185 = vadd.f32 %v2880, %v3067
        %v3186 = vadd.f32 %v2881, %v3072
        %v3187 = vadd.f32 %v2882, %v3075
        %v3188 = vadd.f32 %v2883, %v3080
        %v3189 = vadd.f32 %v2884, %v3083
        %v3190 = vadd.f32 %v2885, %v3088
        %v3191 = vadd.f32 %v2886, %v3091
        %v3192 = vadd.f32 %v2887, %v3096
        %v3193 = vadd.f32 %v2888, %v3099
        %v3194 = vadd.f32 %v2889, %v3104
        %v3195 = vadd.f32 %v2890, %v3107
        %v3196 = vadd.f32 %v2891, %v3112
        %v3197 = vadd.f32 %v2892, %v3115
        %v3198 = vadd.f32 %v2893, %v3120
        %v3199 = vadd.f32 %v2894, %v3123
        %v3200 = vadd.f32 %v2895, %v3128
        %v3201 = vadd.f32 %v2896, %v3131
        %v3202 = vadd.f32 %v2897, %v3136
        %v3203 = vadd.f32 %v2898, %v3139
        %v3204 = vadd.f32 %v2899, %v3144
        %v3205 = vadd.f32 %v2900, %v3147
        %v3206 = vadd.f32 %v2901, %v3152
        %v3207 = vadd.f32 %v2902, %v3155
        %v3208 = vadd.f32 %v2903, %v3160
        %v3209 = vadd.f32 %v2904, %v3163
        %v3210 = vadd.f32 %v2905, %v3168
        %v3211 = vadd.f32 %v2906, %v3171
        %v3212 = vadd.f32 %v2907, %v3176
        %v3213 = vadd.f32 %v2908, %v3179
        %v3214 = vld [vmem:[%s2] sm:$0x1]
        %v3216 = vlaneseq
        %v3217 = vshrl.u32 %v3216, 7
        %v3218 = vsub.s32 0, %v3217
        %v3219 = vrot.slane %v3214, %v3218
        %v3221 = vmul.f32 %v3182, %v3219
        %v3222 = vmul.f32 %v3183, %v3219
        %v3223 = vmul.f32 %v3184, %v3219
        %v3224 = vmul.f32 %v3185, %v3219
        %v3225 = vmul.f32 %v3186, %v3219
        %v3226 = vmul.f32 %v3187, %v3219
        %v3227 = vmul.f32 %v3188, %v3219
        %v3228 = vmul.f32 %v3189, %v3219
        %v3229 = vmul.f32 %v3190, %v3219
        %v3230 = vmul.f32 %v3191, %v3219
        %v3231 = vmul.f32 %v3192, %v3219
        %v3232 = vmul.f32 %v3193, %v3219
        %v3233 = vmul.f32 %v3194, %v3219
        %v3234 = vmul.f32 %v3195, %v3219
        %v3235 = vmul.f32 %v3196, %v3219
        %v3236 = vmul.f32 %v3197, %v3219
        %v3237 = vmul.f32 %v3198, %v3219
        %v3238 = vmul.f32 %v3199, %v3219
        %v3239 = vmul.f32 %v3200, %v3219
        %v3240 = vmul.f32 %v3201, %v3219
        %v3241 = vmul.f32 %v3202, %v3219
        %v3242 = vmul.f32 %v3203, %v3219
        %v3243 = vmul.f32 %v3204, %v3219
        %v3244 = vmul.f32 %v3205, %v3219
        %v3245 = vmul.f32 %v3206, %v3219
        %v3246 = vmul.f32 %v3207, %v3219
        %v3247 = vmul.f32 %v3208, %v3219
        %v3248 = vmul.f32 %v3209, %v3219
        %v3249 = vmul.f32 %v3210, %v3219
        %v3250 = vmul.f32 %v3211, %v3219
        %v3251 = vmul.f32 %v3212, %v3219
        %v3252 = vmul.f32 %v3213, %v3219
        %v3253 = vld [vmem:[%s3] sm:$0x1]
        %v3255 = vlaneseq
        %v3256 = vshrl.u32 %v3255, 7
        %v3257 = vsub.s32 0, %v3256
        %v3258 = vrot.slane %v3253, %v3257
        %v3260 = vadd.f32 %v3221, %v3258
        %v3261 = vadd.f32 %v3222, %v3258
        %v3262 = vadd.f32 %v3223, %v3258
        %v3263 = vadd.f32 %v3224, %v3258
        %v3264 = vadd.f32 %v3225, %v3258
        %v3265 = vadd.f32 %v3226, %v3258
        %v3266 = vadd.f32 %v3227, %v3258
        %v3267 = vadd.f32 %v3228, %v3258
        %v3268 = vadd.f32 %v3229, %v3258
        %v3269 = vadd.f32 %v3230, %v3258
        %v3270 = vadd.f32 %v3231, %v3258
        %v3271 = vadd.f32 %v3232, %v3258
        %v3272 = vadd.f32 %v3233, %v3258
        %v3273 = vadd.f32 %v3234, %v3258
        %v3274 = vadd.f32 %v3235, %v3258
        %v3275 = vadd.f32 %v3236, %v3258
        %v3276 = vadd.f32 %v3237, %v3258
        %v3277 = vadd.f32 %v3238, %v3258
        %v3278 = vadd.f32 %v3239, %v3258
        %v3279 = vadd.f32 %v3240, %v3258
        %v3280 = vadd.f32 %v3241, %v3258
        %v3281 = vadd.f32 %v3242, %v3258
        %v3282 = vadd.f32 %v3243, %v3258
        %v3283 = vadd.f32 %v3244, %v3258
        %v3284 = vadd.f32 %v3245, %v3258
        %v3285 = vadd.f32 %v3246, %v3258
        %v3286 = vadd.f32 %v3247, %v3258
        %v3287 = vadd.f32 %v3248, %v3258
        %v3288 = vadd.f32 %v3249, %v3258
        %v3289 = vadd.f32 %v3250, %v3258
        %v3290 = vadd.f32 %v3251, %v3258
        %v3291 = vadd.f32 %v3252, %v3258
        %v3292 = vmax.f32 %v3260, 0.0
        %v3293 = vmax.f32 %v3261, 0.0
        %v3294 = vmax.f32 %v3262, 0.0
        %v3295 = vmax.f32 %v3263, 0.0
        %v3296 = vmax.f32 %v3264, 0.0
        %v3297 = vmax.f32 %v3265, 0.0
        %v3298 = vmax.f32 %v3266, 0.0
        %v3299 = vmax.f32 %v3267, 0.0
        %v3300 = vmax.f32 %v3268, 0.0
        %v3301 = vmax.f32 %v3269, 0.0
        %v3302 = vmax.f32 %v3270, 0.0
        %v3303 = vmax.f32 %v3271, 0.0
        %v3304 = vmax.f32 %v3272, 0.0
        %v3305 = vmax.f32 %v3273, 0.0
        %v3306 = vmax.f32 %v3274, 0.0
        %v3307 = vmax.f32 %v3275, 0.0
        %v3308 = vmax.f32 %v3276, 0.0
        %v3309 = vmax.f32 %v3277, 0.0
        %v3310 = vmax.f32 %v3278, 0.0
        %v3311 = vmax.f32 %v3279, 0.0
        %v3312 = vmax.f32 %v3280, 0.0
        %v3313 = vmax.f32 %v3281, 0.0
        %v3314 = vmax.f32 %v3282, 0.0
        %v3315 = vmax.f32 %v3283, 0.0
        %v3316 = vmax.f32 %v3284, 0.0
        %v3317 = vmax.f32 %v3285, 0.0
        %v3318 = vmax.f32 %v3286, 0.0
        %v3319 = vmax.f32 %v3287, 0.0
        %v3320 = vmax.f32 %v3288, 0.0
        %v3321 = vmax.f32 %v3289, 0.0
        %v3322 = vmax.f32 %v3290, 0.0
        %v3323 = vmax.f32 %v3291, 0.0
        %s3324 = scalar_lea.vmem [#allocation3], 24
        %3325 = vst [vmem:[%s3324 + $0x1] sm:$0xff] %v3292
        %3326 = vst [vmem:[%s3324 + $0x9] sm:$0xff] %v3293
        %3327 = vst [vmem:[%s3324 + $0x19] sm:$0xff] %v3294
        %3328 = vst [vmem:[%s3324 + $0x21] sm:$0xff] %v3295
        %3329 = vst [vmem:[%s3324 + $0x31] sm:$0xff] %v3296
        %3330 = vst [vmem:[%s3324 + $0x39] sm:$0xff] %v3297
        %3331 = vst [vmem:[%s3324 + $0x49] sm:$0xff] %v3298
        %3332 = vst [vmem:[%s3324 + $0x51] sm:$0xff] %v3299
        %3333 = vst [vmem:[%s3324 + $0x61] sm:$0xff] %v3300
        %3334 = vst [vmem:[%s3324 + $0x69] sm:$0xff] %v3301
        %3335 = vst [vmem:[%s3324 + $0x79] sm:$0xff] %v3302
        %3336 = vst [vmem:[%s3324 + $0x81] sm:$0xff] %v3303
        %3337 = vst [vmem:[%s3324 + $0x91] sm:$0xff] %v3304
        %3338 = vst [vmem:[%s3324 + $0x99] sm:$0xff] %v3305
        %3339 = vst [vmem:[%s3324 + $0xa9] sm:$0xff] %v3306
        %3340 = vst [vmem:[%s3324 + $0xb1] sm:$0xff] %v3307
        %3341 = vst [vmem:[%s3324 + $0xc1] sm:$0xff] %v3308
        %3342 = vst [vmem:[%s3324 + $0xc9] sm:$0xff] %v3309
        %3343 = vst [vmem:[%s3324 + $0xd9] sm:$0xff] %v3310
        %3344 = vst [vmem:[%s3324 + $0xe1] sm:$0xff] %v3311
        %3345 = vst [vmem:[%s3324 + $0xf1] sm:$0xff] %v3312
        %3346 = vst [vmem:[%s3324 + $0xf9] sm:$0xff] %v3313
        %3347 = vst [vmem:[%s3324 + $0x109] sm:$0xff] %v3314
        %3348 = vst [vmem:[%s3324 + $0x111] sm:$0xff] %v3315
        %3349 = vst [vmem:[%s3324 + $0x121] sm:$0xff] %v3316
        %3350 = vst [vmem:[%s3324 + $0x129] sm:$0xff] %v3317
        %3351 = vst [vmem:[%s3324 + $0x139] sm:$0xff] %v3318
        %3352 = vst [vmem:[%s3324 + $0x141] sm:$0xff] %v3319
        %3353 = vst [vmem:[%s3324 + $0x151] sm:$0xff] %v3320
        %3354 = vst [vmem:[%s3324 + $0x159] sm:$0xff] %v3321
        %3355 = vst [vmem:[%s3324 + $0x169] sm:$0xff] %v3322
        %3356 = vst [vmem:[%s3324 + $0x171] sm:$0xff] %v3323
        %v3357 = vld [vmem:[#allocation3] sm:$0xff]
        %v3358 = vld [vmem:[#allocation3 + $0x8] sm:$0xff]
        %v3359 = vld [vmem:[#allocation3 + $0x18] sm:$0xff]
        %v3360 = vld [vmem:[#allocation3 + $0x20] sm:$0xff]
        %v3361 = vld [vmem:[#allocation3 + $0x30] sm:$0xff]
        %v3362 = vld [vmem:[#allocation3 + $0x38] sm:$0xff]
        %v3363 = vld [vmem:[#allocation3 + $0x48] sm:$0xff]
        %v3364 = vld [vmem:[#allocation3 + $0x50] sm:$0xff]
        %v3365 = vld [vmem:[#allocation3 + $0x60] sm:$0xff]
        %v3366 = vld [vmem:[#allocation3 + $0x68] sm:$0xff]
        %v3367 = vld [vmem:[#allocation3 + $0x78] sm:$0xff]
        %v3368 = vld [vmem:[#allocation3 + $0x80] sm:$0xff]
        %v3369 = vld [vmem:[#allocation3 + $0x90] sm:$0xff]
        %v3370 = vld [vmem:[#allocation3 + $0x98] sm:$0xff]
        %v3371 = vld [vmem:[#allocation3 + $0xa8] sm:$0xff]
        %v3372 = vld [vmem:[#allocation3 + $0xb0] sm:$0xff]
        %v3373 = vld [vmem:[#allocation3 + $0xc0] sm:$0xff]
        %v3374 = vld [vmem:[#allocation3 + $0xc8] sm:$0xff]
        %v3375 = vld [vmem:[#allocation3 + $0xd8] sm:$0xff]
        %v3376 = vld [vmem:[#allocation3 + $0xe0] sm:$0xff]
        %v3377 = vld [vmem:[#allocation3 + $0xf0] sm:$0xff]
        %v3378 = vld [vmem:[#allocation3 + $0xf8] sm:$0xff]
        %v3379 = vld [vmem:[#allocation3 + $0x108] sm:$0xff]
        %v3380 = vld [vmem:[#allocation3 + $0x110] sm:$0xff]
        %v3381 = vld [vmem:[#allocation3 + $0x120] sm:$0xff]
        %v3382 = vld [vmem:[#allocation3 + $0x128] sm:$0xff]
        %v3383 = vld [vmem:[#allocation3 + $0x138] sm:$0xff]
        %v3384 = vld [vmem:[#allocation3 + $0x140] sm:$0xff]
        %v3385 = vld [vmem:[#allocation3 + $0x150] sm:$0xff]
        %v3386 = vld [vmem:[#allocation3 + $0x158] sm:$0xff]
        %v3387 = vld [vmem:[#allocation3 + $0x168] sm:$0xff]
        %v3388 = vld [vmem:[#allocation3 + $0x170] sm:$0xff]
        %v3389 = vpack.c.bf16 %v3358, %v3357
        %v3390 = vpack.c.bf16 %v3360, %v3359
        %v3391 = vpack.c.bf16 %v3362, %v3361
        %v3392 = vpack.c.bf16 %v3364, %v3363
        %v3393 = vpack.c.bf16 %v3366, %v3365
        %v3394 = vpack.c.bf16 %v3368, %v3367
        %v3395 = vpack.c.bf16 %v3370, %v3369
        %v3396 = vpack.c.bf16 %v3372, %v3371
        %v3397 = vpack.c.bf16 %v3374, %v3373
        %v3398 = vpack.c.bf16 %v3376, %v3375
        %v3399 = vpack.c.bf16 %v3378, %v3377
        %v3400 = vpack.c.bf16 %v3380, %v3379
        %v3401 = vpack.c.bf16 %v3382, %v3381
        %v3402 = vpack.c.bf16 %v3384, %v3383
        %v3403 = vpack.c.bf16 %v3386, %v3385
        %v3404 = vpack.c.bf16 %v3388, %v3387
        %v3405 = vld [vmem:[#allocation9] sm:$0xf]
        %v3406 = vld [vmem:[#allocation9 + $0x4] sm:$0xf]
        %v3407 = vld [vmem:[#allocation9 + $0x8] sm:$0xf]
        %v3408 = vld [vmem:[#allocation9 + $0xc] sm:$0xf]
        %v3409 = vld [vmem:[#allocation9 + $0x10] sm:$0xf]
        %v3410 = vld [vmem:[#allocation9 + $0x14] sm:$0xf]
        %v3411 = vld [vmem:[#allocation9 + $0x18] sm:$0xf]
        %v3412 = vld [vmem:[#allocation9 + $0x1c] sm:$0xf]
        %v3413 = vld [vmem:[#allocation9 + $0x20] sm:$0xf]
        %v3414 = vld [vmem:[#allocation9 + $0x24] sm:$0xf]
        %v3415 = vld [vmem:[#allocation9 + $0x28] sm:$0xf]
        %v3416 = vld [vmem:[#allocation9 + $0x2c] sm:$0xf]
        %v3417 = vld [vmem:[#allocation9 + $0x30] sm:$0xf]
        %v3418 = vld [vmem:[#allocation9 + $0x34] sm:$0xf]
        %v3419 = vld [vmem:[#allocation9 + $0x38] sm:$0xf]
        %v3420 = vld [vmem:[#allocation9 + $0x3c] sm:$0xf]
        %v3421 = vld [vmem:[#allocation3 + $0x1] sm:$0xff]
        %v3422 = vld [vmem:[#allocation3 + $0x9] sm:$0xff]
        %v3423 = vld [vmem:[#allocation3 + $0x19] sm:$0xff]
        %v3424 = vld [vmem:[#allocation3 + $0x21] sm:$0xff]
        %v3425 = vld [vmem:[#allocation3 + $0x31] sm:$0xff]
        %v3426 = vld [vmem:[#allocation3 + $0x39] sm:$0xff]
        %v3427 = vld [vmem:[#allocation3 + $0x49] sm:$0xff]
        %v3428 = vld [vmem:[#allocation3 + $0x51] sm:$0xff]
        %v3429 = vld [vmem:[#allocation3 + $0x61] sm:$0xff]
        %v3430 = vld [vmem:[#allocation3 + $0x69] sm:$0xff]
        %v3431 = vld [vmem:[#allocation3 + $0x79] sm:$0xff]
        %v3432 = vld [vmem:[#allocation3 + $0x81] sm:$0xff]
        %v3433 = vld [vmem:[#allocation3 + $0x91] sm:$0xff]
        %v3434 = vld [vmem:[#allocation3 + $0x99] sm:$0xff]
        %v3435 = vld [vmem:[#allocation3 + $0xa9] sm:$0xff]
        %v3436 = vld [vmem:[#allocation3 + $0xb1] sm:$0xff]
        %v3437 = vld [vmem:[#allocation3 + $0xc1] sm:$0xff]
        %v3438 = vld [vmem:[#allocation3 + $0xc9] sm:$0xff]
        %v3439 = vld [vmem:[#allocation3 + $0xd9] sm:$0xff]
        %v3440 = vld [vmem:[#allocation3 + $0xe1] sm:$0xff]
        %v3441 = vld [vmem:[#allocation3 + $0xf1] sm:$0xff]
        %v3442 = vld [vmem:[#allocation3 + $0xf9] sm:$0xff]
        %v3443 = vld [vmem:[#allocation3 + $0x109] sm:$0xff]
        %v3444 = vld [vmem:[#allocation3 + $0x111] sm:$0xff]
        %v3445 = vld [vmem:[#allocation3 + $0x121] sm:$0xff]
        %v3446 = vld [vmem:[#allocation3 + $0x129] sm:$0xff]
        %v3447 = vld [vmem:[#allocation3 + $0x139] sm:$0xff]
        %v3448 = vld [vmem:[#allocation3 + $0x141] sm:$0xff]
        %v3449 = vld [vmem:[#allocation3 + $0x151] sm:$0xff]
        %v3450 = vld [vmem:[#allocation3 + $0x159] sm:$0xff]
        %v3451 = vld [vmem:[#allocation3 + $0x169] sm:$0xff]
        %v3452 = vld [vmem:[#allocation3 + $0x171] sm:$0xff]
        %v3453 = vpack.c.bf16 %v3422, %v3421
        %v3454 = vpack.c.bf16 %v3424, %v3423
        %v3455 = vpack.c.bf16 %v3426, %v3425
        %v3456 = vpack.c.bf16 %v3428, %v3427
        %v3457 = vpack.c.bf16 %v3430, %v3429
        %v3458 = vpack.c.bf16 %v3432, %v3431
        %v3459 = vpack.c.bf16 %v3434, %v3433
        %v3460 = vpack.c.bf16 %v3436, %v3435
        %v3461 = vpack.c.bf16 %v3438, %v3437
        %v3462 = vpack.c.bf16 %v3440, %v3439
        %v3463 = vpack.c.bf16 %v3442, %v3441
        %v3464 = vpack.c.bf16 %v3444, %v3443
        %v3465 = vpack.c.bf16 %v3446, %v3445
        %v3466 = vpack.c.bf16 %v3448, %v3447
        %v3467 = vpack.c.bf16 %v3450, %v3449
        %v3468 = vpack.c.bf16 %v3452, %v3451
        %v3469 = vld [vmem:[#allocation9 + $0x40] sm:$0xf]
        %v3470 = vld [vmem:[#allocation9 + $0x44] sm:$0xf]
        %v3471 = vld [vmem:[#allocation9 + $0x48] sm:$0xf]
        %v3472 = vld [vmem:[#allocation9 + $0x4c] sm:$0xf]
        %v3473 = vld [vmem:[#allocation9 + $0x50] sm:$0xf]
        %v3474 = vld [vmem:[#allocation9 + $0x54] sm:$0xf]
        %v3475 = vld [vmem:[#allocation9 + $0x58] sm:$0xf]
        %v3476 = vld [vmem:[#allocation9 + $0x5c] sm:$0xf]
        %v3477 = vld [vmem:[#allocation9 + $0x60] sm:$0xf]
        %v3478 = vld [vmem:[#allocation9 + $0x64] sm:$0xf]
        %v3479 = vld [vmem:[#allocation9 + $0x68] sm:$0xf]
        %v3480 = vld [vmem:[#allocation9 + $0x6c] sm:$0xf]
        %v3481 = vld [vmem:[#allocation9 + $0x70] sm:$0xf]
        %v3482 = vld [vmem:[#allocation9 + $0x74] sm:$0xf]
        %v3483 = vld [vmem:[#allocation9 + $0x78] sm:$0xf]
        %v3484 = vld [vmem:[#allocation9 + $0x7c] sm:$0xf]
        %v3501 = vunpack.c.l.b16 %v3469
        %v3502 = vunpack.c.l.b16 %v3470
        %v3503 = vunpack.c.l.b16 %v3471
        %v3504 = vunpack.c.l.b16 %v3472
        %v3505 = vunpack.c.l.b16 %v3473
        %v3506 = vunpack.c.l.b16 %v3474
        %v3507 = vunpack.c.l.b16 %v3475
        %v3508 = vunpack.c.l.b16 %v3476
        %v3509 = vunpack.c.l.b16 %v3477
        %v3510 = vunpack.c.l.b16 %v3478
        %v3511 = vunpack.c.l.b16 %v3479
        %v3512 = vunpack.c.l.b16 %v3480
        %v3513 = vunpack.c.l.b16 %v3481
        %v3514 = vunpack.c.l.b16 %v3482
        %v3515 = vunpack.c.l.b16 %v3483
        %v3516 = vunpack.c.l.b16 %v3484
        %v3517 = vpack.c.b16 %v3502, %v3501
        %v3518 = vpack.c.b16 %v3504, %v3503
        %v3519 = vpack.c.b16 %v3506, %v3505
        %v3520 = vpack.c.b16 %v3508, %v3507
        %v3521 = vpack.c.b16 %v3510, %v3509
        %v3522 = vpack.c.b16 %v3512, %v3511
        %v3523 = vpack.c.b16 %v3514, %v3513
        %v3524 = vpack.c.b16 %v3516, %v3515
        %3533 = vmatprep.subr.bf16.mxu0 0
        %3534 = vmatpush1.bf16.msra.mxu0 %v3524
        %3535 = vmatprep.subr.bf16.mxu0 0
        %3536 = vmatpush1.bf16.msra.mxu0 %v3523
        %3537 = vmatprep.subr.bf16.mxu0 0
        %3538 = vmatpush1.bf16.msra.mxu0 %v3522
        %3539 = vmatprep.subr.bf16.mxu0 0
        %3540 = vmatpush1.bf16.msra.mxu0 %v3521
        %3541 = vmatprep.subr.bf16.mxu0 0
        %3542 = vmatpush1.bf16.msra.mxu0 %v3520
        %3543 = vmatprep.subr.bf16.mxu0 0
        %3544 = vmatpush1.bf16.msra.mxu0 %v3519
        %3545 = vmatprep.subr.bf16.mxu0 0
        %3546 = vmatpush1.bf16.msra.mxu0 %v3518
        %3547 = vmatprep.subr.bf16.mxu0 0
        %3548 = vmatpush1.bf16.msra.mxu0 %v3517
        %3549 = vmatprep.subr.bf16.mxu0 0
        %3550 = vmatpush2.bf16.msra.mxu0 0
        %3551 = vmatprep.subr.bf16.mxu0 0
        %3552 = vmatpush2.bf16.msra.mxu0 0
        %3553 = vmatprep.subr.bf16.mxu0 0
        %3554 = vmatpush2.bf16.msra.mxu0 0
        %3555 = vmatprep.subr.bf16.mxu0 0
        %3556 = vmatpush2.bf16.msra.mxu0 0
        %3557 = vmatprep.subr.bf16.mxu0 0
        %3558 = vmatpush2.bf16.msra.mxu0 0
        %3559 = vmatprep.subr.bf16.mxu0 0
        %3560 = vmatpush2.bf16.msra.mxu0 0
        %3561 = vmatprep.subr.bf16.mxu0 0
        %3562 = vmatpush2.bf16.msra.mxu0 0
        %3563 = vmatprep.subr.bf16.mxu0 0
        %3564 = vmatpush2.bf16.msra.mxu0 0
        %3565 = vmatprep.mubr.bf16.mxu0 0
        %3566 = vmatmul.mubr.bf16.gmra.mxu0 %v3453
        %v3567 = vpop.f32.mrf.mxu0
        %v3568 = vadd.f32 0.0, %v3567
        %v3569 = vpop.f32.mrf.mxu0
        %v3570 = vpop.f32.mrf.mxu0
        %v3571 = vadd.f32 0.0, %v3570
        %v3572 = vpop.f32.mrf.mxu0
        %3573 = vmatprep.mubr.bf16.mxu0 0
        %3574 = vmatmul.mubr.bf16.gmra.mxu0 %v3454
        %v3575 = vpop.f32.mrf.mxu0
        %v3576 = vadd.f32 0.0, %v3575
        %v3577 = vpop.f32.mrf.mxu0
        %v3578 = vpop.f32.mrf.mxu0
        %v3579 = vadd.f32 0.0, %v3578
        %v3580 = vpop.f32.mrf.mxu0
        %3581 = vmatprep.mubr.bf16.mxu0 0
        %3582 = vmatmul.mubr.bf16.gmra.mxu0 %v3455
        %v3583 = vpop.f32.mrf.mxu0
        %v3584 = vadd.f32 0.0, %v3583
        %v3585 = vpop.f32.mrf.mxu0
        %v3586 = vpop.f32.mrf.mxu0
        %v3587 = vadd.f32 0.0, %v3586
        %v3588 = vpop.f32.mrf.mxu0
        %3589 = vmatprep.mubr.bf16.mxu0 0
        %3590 = vmatmul.mubr.bf16.gmra.mxu0 %v3456
        %v3591 = vpop.f32.mrf.mxu0
        %v3592 = vadd.f32 0.0, %v3591
        %v3593 = vpop.f32.mrf.mxu0
        %v3594 = vpop.f32.mrf.mxu0
        %v3595 = vadd.f32 0.0, %v3594
        %v3596 = vpop.f32.mrf.mxu0
        %3597 = vmatprep.mubr.bf16.mxu0 0
        %3598 = vmatmul.mubr.bf16.gmra.mxu0 %v3457
        %v3599 = vpop.f32.mrf.mxu0
        %v3600 = vadd.f32 0.0, %v3599
        %v3601 = vpop.f32.mrf.mxu0
        %v3602 = vpop.f32.mrf.mxu0
        %v3603 = vadd.f32 0.0, %v3602
        %v3604 = vpop.f32.mrf.mxu0
        %3605 = vmatprep.mubr.bf16.mxu0 0
        %3606 = vmatmul.mubr.bf16.gmra.mxu0 %v3458
        %v3607 = vpop.f32.mrf.mxu0
        %v3608 = vadd.f32 0.0, %v3607
        %v3609 = vpop.f32.mrf.mxu0
        %v3610 = vpop.f32.mrf.mxu0
        %v3611 = vadd.f32 0.0, %v3610
        %v3612 = vpop.f32.mrf.mxu0
        %3613 = vmatprep.mubr.bf16.mxu0 0
        %3614 = vmatmul.mubr.bf16.gmra.mxu0 %v3459
        %v3615 = vpop.f32.mrf.mxu0
        %v3616 = vadd.f32 0.0, %v3615
        %v3617 = vpop.f32.mrf.mxu0
        %v3618 = vpop.f32.mrf.mxu0
        %v3619 = vadd.f32 0.0, %v3618
        %v3620 = vpop.f32.mrf.mxu0
        %3621 = vmatprep.mubr.bf16.mxu0 0
        %3622 = vmatmul.mubr.bf16.gmra.mxu0 %v3460
        %v3623 = vpop.f32.mrf.mxu0
        %v3624 = vadd.f32 0.0, %v3623
        %v3625 = vpop.f32.mrf.mxu0
        %v3626 = vpop.f32.mrf.mxu0
        %v3627 = vadd.f32 0.0, %v3626
        %v3628 = vpop.f32.mrf.mxu0
        %3629 = vmatprep.mubr.bf16.mxu0 0
        %3630 = vmatmul.mubr.bf16.gmra.mxu0 %v3461
        %v3631 = vpop.f32.mrf.mxu0
        %v3632 = vadd.f32 0.0, %v3631
        %v3633 = vpop.f32.mrf.mxu0
        %v3634 = vpop.f32.mrf.mxu0
        %v3635 = vadd.f32 0.0, %v3634
        %v3636 = vpop.f32.mrf.mxu0
        %3637 = vmatprep.mubr.bf16.mxu0 0
        %3638 = vmatmul.mubr.bf16.gmra.mxu0 %v3462
        %v3639 = vpop.f32.mrf.mxu0
        %v3640 = vadd.f32 0.0, %v3639
        %v3641 = vpop.f32.mrf.mxu0
        %v3642 = vpop.f32.mrf.mxu0
        %v3643 = vadd.f32 0.0, %v3642
        %v3644 = vpop.f32.mrf.mxu0
        %3645 = vmatprep.mubr.bf16.mxu0 0
        %3646 = vmatmul.mubr.bf16.gmra.mxu0 %v3463
        %v3647 = vpop.f32.mrf.mxu0
        %v3648 = vadd.f32 0.0, %v3647
        %v3649 = vpop.f32.mrf.mxu0
        %v3650 = vpop.f32.mrf.mxu0
        %v3651 = vadd.f32 0.0, %v3650
        %v3652 = vpop.f32.mrf.mxu0
        %3653 = vmatprep.mubr.bf16.mxu0 0
        %3654 = vmatmul.mubr.bf16.gmra.mxu0 %v3464
        %v3655 = vpop.f32.mrf.mxu0
        %v3656 = vadd.f32 0.0, %v3655
        %v3657 = vpop.f32.mrf.mxu0
        %v3658 = vpop.f32.mrf.mxu0
        %v3659 = vadd.f32 0.0, %v3658
        %v3660 = vpop.f32.mrf.mxu0
        %3661 = vmatprep.mubr.bf16.mxu0 0
        %3662 = vmatmul.mubr.bf16.gmra.mxu0 %v3465
        %v3663 = vpop.f32.mrf.mxu0
        %v3664 = vadd.f32 0.0, %v3663
        %v3665 = vpop.f32.mrf.mxu0
        %v3666 = vpop.f32.mrf.mxu0
        %v3667 = vadd.f32 0.0, %v3666
        %v3668 = vpop.f32.mrf.mxu0
        %3669 = vmatprep.mubr.bf16.mxu0 0
        %3670 = vmatmul.mubr.bf16.gmra.mxu0 %v3466
        %v3671 = vpop.f32.mrf.mxu0
        %v3672 = vadd.f32 0.0, %v3671
        %v3673 = vpop.f32.mrf.mxu0
        %v3674 = vpop.f32.mrf.mxu0
        %v3675 = vadd.f32 0.0, %v3674
        %v3676 = vpop.f32.mrf.mxu0
        %3677 = vmatprep.mubr.bf16.mxu0 0
        %3678 = vmatmul.mubr.bf16.gmra.mxu0 %v3467
        %v3679 = vpop.f32.mrf.mxu0
        %v3680 = vadd.f32 0.0, %v3679
        %v3681 = vpop.f32.mrf.mxu0
        %v3682 = vpop.f32.mrf.mxu0
        %v3683 = vadd.f32 0.0, %v3682
        %v3684 = vpop.f32.mrf.mxu0
        %3685 = vmatprep.mubr.bf16.mxu0 0
        %3686 = vmatmul.mubr.bf16.gmra.mxu0 %v3468
        %v3687 = vpop.f32.mrf.mxu0
        %v3688 = vadd.f32 0.0, %v3687
        %v3689 = vpop.f32.mrf.mxu0
        %v3690 = vpop.f32.mrf.mxu0
        %v3691 = vadd.f32 0.0, %v3690
        %v3692 = vpop.f32.mrf.mxu0
        %3693 = vdwg.mxu0
        %v3710 = vunpack.c.l.b16 %v3405
        %v3711 = vunpack.c.l.b16 %v3406
        %v3712 = vunpack.c.l.b16 %v3407
        %v3713 = vunpack.c.l.b16 %v3408
        %v3714 = vunpack.c.l.b16 %v3409
        %v3715 = vunpack.c.l.b16 %v3410
        %v3716 = vunpack.c.l.b16 %v3411
        %v3717 = vunpack.c.l.b16 %v3412
        %v3718 = vunpack.c.l.b16 %v3413
        %v3719 = vunpack.c.l.b16 %v3414
        %v3720 = vunpack.c.l.b16 %v3415
        %v3721 = vunpack.c.l.b16 %v3416
        %v3722 = vunpack.c.l.b16 %v3417
        %v3723 = vunpack.c.l.b16 %v3418
        %v3724 = vunpack.c.l.b16 %v3419
        %v3725 = vunpack.c.l.b16 %v3420
        %v3726 = vpack.c.b16 %v3711, %v3710
        %v3727 = vpack.c.b16 %v3713, %v3712
        %v3728 = vpack.c.b16 %v3715, %v3714
        %v3729 = vpack.c.b16 %v3717, %v3716
        %v3730 = vpack.c.b16 %v3719, %v3718
        %v3731 = vpack.c.b16 %v3721, %v3720
        %v3732 = vpack.c.b16 %v3723, %v3722
        %v3733 = vpack.c.b16 %v3725, %v3724
        %3742 = vmatprep.subr.bf16.mxu0 0
        %3743 = vmatpush1.bf16.msra.mxu0 %v3733
        %3744 = vmatprep.subr.bf16.mxu0 0
        %3745 = vmatpush1.bf16.msra.mxu0 %v3732
        %3746 = vmatprep.subr.bf16.mxu0 0
        %3747 = vmatpush1.bf16.msra.mxu0 %v3731
        %3748 = vmatprep.subr.bf16.mxu0 0
        %3749 = vmatpush1.bf16.msra.mxu0 %v3730
        %3750 = vmatprep.subr.bf16.mxu0 0
        %3751 = vmatpush1.bf16.msra.mxu0 %v3729
        %3752 = vmatprep.subr.bf16.mxu0 0
        %3753 = vmatpush1.bf16.msra.mxu0 %v3728
        %3754 = vmatprep.subr.bf16.mxu0 0
        %3755 = vmatpush1.bf16.msra.mxu0 %v3727
        %3756 = vmatprep.subr.bf16.mxu0 0
        %3757 = vmatpush1.bf16.msra.mxu0 %v3726
        %3758 = vmatprep.subr.bf16.mxu0 0
        %3759 = vmatpush2.bf16.msra.mxu0 0
        %3760 = vmatprep.subr.bf16.mxu0 0
        %3761 = vmatpush2.bf16.msra.mxu0 0
        %3762 = vmatprep.subr.bf16.mxu0 0
        %3763 = vmatpush2.bf16.msra.mxu0 0
        %3764 = vmatprep.subr.bf16.mxu0 0
        %3765 = vmatpush2.bf16.msra.mxu0 0
        %3766 = vmatprep.subr.bf16.mxu0 0
        %3767 = vmatpush2.bf16.msra.mxu0 0
        %3768 = vmatprep.subr.bf16.mxu0 0
        %3769 = vmatpush2.bf16.msra.mxu0 0
        %3770 = vmatprep.subr.bf16.mxu0 0
        %3771 = vmatpush2.bf16.msra.mxu0 0
        %3772 = vmatprep.subr.bf16.mxu0 0
        %3773 = vmatpush2.bf16.msra.mxu0 0
        %3774 = vmatprep.mubr.bf16.mxu0 0
        %3775 = vmatmul.mubr.bf16.gmra.mxu0 %v3389
        %v3776 = vpop.f32.mrf.mxu0
        %v3777 = vadd.f32 %v3568, %v3776
        %v3778 = vpop.f32.mrf.mxu0
        %v3779 = vpop.f32.mrf.mxu0
        %v3780 = vadd.f32 %v3571, %v3779
        %v3781 = vpop.f32.mrf.mxu0
        %3782 = vmatprep.mubr.bf16.mxu0 0
        %3783 = vmatmul.mubr.bf16.gmra.mxu0 %v3390
        %v3784 = vpop.f32.mrf.mxu0
        %v3785 = vadd.f32 %v3576, %v3784
        %v3786 = vpop.f32.mrf.mxu0
        %v3787 = vpop.f32.mrf.mxu0
        %v3788 = vadd.f32 %v3579, %v3787
        %v3789 = vpop.f32.mrf.mxu0
        %3790 = vmatprep.mubr.bf16.mxu0 0
        %3791 = vmatmul.mubr.bf16.gmra.mxu0 %v3391
        %v3792 = vpop.f32.mrf.mxu0
        %v3793 = vadd.f32 %v3584, %v3792
        %v3794 = vpop.f32.mrf.mxu0
        %v3795 = vpop.f32.mrf.mxu0
        %v3796 = vadd.f32 %v3587, %v3795
        %v3797 = vpop.f32.mrf.mxu0
        %3798 = vmatprep.mubr.bf16.mxu0 0
        %3799 = vmatmul.mubr.bf16.gmra.mxu0 %v3392
        %v3800 = vpop.f32.mrf.mxu0
        %v3801 = vadd.f32 %v3592, %v3800
        %v3802 = vpop.f32.mrf.mxu0
        %v3803 = vpop.f32.mrf.mxu0
        %v3804 = vadd.f32 %v3595, %v3803
        %v3805 = vpop.f32.mrf.mxu0
        %3806 = vmatprep.mubr.bf16.mxu0 0
        %3807 = vmatmul.mubr.bf16.gmra.mxu0 %v3393
        %v3808 = vpop.f32.mrf.mxu0
        %v3809 = vadd.f32 %v3600, %v3808
        %v3810 = vpop.f32.mrf.mxu0
        %v3811 = vpop.f32.mrf.mxu0
        %v3812 = vadd.f32 %v3603, %v3811
        %v3813 = vpop.f32.mrf.mxu0
        %3814 = vmatprep.mubr.bf16.mxu0 0
        %3815 = vmatmul.mubr.bf16.gmra.mxu0 %v3394
        %v3816 = vpop.f32.mrf.mxu0
        %v3817 = vadd.f32 %v3608, %v3816
        %v3818 = vpop.f32.mrf.mxu0
        %v3819 = vpop.f32.mrf.mxu0
        %v3820 = vadd.f32 %v3611, %v3819
        %v3821 = vpop.f32.mrf.mxu0
        %3822 = vmatprep.mubr.bf16.mxu0 0
        %3823 = vmatmul.mubr.bf16.gmra.mxu0 %v3395
        %v3824 = vpop.f32.mrf.mxu0
        %v3825 = vadd.f32 %v3616, %v3824
        %v3826 = vpop.f32.mrf.mxu0
        %v3827 = vpop.f32.mrf.mxu0
        %v3828 = vadd.f32 %v3619, %v3827
        %v3829 = vpop.f32.mrf.mxu0
        %3830 = vmatprep.mubr.bf16.mxu0 0
        %3831 = vmatmul.mubr.bf16.gmra.mxu0 %v3396
        %v3832 = vpop.f32.mrf.mxu0
        %v3833 = vadd.f32 %v3624, %v3832
        %v3834 = vpop.f32.mrf.mxu0
        %v3835 = vpop.f32.mrf.mxu0
        %v3836 = vadd.f32 %v3627, %v3835
        %v3837 = vpop.f32.mrf.mxu0
        %3838 = vmatprep.mubr.bf16.mxu0 0
        %3839 = vmatmul.mubr.bf16.gmra.mxu0 %v3397
        %v3840 = vpop.f32.mrf.mxu0
        %v3841 = vadd.f32 %v3632, %v3840
        %v3842 = vpop.f32.mrf.mxu0
        %v3843 = vpop.f32.mrf.mxu0
        %v3844 = vadd.f32 %v3635, %v3843
        %v3845 = vpop.f32.mrf.mxu0
        %3846 = vmatprep.mubr.bf16.mxu0 0
        %3847 = vmatmul.mubr.bf16.gmra.mxu0 %v3398
        %v3848 = vpop.f32.mrf.mxu0
        %v3849 = vadd.f32 %v3640, %v3848
        %v3850 = vpop.f32.mrf.mxu0
        %v3851 = vpop.f32.mrf.mxu0
        %v3852 = vadd.f32 %v3643, %v3851
        %v3853 = vpop.f32.mrf.mxu0
        %3854 = vmatprep.mubr.bf16.mxu0 0
        %3855 = vmatmul.mubr.bf16.gmra.mxu0 %v3399
        %v3856 = vpop.f32.mrf.mxu0
        %v3857 = vadd.f32 %v3648, %v3856
        %v3858 = vpop.f32.mrf.mxu0
        %v3859 = vpop.f32.mrf.mxu0
        %v3860 = vadd.f32 %v3651, %v3859
        %v3861 = vpop.f32.mrf.mxu0
        %3862 = vmatprep.mubr.bf16.mxu0 0
        %3863 = vmatmul.mubr.bf16.gmra.mxu0 %v3400
        %v3864 = vpop.f32.mrf.mxu0
        %v3865 = vadd.f32 %v3656, %v3864
        %v3866 = vpop.f32.mrf.mxu0
        %v3867 = vpop.f32.mrf.mxu0
        %v3868 = vadd.f32 %v3659, %v3867
        %v3869 = vpop.f32.mrf.mxu0
        %3870 = vmatprep.mubr.bf16.mxu0 0
        %3871 = vmatmul.mubr.bf16.gmra.mxu0 %v3401
        %v3872 = vpop.f32.mrf.mxu0
        %v3873 = vadd.f32 %v3664, %v3872
        %v3874 = vpop.f32.mrf.mxu0
        %v3875 = vpop.f32.mrf.mxu0
        %v3876 = vadd.f32 %v3667, %v3875
        %v3877 = vpop.f32.mrf.mxu0
        %3878 = vmatprep.mubr.bf16.mxu0 0
        %3879 = vmatmul.mubr.bf16.gmra.mxu0 %v3402
        %v3880 = vpop.f32.mrf.mxu0
        %v3881 = vadd.f32 %v3672, %v3880
        %v3882 = vpop.f32.mrf.mxu0
        %v3883 = vpop.f32.mrf.mxu0
        %v3884 = vadd.f32 %v3675, %v3883
        %v3885 = vpop.f32.mrf.mxu0
        %3886 = vmatprep.mubr.bf16.mxu0 0
        %3887 = vmatmul.mubr.bf16.gmra.mxu0 %v3403
        %v3888 = vpop.f32.mrf.mxu0
        %v3889 = vadd.f32 %v3680, %v3888
        %v3890 = vpop.f32.mrf.mxu0
        %v3891 = vpop.f32.mrf.mxu0
        %v3892 = vadd.f32 %v3683, %v3891
        %v3893 = vpop.f32.mrf.mxu0
        %3894 = vmatprep.mubr.bf16.mxu0 0
        %3895 = vmatmul.mubr.bf16.gmra.mxu0 %v3404
        %v3896 = vpop.f32.mrf.mxu0
        %v3897 = vadd.f32 %v3688, %v3896
        %v3898 = vpop.f32.mrf.mxu0
        %v3899 = vpop.f32.mrf.mxu0
        %v3900 = vadd.f32 %v3691, %v3899
        %v3901 = vpop.f32.mrf.mxu0
        %3902 = vdwg.mxu0
        %v3903 = vld [vmem:[#allocation3 + $0x2] sm:$0xff]
        %v3904 = vld [vmem:[#allocation3 + $0xa] sm:$0xff]
        %v3905 = vld [vmem:[#allocation3 + $0x1a] sm:$0xff]
        %v3906 = vld [vmem:[#allocation3 + $0x22] sm:$0xff]
        %v3907 = vld [vmem:[#allocation3 + $0x32] sm:$0xff]
        %v3908 = vld [vmem:[#allocation3 + $0x3a] sm:$0xff]
        %v3909 = vld [vmem:[#allocation3 + $0x4a] sm:$0xff]
        %v3910 = vld [vmem:[#allocation3 + $0x52] sm:$0xff]
        %v3911 = vld [vmem:[#allocation3 + $0x62] sm:$0xff]
        %v3912 = vld [vmem:[#allocation3 + $0x6a] sm:$0xff]
        %v3913 = vld [vmem:[#allocation3 + $0x7a] sm:$0xff]
        %v3914 = vld [vmem:[#allocation3 + $0x82] sm:$0xff]
        %v3915 = vld [vmem:[#allocation3 + $0x92] sm:$0xff]
        %v3916 = vld [vmem:[#allocation3 + $0x9a] sm:$0xff]
        %v3917 = vld [vmem:[#allocation3 + $0xaa] sm:$0xff]
        %v3918 = vld [vmem:[#allocation3 + $0xb2] sm:$0xff]
        %v3919 = vld [vmem:[#allocation3 + $0xc2] sm:$0xff]
        %v3920 = vld [vmem:[#allocation3 + $0xca] sm:$0xff]
        %v3921 = vld [vmem:[#allocation3 + $0xda] sm:$0xff]
        %v3922 = vld [vmem:[#allocation3 + $0xe2] sm:$0xff]
        %v3923 = vld [vmem:[#allocation3 + $0xf2] sm:$0xff]
        %v3924 = vld [vmem:[#allocation3 + $0xfa] sm:$0xff]
        %v3925 = vld [vmem:[#allocation3 + $0x10a] sm:$0xff]
        %v3926 = vld [vmem:[#allocation3 + $0x112] sm:$0xff]
        %v3927 = vld [vmem:[#allocation3 + $0x122] sm:$0xff]
        %v3928 = vld [vmem:[#allocation3 + $0x12a] sm:$0xff]
        %v3929 = vld [vmem:[#allocation3 + $0x13a] sm:$0xff]
        %v3930 = vld [vmem:[#allocation3 + $0x142] sm:$0xff]
        %v3931 = vld [vmem:[#allocation3 + $0x152] sm:$0xff]
        %v3932 = vld [vmem:[#allocation3 + $0x15a] sm:$0xff]
        %v3933 = vld [vmem:[#allocation3 + $0x16a] sm:$0xff]
        %v3934 = vld [vmem:[#allocation3 + $0x172] sm:$0xff]
        %v3935 = vpack.c.bf16 %v3904, %v3903
        %v3936 = vpack.c.bf16 %v3906, %v3905
        %v3937 = vpack.c.bf16 %v3908, %v3907
        %v3938 = vpack.c.bf16 %v3910, %v3909
        %v3939 = vpack.c.bf16 %v3912, %v3911
        %v3940 = vpack.c.bf16 %v3914, %v3913
        %v3941 = vpack.c.bf16 %v3916, %v3915
        %v3942 = vpack.c.bf16 %v3918, %v3917
        %v3943 = vpack.c.bf16 %v3920, %v3919
        %v3944 = vpack.c.bf16 %v3922, %v3921
        %v3945 = vpack.c.bf16 %v3924, %v3923
        %v3946 = vpack.c.bf16 %v3926, %v3925
        %v3947 = vpack.c.bf16 %v3928, %v3927
        %v3948 = vpack.c.bf16 %v3930, %v3929
        %v3949 = vpack.c.bf16 %v3932, %v3931
        %v3950 = vpack.c.bf16 %v3934, %v3933
        %v3951 = vld [vmem:[#allocation9 + $0x80] sm:$0xf]
        %v3952 = vld [vmem:[#allocation9 + $0x84] sm:$0xf]
        %v3953 = vld [vmem:[#allocation9 + $0x88] sm:$0xf]
        %v3954 = vld [vmem:[#allocation9 + $0x8c] sm:$0xf]
        %v3955 = vld [vmem:[#allocation9 + $0x90] sm:$0xf]
        %v3956 = vld [vmem:[#allocation9 + $0x94] sm:$0xf]
        %v3957 = vld [vmem:[#allocation9 + $0x98] sm:$0xf]
        %v3958 = vld [vmem:[#allocation9 + $0x9c] sm:$0xf]
        %v3959 = vld [vmem:[#allocation9 + $0xa0] sm:$0xf]
        %v3960 = vld [vmem:[#allocation9 + $0xa4] sm:$0xf]
        %v3961 = vld [vmem:[#allocation9 + $0xa8] sm:$0xf]
        %v3962 = vld [vmem:[#allocation9 + $0xac] sm:$0xf]
        %v3963 = vld [vmem:[#allocation9 + $0xb0] sm:$0xf]
        %v3964 = vld [vmem:[#allocation9 + $0xb4] sm:$0xf]
        %v3965 = vld [vmem:[#allocation9 + $0xb8] sm:$0xf]
        %v3966 = vld [vmem:[#allocation9 + $0xbc] sm:$0xf]
        %v3983 = vunpack.c.l.b16 %v3951
        %v3984 = vunpack.c.l.b16 %v3952
        %v3985 = vunpack.c.l.b16 %v3953
        %v3986 = vunpack.c.l.b16 %v3954
        %v3987 = vunpack.c.l.b16 %v3955
        %v3988 = vunpack.c.l.b16 %v3956
        %v3989 = vunpack.c.l.b16 %v3957
        %v3990 = vunpack.c.l.b16 %v3958
        %v3991 = vunpack.c.l.b16 %v3959
        %v3992 = vunpack.c.l.b16 %v3960
        %v3993 = vunpack.c.l.b16 %v3961
        %v3994 = vunpack.c.l.b16 %v3962
        %v3995 = vunpack.c.l.b16 %v3963
        %v3996 = vunpack.c.l.b16 %v3964
        %v3997 = vunpack.c.l.b16 %v3965
        %v3998 = vunpack.c.l.b16 %v3966
        %v3999 = vpack.c.b16 %v3984, %v3983
        %v4000 = vpack.c.b16 %v3986, %v3985
        %v4001 = vpack.c.b16 %v3988, %v3987
        %v4002 = vpack.c.b16 %v3990, %v3989
        %v4003 = vpack.c.b16 %v3992, %v3991
        %v4004 = vpack.c.b16 %v3994, %v3993
        %v4005 = vpack.c.b16 %v3996, %v3995
        %v4006 = vpack.c.b16 %v3998, %v3997
        %4015 = vmatprep.subr.bf16.mxu0 0
        %4016 = vmatpush1.bf16.msra.mxu0 %v4006
        %4017 = vmatprep.subr.bf16.mxu0 0
        %4018 = vmatpush1.bf16.msra.mxu0 %v4005
        %4019 = vmatprep.subr.bf16.mxu0 0
        %4020 = vmatpush1.bf16.msra.mxu0 %v4004
        %4021 = vmatprep.subr.bf16.mxu0 0
        %4022 = vmatpush1.bf16.msra.mxu0 %v4003
        %4023 = vmatprep.subr.bf16.mxu0 0
        %4024 = vmatpush1.bf16.msra.mxu0 %v4002
        %4025 = vmatprep.subr.bf16.mxu0 0
        %4026 = vmatpush1.bf16.msra.mxu0 %v4001
        %4027 = vmatprep.subr.bf16.mxu0 0
        %4028 = vmatpush1.bf16.msra.mxu0 %v4000
        %4029 = vmatprep.subr.bf16.mxu0 0
        %4030 = vmatpush1.bf16.msra.mxu0 %v3999
        %4031 = vmatprep.subr.bf16.mxu0 0
        %4032 = vmatpush2.bf16.msra.mxu0 0
        %4033 = vmatprep.subr.bf16.mxu0 0
        %4034 = vmatpush2.bf16.msra.mxu0 0
        %4035 = vmatprep.subr.bf16.mxu0 0
        %4036 = vmatpush2.bf16.msra.mxu0 0
        %4037 = vmatprep.subr.bf16.mxu0 0
        %4038 = vmatpush2.bf16.msra.mxu0 0
        %4039 = vmatprep.subr.bf16.mxu0 0
        %4040 = vmatpush2.bf16.msra.mxu0 0
        %4041 = vmatprep.subr.bf16.mxu0 0
        %4042 = vmatpush2.bf16.msra.mxu0 0
        %4043 = vmatprep.subr.bf16.mxu0 0
        %4044 = vmatpush2.bf16.msra.mxu0 0
        %4045 = vmatprep.subr.bf16.mxu0 0
        %4046 = vmatpush2.bf16.msra.mxu0 0
        %4047 = vmatprep.mubr.bf16.mxu0 0
        %4048 = vmatmul.mubr.bf16.gmra.mxu0 %v3935
        %v4049 = vpop.f32.mrf.mxu0
        %v4050 = vadd.f32 0.0, %v4049
        %v4051 = vpop.f32.mrf.mxu0
        %v4052 = vpop.f32.mrf.mxu0
        %v4053 = vadd.f32 0.0, %v4052
        %v4054 = vpop.f32.mrf.mxu0
        %4055 = vmatprep.mubr.bf16.mxu0 0
        %4056 = vmatmul.mubr.bf16.gmra.mxu0 %v3936
        %v4057 = vpop.f32.mrf.mxu0
        %v4058 = vadd.f32 0.0, %v4057
        %v4059 = vpop.f32.mrf.mxu0
        %v4060 = vpop.f32.mrf.mxu0
        %v4061 = vadd.f32 0.0, %v4060
        %v4062 = vpop.f32.mrf.mxu0
        %4063 = vmatprep.mubr.bf16.mxu0 0
        %4064 = vmatmul.mubr.bf16.gmra.mxu0 %v3937
        %v4065 = vpop.f32.mrf.mxu0
        %v4066 = vadd.f32 0.0, %v4065
        %v4067 = vpop.f32.mrf.mxu0
        %v4068 = vpop.f32.mrf.mxu0
        %v4069 = vadd.f32 0.0, %v4068
        %v4070 = vpop.f32.mrf.mxu0
        %4071 = vmatprep.mubr.bf16.mxu0 0
        %4072 = vmatmul.mubr.bf16.gmra.mxu0 %v3938
        %v4073 = vpop.f32.mrf.mxu0
        %v4074 = vadd.f32 0.0, %v4073
        %v4075 = vpop.f32.mrf.mxu0
        %v4076 = vpop.f32.mrf.mxu0
        %v4077 = vadd.f32 0.0, %v4076
        %v4078 = vpop.f32.mrf.mxu0
        %4079 = vmatprep.mubr.bf16.mxu0 0
        %4080 = vmatmul.mubr.bf16.gmra.mxu0 %v3939
        %v4081 = vpop.f32.mrf.mxu0
        %v4082 = vadd.f32 0.0, %v4081
        %v4083 = vpop.f32.mrf.mxu0
        %v4084 = vpop.f32.mrf.mxu0
        %v4085 = vadd.f32 0.0, %v4084
        %v4086 = vpop.f32.mrf.mxu0
        %4087 = vmatprep.mubr.bf16.mxu0 0
        %4088 = vmatmul.mubr.bf16.gmra.mxu0 %v3940
        %v4089 = vpop.f32.mrf.mxu0
        %v4090 = vadd.f32 0.0, %v4089
        %v4091 = vpop.f32.mrf.mxu0
        %v4092 = vpop.f32.mrf.mxu0
        %v4093 = vadd.f32 0.0, %v4092
        %v4094 = vpop.f32.mrf.mxu0
        %4095 = vmatprep.mubr.bf16.mxu0 0
        %4096 = vmatmul.mubr.bf16.gmra.mxu0 %v3941
        %v4097 = vpop.f32.mrf.mxu0
        %v4098 = vadd.f32 0.0, %v4097
        %v4099 = vpop.f32.mrf.mxu0
        %v4100 = vpop.f32.mrf.mxu0
        %v4101 = vadd.f32 0.0, %v4100
        %v4102 = vpop.f32.mrf.mxu0
        %4103 = vmatprep.mubr.bf16.mxu0 0
        %4104 = vmatmul.mubr.bf16.gmra.mxu0 %v3942
        %v4105 = vpop.f32.mrf.mxu0
        %v4106 = vadd.f32 0.0, %v4105
        %v4107 = vpop.f32.mrf.mxu0
        %v4108 = vpop.f32.mrf.mxu0
        %v4109 = vadd.f32 0.0, %v4108
        %v4110 = vpop.f32.mrf.mxu0
        %4111 = vmatprep.mubr.bf16.mxu0 0
        %4112 = vmatmul.mubr.bf16.gmra.mxu0 %v3943
        %v4113 = vpop.f32.mrf.mxu0
        %v4114 = vadd.f32 0.0, %v4113
        %v4115 = vpop.f32.mrf.mxu0
        %v4116 = vpop.f32.mrf.mxu0
        %v4117 = vadd.f32 0.0, %v4116
        %v4118 = vpop.f32.mrf.mxu0
        %4119 = vmatprep.mubr.bf16.mxu0 0
        %4120 = vmatmul.mubr.bf16.gmra.mxu0 %v3944
        %v4121 = vpop.f32.mrf.mxu0
        %v4122 = vadd.f32 0.0, %v4121
        %v4123 = vpop.f32.mrf.mxu0
        %v4124 = vpop.f32.mrf.mxu0
        %v4125 = vadd.f32 0.0, %v4124
        %v4126 = vpop.f32.mrf.mxu0
        %4127 = vmatprep.mubr.bf16.mxu0 0
        %4128 = vmatmul.mubr.bf16.gmra.mxu0 %v3945
        %v4129 = vpop.f32.mrf.mxu0
        %v4130 = vadd.f32 0.0, %v4129
        %v4131 = vpop.f32.mrf.mxu0
        %v4132 = vpop.f32.mrf.mxu0
        %v4133 = vadd.f32 0.0, %v4132
        %v4134 = vpop.f32.mrf.mxu0
        %4135 = vmatprep.mubr.bf16.mxu0 0
        %4136 = vmatmul.mubr.bf16.gmra.mxu0 %v3946
        %v4137 = vpop.f32.mrf.mxu0
        %v4138 = vadd.f32 0.0, %v4137
        %v4139 = vpop.f32.mrf.mxu0
        %v4140 = vpop.f32.mrf.mxu0
        %v4141 = vadd.f32 0.0, %v4140
        %v4142 = vpop.f32.mrf.mxu0
        %4143 = vmatprep.mubr.bf16.mxu0 0
        %4144 = vmatmul.mubr.bf16.gmra.mxu0 %v3947
        %v4145 = vpop.f32.mrf.mxu0
        %v4146 = vadd.f32 0.0, %v4145
        %v4147 = vpop.f32.mrf.mxu0
        %v4148 = vpop.f32.mrf.mxu0
        %v4149 = vadd.f32 0.0, %v4148
        %v4150 = vpop.f32.mrf.mxu0
        %4151 = vmatprep.mubr.bf16.mxu0 0
        %4152 = vmatmul.mubr.bf16.gmra.mxu0 %v3948
        %v4153 = vpop.f32.mrf.mxu0
        %v4154 = vadd.f32 0.0, %v4153
        %v4155 = vpop.f32.mrf.mxu0
        %v4156 = vpop.f32.mrf.mxu0
        %v4157 = vadd.f32 0.0, %v4156
        %v4158 = vpop.f32.mrf.mxu0
        %4159 = vmatprep.mubr.bf16.mxu0 0
        %4160 = vmatmul.mubr.bf16.gmra.mxu0 %v3949
        %v4161 = vpop.f32.mrf.mxu0
        %v4162 = vadd.f32 0.0, %v4161
        %v4163 = vpop.f32.mrf.mxu0
        %v4164 = vpop.f32.mrf.mxu0
        %v4165 = vadd.f32 0.0, %v4164
        %v4166 = vpop.f32.mrf.mxu0
        %4167 = vmatprep.mubr.bf16.mxu0 0
        %4168 = vmatmul.mubr.bf16.gmra.mxu0 %v3950
        %v4169 = vpop.f32.mrf.mxu0
        %v4170 = vadd.f32 0.0, %v4169
        %v4171 = vpop.f32.mrf.mxu0
        %v4172 = vpop.f32.mrf.mxu0
        %v4173 = vadd.f32 0.0, %v4172
        %v4174 = vpop.f32.mrf.mxu0
        %4175 = vdwg.mxu0
        %v4176 = vadd.f32 %v3777, %v4050
        %v4177 = vadd.f32 %v3780, %v4053
        %v4178 = vadd.f32 %v3785, %v4058
        %v4179 = vadd.f32 %v3788, %v4061
        %v4180 = vadd.f32 %v3793, %v4066
        %v4181 = vadd.f32 %v3796, %v4069
        %v4182 = vadd.f32 %v3801, %v4074
        %v4183 = vadd.f32 %v3804, %v4077
        %v4184 = vadd.f32 %v3809, %v4082
        %v4185 = vadd.f32 %v3812, %v4085
        %v4186 = vadd.f32 %v3817, %v4090
        %v4187 = vadd.f32 %v3820, %v4093
        %v4188 = vadd.f32 %v3825, %v4098
        %v4189 = vadd.f32 %v3828, %v4101
        %v4190 = vadd.f32 %v3833, %v4106
        %v4191 = vadd.f32 %v3836, %v4109
        %v4192 = vadd.f32 %v3841, %v4114
        %v4193 = vadd.f32 %v3844, %v4117
        %v4194 = vadd.f32 %v3849, %v4122
        %v4195 = vadd.f32 %v3852, %v4125
        %v4196 = vadd.f32 %v3857, %v4130
        %v4197 = vadd.f32 %v3860, %v4133
        %v4198 = vadd.f32 %v3865, %v4138
        %v4199 = vadd.f32 %v3868, %v4141
        %v4200 = vadd.f32 %v3873, %v4146
        %v4201 = vadd.f32 %v3876, %v4149
        %v4202 = vadd.f32 %v3881, %v4154
        %v4203 = vadd.f32 %v3884, %v4157
        %v4204 = vadd.f32 %v3889, %v4162
        %v4205 = vadd.f32 %v3892, %v4165
        %v4206 = vadd.f32 %v3897, %v4170
        %v4207 = vadd.f32 %v3900, %v4173
        %v4208 = vld [vmem:[%s3324] sm:$0xff]
        %v4209 = vld [vmem:[%s3324 + $0x8] sm:$0xff]
        %v4210 = vld [vmem:[%s3324 + $0x18] sm:$0xff]
        %v4211 = vld [vmem:[%s3324 + $0x20] sm:$0xff]
        %v4212 = vld [vmem:[%s3324 + $0x30] sm:$0xff]
        %v4213 = vld [vmem:[%s3324 + $0x38] sm:$0xff]
        %v4214 = vld [vmem:[%s3324 + $0x48] sm:$0xff]
        %v4215 = vld [vmem:[%s3324 + $0x50] sm:$0xff]
        %v4216 = vld [vmem:[%s3324 + $0x60] sm:$0xff]
        %v4217 = vld [vmem:[%s3324 + $0x68] sm:$0xff]
        %v4218 = vld [vmem:[%s3324 + $0x78] sm:$0xff]
        %v4219 = vld [vmem:[%s3324 + $0x80] sm:$0xff]
        %v4220 = vld [vmem:[%s3324 + $0x90] sm:$0xff]
        %v4221 = vld [vmem:[%s3324 + $0x98] sm:$0xff]
        %v4222 = vld [vmem:[%s3324 + $0xa8] sm:$0xff]
        %v4223 = vld [vmem:[%s3324 + $0xb0] sm:$0xff]
        %v4224 = vld [vmem:[%s3324 + $0xc0] sm:$0xff]
        %v4225 = vld [vmem:[%s3324 + $0xc8] sm:$0xff]
        %v4226 = vld [vmem:[%s3324 + $0xd8] sm:$0xff]
        %v4227 = vld [vmem:[%s3324 + $0xe0] sm:$0xff]
        %v4228 = vld [vmem:[%s3324 + $0xf0] sm:$0xff]
        %v4229 = vld [vmem:[%s3324 + $0xf8] sm:$0xff]
        %v4230 = vld [vmem:[%s3324 + $0x108] sm:$0xff]
        %v4231 = vld [vmem:[%s3324 + $0x110] sm:$0xff]
        %v4232 = vld [vmem:[%s3324 + $0x120] sm:$0xff]
        %v4233 = vld [vmem:[%s3324 + $0x128] sm:$0xff]
        %v4234 = vld [vmem:[%s3324 + $0x138] sm:$0xff]
        %v4235 = vld [vmem:[%s3324 + $0x140] sm:$0xff]
        %v4236 = vld [vmem:[%s3324 + $0x150] sm:$0xff]
        %v4237 = vld [vmem:[%s3324 + $0x158] sm:$0xff]
        %v4238 = vld [vmem:[%s3324 + $0x168] sm:$0xff]
        %v4239 = vld [vmem:[%s3324 + $0x170] sm:$0xff]
        %v4240 = vpack.c.bf16 %v4209, %v4208
        %v4241 = vpack.c.bf16 %v4211, %v4210
        %v4242 = vpack.c.bf16 %v4213, %v4212
        %v4243 = vpack.c.bf16 %v4215, %v4214
        %v4244 = vpack.c.bf16 %v4217, %v4216
        %v4245 = vpack.c.bf16 %v4219, %v4218
        %v4246 = vpack.c.bf16 %v4221, %v4220
        %v4247 = vpack.c.bf16 %v4223, %v4222
        %v4248 = vpack.c.bf16 %v4225, %v4224
        %v4249 = vpack.c.bf16 %v4227, %v4226
        %v4250 = vpack.c.bf16 %v4229, %v4228
        %v4251 = vpack.c.bf16 %v4231, %v4230
        %v4252 = vpack.c.bf16 %v4233, %v4232
        %v4253 = vpack.c.bf16 %v4235, %v4234
        %v4254 = vpack.c.bf16 %v4237, %v4236
        %v4255 = vpack.c.bf16 %v4239, %v4238
        %v4256 = vld [vmem:[#allocation9 + $0xc0] sm:$0xf]
        %v4257 = vld [vmem:[#allocation9 + $0xc4] sm:$0xf]
        %v4258 = vld [vmem:[#allocation9 + $0xc8] sm:$0xf]
        %v4259 = vld [vmem:[#allocation9 + $0xcc] sm:$0xf]
        %v4260 = vld [vmem:[#allocation9 + $0xd0] sm:$0xf]
        %v4261 = vld [vmem:[#allocation9 + $0xd4] sm:$0xf]
        %v4262 = vld [vmem:[#allocation9 + $0xd8] sm:$0xf]
        %v4263 = vld [vmem:[#allocation9 + $0xdc] sm:$0xf]
        %v4264 = vld [vmem:[#allocation9 + $0xe0] sm:$0xf]
        %v4265 = vld [vmem:[#allocation9 + $0xe4] sm:$0xf]
        %v4266 = vld [vmem:[#allocation9 + $0xe8] sm:$0xf]
        %v4267 = vld [vmem:[#allocation9 + $0xec] sm:$0xf]
        %v4268 = vld [vmem:[#allocation9 + $0xf0] sm:$0xf]
        %v4269 = vld [vmem:[#allocation9 + $0xf4] sm:$0xf]
        %v4270 = vld [vmem:[#allocation9 + $0xf8] sm:$0xf]
        %v4271 = vld [vmem:[#allocation9 + $0xfc] sm:$0xf]
        %v4288 = vunpack.c.l.b16 %v4256
        %v4289 = vunpack.c.l.b16 %v4257
        %v4290 = vunpack.c.l.b16 %v4258
        %v4291 = vunpack.c.l.b16 %v4259
        %v4292 = vunpack.c.l.b16 %v4260
        %v4293 = vunpack.c.l.b16 %v4261
        %v4294 = vunpack.c.l.b16 %v4262
        %v4295 = vunpack.c.l.b16 %v4263
        %v4296 = vunpack.c.l.b16 %v4264
        %v4297 = vunpack.c.l.b16 %v4265
        %v4298 = vunpack.c.l.b16 %v4266
        %v4299 = vunpack.c.l.b16 %v4267
        %v4300 = vunpack.c.l.b16 %v4268
        %v4301 = vunpack.c.l.b16 %v4269
        %v4302 = vunpack.c.l.b16 %v4270
        %v4303 = vunpack.c.l.b16 %v4271
        %v4304 = vpack.c.b16 %v4289, %v4288
        %v4305 = vpack.c.b16 %v4291, %v4290
        %v4306 = vpack.c.b16 %v4293, %v4292
        %v4307 = vpack.c.b16 %v4295, %v4294
        %v4308 = vpack.c.b16 %v4297, %v4296
        %v4309 = vpack.c.b16 %v4299, %v4298
        %v4310 = vpack.c.b16 %v4301, %v4300
        %v4311 = vpack.c.b16 %v4303, %v4302
        %4320 = vmatprep.subr.bf16.mxu0 0
        %4321 = vmatpush1.bf16.msra.mxu0 %v4311
        %4322 = vmatprep.subr.bf16.mxu0 0
        %4323 = vmatpush1.bf16.msra.mxu0 %v4310
        %4324 = vmatprep.subr.bf16.mxu0 0
        %4325 = vmatpush1.bf16.msra.mxu0 %v4309
        %4326 = vmatprep.subr.bf16.mxu0 0
        %4327 = vmatpush1.bf16.msra.mxu0 %v4308
        %4328 = vmatprep.subr.bf16.mxu0 0
        %4329 = vmatpush1.bf16.msra.mxu0 %v4307
        %4330 = vmatprep.subr.bf16.mxu0 0
        %4331 = vmatpush1.bf16.msra.mxu0 %v4306
        %4332 = vmatprep.subr.bf16.mxu0 0
        %4333 = vmatpush1.bf16.msra.mxu0 %v4305
        %4334 = vmatprep.subr.bf16.mxu0 0
        %4335 = vmatpush1.bf16.msra.mxu0 %v4304
        %4336 = vmatprep.subr.bf16.mxu0 0
        %4337 = vmatpush2.bf16.msra.mxu0 0
        %4338 = vmatprep.subr.bf16.mxu0 0
        %4339 = vmatpush2.bf16.msra.mxu0 0
        %4340 = vmatprep.subr.bf16.mxu0 0
        %4341 = vmatpush2.bf16.msra.mxu0 0
        %4342 = vmatprep.subr.bf16.mxu0 0
        %4343 = vmatpush2.bf16.msra.mxu0 0
        %4344 = vmatprep.subr.bf16.mxu0 0
        %4345 = vmatpush2.bf16.msra.mxu0 0
        %4346 = vmatprep.subr.bf16.mxu0 0
        %4347 = vmatpush2.bf16.msra.mxu0 0
        %4348 = vmatprep.subr.bf16.mxu0 0
        %4349 = vmatpush2.bf16.msra.mxu0 0
        %4350 = vmatprep.subr.bf16.mxu0 0
        %4351 = vmatpush2.bf16.msra.mxu0 0
        %4352 = vmatprep.mubr.bf16.mxu0 0
        %4353 = vmatmul.mubr.bf16.gmra.mxu0 %v4240
        %v4354 = vpop.f32.mrf.mxu0
        %v4355 = vadd.f32 0.0, %v4354
        %v4356 = vpop.f32.mrf.mxu0
        %v4357 = vpop.f32.mrf.mxu0
        %v4358 = vadd.f32 0.0, %v4357
        %v4359 = vpop.f32.mrf.mxu0
        %4360 = vmatprep.mubr.bf16.mxu0 0
        %4361 = vmatmul.mubr.bf16.gmra.mxu0 %v4241
        %v4362 = vpop.f32.mrf.mxu0
        %v4363 = vadd.f32 0.0, %v4362
        %v4364 = vpop.f32.mrf.mxu0
        %v4365 = vpop.f32.mrf.mxu0
        %v4366 = vadd.f32 0.0, %v4365
        %v4367 = vpop.f32.mrf.mxu0
        %4368 = vmatprep.mubr.bf16.mxu0 0
        %4369 = vmatmul.mubr.bf16.gmra.mxu0 %v4242
        %v4370 = vpop.f32.mrf.mxu0
        %v4371 = vadd.f32 0.0, %v4370
        %v4372 = vpop.f32.mrf.mxu0
        %v4373 = vpop.f32.mrf.mxu0
        %v4374 = vadd.f32 0.0, %v4373
        %v4375 = vpop.f32.mrf.mxu0
        %4376 = vmatprep.mubr.bf16.mxu0 0
        %4377 = vmatmul.mubr.bf16.gmra.mxu0 %v4243
        %v4378 = vpop.f32.mrf.mxu0
        %v4379 = vadd.f32 0.0, %v4378
        %v4380 = vpop.f32.mrf.mxu0
        %v4381 = vpop.f32.mrf.mxu0
        %v4382 = vadd.f32 0.0, %v4381
        %v4383 = vpop.f32.mrf.mxu0
        %4384 = vmatprep.mubr.bf16.mxu0 0
        %4385 = vmatmul.mubr.bf16.gmra.mxu0 %v4244
        %v4386 = vpop.f32.mrf.mxu0
        %v4387 = vadd.f32 0.0, %v4386
        %v4388 = vpop.f32.mrf.mxu0
        %v4389 = vpop.f32.mrf.mxu0
        %v4390 = vadd.f32 0.0, %v4389
        %v4391 = vpop.f32.mrf.mxu0
        %4392 = vmatprep.mubr.bf16.mxu0 0
        %4393 = vmatmul.mubr.bf16.gmra.mxu0 %v4245
        %v4394 = vpop.f32.mrf.mxu0
        %v4395 = vadd.f32 0.0, %v4394
        %v4396 = vpop.f32.mrf.mxu0
        %v4397 = vpop.f32.mrf.mxu0
        %v4398 = vadd.f32 0.0, %v4397
        %v4399 = vpop.f32.mrf.mxu0
        %4400 = vmatprep.mubr.bf16.mxu0 0
        %4401 = vmatmul.mubr.bf16.gmra.mxu0 %v4246
        %v4402 = vpop.f32.mrf.mxu0
        %v4403 = vadd.f32 0.0, %v4402
        %v4404 = vpop.f32.mrf.mxu0
        %v4405 = vpop.f32.mrf.mxu0
        %v4406 = vadd.f32 0.0, %v4405
        %v4407 = vpop.f32.mrf.mxu0
        %4408 = vmatprep.mubr.bf16.mxu0 0
        %4409 = vmatmul.mubr.bf16.gmra.mxu0 %v4247
        %v4410 = vpop.f32.mrf.mxu0
        %v4411 = vadd.f32 0.0, %v4410
        %v4412 = vpop.f32.mrf.mxu0
        %v4413 = vpop.f32.mrf.mxu0
        %v4414 = vadd.f32 0.0, %v4413
        %v4415 = vpop.f32.mrf.mxu0
        %4416 = vmatprep.mubr.bf16.mxu0 0
        %4417 = vmatmul.mubr.bf16.gmra.mxu0 %v4248
        %v4418 = vpop.f32.mrf.mxu0
        %v4419 = vadd.f32 0.0, %v4418
        %v4420 = vpop.f32.mrf.mxu0
        %v4421 = vpop.f32.mrf.mxu0
        %v4422 = vadd.f32 0.0, %v4421
        %v4423 = vpop.f32.mrf.mxu0
        %4424 = vmatprep.mubr.bf16.mxu0 0
        %4425 = vmatmul.mubr.bf16.gmra.mxu0 %v4249
        %v4426 = vpop.f32.mrf.mxu0
        %v4427 = vadd.f32 0.0, %v4426
        %v4428 = vpop.f32.mrf.mxu0
        %v4429 = vpop.f32.mrf.mxu0
        %v4430 = vadd.f32 0.0, %v4429
        %v4431 = vpop.f32.mrf.mxu0
        %4432 = vmatprep.mubr.bf16.mxu0 0
        %4433 = vmatmul.mubr.bf16.gmra.mxu0 %v4250
        %v4434 = vpop.f32.mrf.mxu0
        %v4435 = vadd.f32 0.0, %v4434
        %v4436 = vpop.f32.mrf.mxu0
        %v4437 = vpop.f32.mrf.mxu0
        %v4438 = vadd.f32 0.0, %v4437
        %v4439 = vpop.f32.mrf.mxu0
        %4440 = vmatprep.mubr.bf16.mxu0 0
        %4441 = vmatmul.mubr.bf16.gmra.mxu0 %v4251
        %v4442 = vpop.f32.mrf.mxu0
        %v4443 = vadd.f32 0.0, %v4442
        %v4444 = vpop.f32.mrf.mxu0
        %v4445 = vpop.f32.mrf.mxu0
        %v4446 = vadd.f32 0.0, %v4445
        %v4447 = vpop.f32.mrf.mxu0
        %4448 = vmatprep.mubr.bf16.mxu0 0
        %4449 = vmatmul.mubr.bf16.gmra.mxu0 %v4252
        %v4450 = vpop.f32.mrf.mxu0
        %v4451 = vadd.f32 0.0, %v4450
        %v4452 = vpop.f32.mrf.mxu0
        %v4453 = vpop.f32.mrf.mxu0
        %v4454 = vadd.f32 0.0, %v4453
        %v4455 = vpop.f32.mrf.mxu0
        %4456 = vmatprep.mubr.bf16.mxu0 0
        %4457 = vmatmul.mubr.bf16.gmra.mxu0 %v4253
        %v4458 = vpop.f32.mrf.mxu0
        %v4459 = vadd.f32 0.0, %v4458
        %v4460 = vpop.f32.mrf.mxu0
        %v4461 = vpop.f32.mrf.mxu0
        %v4462 = vadd.f32 0.0, %v4461
        %v4463 = vpop.f32.mrf.mxu0
        %4464 = vmatprep.mubr.bf16.mxu0 0
        %4465 = vmatmul.mubr.bf16.gmra.mxu0 %v4254
        %v4466 = vpop.f32.mrf.mxu0
        %v4467 = vadd.f32 0.0, %v4466
        %v4468 = vpop.f32.mrf.mxu0
        %v4469 = vpop.f32.mrf.mxu0
        %v4470 = vadd.f32 0.0, %v4469
        %v4471 = vpop.f32.mrf.mxu0
        %4472 = vmatprep.mubr.bf16.mxu0 0
        %4473 = vmatmul.mubr.bf16.gmra.mxu0 %v4255
        %v4474 = vpop.f32.mrf.mxu0
        %v4475 = vadd.f32 0.0, %v4474
        %v4476 = vpop.f32.mrf.mxu0
        %v4477 = vpop.f32.mrf.mxu0
        %v4478 = vadd.f32 0.0, %v4477
        %v4479 = vpop.f32.mrf.mxu0
        %4480 = vdwg.mxu0
        %v4481 = vadd.f32 %v4176, %v4355
        %v4482 = vadd.f32 %v4177, %v4358
        %v4483 = vadd.f32 %v4178, %v4363
        %v4484 = vadd.f32 %v4179, %v4366
        %v4485 = vadd.f32 %v4180, %v4371
        %v4486 = vadd.f32 %v4181, %v4374
        %v4487 = vadd.f32 %v4182, %v4379
        %v4488 = vadd.f32 %v4183, %v4382
        %v4489 = vadd.f32 %v4184, %v4387
        %v4490 = vadd.f32 %v4185, %v4390
        %v4491 = vadd.f32 %v4186, %v4395
        %v4492 = vadd.f32 %v4187, %v4398
        %v4493 = vadd.f32 %v4188, %v4403
        %v4494 = vadd.f32 %v4189, %v4406
        %v4495 = vadd.f32 %v4190, %v4411
        %v4496 = vadd.f32 %v4191, %v4414
        %v4497 = vadd.f32 %v4192, %v4419
        %v4498 = vadd.f32 %v4193, %v4422
        %v4499 = vadd.f32 %v4194, %v4427
        %v4500 = vadd.f32 %v4195, %v4430
        %v4501 = vadd.f32 %v4196, %v4435
        %v4502 = vadd.f32 %v4197, %v4438
        %v4503 = vadd.f32 %v4198, %v4443
        %v4504 = vadd.f32 %v4199, %v4446
        %v4505 = vadd.f32 %v4200, %v4451
        %v4506 = vadd.f32 %v4201, %v4454
        %v4507 = vadd.f32 %v4202, %v4459
        %v4508 = vadd.f32 %v4203, %v4462
        %v4509 = vadd.f32 %v4204, %v4467
        %v4510 = vadd.f32 %v4205, %v4470
        %v4511 = vadd.f32 %v4206, %v4475
        %v4512 = vadd.f32 %v4207, %v4478
        %v4513 = vld [vmem:[%s3324 + $0x1] sm:$0xff]
        %v4514 = vld [vmem:[%s3324 + $0x9] sm:$0xff]
        %v4515 = vld [vmem:[%s3324 + $0x19] sm:$0xff]
        %v4516 = vld [vmem:[%s3324 + $0x21] sm:$0xff]
        %v4517 = vld [vmem:[%s3324 + $0x31] sm:$0xff]
        %v4518 = vld [vmem:[%s3324 + $0x39] sm:$0xff]
        %v4519 = vld [vmem:[%s3324 + $0x49] sm:$0xff]
        %v4520 = vld [vmem:[%s3324 + $0x51] sm:$0xff]
        %v4521 = vld [vmem:[%s3324 + $0x61] sm:$0xff]
        %v4522 = vld [vmem:[%s3324 + $0x69] sm:$0xff]
        %v4523 = vld [vmem:[%s3324 + $0x79] sm:$0xff]
        %v4524 = vld [vmem:[%s3324 + $0x81] sm:$0xff]
        %v4525 = vld [vmem:[%s3324 + $0x91] sm:$0xff]
        %v4526 = vld [vmem:[%s3324 + $0x99] sm:$0xff]
        %v4527 = vld [vmem:[%s3324 + $0xa9] sm:$0xff]
        %v4528 = vld [vmem:[%s3324 + $0xb1] sm:$0xff]
        %v4529 = vld [vmem:[%s3324 + $0xc1] sm:$0xff]
        %v4530 = vld [vmem:[%s3324 + $0xc9] sm:$0xff]
        %v4531 = vld [vmem:[%s3324 + $0xd9] sm:$0xff]
        %v4532 = vld [vmem:[%s3324 + $0xe1] sm:$0xff]
        %v4533 = vld [vmem:[%s3324 + $0xf1] sm:$0xff]
        %v4534 = vld [vmem:[%s3324 + $0xf9] sm:$0xff]
        %v4535 = vld [vmem:[%s3324 + $0x109] sm:$0xff]
        %v4536 = vld [vmem:[%s3324 + $0x111] sm:$0xff]
        %v4537 = vld [vmem:[%s3324 + $0x121] sm:$0xff]
        %v4538 = vld [vmem:[%s3324 + $0x129] sm:$0xff]
        %v4539 = vld [vmem:[%s3324 + $0x139] sm:$0xff]
        %v4540 = vld [vmem:[%s3324 + $0x141] sm:$0xff]
        %v4541 = vld [vmem:[%s3324 + $0x151] sm:$0xff]
        %v4542 = vld [vmem:[%s3324 + $0x159] sm:$0xff]
        %v4543 = vld [vmem:[%s3324 + $0x169] sm:$0xff]
        %v4544 = vld [vmem:[%s3324 + $0x171] sm:$0xff]
        %v4545 = vpack.c.bf16 %v4514, %v4513
        %v4546 = vpack.c.bf16 %v4516, %v4515
        %v4547 = vpack.c.bf16 %v4518, %v4517
        %v4548 = vpack.c.bf16 %v4520, %v4519
        %v4549 = vpack.c.bf16 %v4522, %v4521
        %v4550 = vpack.c.bf16 %v4524, %v4523
        %v4551 = vpack.c.bf16 %v4526, %v4525
        %v4552 = vpack.c.bf16 %v4528, %v4527
        %v4553 = vpack.c.bf16 %v4530, %v4529
        %v4554 = vpack.c.bf16 %v4532, %v4531
        %v4555 = vpack.c.bf16 %v4534, %v4533
        %v4556 = vpack.c.bf16 %v4536, %v4535
        %v4557 = vpack.c.bf16 %v4538, %v4537
        %v4558 = vpack.c.bf16 %v4540, %v4539
        %v4559 = vpack.c.bf16 %v4542, %v4541
        %v4560 = vpack.c.bf16 %v4544, %v4543
        %v4561 = vld [vmem:[#allocation9 + $0x100] sm:$0xf]
        %v4562 = vld [vmem:[#allocation9 + $0x104] sm:$0xf]
        %v4563 = vld [vmem:[#allocation9 + $0x108] sm:$0xf]
        %v4564 = vld [vmem:[#allocation9 + $0x10c] sm:$0xf]
        %v4565 = vld [vmem:[#allocation9 + $0x110] sm:$0xf]
        %v4566 = vld [vmem:[#allocation9 + $0x114] sm:$0xf]
        %v4567 = vld [vmem:[#allocation9 + $0x118] sm:$0xf]
        %v4568 = vld [vmem:[#allocation9 + $0x11c] sm:$0xf]
        %v4569 = vld [vmem:[#allocation9 + $0x120] sm:$0xf]
        %v4570 = vld [vmem:[#allocation9 + $0x124] sm:$0xf]
        %v4571 = vld [vmem:[#allocation9 + $0x128] sm:$0xf]
        %v4572 = vld [vmem:[#allocation9 + $0x12c] sm:$0xf]
        %v4573 = vld [vmem:[#allocation9 + $0x130] sm:$0xf]
        %v4574 = vld [vmem:[#allocation9 + $0x134] sm:$0xf]
        %v4575 = vld [vmem:[#allocation9 + $0x138] sm:$0xf]
        %v4576 = vld [vmem:[#allocation9 + $0x13c] sm:$0xf]
        %v4593 = vunpack.c.l.b16 %v4561
        %v4594 = vunpack.c.l.b16 %v4562
        %v4595 = vunpack.c.l.b16 %v4563
        %v4596 = vunpack.c.l.b16 %v4564
        %v4597 = vunpack.c.l.b16 %v4565
        %v4598 = vunpack.c.l.b16 %v4566
        %v4599 = vunpack.c.l.b16 %v4567
        %v4600 = vunpack.c.l.b16 %v4568
        %v4601 = vunpack.c.l.b16 %v4569
        %v4602 = vunpack.c.l.b16 %v4570
        %v4603 = vunpack.c.l.b16 %v4571
        %v4604 = vunpack.c.l.b16 %v4572
        %v4605 = vunpack.c.l.b16 %v4573
        %v4606 = vunpack.c.l.b16 %v4574
        %v4607 = vunpack.c.l.b16 %v4575
        %v4608 = vunpack.c.l.b16 %v4576
        %v4609 = vpack.c.b16 %v4594, %v4593
        %v4610 = vpack.c.b16 %v4596, %v4595
        %v4611 = vpack.c.b16 %v4598, %v4597
        %v4612 = vpack.c.b16 %v4600, %v4599
        %v4613 = vpack.c.b16 %v4602, %v4601
        %v4614 = vpack.c.b16 %v4604, %v4603
        %v4615 = vpack.c.b16 %v4606, %v4605
        %v4616 = vpack.c.b16 %v4608, %v4607
        %4625 = vmatprep.subr.bf16.mxu0 0
        %4626 = vmatpush1.bf16.msra.mxu0 %v4616
        %4627 = vmatprep.subr.bf16.mxu0 0
        %4628 = vmatpush1.bf16.msra.mxu0 %v4615
        %4629 = vmatprep.subr.bf16.mxu0 0
        %4630 = vmatpush1.bf16.msra.mxu0 %v4614
        %4631 = vmatprep.subr.bf16.mxu0 0
        %4632 = vmatpush1.bf16.msra.mxu0 %v4613
        %4633 = vmatprep.subr.bf16.mxu0 0
        %4634 = vmatpush1.bf16.msra.mxu0 %v4612
        %4635 = vmatprep.subr.bf16.mxu0 0
        %4636 = vmatpush1.bf16.msra.mxu0 %v4611
        %4637 = vmatprep.subr.bf16.mxu0 0
        %4638 = vmatpush1.bf16.msra.mxu0 %v4610
        %4639 = vmatprep.subr.bf16.mxu0 0
        %4640 = vmatpush1.bf16.msra.mxu0 %v4609
        %4641 = vmatprep.subr.bf16.mxu0 0
        %4642 = vmatpush2.bf16.msra.mxu0 0
        %4643 = vmatprep.subr.bf16.mxu0 0
        %4644 = vmatpush2.bf16.msra.mxu0 0
        %4645 = vmatprep.subr.bf16.mxu0 0
        %4646 = vmatpush2.bf16.msra.mxu0 0
        %4647 = vmatprep.subr.bf16.mxu0 0
        %4648 = vmatpush2.bf16.msra.mxu0 0
        %4649 = vmatprep.subr.bf16.mxu0 0
        %4650 = vmatpush2.bf16.msra.mxu0 0
        %4651 = vmatprep.subr.bf16.mxu0 0
        %4652 = vmatpush2.bf16.msra.mxu0 0
        %4653 = vmatprep.subr.bf16.mxu0 0
        %4654 = vmatpush2.bf16.msra.mxu0 0
        %4655 = vmatprep.subr.bf16.mxu0 0
        %4656 = vmatpush2.bf16.msra.mxu0 0
        %4657 = vmatprep.mubr.bf16.mxu0 0
        %4658 = vmatmul.mubr.bf16.gmra.mxu0 %v4545
        %v4659 = vpop.f32.mrf.mxu0
        %v4660 = vadd.f32 0.0, %v4659
        %v4661 = vpop.f32.mrf.mxu0
        %v4662 = vpop.f32.mrf.mxu0
        %v4663 = vadd.f32 0.0, %v4662
        %v4664 = vpop.f32.mrf.mxu0
        %4665 = vmatprep.mubr.bf16.mxu0 0
        %4666 = vmatmul.mubr.bf16.gmra.mxu0 %v4546
        %v4667 = vpop.f32.mrf.mxu0
        %v4668 = vadd.f32 0.0, %v4667
        %v4669 = vpop.f32.mrf.mxu0
        %v4670 = vpop.f32.mrf.mxu0
        %v4671 = vadd.f32 0.0, %v4670
        %v4672 = vpop.f32.mrf.mxu0
        %4673 = vmatprep.mubr.bf16.mxu0 0
        %4674 = vmatmul.mubr.bf16.gmra.mxu0 %v4547
        %v4675 = vpop.f32.mrf.mxu0
        %v4676 = vadd.f32 0.0, %v4675
        %v4677 = vpop.f32.mrf.mxu0
        %v4678 = vpop.f32.mrf.mxu0
        %v4679 = vadd.f32 0.0, %v4678
        %v4680 = vpop.f32.mrf.mxu0
        %4681 = vmatprep.mubr.bf16.mxu0 0
        %4682 = vmatmul.mubr.bf16.gmra.mxu0 %v4548
        %v4683 = vpop.f32.mrf.mxu0
        %v4684 = vadd.f32 0.0, %v4683
        %v4685 = vpop.f32.mrf.mxu0
        %v4686 = vpop.f32.mrf.mxu0
        %v4687 = vadd.f32 0.0, %v4686
        %v4688 = vpop.f32.mrf.mxu0
        %4689 = vmatprep.mubr.bf16.mxu0 0
        %4690 = vmatmul.mubr.bf16.gmra.mxu0 %v4549
        %v4691 = vpop.f32.mrf.mxu0
        %v4692 = vadd.f32 0.0, %v4691
        %v4693 = vpop.f32.mrf.mxu0
        %v4694 = vpop.f32.mrf.mxu0
        %v4695 = vadd.f32 0.0, %v4694
        %v4696 = vpop.f32.mrf.mxu0
        %4697 = vmatprep.mubr.bf16.mxu0 0
        %4698 = vmatmul.mubr.bf16.gmra.mxu0 %v4550
        %v4699 = vpop.f32.mrf.mxu0
        %v4700 = vadd.f32 0.0, %v4699
        %v4701 = vpop.f32.mrf.mxu0
        %v4702 = vpop.f32.mrf.mxu0
        %v4703 = vadd.f32 0.0, %v4702
        %v4704 = vpop.f32.mrf.mxu0
        %4705 = vmatprep.mubr.bf16.mxu0 0
        %4706 = vmatmul.mubr.bf16.gmra.mxu0 %v4551
        %v4707 = vpop.f32.mrf.mxu0
        %v4708 = vadd.f32 0.0, %v4707
        %v4709 = vpop.f32.mrf.mxu0
        %v4710 = vpop.f32.mrf.mxu0
        %v4711 = vadd.f32 0.0, %v4710
        %v4712 = vpop.f32.mrf.mxu0
        %4713 = vmatprep.mubr.bf16.mxu0 0
        %4714 = vmatmul.mubr.bf16.gmra.mxu0 %v4552
        %v4715 = vpop.f32.mrf.mxu0
        %v4716 = vadd.f32 0.0, %v4715
        %v4717 = vpop.f32.mrf.mxu0
        %v4718 = vpop.f32.mrf.mxu0
        %v4719 = vadd.f32 0.0, %v4718
        %v4720 = vpop.f32.mrf.mxu0
        %4721 = vmatprep.mubr.bf16.mxu0 0
        %4722 = vmatmul.mubr.bf16.gmra.mxu0 %v4553
        %v4723 = vpop.f32.mrf.mxu0
        %v4724 = vadd.f32 0.0, %v4723
        %v4725 = vpop.f32.mrf.mxu0
        %v4726 = vpop.f32.mrf.mxu0
        %v4727 = vadd.f32 0.0, %v4726
        %v4728 = vpop.f32.mrf.mxu0
        %4729 = vmatprep.mubr.bf16.mxu0 0
        %4730 = vmatmul.mubr.bf16.gmra.mxu0 %v4554
        %v4731 = vpop.f32.mrf.mxu0
        %v4732 = vadd.f32 0.0, %v4731
        %v4733 = vpop.f32.mrf.mxu0
        %v4734 = vpop.f32.mrf.mxu0
        %v4735 = vadd.f32 0.0, %v4734
        %v4736 = vpop.f32.mrf.mxu0
        %4737 = vmatprep.mubr.bf16.mxu0 0
        %4738 = vmatmul.mubr.bf16.gmra.mxu0 %v4555
        %v4739 = vpop.f32.mrf.mxu0
        %v4740 = vadd.f32 0.0, %v4739
        %v4741 = vpop.f32.mrf.mxu0
        %v4742 = vpop.f32.mrf.mxu0
        %v4743 = vadd.f32 0.0, %v4742
        %v4744 = vpop.f32.mrf.mxu0
        %4745 = vmatprep.mubr.bf16.mxu0 0
        %4746 = vmatmul.mubr.bf16.gmra.mxu0 %v4556
        %v4747 = vpop.f32.mrf.mxu0
        %v4748 = vadd.f32 0.0, %v4747
        %v4749 = vpop.f32.mrf.mxu0
        %v4750 = vpop.f32.mrf.mxu0
        %v4751 = vadd.f32 0.0, %v4750
        %v4752 = vpop.f32.mrf.mxu0
        %4753 = vmatprep.mubr.bf16.mxu0 0
        %4754 = vmatmul.mubr.bf16.gmra.mxu0 %v4557
        %v4755 = vpop.f32.mrf.mxu0
        %v4756 = vadd.f32 0.0, %v4755
        %v4757 = vpop.f32.mrf.mxu0
        %v4758 = vpop.f32.mrf.mxu0
        %v4759 = vadd.f32 0.0, %v4758
        %v4760 = vpop.f32.mrf.mxu0
        %4761 = vmatprep.mubr.bf16.mxu0 0
        %4762 = vmatmul.mubr.bf16.gmra.mxu0 %v4558
        %v4763 = vpop.f32.mrf.mxu0
        %v4764 = vadd.f32 0.0, %v4763
        %v4765 = vpop.f32.mrf.mxu0
        %v4766 = vpop.f32.mrf.mxu0
        %v4767 = vadd.f32 0.0, %v4766
        %v4768 = vpop.f32.mrf.mxu0
        %4769 = vmatprep.mubr.bf16.mxu0 0
        %4770 = vmatmul.mubr.bf16.gmra.mxu0 %v4559
        %v4771 = vpop.f32.mrf.mxu0
        %v4772 = vadd.f32 0.0, %v4771
        %v4773 = vpop.f32.mrf.mxu0
        %v4774 = vpop.f32.mrf.mxu0
        %v4775 = vadd.f32 0.0, %v4774
        %v4776 = vpop.f32.mrf.mxu0
        %4777 = vmatprep.mubr.bf16.mxu0 0
        %4778 = vmatmul.mubr.bf16.gmra.mxu0 %v4560
        %v4779 = vpop.f32.mrf.mxu0
        %v4780 = vadd.f32 0.0, %v4779
        %v4781 = vpop.f32.mrf.mxu0
        %v4782 = vpop.f32.mrf.mxu0
        %v4783 = vadd.f32 0.0, %v4782
        %v4784 = vpop.f32.mrf.mxu0
        %4785 = vdwg.mxu0
        %v4786 = vadd.f32 %v4481, %v4660
        %v4787 = vadd.f32 %v4482, %v4663
        %v4788 = vadd.f32 %v4483, %v4668
        %v4789 = vadd.f32 %v4484, %v4671
        %v4790 = vadd.f32 %v4485, %v4676
        %v4791 = vadd.f32 %v4486, %v4679
        %v4792 = vadd.f32 %v4487, %v4684
        %v4793 = vadd.f32 %v4488, %v4687
        %v4794 = vadd.f32 %v4489, %v4692
        %v4795 = vadd.f32 %v4490, %v4695
        %v4796 = vadd.f32 %v4491, %v4700
        %v4797 = vadd.f32 %v4492, %v4703
        %v4798 = vadd.f32 %v4493, %v4708
        %v4799 = vadd.f32 %v4494, %v4711
        %v4800 = vadd.f32 %v4495, %v4716
        %v4801 = vadd.f32 %v4496, %v4719
        %v4802 = vadd.f32 %v4497, %v4724
        %v4803 = vadd.f32 %v4498, %v4727
        %v4804 = vadd.f32 %v4499, %v4732
        %v4805 = vadd.f32 %v4500, %v4735
        %v4806 = vadd.f32 %v4501, %v4740
        %v4807 = vadd.f32 %v4502, %v4743
        %v4808 = vadd.f32 %v4503, %v4748
        %v4809 = vadd.f32 %v4504, %v4751
        %v4810 = vadd.f32 %v4505, %v4756
        %v4811 = vadd.f32 %v4506, %v4759
        %v4812 = vadd.f32 %v4507, %v4764
        %v4813 = vadd.f32 %v4508, %v4767
        %v4814 = vadd.f32 %v4509, %v4772
        %v4815 = vadd.f32 %v4510, %v4775
        %v4816 = vadd.f32 %v4511, %v4780
        %v4817 = vadd.f32 %v4512, %v4783
        %v4818 = vld [vmem:[%s3324 + $0x2] sm:$0xff]
        %v4819 = vld [vmem:[%s3324 + $0xa] sm:$0xff]
        %v4820 = vld [vmem:[%s3324 + $0x1a] sm:$0xff]
        %v4821 = vld [vmem:[%s3324 + $0x22] sm:$0xff]
        %v4822 = vld [vmem:[%s3324 + $0x32] sm:$0xff]
        %v4823 = vld [vmem:[%s3324 + $0x3a] sm:$0xff]
        %v4824 = vld [vmem:[%s3324 + $0x4a] sm:$0xff]
        %v4825 = vld [vmem:[%s3324 + $0x52] sm:$0xff]
        %v4826 = vld [vmem:[%s3324 + $0x62] sm:$0xff]
        %v4827 = vld [vmem:[%s3324 + $0x6a] sm:$0xff]
        %v4828 = vld [vmem:[%s3324 + $0x7a] sm:$0xff]
        %v4829 = vld [vmem:[%s3324 + $0x82] sm:$0xff]
        %v4830 = vld [vmem:[%s3324 + $0x92] sm:$0xff]
        %v4831 = vld [vmem:[%s3324 + $0x9a] sm:$0xff]
        %v4832 = vld [vmem:[%s3324 + $0xaa] sm:$0xff]
        %v4833 = vld [vmem:[%s3324 + $0xb2] sm:$0xff]
        %v4834 = vld [vmem:[%s3324 + $0xc2] sm:$0xff]
        %v4835 = vld [vmem:[%s3324 + $0xca] sm:$0xff]
        %v4836 = vld [vmem:[%s3324 + $0xda] sm:$0xff]
        %v4837 = vld [vmem:[%s3324 + $0xe2] sm:$0xff]
        %v4838 = vld [vmem:[%s3324 + $0xf2] sm:$0xff]
        %v4839 = vld [vmem:[%s3324 + $0xfa] sm:$0xff]
        %v4840 = vld [vmem:[%s3324 + $0x10a] sm:$0xff]
        %v4841 = vld [vmem:[%s3324 + $0x112] sm:$0xff]
        %v4842 = vld [vmem:[%s3324 + $0x122] sm:$0xff]
        %v4843 = vld [vmem:[%s3324 + $0x12a] sm:$0xff]
        %v4844 = vld [vmem:[%s3324 + $0x13a] sm:$0xff]
        %v4845 = vld [vmem:[%s3324 + $0x142] sm:$0xff]
        %v4846 = vld [vmem:[%s3324 + $0x152] sm:$0xff]
        %v4847 = vld [vmem:[%s3324 + $0x15a] sm:$0xff]
        %v4848 = vld [vmem:[%s3324 + $0x16a] sm:$0xff]
        %v4849 = vld [vmem:[%s3324 + $0x172] sm:$0xff]
        %v4850 = vpack.c.bf16 %v4819, %v4818
        %v4851 = vpack.c.bf16 %v4821, %v4820
        %v4852 = vpack.c.bf16 %v4823, %v4822
        %v4853 = vpack.c.bf16 %v4825, %v4824
        %v4854 = vpack.c.bf16 %v4827, %v4826
        %v4855 = vpack.c.bf16 %v4829, %v4828
        %v4856 = vpack.c.bf16 %v4831, %v4830
        %v4857 = vpack.c.bf16 %v4833, %v4832
        %v4858 = vpack.c.bf16 %v4835, %v4834
        %v4859 = vpack.c.bf16 %v4837, %v4836
        %v4860 = vpack.c.bf16 %v4839, %v4838
        %v4861 = vpack.c.bf16 %v4841, %v4840
        %v4862 = vpack.c.bf16 %v4843, %v4842
        %v4863 = vpack.c.bf16 %v4845, %v4844
        %v4864 = vpack.c.bf16 %v4847, %v4846
        %v4865 = vpack.c.bf16 %v4849, %v4848
        %v4866 = vld [vmem:[#allocation9 + $0x140] sm:$0xf]
        %v4867 = vld [vmem:[#allocation9 + $0x144] sm:$0xf]
        %v4868 = vld [vmem:[#allocation9 + $0x148] sm:$0xf]
        %v4869 = vld [vmem:[#allocation9 + $0x14c] sm:$0xf]
        %v4870 = vld [vmem:[#allocation9 + $0x150] sm:$0xf]
        %v4871 = vld [vmem:[#allocation9 + $0x154] sm:$0xf]
        %v4872 = vld [vmem:[#allocation9 + $0x158] sm:$0xf]
        %v4873 = vld [vmem:[#allocation9 + $0x15c] sm:$0xf]
        %v4874 = vld [vmem:[#allocation9 + $0x160] sm:$0xf]
        %v4875 = vld [vmem:[#allocation9 + $0x164] sm:$0xf]
        %v4876 = vld [vmem:[#allocation9 + $0x168] sm:$0xf]
        %v4877 = vld [vmem:[#allocation9 + $0x16c] sm:$0xf]
        %v4878 = vld [vmem:[#allocation9 + $0x170] sm:$0xf]
        %v4879 = vld [vmem:[#allocation9 + $0x174] sm:$0xf]
        %v4880 = vld [vmem:[#allocation9 + $0x178] sm:$0xf]
        %v4881 = vld [vmem:[#allocation9 + $0x17c] sm:$0xf]
        %v4898 = vunpack.c.l.b16 %v4866
        %v4899 = vunpack.c.l.b16 %v4867
        %v4900 = vunpack.c.l.b16 %v4868
        %v4901 = vunpack.c.l.b16 %v4869
        %v4902 = vunpack.c.l.b16 %v4870
        %v4903 = vunpack.c.l.b16 %v4871
        %v4904 = vunpack.c.l.b16 %v4872
        %v4905 = vunpack.c.l.b16 %v4873
        %v4906 = vunpack.c.l.b16 %v4874
        %v4907 = vunpack.c.l.b16 %v4875
        %v4908 = vunpack.c.l.b16 %v4876
        %v4909 = vunpack.c.l.b16 %v4877
        %v4910 = vunpack.c.l.b16 %v4878
        %v4911 = vunpack.c.l.b16 %v4879
        %v4912 = vunpack.c.l.b16 %v4880
        %v4913 = vunpack.c.l.b16 %v4881
        %v4914 = vpack.c.b16 %v4899, %v4898
        %v4915 = vpack.c.b16 %v4901, %v4900
        %v4916 = vpack.c.b16 %v4903, %v4902
        %v4917 = vpack.c.b16 %v4905, %v4904
        %v4918 = vpack.c.b16 %v4907, %v4906
        %v4919 = vpack.c.b16 %v4909, %v4908
        %v4920 = vpack.c.b16 %v4911, %v4910
        %v4921 = vpack.c.b16 %v4913, %v4912
        %4930 = vmatprep.subr.bf16.mxu0 0
        %4931 = vmatpush1.bf16.msra.mxu0 %v4921
        %4932 = vmatprep.subr.bf16.mxu0 0
        %4933 = vmatpush1.bf16.msra.mxu0 %v4920
        %4934 = vmatprep.subr.bf16.mxu0 0
        %4935 = vmatpush1.bf16.msra.mxu0 %v4919
        %4936 = vmatprep.subr.bf16.mxu0 0
        %4937 = vmatpush1.bf16.msra.mxu0 %v4918
        %4938 = vmatprep.subr.bf16.mxu0 0
        %4939 = vmatpush1.bf16.msra.mxu0 %v4917
        %4940 = vmatprep.subr.bf16.mxu0 0
        %4941 = vmatpush1.bf16.msra.mxu0 %v4916
        %4942 = vmatprep.subr.bf16.mxu0 0
        %4943 = vmatpush1.bf16.msra.mxu0 %v4915
        %4944 = vmatprep.subr.bf16.mxu0 0
        %4945 = vmatpush1.bf16.msra.mxu0 %v4914
        %4946 = vmatprep.subr.bf16.mxu0 0
        %4947 = vmatpush2.bf16.msra.mxu0 0
        %4948 = vmatprep.subr.bf16.mxu0 0
        %4949 = vmatpush2.bf16.msra.mxu0 0
        %4950 = vmatprep.subr.bf16.mxu0 0
        %4951 = vmatpush2.bf16.msra.mxu0 0
        %4952 = vmatprep.subr.bf16.mxu0 0
        %4953 = vmatpush2.bf16.msra.mxu0 0
        %4954 = vmatprep.subr.bf16.mxu0 0
        %4955 = vmatpush2.bf16.msra.mxu0 0
        %4956 = vmatprep.subr.bf16.mxu0 0
        %4957 = vmatpush2.bf16.msra.mxu0 0
        %4958 = vmatprep.subr.bf16.mxu0 0
        %4959 = vmatpush2.bf16.msra.mxu0 0
        %4960 = vmatprep.subr.bf16.mxu0 0
        %4961 = vmatpush2.bf16.msra.mxu0 0
        %4962 = vmatprep.mubr.bf16.mxu0 0
        %4963 = vmatmul.mubr.bf16.gmra.mxu0 %v4850
        %v4964 = vpop.f32.mrf.mxu0
        %v4965 = vadd.f32 0.0, %v4964
        %v4966 = vpop.f32.mrf.mxu0
        %v4967 = vpop.f32.mrf.mxu0
        %v4968 = vadd.f32 0.0, %v4967
        %v4969 = vpop.f32.mrf.mxu0
        %4970 = vmatprep.mubr.bf16.mxu0 0
        %4971 = vmatmul.mubr.bf16.gmra.mxu0 %v4851
        %v4972 = vpop.f32.mrf.mxu0
        %v4973 = vadd.f32 0.0, %v4972
        %v4974 = vpop.f32.mrf.mxu0
        %v4975 = vpop.f32.mrf.mxu0
        %v4976 = vadd.f32 0.0, %v4975
        %v4977 = vpop.f32.mrf.mxu0
        %4978 = vmatprep.mubr.bf16.mxu0 0
        %4979 = vmatmul.mubr.bf16.gmra.mxu0 %v4852
        %v4980 = vpop.f32.mrf.mxu0
        %v4981 = vadd.f32 0.0, %v4980
        %v4982 = vpop.f32.mrf.mxu0
        %v4983 = vpop.f32.mrf.mxu0
        %v4984 = vadd.f32 0.0, %v4983
        %v4985 = vpop.f32.mrf.mxu0
        %4986 = vmatprep.mubr.bf16.mxu0 0
        %4987 = vmatmul.mubr.bf16.gmra.mxu0 %v4853
        %v4988 = vpop.f32.mrf.mxu0
        %v4989 = vadd.f32 0.0, %v4988
        %v4990 = vpop.f32.mrf.mxu0
        %v4991 = vpop.f32.mrf.mxu0
        %v4992 = vadd.f32 0.0, %v4991
        %v4993 = vpop.f32.mrf.mxu0
        %4994 = vmatprep.mubr.bf16.mxu0 0
        %4995 = vmatmul.mubr.bf16.gmra.mxu0 %v4854
        %v4996 = vpop.f32.mrf.mxu0
        %v4997 = vadd.f32 0.0, %v4996
        %v4998 = vpop.f32.mrf.mxu0
        %v4999 = vpop.f32.mrf.mxu0
        %v5000 = vadd.f32 0.0, %v4999
        %v5001 = vpop.f32.mrf.mxu0
        %5002 = vmatprep.mubr.bf16.mxu0 0
        %5003 = vmatmul.mubr.bf16.gmra.mxu0 %v4855
        %v5004 = vpop.f32.mrf.mxu0
        %v5005 = vadd.f32 0.0, %v5004
        %v5006 = vpop.f32.mrf.mxu0
        %v5007 = vpop.f32.mrf.mxu0
        %v5008 = vadd.f32 0.0, %v5007
        %v5009 = vpop.f32.mrf.mxu0
        %5010 = vmatprep.mubr.bf16.mxu0 0
        %5011 = vmatmul.mubr.bf16.gmra.mxu0 %v4856
        %v5012 = vpop.f32.mrf.mxu0
        %v5013 = vadd.f32 0.0, %v5012
        %v5014 = vpop.f32.mrf.mxu0
        %v5015 = vpop.f32.mrf.mxu0
        %v5016 = vadd.f32 0.0, %v5015
        %v5017 = vpop.f32.mrf.mxu0
        %5018 = vmatprep.mubr.bf16.mxu0 0
        %5019 = vmatmul.mubr.bf16.gmra.mxu0 %v4857
        %v5020 = vpop.f32.mrf.mxu0
        %v5021 = vadd.f32 0.0, %v5020
        %v5022 = vpop.f32.mrf.mxu0
        %v5023 = vpop.f32.mrf.mxu0
        %v5024 = vadd.f32 0.0, %v5023
        %v5025 = vpop.f32.mrf.mxu0
        %5026 = vmatprep.mubr.bf16.mxu0 0
        %5027 = vmatmul.mubr.bf16.gmra.mxu0 %v4858
        %v5028 = vpop.f32.mrf.mxu0
        %v5029 = vadd.f32 0.0, %v5028
        %v5030 = vpop.f32.mrf.mxu0
        %v5031 = vpop.f32.mrf.mxu0
        %v5032 = vadd.f32 0.0, %v5031
        %v5033 = vpop.f32.mrf.mxu0
        %5034 = vmatprep.mubr.bf16.mxu0 0
        %5035 = vmatmul.mubr.bf16.gmra.mxu0 %v4859
        %v5036 = vpop.f32.mrf.mxu0
        %v5037 = vadd.f32 0.0, %v5036
        %v5038 = vpop.f32.mrf.mxu0
        %v5039 = vpop.f32.mrf.mxu0
        %v5040 = vadd.f32 0.0, %v5039
        %v5041 = vpop.f32.mrf.mxu0
        %5042 = vmatprep.mubr.bf16.mxu0 0
        %5043 = vmatmul.mubr.bf16.gmra.mxu0 %v4860
        %v5044 = vpop.f32.mrf.mxu0
        %v5045 = vadd.f32 0.0, %v5044
        %v5046 = vpop.f32.mrf.mxu0
        %v5047 = vpop.f32.mrf.mxu0
        %v5048 = vadd.f32 0.0, %v5047
        %v5049 = vpop.f32.mrf.mxu0
        %5050 = vmatprep.mubr.bf16.mxu0 0
        %5051 = vmatmul.mubr.bf16.gmra.mxu0 %v4861
        %v5052 = vpop.f32.mrf.mxu0
        %v5053 = vadd.f32 0.0, %v5052
        %v5054 = vpop.f32.mrf.mxu0
        %v5055 = vpop.f32.mrf.mxu0
        %v5056 = vadd.f32 0.0, %v5055
        %v5057 = vpop.f32.mrf.mxu0
        %5058 = vmatprep.mubr.bf16.mxu0 0
        %5059 = vmatmul.mubr.bf16.gmra.mxu0 %v4862
        %v5060 = vpop.f32.mrf.mxu0
        %v5061 = vadd.f32 0.0, %v5060
        %v5062 = vpop.f32.mrf.mxu0
        %v5063 = vpop.f32.mrf.mxu0
        %v5064 = vadd.f32 0.0, %v5063
        %v5065 = vpop.f32.mrf.mxu0
        %5066 = vmatprep.mubr.bf16.mxu0 0
        %5067 = vmatmul.mubr.bf16.gmra.mxu0 %v4863
        %v5068 = vpop.f32.mrf.mxu0
        %v5069 = vadd.f32 0.0, %v5068
        %v5070 = vpop.f32.mrf.mxu0
        %v5071 = vpop.f32.mrf.mxu0
        %v5072 = vadd.f32 0.0, %v5071
        %v5073 = vpop.f32.mrf.mxu0
        %5074 = vmatprep.mubr.bf16.mxu0 0
        %5075 = vmatmul.mubr.bf16.gmra.mxu0 %v4864
        %v5076 = vpop.f32.mrf.mxu0
        %v5077 = vadd.f32 0.0, %v5076
        %v5078 = vpop.f32.mrf.mxu0
        %v5079 = vpop.f32.mrf.mxu0
        %v5080 = vadd.f32 0.0, %v5079
        %v5081 = vpop.f32.mrf.mxu0
        %5082 = vmatprep.mubr.bf16.mxu0 0
        %5083 = vmatmul.mubr.bf16.gmra.mxu0 %v4865
        %v5084 = vpop.f32.mrf.mxu0
        %v5085 = vadd.f32 0.0, %v5084
        %v5086 = vpop.f32.mrf.mxu0
        %v5087 = vpop.f32.mrf.mxu0
        %v5088 = vadd.f32 0.0, %v5087
        %v5089 = vpop.f32.mrf.mxu0
        %5090 = vdwg.mxu0
        %v5091 = vadd.f32 %v4786, %v4965
        %v5092 = vadd.f32 %v4787, %v4968
        %v5093 = vadd.f32 %v4788, %v4973
        %v5094 = vadd.f32 %v4789, %v4976
        %v5095 = vadd.f32 %v4790, %v4981
        %v5096 = vadd.f32 %v4791, %v4984
        %v5097 = vadd.f32 %v4792, %v4989
        %v5098 = vadd.f32 %v4793, %v4992
        %v5099 = vadd.f32 %v4794, %v4997
        %v5100 = vadd.f32 %v4795, %v5000
        %v5101 = vadd.f32 %v4796, %v5005
        %v5102 = vadd.f32 %v4797, %v5008
        %v5103 = vadd.f32 %v4798, %v5013
        %v5104 = vadd.f32 %v4799, %v5016
        %v5105 = vadd.f32 %v4800, %v5021
        %v5106 = vadd.f32 %v4801, %v5024
        %v5107 = vadd.f32 %v4802, %v5029
        %v5108 = vadd.f32 %v4803, %v5032
        %v5109 = vadd.f32 %v4804, %v5037
        %v5110 = vadd.f32 %v4805, %v5040
        %v5111 = vadd.f32 %v4806, %v5045
        %v5112 = vadd.f32 %v4807, %v5048
        %v5113 = vadd.f32 %v4808, %v5053
        %v5114 = vadd.f32 %v4809, %v5056
        %v5115 = vadd.f32 %v4810, %v5061
        %v5116 = vadd.f32 %v4811, %v5064
        %v5117 = vadd.f32 %v4812, %v5069
        %v5118 = vadd.f32 %v4813, %v5072
        %v5119 = vadd.f32 %v4814, %v5077
        %v5120 = vadd.f32 %v4815, %v5080
        %v5121 = vadd.f32 %v4816, %v5085
        %v5122 = vadd.f32 %v4817, %v5088
        %s5123 = scalar_lea.vmem [#allocation3], 48
        %v5124 = vld [vmem:[%s5123] sm:$0xff]
        %v5125 = vld [vmem:[%s5123 + $0x8] sm:$0xff]
        %v5126 = vld [vmem:[%s5123 + $0x18] sm:$0xff]
        %v5127 = vld [vmem:[%s5123 + $0x20] sm:$0xff]
        %v5128 = vld [vmem:[%s5123 + $0x30] sm:$0xff]
        %v5129 = vld [vmem:[%s5123 + $0x38] sm:$0xff]
        %v5130 = vld [vmem:[%s5123 + $0x48] sm:$0xff]
        %v5131 = vld [vmem:[%s5123 + $0x50] sm:$0xff]
        %v5132 = vld [vmem:[%s5123 + $0x60] sm:$0xff]
        %v5133 = vld [vmem:[%s5123 + $0x68] sm:$0xff]
        %v5134 = vld [vmem:[%s5123 + $0x78] sm:$0xff]
        %v5135 = vld [vmem:[%s5123 + $0x80] sm:$0xff]
        %v5136 = vld [vmem:[%s5123 + $0x90] sm:$0xff]
        %v5137 = vld [vmem:[%s5123 + $0x98] sm:$0xff]
        %v5138 = vld [vmem:[%s5123 + $0xa8] sm:$0xff]
        %v5139 = vld [vmem:[%s5123 + $0xb0] sm:$0xff]
        %v5140 = vld [vmem:[%s5123 + $0xc0] sm:$0xff]
        %v5141 = vld [vmem:[%s5123 + $0xc8] sm:$0xff]
        %v5142 = vld [vmem:[%s5123 + $0xd8] sm:$0xff]
        %v5143 = vld [vmem:[%s5123 + $0xe0] sm:$0xff]
        %v5144 = vld [vmem:[%s5123 + $0xf0] sm:$0xff]
        %v5145 = vld [vmem:[%s5123 + $0xf8] sm:$0xff]
        %v5146 = vld [vmem:[%s5123 + $0x108] sm:$0xff]
        %v5147 = vld [vmem:[%s5123 + $0x110] sm:$0xff]
        %v5148 = vld [vmem:[%s5123 + $0x120] sm:$0xff]
        %v5149 = vld [vmem:[%s5123 + $0x128] sm:$0xff]
        %v5150 = vld [vmem:[%s5123 + $0x138] sm:$0xff]
        %v5151 = vld [vmem:[%s5123 + $0x140] sm:$0xff]
        %v5152 = vld [vmem:[%s5123 + $0x150] sm:$0xff]
        %v5153 = vld [vmem:[%s5123 + $0x158] sm:$0xff]
        %v5154 = vld [vmem:[%s5123 + $0x168] sm:$0xff]
        %v5155 = vld [vmem:[%s5123 + $0x170] sm:$0xff]
        %v5156 = vpack.c.bf16 %v5125, %v5124
        %v5157 = vpack.c.bf16 %v5127, %v5126
        %v5158 = vpack.c.bf16 %v5129, %v5128
        %v5159 = vpack.c.bf16 %v5131, %v5130
        %v5160 = vpack.c.bf16 %v5133, %v5132
        %v5161 = vpack.c.bf16 %v5135, %v5134
        %v5162 = vpack.c.bf16 %v5137, %v5136
        %v5163 = vpack.c.bf16 %v5139, %v5138
        %v5164 = vpack.c.bf16 %v5141, %v5140
        %v5165 = vpack.c.bf16 %v5143, %v5142
        %v5166 = vpack.c.bf16 %v5145, %v5144
        %v5167 = vpack.c.bf16 %v5147, %v5146
        %v5168 = vpack.c.bf16 %v5149, %v5148
        %v5169 = vpack.c.bf16 %v5151, %v5150
        %v5170 = vpack.c.bf16 %v5153, %v5152
        %v5171 = vpack.c.bf16 %v5155, %v5154
        %v5172 = vld [vmem:[#allocation9 + $0x180] sm:$0xf]
        %v5173 = vld [vmem:[#allocation9 + $0x184] sm:$0xf]
        %v5174 = vld [vmem:[#allocation9 + $0x188] sm:$0xf]
        %v5175 = vld [vmem:[#allocation9 + $0x18c] sm:$0xf]
        %v5176 = vld [vmem:[#allocation9 + $0x190] sm:$0xf]
        %v5177 = vld [vmem:[#allocation9 + $0x194] sm:$0xf]
        %v5178 = vld [vmem:[#allocation9 + $0x198] sm:$0xf]
        %v5179 = vld [vmem:[#allocation9 + $0x19c] sm:$0xf]
        %v5180 = vld [vmem:[#allocation9 + $0x1a0] sm:$0xf]
        %v5181 = vld [vmem:[#allocation9 + $0x1a4] sm:$0xf]
        %v5182 = vld [vmem:[#allocation9 + $0x1a8] sm:$0xf]
        %v5183 = vld [vmem:[#allocation9 + $0x1ac] sm:$0xf]
        %v5184 = vld [vmem:[#allocation9 + $0x1b0] sm:$0xf]
        %v5185 = vld [vmem:[#allocation9 + $0x1b4] sm:$0xf]
        %v5186 = vld [vmem:[#allocation9 + $0x1b8] sm:$0xf]
        %v5187 = vld [vmem:[#allocation9 + $0x1bc] sm:$0xf]
        %v5204 = vunpack.c.l.b16 %v5172
        %v5205 = vunpack.c.l.b16 %v5173
        %v5206 = vunpack.c.l.b16 %v5174
        %v5207 = vunpack.c.l.b16 %v5175
        %v5208 = vunpack.c.l.b16 %v5176
        %v5209 = vunpack.c.l.b16 %v5177
        %v5210 = vunpack.c.l.b16 %v5178
        %v5211 = vunpack.c.l.b16 %v5179
        %v5212 = vunpack.c.l.b16 %v5180
        %v5213 = vunpack.c.l.b16 %v5181
        %v5214 = vunpack.c.l.b16 %v5182
        %v5215 = vunpack.c.l.b16 %v5183
        %v5216 = vunpack.c.l.b16 %v5184
        %v5217 = vunpack.c.l.b16 %v5185
        %v5218 = vunpack.c.l.b16 %v5186
        %v5219 = vunpack.c.l.b16 %v5187
        %v5220 = vpack.c.b16 %v5205, %v5204
        %v5221 = vpack.c.b16 %v5207, %v5206
        %v5222 = vpack.c.b16 %v5209, %v5208
        %v5223 = vpack.c.b16 %v5211, %v5210
        %v5224 = vpack.c.b16 %v5213, %v5212
        %v5225 = vpack.c.b16 %v5215, %v5214
        %v5226 = vpack.c.b16 %v5217, %v5216
        %v5227 = vpack.c.b16 %v5219, %v5218
        %5236 = vmatprep.subr.bf16.mxu0 0
        %5237 = vmatpush1.bf16.msra.mxu0 %v5227
        %5238 = vmatprep.subr.bf16.mxu0 0
        %5239 = vmatpush1.bf16.msra.mxu0 %v5226
        %5240 = vmatprep.subr.bf16.mxu0 0
        %5241 = vmatpush1.bf16.msra.mxu0 %v5225
        %5242 = vmatprep.subr.bf16.mxu0 0
        %5243 = vmatpush1.bf16.msra.mxu0 %v5224
        %5244 = vmatprep.subr.bf16.mxu0 0
        %5245 = vmatpush1.bf16.msra.mxu0 %v5223
        %5246 = vmatprep.subr.bf16.mxu0 0
        %5247 = vmatpush1.bf16.msra.mxu0 %v5222
        %5248 = vmatprep.subr.bf16.mxu0 0
        %5249 = vmatpush1.bf16.msra.mxu0 %v5221
        %5250 = vmatprep.subr.bf16.mxu0 0
        %5251 = vmatpush1.bf16.msra.mxu0 %v5220
        %5252 = vmatprep.subr.bf16.mxu0 0
        %5253 = vmatpush2.bf16.msra.mxu0 0
        %5254 = vmatprep.subr.bf16.mxu0 0
        %5255 = vmatpush2.bf16.msra.mxu0 0
        %5256 = vmatprep.subr.bf16.mxu0 0
        %5257 = vmatpush2.bf16.msra.mxu0 0
        %5258 = vmatprep.subr.bf16.mxu0 0
        %5259 = vmatpush2.bf16.msra.mxu0 0
        %5260 = vmatprep.subr.bf16.mxu0 0
        %5261 = vmatpush2.bf16.msra.mxu0 0
        %5262 = vmatprep.subr.bf16.mxu0 0
        %5263 = vmatpush2.bf16.msra.mxu0 0
        %5264 = vmatprep.subr.bf16.mxu0 0
        %5265 = vmatpush2.bf16.msra.mxu0 0
        %5266 = vmatprep.subr.bf16.mxu0 0
        %5267 = vmatpush2.bf16.msra.mxu0 0
        %5268 = vmatprep.mubr.bf16.mxu0 0
        %5269 = vmatmul.mubr.bf16.gmra.mxu0 %v5156
        %v5270 = vpop.f32.mrf.mxu0
        %v5271 = vadd.f32 0.0, %v5270
        %v5272 = vpop.f32.mrf.mxu0
        %v5273 = vpop.f32.mrf.mxu0
        %v5274 = vadd.f32 0.0, %v5273
        %v5275 = vpop.f32.mrf.mxu0
        %5276 = vmatprep.mubr.bf16.mxu0 0
        %5277 = vmatmul.mubr.bf16.gmra.mxu0 %v5157
        %v5278 = vpop.f32.mrf.mxu0
        %v5279 = vadd.f32 0.0, %v5278
        %v5280 = vpop.f32.mrf.mxu0
        %v5281 = vpop.f32.mrf.mxu0
        %v5282 = vadd.f32 0.0, %v5281
        %v5283 = vpop.f32.mrf.mxu0
        %5284 = vmatprep.mubr.bf16.mxu0 0
        %5285 = vmatmul.mubr.bf16.gmra.mxu0 %v5158
        %v5286 = vpop.f32.mrf.mxu0
        %v5287 = vadd.f32 0.0, %v5286
        %v5288 = vpop.f32.mrf.mxu0
        %v5289 = vpop.f32.mrf.mxu0
        %v5290 = vadd.f32 0.0, %v5289
        %v5291 = vpop.f32.mrf.mxu0
        %5292 = vmatprep.mubr.bf16.mxu0 0
        %5293 = vmatmul.mubr.bf16.gmra.mxu0 %v5159
        %v5294 = vpop.f32.mrf.mxu0
        %v5295 = vadd.f32 0.0, %v5294
        %v5296 = vpop.f32.mrf.mxu0
        %v5297 = vpop.f32.mrf.mxu0
        %v5298 = vadd.f32 0.0, %v5297
        %v5299 = vpop.f32.mrf.mxu0
        %5300 = vmatprep.mubr.bf16.mxu0 0
        %5301 = vmatmul.mubr.bf16.gmra.mxu0 %v5160
        %v5302 = vpop.f32.mrf.mxu0
        %v5303 = vadd.f32 0.0, %v5302
        %v5304 = vpop.f32.mrf.mxu0
        %v5305 = vpop.f32.mrf.mxu0
        %v5306 = vadd.f32 0.0, %v5305
        %v5307 = vpop.f32.mrf.mxu0
        %5308 = vmatprep.mubr.bf16.mxu0 0
        %5309 = vmatmul.mubr.bf16.gmra.mxu0 %v5161
        %v5310 = vpop.f32.mrf.mxu0
        %v5311 = vadd.f32 0.0, %v5310
        %v5312 = vpop.f32.mrf.mxu0
        %v5313 = vpop.f32.mrf.mxu0
        %v5314 = vadd.f32 0.0, %v5313
        %v5315 = vpop.f32.mrf.mxu0
        %5316 = vmatprep.mubr.bf16.mxu0 0
        %5317 = vmatmul.mubr.bf16.gmra.mxu0 %v5162
        %v5318 = vpop.f32.mrf.mxu0
        %v5319 = vadd.f32 0.0, %v5318
        %v5320 = vpop.f32.mrf.mxu0
        %v5321 = vpop.f32.mrf.mxu0
        %v5322 = vadd.f32 0.0, %v5321
        %v5323 = vpop.f32.mrf.mxu0
        %5324 = vmatprep.mubr.bf16.mxu0 0
        %5325 = vmatmul.mubr.bf16.gmra.mxu0 %v5163
        %v5326 = vpop.f32.mrf.mxu0
        %v5327 = vadd.f32 0.0, %v5326
        %v5328 = vpop.f32.mrf.mxu0
        %v5329 = vpop.f32.mrf.mxu0
        %v5330 = vadd.f32 0.0, %v5329
        %v5331 = vpop.f32.mrf.mxu0
        %5332 = vmatprep.mubr.bf16.mxu0 0
        %5333 = vmatmul.mubr.bf16.gmra.mxu0 %v5164
        %v5334 = vpop.f32.mrf.mxu0
        %v5335 = vadd.f32 0.0, %v5334
        %v5336 = vpop.f32.mrf.mxu0
        %v5337 = vpop.f32.mrf.mxu0
        %v5338 = vadd.f32 0.0, %v5337
        %v5339 = vpop.f32.mrf.mxu0
        %5340 = vmatprep.mubr.bf16.mxu0 0
        %5341 = vmatmul.mubr.bf16.gmra.mxu0 %v5165
        %v5342 = vpop.f32.mrf.mxu0
        %v5343 = vadd.f32 0.0, %v5342
        %v5344 = vpop.f32.mrf.mxu0
        %v5345 = vpop.f32.mrf.mxu0
        %v5346 = vadd.f32 0.0, %v5345
        %v5347 = vpop.f32.mrf.mxu0
        %5348 = vmatprep.mubr.bf16.mxu0 0
        %5349 = vmatmul.mubr.bf16.gmra.mxu0 %v5166
        %v5350 = vpop.f32.mrf.mxu0
        %v5351 = vadd.f32 0.0, %v5350
        %v5352 = vpop.f32.mrf.mxu0
        %v5353 = vpop.f32.mrf.mxu0
        %v5354 = vadd.f32 0.0, %v5353
        %v5355 = vpop.f32.mrf.mxu0
        %5356 = vmatprep.mubr.bf16.mxu0 0
        %5357 = vmatmul.mubr.bf16.gmra.mxu0 %v5167
        %v5358 = vpop.f32.mrf.mxu0
        %v5359 = vadd.f32 0.0, %v5358
        %v5360 = vpop.f32.mrf.mxu0
        %v5361 = vpop.f32.mrf.mxu0
        %v5362 = vadd.f32 0.0, %v5361
        %v5363 = vpop.f32.mrf.mxu0
        %5364 = vmatprep.mubr.bf16.mxu0 0
        %5365 = vmatmul.mubr.bf16.gmra.mxu0 %v5168
        %v5366 = vpop.f32.mrf.mxu0
        %v5367 = vadd.f32 0.0, %v5366
        %v5368 = vpop.f32.mrf.mxu0
        %v5369 = vpop.f32.mrf.mxu0
        %v5370 = vadd.f32 0.0, %v5369
        %v5371 = vpop.f32.mrf.mxu0
        %5372 = vmatprep.mubr.bf16.mxu0 0
        %5373 = vmatmul.mubr.bf16.gmra.mxu0 %v5169
        %v5374 = vpop.f32.mrf.mxu0
        %v5375 = vadd.f32 0.0, %v5374
        %v5376 = vpop.f32.mrf.mxu0
        %v5377 = vpop.f32.mrf.mxu0
        %v5378 = vadd.f32 0.0, %v5377
        %v5379 = vpop.f32.mrf.mxu0
        %5380 = vmatprep.mubr.bf16.mxu0 0
        %5381 = vmatmul.mubr.bf16.gmra.mxu0 %v5170
        %v5382 = vpop.f32.mrf.mxu0
        %v5383 = vadd.f32 0.0, %v5382
        %v5384 = vpop.f32.mrf.mxu0
        %v5385 = vpop.f32.mrf.mxu0
        %v5386 = vadd.f32 0.0, %v5385
        %v5387 = vpop.f32.mrf.mxu0
        %5388 = vmatprep.mubr.bf16.mxu0 0
        %5389 = vmatmul.mubr.bf16.gmra.mxu0 %v5171
        %v5390 = vpop.f32.mrf.mxu0
        %v5391 = vadd.f32 0.0, %v5390
        %v5392 = vpop.f32.mrf.mxu0
        %v5393 = vpop.f32.mrf.mxu0
        %v5394 = vadd.f32 0.0, %v5393
        %v5395 = vpop.f32.mrf.mxu0
        %5396 = vdwg.mxu0
        %v5397 = vadd.f32 %v5091, %v5271
        %v5398 = vadd.f32 %v5092, %v5274
        %v5399 = vadd.f32 %v5093, %v5279
        %v5400 = vadd.f32 %v5094, %v5282
        %v5401 = vadd.f32 %v5095, %v5287
        %v5402 = vadd.f32 %v5096, %v5290
        %v5403 = vadd.f32 %v5097, %v5295
        %v5404 = vadd.f32 %v5098, %v5298
        %v5405 = vadd.f32 %v5099, %v5303
        %v5406 = vadd.f32 %v5100, %v5306
        %v5407 = vadd.f32 %v5101, %v5311
        %v5408 = vadd.f32 %v5102, %v5314
        %v5409 = vadd.f32 %v5103, %v5319
        %v5410 = vadd.f32 %v5104, %v5322
        %v5411 = vadd.f32 %v5105, %v5327
        %v5412 = vadd.f32 %v5106, %v5330
        %v5413 = vadd.f32 %v5107, %v5335
        %v5414 = vadd.f32 %v5108, %v5338
        %v5415 = vadd.f32 %v5109, %v5343
        %v5416 = vadd.f32 %v5110, %v5346
        %v5417 = vadd.f32 %v5111, %v5351
        %v5418 = vadd.f32 %v5112, %v5354
        %v5419 = vadd.f32 %v5113, %v5359
        %v5420 = vadd.f32 %v5114, %v5362
        %v5421 = vadd.f32 %v5115, %v5367
        %v5422 = vadd.f32 %v5116, %v5370
        %v5423 = vadd.f32 %v5117, %v5375
        %v5424 = vadd.f32 %v5118, %v5378
        %v5425 = vadd.f32 %v5119, %v5383
        %v5426 = vadd.f32 %v5120, %v5386
        %v5427 = vadd.f32 %v5121, %v5391
        %v5428 = vadd.f32 %v5122, %v5394
        %v5429 = vld [vmem:[%s5123 + $0x1] sm:$0xff]
        %v5430 = vld [vmem:[%s5123 + $0x9] sm:$0xff]
        %v5431 = vld [vmem:[%s5123 + $0x19] sm:$0xff]
        %v5432 = vld [vmem:[%s5123 + $0x21] sm:$0xff]
        %v5433 = vld [vmem:[%s5123 + $0x31] sm:$0xff]
        %v5434 = vld [vmem:[%s5123 + $0x39] sm:$0xff]
        %v5435 = vld [vmem:[%s5123 + $0x49] sm:$0xff]
        %v5436 = vld [vmem:[%s5123 + $0x51] sm:$0xff]
        %v5437 = vld [vmem:[%s5123 + $0x61] sm:$0xff]
        %v5438 = vld [vmem:[%s5123 + $0x69] sm:$0xff]
        %v5439 = vld [vmem:[%s5123 + $0x79] sm:$0xff]
        %v5440 = vld [vmem:[%s5123 + $0x81] sm:$0xff]
        %v5441 = vld [vmem:[%s5123 + $0x91] sm:$0xff]
        %v5442 = vld [vmem:[%s5123 + $0x99] sm:$0xff]
        %v5443 = vld [vmem:[%s5123 + $0xa9] sm:$0xff]
        %v5444 = vld [vmem:[%s5123 + $0xb1] sm:$0xff]
        %v5445 = vld [vmem:[%s5123 + $0xc1] sm:$0xff]
        %v5446 = vld [vmem:[%s5123 + $0xc9] sm:$0xff]
        %v5447 = vld [vmem:[%s5123 + $0xd9] sm:$0xff]
        %v5448 = vld [vmem:[%s5123 + $0xe1] sm:$0xff]
        %v5449 = vld [vmem:[%s5123 + $0xf1] sm:$0xff]
        %v5450 = vld [vmem:[%s5123 + $0xf9] sm:$0xff]
        %v5451 = vld [vmem:[%s5123 + $0x109] sm:$0xff]
        %v5452 = vld [vmem:[%s5123 + $0x111] sm:$0xff]
        %v5453 = vld [vmem:[%s5123 + $0x121] sm:$0xff]
        %v5454 = vld [vmem:[%s5123 + $0x129] sm:$0xff]
        %v5455 = vld [vmem:[%s5123 + $0x139] sm:$0xff]
        %v5456 = vld [vmem:[%s5123 + $0x141] sm:$0xff]
        %v5457 = vld [vmem:[%s5123 + $0x151] sm:$0xff]
        %v5458 = vld [vmem:[%s5123 + $0x159] sm:$0xff]
        %v5459 = vld [vmem:[%s5123 + $0x169] sm:$0xff]
        %v5460 = vld [vmem:[%s5123 + $0x171] sm:$0xff]
        %v5461 = vpack.c.bf16 %v5430, %v5429
        %v5462 = vpack.c.bf16 %v5432, %v5431
        %v5463 = vpack.c.bf16 %v5434, %v5433
        %v5464 = vpack.c.bf16 %v5436, %v5435
        %v5465 = vpack.c.bf16 %v5438, %v5437
        %v5466 = vpack.c.bf16 %v5440, %v5439
        %v5467 = vpack.c.bf16 %v5442, %v5441
        %v5468 = vpack.c.bf16 %v5444, %v5443
        %v5469 = vpack.c.bf16 %v5446, %v5445
        %v5470 = vpack.c.bf16 %v5448, %v5447
        %v5471 = vpack.c.bf16 %v5450, %v5449
        %v5472 = vpack.c.bf16 %v5452, %v5451
        %v5473 = vpack.c.bf16 %v5454, %v5453
        %v5474 = vpack.c.bf16 %v5456, %v5455
        %v5475 = vpack.c.bf16 %v5458, %v5457
        %v5476 = vpack.c.bf16 %v5460, %v5459
        %v5477 = vld [vmem:[#allocation9 + $0x1c0] sm:$0xf]
        %v5478 = vld [vmem:[#allocation9 + $0x1c4] sm:$0xf]
        %v5479 = vld [vmem:[#allocation9 + $0x1c8] sm:$0xf]
        %v5480 = vld [vmem:[#allocation9 + $0x1cc] sm:$0xf]
        %v5481 = vld [vmem:[#allocation9 + $0x1d0] sm:$0xf]
        %v5482 = vld [vmem:[#allocation9 + $0x1d4] sm:$0xf]
        %v5483 = vld [vmem:[#allocation9 + $0x1d8] sm:$0xf]
        %v5484 = vld [vmem:[#allocation9 + $0x1dc] sm:$0xf]
        %v5485 = vld [vmem:[#allocation9 + $0x1e0] sm:$0xf]
        %v5486 = vld [vmem:[#allocation9 + $0x1e4] sm:$0xf]
        %v5487 = vld [vmem:[#allocation9 + $0x1e8] sm:$0xf]
        %v5488 = vld [vmem:[#allocation9 + $0x1ec] sm:$0xf]
        %v5489 = vld [vmem:[#allocation9 + $0x1f0] sm:$0xf]
        %v5490 = vld [vmem:[#allocation9 + $0x1f4] sm:$0xf]
        %v5491 = vld [vmem:[#allocation9 + $0x1f8] sm:$0xf]
        %v5492 = vld [vmem:[#allocation9 + $0x1fc] sm:$0xf]
        %v5509 = vunpack.c.l.b16 %v5477
        %v5510 = vunpack.c.l.b16 %v5478
        %v5511 = vunpack.c.l.b16 %v5479
        %v5512 = vunpack.c.l.b16 %v5480
        %v5513 = vunpack.c.l.b16 %v5481
        %v5514 = vunpack.c.l.b16 %v5482
        %v5515 = vunpack.c.l.b16 %v5483
        %v5516 = vunpack.c.l.b16 %v5484
        %v5517 = vunpack.c.l.b16 %v5485
        %v5518 = vunpack.c.l.b16 %v5486
        %v5519 = vunpack.c.l.b16 %v5487
        %v5520 = vunpack.c.l.b16 %v5488
        %v5521 = vunpack.c.l.b16 %v5489
        %v5522 = vunpack.c.l.b16 %v5490
        %v5523 = vunpack.c.l.b16 %v5491
        %v5524 = vunpack.c.l.b16 %v5492
        %v5525 = vpack.c.b16 %v5510, %v5509
        %v5526 = vpack.c.b16 %v5512, %v5511
        %v5527 = vpack.c.b16 %v5514, %v5513
        %v5528 = vpack.c.b16 %v5516, %v5515
        %v5529 = vpack.c.b16 %v5518, %v5517
        %v5530 = vpack.c.b16 %v5520, %v5519
        %v5531 = vpack.c.b16 %v5522, %v5521
        %v5532 = vpack.c.b16 %v5524, %v5523
        %5541 = vmatprep.subr.bf16.mxu0 0
        %5542 = vmatpush1.bf16.msra.mxu0 %v5532
        %5543 = vmatprep.subr.bf16.mxu0 0
        %5544 = vmatpush1.bf16.msra.mxu0 %v5531
        %5545 = vmatprep.subr.bf16.mxu0 0
        %5546 = vmatpush1.bf16.msra.mxu0 %v5530
        %5547 = vmatprep.subr.bf16.mxu0 0
        %5548 = vmatpush1.bf16.msra.mxu0 %v5529
        %5549 = vmatprep.subr.bf16.mxu0 0
        %5550 = vmatpush1.bf16.msra.mxu0 %v5528
        %5551 = vmatprep.subr.bf16.mxu0 0
        %5552 = vmatpush1.bf16.msra.mxu0 %v5527
        %5553 = vmatprep.subr.bf16.mxu0 0
        %5554 = vmatpush1.bf16.msra.mxu0 %v5526
        %5555 = vmatprep.subr.bf16.mxu0 0
        %5556 = vmatpush1.bf16.msra.mxu0 %v5525
        %5557 = vmatprep.subr.bf16.mxu0 0
        %5558 = vmatpush2.bf16.msra.mxu0 0
        %5559 = vmatprep.subr.bf16.mxu0 0
        %5560 = vmatpush2.bf16.msra.mxu0 0
        %5561 = vmatprep.subr.bf16.mxu0 0
        %5562 = vmatpush2.bf16.msra.mxu0 0
        %5563 = vmatprep.subr.bf16.mxu0 0
        %5564 = vmatpush2.bf16.msra.mxu0 0
        %5565 = vmatprep.subr.bf16.mxu0 0
        %5566 = vmatpush2.bf16.msra.mxu0 0
        %5567 = vmatprep.subr.bf16.mxu0 0
        %5568 = vmatpush2.bf16.msra.mxu0 0
        %5569 = vmatprep.subr.bf16.mxu0 0
        %5570 = vmatpush2.bf16.msra.mxu0 0
        %5571 = vmatprep.subr.bf16.mxu0 0
        %5572 = vmatpush2.bf16.msra.mxu0 0
        %5573 = vmatprep.mubr.bf16.mxu0 0
        %5574 = vmatmul.mubr.bf16.gmra.mxu0 %v5461
        %v5575 = vpop.f32.mrf.mxu0
        %v5576 = vadd.f32 0.0, %v5575
        %v5577 = vpop.f32.mrf.mxu0
        %v5578 = vpop.f32.mrf.mxu0
        %v5579 = vadd.f32 0.0, %v5578
        %v5580 = vpop.f32.mrf.mxu0
        %5581 = vmatprep.mubr.bf16.mxu0 0
        %5582 = vmatmul.mubr.bf16.gmra.mxu0 %v5462
        %v5583 = vpop.f32.mrf.mxu0
        %v5584 = vadd.f32 0.0, %v5583
        %v5585 = vpop.f32.mrf.mxu0
        %v5586 = vpop.f32.mrf.mxu0
        %v5587 = vadd.f32 0.0, %v5586
        %v5588 = vpop.f32.mrf.mxu0
        %5589 = vmatprep.mubr.bf16.mxu0 0
        %5590 = vmatmul.mubr.bf16.gmra.mxu0 %v5463
        %v5591 = vpop.f32.mrf.mxu0
        %v5592 = vadd.f32 0.0, %v5591
        %v5593 = vpop.f32.mrf.mxu0
        %v5594 = vpop.f32.mrf.mxu0
        %v5595 = vadd.f32 0.0, %v5594
        %v5596 = vpop.f32.mrf.mxu0
        %5597 = vmatprep.mubr.bf16.mxu0 0
        %5598 = vmatmul.mubr.bf16.gmra.mxu0 %v5464
        %v5599 = vpop.f32.mrf.mxu0
        %v5600 = vadd.f32 0.0, %v5599
        %v5601 = vpop.f32.mrf.mxu0
        %v5602 = vpop.f32.mrf.mxu0
        %v5603 = vadd.f32 0.0, %v5602
        %v5604 = vpop.f32.mrf.mxu0
        %5605 = vmatprep.mubr.bf16.mxu0 0
        %5606 = vmatmul.mubr.bf16.gmra.mxu0 %v5465
        %v5607 = vpop.f32.mrf.mxu0
        %v5608 = vadd.f32 0.0, %v5607
        %v5609 = vpop.f32.mrf.mxu0
        %v5610 = vpop.f32.mrf.mxu0
        %v5611 = vadd.f32 0.0, %v5610
        %v5612 = vpop.f32.mrf.mxu0
        %5613 = vmatprep.mubr.bf16.mxu0 0
        %5614 = vmatmul.mubr.bf16.gmra.mxu0 %v5466
        %v5615 = vpop.f32.mrf.mxu0
        %v5616 = vadd.f32 0.0, %v5615
        %v5617 = vpop.f32.mrf.mxu0
        %v5618 = vpop.f32.mrf.mxu0
        %v5619 = vadd.f32 0.0, %v5618
        %v5620 = vpop.f32.mrf.mxu0
        %5621 = vmatprep.mubr.bf16.mxu0 0
        %5622 = vmatmul.mubr.bf16.gmra.mxu0 %v5467
        %v5623 = vpop.f32.mrf.mxu0
        %v5624 = vadd.f32 0.0, %v5623
        %v5625 = vpop.f32.mrf.mxu0
        %v5626 = vpop.f32.mrf.mxu0
        %v5627 = vadd.f32 0.0, %v5626
        %v5628 = vpop.f32.mrf.mxu0
        %5629 = vmatprep.mubr.bf16.mxu0 0
        %5630 = vmatmul.mubr.bf16.gmra.mxu0 %v5468
        %v5631 = vpop.f32.mrf.mxu0
        %v5632 = vadd.f32 0.0, %v5631
        %v5633 = vpop.f32.mrf.mxu0
        %v5634 = vpop.f32.mrf.mxu0
        %v5635 = vadd.f32 0.0, %v5634
        %v5636 = vpop.f32.mrf.mxu0
        %5637 = vmatprep.mubr.bf16.mxu0 0
        %5638 = vmatmul.mubr.bf16.gmra.mxu0 %v5469
        %v5639 = vpop.f32.mrf.mxu0
        %v5640 = vadd.f32 0.0, %v5639
        %v5641 = vpop.f32.mrf.mxu0
        %v5642 = vpop.f32.mrf.mxu0
        %v5643 = vadd.f32 0.0, %v5642
        %v5644 = vpop.f32.mrf.mxu0
        %5645 = vmatprep.mubr.bf16.mxu0 0
        %5646 = vmatmul.mubr.bf16.gmra.mxu0 %v5470
        %v5647 = vpop.f32.mrf.mxu0
        %v5648 = vadd.f32 0.0, %v5647
        %v5649 = vpop.f32.mrf.mxu0
        %v5650 = vpop.f32.mrf.mxu0
        %v5651 = vadd.f32 0.0, %v5650
        %v5652 = vpop.f32.mrf.mxu0
        %5653 = vmatprep.mubr.bf16.mxu0 0
        %5654 = vmatmul.mubr.bf16.gmra.mxu0 %v5471
        %v5655 = vpop.f32.mrf.mxu0
        %v5656 = vadd.f32 0.0, %v5655
        %v5657 = vpop.f32.mrf.mxu0
        %v5658 = vpop.f32.mrf.mxu0
        %v5659 = vadd.f32 0.0, %v5658
        %v5660 = vpop.f32.mrf.mxu0
        %5661 = vmatprep.mubr.bf16.mxu0 0
        %5662 = vmatmul.mubr.bf16.gmra.mxu0 %v5472
        %v5663 = vpop.f32.mrf.mxu0
        %v5664 = vadd.f32 0.0, %v5663
        %v5665 = vpop.f32.mrf.mxu0
        %v5666 = vpop.f32.mrf.mxu0
        %v5667 = vadd.f32 0.0, %v5666
        %v5668 = vpop.f32.mrf.mxu0
        %5669 = vmatprep.mubr.bf16.mxu0 0
        %5670 = vmatmul.mubr.bf16.gmra.mxu0 %v5473
        %v5671 = vpop.f32.mrf.mxu0
        %v5672 = vadd.f32 0.0, %v5671
        %v5673 = vpop.f32.mrf.mxu0
        %v5674 = vpop.f32.mrf.mxu0
        %v5675 = vadd.f32 0.0, %v5674
        %v5676 = vpop.f32.mrf.mxu0
        %5677 = vmatprep.mubr.bf16.mxu0 0
        %5678 = vmatmul.mubr.bf16.gmra.mxu0 %v5474
        %v5679 = vpop.f32.mrf.mxu0
        %v5680 = vadd.f32 0.0, %v5679
        %v5681 = vpop.f32.mrf.mxu0
        %v5682 = vpop.f32.mrf.mxu0
        %v5683 = vadd.f32 0.0, %v5682
        %v5684 = vpop.f32.mrf.mxu0
        %5685 = vmatprep.mubr.bf16.mxu0 0
        %5686 = vmatmul.mubr.bf16.gmra.mxu0 %v5475
        %v5687 = vpop.f32.mrf.mxu0
        %v5688 = vadd.f32 0.0, %v5687
        %v5689 = vpop.f32.mrf.mxu0
        %v5690 = vpop.f32.mrf.mxu0
        %v5691 = vadd.f32 0.0, %v5690
        %v5692 = vpop.f32.mrf.mxu0
        %5693 = vmatprep.mubr.bf16.mxu0 0
        %5694 = vmatmul.mubr.bf16.gmra.mxu0 %v5476
        %v5695 = vpop.f32.mrf.mxu0
        %v5696 = vadd.f32 0.0, %v5695
        %v5697 = vpop.f32.mrf.mxu0
        %v5698 = vpop.f32.mrf.mxu0
        %v5699 = vadd.f32 0.0, %v5698
        %v5700 = vpop.f32.mrf.mxu0
        %5701 = vdwg.mxu0
        %v5702 = vadd.f32 %v5397, %v5576
        %v5703 = vadd.f32 %v5398, %v5579
        %v5704 = vadd.f32 %v5399, %v5584
        %v5705 = vadd.f32 %v5400, %v5587
        %v5706 = vadd.f32 %v5401, %v5592
        %v5707 = vadd.f32 %v5402, %v5595
        %v5708 = vadd.f32 %v5403, %v5600
        %v5709 = vadd.f32 %v5404, %v5603
        %v5710 = vadd.f32 %v5405, %v5608
        %v5711 = vadd.f32 %v5406, %v5611
        %v5712 = vadd.f32 %v5407, %v5616
        %v5713 = vadd.f32 %v5408, %v5619
        %v5714 = vadd.f32 %v5409, %v5624
        %v5715 = vadd.f32 %v5410, %v5627
        %v5716 = vadd.f32 %v5411, %v5632
        %v5717 = vadd.f32 %v5412, %v5635
        %v5718 = vadd.f32 %v5413, %v5640
        %v5719 = vadd.f32 %v5414, %v5643
        %v5720 = vadd.f32 %v5415, %v5648
        %v5721 = vadd.f32 %v5416, %v5651
        %v5722 = vadd.f32 %v5417, %v5656
        %v5723 = vadd.f32 %v5418, %v5659
        %v5724 = vadd.f32 %v5419, %v5664
        %v5725 = vadd.f32 %v5420, %v5667
        %v5726 = vadd.f32 %v5421, %v5672
        %v5727 = vadd.f32 %v5422, %v5675
        %v5728 = vadd.f32 %v5423, %v5680
        %v5729 = vadd.f32 %v5424, %v5683
        %v5730 = vadd.f32 %v5425, %v5688
        %v5731 = vadd.f32 %v5426, %v5691
        %v5732 = vadd.f32 %v5427, %v5696
        %v5733 = vadd.f32 %v5428, %v5699
        %v5734 = vld [vmem:[%s5123 + $0x2] sm:$0xff]
        %v5735 = vld [vmem:[%s5123 + $0xa] sm:$0xff]
        %v5736 = vld [vmem:[%s5123 + $0x1a] sm:$0xff]
        %v5737 = vld [vmem:[%s5123 + $0x22] sm:$0xff]
        %v5738 = vld [vmem:[%s5123 + $0x32] sm:$0xff]
        %v5739 = vld [vmem:[%s5123 + $0x3a] sm:$0xff]
        %v5740 = vld [vmem:[%s5123 + $0x4a] sm:$0xff]
        %v5741 = vld [vmem:[%s5123 + $0x52] sm:$0xff]
        %v5742 = vld [vmem:[%s5123 + $0x62] sm:$0xff]
        %v5743 = vld [vmem:[%s5123 + $0x6a] sm:$0xff]
        %v5744 = vld [vmem:[%s5123 + $0x7a] sm:$0xff]
        %v5745 = vld [vmem:[%s5123 + $0x82] sm:$0xff]
        %v5746 = vld [vmem:[%s5123 + $0x92] sm:$0xff]
        %v5747 = vld [vmem:[%s5123 + $0x9a] sm:$0xff]
        %v5748 = vld [vmem:[%s5123 + $0xaa] sm:$0xff]
        %v5749 = vld [vmem:[%s5123 + $0xb2] sm:$0xff]
        %v5750 = vld [vmem:[%s5123 + $0xc2] sm:$0xff]
        %v5751 = vld [vmem:[%s5123 + $0xca] sm:$0xff]
        %v5752 = vld [vmem:[%s5123 + $0xda] sm:$0xff]
        %v5753 = vld [vmem:[%s5123 + $0xe2] sm:$0xff]
        %v5754 = vld [vmem:[%s5123 + $0xf2] sm:$0xff]
        %v5755 = vld [vmem:[%s5123 + $0xfa] sm:$0xff]
        %v5756 = vld [vmem:[%s5123 + $0x10a] sm:$0xff]
        %v5757 = vld [vmem:[%s5123 + $0x112] sm:$0xff]
        %v5758 = vld [vmem:[%s5123 + $0x122] sm:$0xff]
        %v5759 = vld [vmem:[%s5123 + $0x12a] sm:$0xff]
        %v5760 = vld [vmem:[%s5123 + $0x13a] sm:$0xff]
        %v5761 = vld [vmem:[%s5123 + $0x142] sm:$0xff]
        %v5762 = vld [vmem:[%s5123 + $0x152] sm:$0xff]
        %v5763 = vld [vmem:[%s5123 + $0x15a] sm:$0xff]
        %v5764 = vld [vmem:[%s5123 + $0x16a] sm:$0xff]
        %v5765 = vld [vmem:[%s5123 + $0x172] sm:$0xff]
        %v5766 = vpack.c.bf16 %v5735, %v5734
        %v5767 = vpack.c.bf16 %v5737, %v5736
        %v5768 = vpack.c.bf16 %v5739, %v5738
        %v5769 = vpack.c.bf16 %v5741, %v5740
        %v5770 = vpack.c.bf16 %v5743, %v5742
        %v5771 = vpack.c.bf16 %v5745, %v5744
        %v5772 = vpack.c.bf16 %v5747, %v5746
        %v5773 = vpack.c.bf16 %v5749, %v5748
        %v5774 = vpack.c.bf16 %v5751, %v5750
        %v5775 = vpack.c.bf16 %v5753, %v5752
        %v5776 = vpack.c.bf16 %v5755, %v5754
        %v5777 = vpack.c.bf16 %v5757, %v5756
        %v5778 = vpack.c.bf16 %v5759, %v5758
        %v5779 = vpack.c.bf16 %v5761, %v5760
        %v5780 = vpack.c.bf16 %v5763, %v5762
        %v5781 = vpack.c.bf16 %v5765, %v5764
        %v5782 = vld [vmem:[#allocation9 + $0x200] sm:$0xf]
        %v5783 = vld [vmem:[#allocation9 + $0x204] sm:$0xf]
        %v5784 = vld [vmem:[#allocation9 + $0x208] sm:$0xf]
        %v5785 = vld [vmem:[#allocation9 + $0x20c] sm:$0xf]
        %v5786 = vld [vmem:[#allocation9 + $0x210] sm:$0xf]
        %v5787 = vld [vmem:[#allocation9 + $0x214] sm:$0xf]
        %v5788 = vld [vmem:[#allocation9 + $0x218] sm:$0xf]
        %v5789 = vld [vmem:[#allocation9 + $0x21c] sm:$0xf]
        %v5790 = vld [vmem:[#allocation9 + $0x220] sm:$0xf]
        %v5791 = vld [vmem:[#allocation9 + $0x224] sm:$0xf]
        %v5792 = vld [vmem:[#allocation9 + $0x228] sm:$0xf]
        %v5793 = vld [vmem:[#allocation9 + $0x22c] sm:$0xf]
        %v5794 = vld [vmem:[#allocation9 + $0x230] sm:$0xf]
        %v5795 = vld [vmem:[#allocation9 + $0x234] sm:$0xf]
        %v5796 = vld [vmem:[#allocation9 + $0x238] sm:$0xf]
        %v5797 = vld [vmem:[#allocation9 + $0x23c] sm:$0xf]
        %v5814 = vunpack.c.l.b16 %v5782
        %v5815 = vunpack.c.l.b16 %v5783
        %v5816 = vunpack.c.l.b16 %v5784
        %v5817 = vunpack.c.l.b16 %v5785
        %v5818 = vunpack.c.l.b16 %v5786
        %v5819 = vunpack.c.l.b16 %v5787
        %v5820 = vunpack.c.l.b16 %v5788
        %v5821 = vunpack.c.l.b16 %v5789
        %v5822 = vunpack.c.l.b16 %v5790
        %v5823 = vunpack.c.l.b16 %v5791
        %v5824 = vunpack.c.l.b16 %v5792
        %v5825 = vunpack.c.l.b16 %v5793
        %v5826 = vunpack.c.l.b16 %v5794
        %v5827 = vunpack.c.l.b16 %v5795
        %v5828 = vunpack.c.l.b16 %v5796
        %v5829 = vunpack.c.l.b16 %v5797
        %v5830 = vpack.c.b16 %v5815, %v5814
        %v5831 = vpack.c.b16 %v5817, %v5816
        %v5832 = vpack.c.b16 %v5819, %v5818
        %v5833 = vpack.c.b16 %v5821, %v5820
        %v5834 = vpack.c.b16 %v5823, %v5822
        %v5835 = vpack.c.b16 %v5825, %v5824
        %v5836 = vpack.c.b16 %v5827, %v5826
        %v5837 = vpack.c.b16 %v5829, %v5828
        %5846 = vmatprep.subr.bf16.mxu0 0
        %5847 = vmatpush1.bf16.msra.mxu0 %v5837
        %5848 = vmatprep.subr.bf16.mxu0 0
        %5849 = vmatpush1.bf16.msra.mxu0 %v5836
        %5850 = vmatprep.subr.bf16.mxu0 0
        %5851 = vmatpush1.bf16.msra.mxu0 %v5835
        %5852 = vmatprep.subr.bf16.mxu0 0
        %5853 = vmatpush1.bf16.msra.mxu0 %v5834
        %5854 = vmatprep.subr.bf16.mxu0 0
        %5855 = vmatpush1.bf16.msra.mxu0 %v5833
        %5856 = vmatprep.subr.bf16.mxu0 0
        %5857 = vmatpush1.bf16.msra.mxu0 %v5832
        %5858 = vmatprep.subr.bf16.mxu0 0
        %5859 = vmatpush1.bf16.msra.mxu0 %v5831
        %5860 = vmatprep.subr.bf16.mxu0 0
        %5861 = vmatpush1.bf16.msra.mxu0 %v5830
        %5862 = vmatprep.subr.bf16.mxu0 0
        %5863 = vmatpush2.bf16.msra.mxu0 0
        %5864 = vmatprep.subr.bf16.mxu0 0
        %5865 = vmatpush2.bf16.msra.mxu0 0
        %5866 = vmatprep.subr.bf16.mxu0 0
        %5867 = vmatpush2.bf16.msra.mxu0 0
        %5868 = vmatprep.subr.bf16.mxu0 0
        %5869 = vmatpush2.bf16.msra.mxu0 0
        %5870 = vmatprep.subr.bf16.mxu0 0
        %5871 = vmatpush2.bf16.msra.mxu0 0
        %5872 = vmatprep.subr.bf16.mxu0 0
        %5873 = vmatpush2.bf16.msra.mxu0 0
        %5874 = vmatprep.subr.bf16.mxu0 0
        %5875 = vmatpush2.bf16.msra.mxu0 0
        %5876 = vmatprep.subr.bf16.mxu0 0
        %5877 = vmatpush2.bf16.msra.mxu0 0
        %5878 = vmatprep.mubr.bf16.mxu0 0
        %5879 = vmatmul.mubr.bf16.gmra.mxu0 %v5766
        %v5880 = vpop.f32.mrf.mxu0
        %v5881 = vadd.f32 0.0, %v5880
        %v5882 = vpop.f32.mrf.mxu0
        %v5883 = vpop.f32.mrf.mxu0
        %v5884 = vadd.f32 0.0, %v5883
        %v5885 = vpop.f32.mrf.mxu0
        %5886 = vmatprep.mubr.bf16.mxu0 0
        %5887 = vmatmul.mubr.bf16.gmra.mxu0 %v5767
        %v5888 = vpop.f32.mrf.mxu0
        %v5889 = vadd.f32 0.0, %v5888
        %v5890 = vpop.f32.mrf.mxu0
        %v5891 = vpop.f32.mrf.mxu0
        %v5892 = vadd.f32 0.0, %v5891
        %v5893 = vpop.f32.mrf.mxu0
        %5894 = vmatprep.mubr.bf16.mxu0 0
        %5895 = vmatmul.mubr.bf16.gmra.mxu0 %v5768
        %v5896 = vpop.f32.mrf.mxu0
        %v5897 = vadd.f32 0.0, %v5896
        %v5898 = vpop.f32.mrf.mxu0
        %v5899 = vpop.f32.mrf.mxu0
        %v5900 = vadd.f32 0.0, %v5899
        %v5901 = vpop.f32.mrf.mxu0
        %5902 = vmatprep.mubr.bf16.mxu0 0
        %5903 = vmatmul.mubr.bf16.gmra.mxu0 %v5769
        %v5904 = vpop.f32.mrf.mxu0
        %v5905 = vadd.f32 0.0, %v5904
        %v5906 = vpop.f32.mrf.mxu0
        %v5907 = vpop.f32.mrf.mxu0
        %v5908 = vadd.f32 0.0, %v5907
        %v5909 = vpop.f32.mrf.mxu0
        %5910 = vmatprep.mubr.bf16.mxu0 0
        %5911 = vmatmul.mubr.bf16.gmra.mxu0 %v5770
        %v5912 = vpop.f32.mrf.mxu0
        %v5913 = vadd.f32 0.0, %v5912
        %v5914 = vpop.f32.mrf.mxu0
        %v5915 = vpop.f32.mrf.mxu0
        %v5916 = vadd.f32 0.0, %v5915
        %v5917 = vpop.f32.mrf.mxu0
        %5918 = vmatprep.mubr.bf16.mxu0 0
        %5919 = vmatmul.mubr.bf16.gmra.mxu0 %v5771
        %v5920 = vpop.f32.mrf.mxu0
        %v5921 = vadd.f32 0.0, %v5920
        %v5922 = vpop.f32.mrf.mxu0
        %v5923 = vpop.f32.mrf.mxu0
        %v5924 = vadd.f32 0.0, %v5923
        %v5925 = vpop.f32.mrf.mxu0
        %5926 = vmatprep.mubr.bf16.mxu0 0
        %5927 = vmatmul.mubr.bf16.gmra.mxu0 %v5772
        %v5928 = vpop.f32.mrf.mxu0
        %v5929 = vadd.f32 0.0, %v5928
        %v5930 = vpop.f32.mrf.mxu0
        %v5931 = vpop.f32.mrf.mxu0
        %v5932 = vadd.f32 0.0, %v5931
        %v5933 = vpop.f32.mrf.mxu0
        %5934 = vmatprep.mubr.bf16.mxu0 0
        %5935 = vmatmul.mubr.bf16.gmra.mxu0 %v5773
        %v5936 = vpop.f32.mrf.mxu0
        %v5937 = vadd.f32 0.0, %v5936
        %v5938 = vpop.f32.mrf.mxu0
        %v5939 = vpop.f32.mrf.mxu0
        %v5940 = vadd.f32 0.0, %v5939
        %v5941 = vpop.f32.mrf.mxu0
        %5942 = vmatprep.mubr.bf16.mxu0 0
        %5943 = vmatmul.mubr.bf16.gmra.mxu0 %v5774
        %v5944 = vpop.f32.mrf.mxu0
        %v5945 = vadd.f32 0.0, %v5944
        %v5946 = vpop.f32.mrf.mxu0
        %v5947 = vpop.f32.mrf.mxu0
        %v5948 = vadd.f32 0.0, %v5947
        %v5949 = vpop.f32.mrf.mxu0
        %5950 = vmatprep.mubr.bf16.mxu0 0
        %5951 = vmatmul.mubr.bf16.gmra.mxu0 %v5775
        %v5952 = vpop.f32.mrf.mxu0
        %v5953 = vadd.f32 0.0, %v5952
        %v5954 = vpop.f32.mrf.mxu0
        %v5955 = vpop.f32.mrf.mxu0
        %v5956 = vadd.f32 0.0, %v5955
        %v5957 = vpop.f32.mrf.mxu0
        %5958 = vmatprep.mubr.bf16.mxu0 0
        %5959 = vmatmul.mubr.bf16.gmra.mxu0 %v5776
        %v5960 = vpop.f32.mrf.mxu0
        %v5961 = vadd.f32 0.0, %v5960
        %v5962 = vpop.f32.mrf.mxu0
        %v5963 = vpop.f32.mrf.mxu0
        %v5964 = vadd.f32 0.0, %v5963
        %v5965 = vpop.f32.mrf.mxu0
        %5966 = vmatprep.mubr.bf16.mxu0 0
        %5967 = vmatmul.mubr.bf16.gmra.mxu0 %v5777
        %v5968 = vpop.f32.mrf.mxu0
        %v5969 = vadd.f32 0.0, %v5968
        %v5970 = vpop.f32.mrf.mxu0
        %v5971 = vpop.f32.mrf.mxu0
        %v5972 = vadd.f32 0.0, %v5971
        %v5973 = vpop.f32.mrf.mxu0
        %5974 = vmatprep.mubr.bf16.mxu0 0
        %5975 = vmatmul.mubr.bf16.gmra.mxu0 %v5778
        %v5976 = vpop.f32.mrf.mxu0
        %v5977 = vadd.f32 0.0, %v5976
        %v5978 = vpop.f32.mrf.mxu0
        %v5979 = vpop.f32.mrf.mxu0
        %v5980 = vadd.f32 0.0, %v5979
        %v5981 = vpop.f32.mrf.mxu0
        %5982 = vmatprep.mubr.bf16.mxu0 0
        %5983 = vmatmul.mubr.bf16.gmra.mxu0 %v5779
        %v5984 = vpop.f32.mrf.mxu0
        %v5985 = vadd.f32 0.0, %v5984
        %v5986 = vpop.f32.mrf.mxu0
        %v5987 = vpop.f32.mrf.mxu0
        %v5988 = vadd.f32 0.0, %v5987
        %v5989 = vpop.f32.mrf.mxu0
        %5990 = vmatprep.mubr.bf16.mxu0 0
        %5991 = vmatmul.mubr.bf16.gmra.mxu0 %v5780
        %v5992 = vpop.f32.mrf.mxu0
        %v5993 = vadd.f32 0.0, %v5992
        %v5994 = vpop.f32.mrf.mxu0
        %v5995 = vpop.f32.mrf.mxu0
        %v5996 = vadd.f32 0.0, %v5995
        %v5997 = vpop.f32.mrf.mxu0
        %5998 = vmatprep.mubr.bf16.mxu0 0
        %5999 = vmatmul.mubr.bf16.gmra.mxu0 %v5781
        %v6000 = vpop.f32.mrf.mxu0
        %v6001 = vadd.f32 0.0, %v6000
        %v6002 = vpop.f32.mrf.mxu0
        %v6003 = vpop.f32.mrf.mxu0
        %v6004 = vadd.f32 0.0, %v6003
        %v6005 = vpop.f32.mrf.mxu0
        %6006 = vdwg.mxu0
        %v6007 = vadd.f32 %v5702, %v5881
        %v6008 = vadd.f32 %v5703, %v5884
        %v6009 = vadd.f32 %v5704, %v5889
        %v6010 = vadd.f32 %v5705, %v5892
        %v6011 = vadd.f32 %v5706, %v5897
        %v6012 = vadd.f32 %v5707, %v5900
        %v6013 = vadd.f32 %v5708, %v5905
        %v6014 = vadd.f32 %v5709, %v5908
        %v6015 = vadd.f32 %v5710, %v5913
        %v6016 = vadd.f32 %v5711, %v5916
        %v6017 = vadd.f32 %v5712, %v5921
        %v6018 = vadd.f32 %v5713, %v5924
        %v6019 = vadd.f32 %v5714, %v5929
        %v6020 = vadd.f32 %v5715, %v5932
        %v6021 = vadd.f32 %v5716, %v5937
        %v6022 = vadd.f32 %v5717, %v5940
        %v6023 = vadd.f32 %v5718, %v5945
        %v6024 = vadd.f32 %v5719, %v5948
        %v6025 = vadd.f32 %v5720, %v5953
        %v6026 = vadd.f32 %v5721, %v5956
        %v6027 = vadd.f32 %v5722, %v5961
        %v6028 = vadd.f32 %v5723, %v5964
        %v6029 = vadd.f32 %v5724, %v5969
        %v6030 = vadd.f32 %v5725, %v5972
        %v6031 = vadd.f32 %v5726, %v5977
        %v6032 = vadd.f32 %v5727, %v5980
        %v6033 = vadd.f32 %v5728, %v5985
        %v6034 = vadd.f32 %v5729, %v5988
        %v6035 = vadd.f32 %v5730, %v5993
        %v6036 = vadd.f32 %v5731, %v5996
        %v6037 = vadd.f32 %v5732, %v6001
        %v6038 = vadd.f32 %v5733, %v6004
        %v6039 = vld [vmem:[%s5] sm:$0x1]
        %v6041 = vlaneseq
        %v6042 = vshrl.u32 %v6041, 7
        %v6043 = vsub.s32 0, %v6042
        %v6044 = vrot.slane %v6039, %v6043
        %v6046 = vmul.f32 %v6007, %v6044
        %v6047 = vmul.f32 %v6008, %v6044
        %v6048 = vmul.f32 %v6009, %v6044
        %v6049 = vmul.f32 %v6010, %v6044
        %v6050 = vmul.f32 %v6011, %v6044
        %v6051 = vmul.f32 %v6012, %v6044
        %v6052 = vmul.f32 %v6013, %v6044
        %v6053 = vmul.f32 %v6014, %v6044
        %v6054 = vmul.f32 %v6015, %v6044
        %v6055 = vmul.f32 %v6016, %v6044
        %v6056 = vmul.f32 %v6017, %v6044
        %v6057 = vmul.f32 %v6018, %v6044
        %v6058 = vmul.f32 %v6019, %v6044
        %v6059 = vmul.f32 %v6020, %v6044
        %v6060 = vmul.f32 %v6021, %v6044
        %v6061 = vmul.f32 %v6022, %v6044
        %v6062 = vmul.f32 %v6023, %v6044
        %v6063 = vmul.f32 %v6024, %v6044
        %v6064 = vmul.f32 %v6025, %v6044
        %v6065 = vmul.f32 %v6026, %v6044
        %v6066 = vmul.f32 %v6027, %v6044
        %v6067 = vmul.f32 %v6028, %v6044
        %v6068 = vmul.f32 %v6029, %v6044
        %v6069 = vmul.f32 %v6030, %v6044
        %v6070 = vmul.f32 %v6031, %v6044
        %v6071 = vmul.f32 %v6032, %v6044
        %v6072 = vmul.f32 %v6033, %v6044
        %v6073 = vmul.f32 %v6034, %v6044
        %v6074 = vmul.f32 %v6035, %v6044
        %v6075 = vmul.f32 %v6036, %v6044
        %v6076 = vmul.f32 %v6037, %v6044
        %v6077 = vmul.f32 %v6038, %v6044
        %v6078 = vld [vmem:[%s6] sm:$0x1]
        %v6080 = vlaneseq
        %v6081 = vshrl.u32 %v6080, 7
        %v6082 = vsub.s32 0, %v6081
        %v6083 = vrot.slane %v6078, %v6082
        %v6085 = vadd.f32 %v6046, %v6083
        %v6086 = vadd.f32 %v6047, %v6083
        %v6087 = vadd.f32 %v6048, %v6083
        %v6088 = vadd.f32 %v6049, %v6083
        %v6089 = vadd.f32 %v6050, %v6083
        %v6090 = vadd.f32 %v6051, %v6083
        %v6091 = vadd.f32 %v6052, %v6083
        %v6092 = vadd.f32 %v6053, %v6083
        %v6093 = vadd.f32 %v6054, %v6083
        %v6094 = vadd.f32 %v6055, %v6083
        %v6095 = vadd.f32 %v6056, %v6083
        %v6096 = vadd.f32 %v6057, %v6083
        %v6097 = vadd.f32 %v6058, %v6083
        %v6098 = vadd.f32 %v6059, %v6083
        %v6099 = vadd.f32 %v6060, %v6083
        %v6100 = vadd.f32 %v6061, %v6083
        %v6101 = vadd.f32 %v6062, %v6083
        %v6102 = vadd.f32 %v6063, %v6083
        %v6103 = vadd.f32 %v6064, %v6083
        %v6104 = vadd.f32 %v6065, %v6083
        %v6105 = vadd.f32 %v6066, %v6083
        %v6106 = vadd.f32 %v6067, %v6083
        %v6107 = vadd.f32 %v6068, %v6083
        %v6108 = vadd.f32 %v6069, %v6083
        %v6109 = vadd.f32 %v6070, %v6083
        %v6110 = vadd.f32 %v6071, %v6083
        %v6111 = vadd.f32 %v6072, %v6083
        %v6112 = vadd.f32 %v6073, %v6083
        %v6113 = vadd.f32 %v6074, %v6083
        %v6114 = vadd.f32 %v6075, %v6083
        %v6115 = vadd.f32 %v6076, %v6083
        %v6116 = vadd.f32 %v6077, %v6083
        %v6117 = vmax.f32 %v6085, 0.0
        %v6118 = vmax.f32 %v6086, 0.0
        %v6119 = vmax.f32 %v6087, 0.0
        %v6120 = vmax.f32 %v6088, 0.0
        %v6121 = vmax.f32 %v6089, 0.0
        %v6122 = vmax.f32 %v6090, 0.0
        %v6123 = vmax.f32 %v6091, 0.0
        %v6124 = vmax.f32 %v6092, 0.0
        %v6125 = vmax.f32 %v6093, 0.0
        %v6126 = vmax.f32 %v6094, 0.0
        %v6127 = vmax.f32 %v6095, 0.0
        %v6128 = vmax.f32 %v6096, 0.0
        %v6129 = vmax.f32 %v6097, 0.0
        %v6130 = vmax.f32 %v6098, 0.0
        %v6131 = vmax.f32 %v6099, 0.0
        %v6132 = vmax.f32 %v6100, 0.0
        %v6133 = vmax.f32 %v6101, 0.0
        %v6134 = vmax.f32 %v6102, 0.0
        %v6135 = vmax.f32 %v6103, 0.0
        %v6136 = vmax.f32 %v6104, 0.0
        %v6137 = vmax.f32 %v6105, 0.0
        %v6138 = vmax.f32 %v6106, 0.0
        %v6139 = vmax.f32 %v6107, 0.0
        %v6140 = vmax.f32 %v6108, 0.0
        %v6141 = vmax.f32 %v6109, 0.0
        %v6142 = vmax.f32 %v6110, 0.0
        %v6143 = vmax.f32 %v6111, 0.0
        %v6144 = vmax.f32 %v6112, 0.0
        %v6145 = vmax.f32 %v6113, 0.0
        %v6146 = vmax.f32 %v6114, 0.0
        %v6147 = vmax.f32 %v6115, 0.0
        %v6148 = vmax.f32 %v6116, 0.0
        %6149 = vst [vmem:[%s325] sm:$0xff] %v6117
        %6150 = vst [vmem:[%s325 + $0x8] sm:$0xff] %v6118
        %6151 = vst [vmem:[%s325 + $0x10] sm:$0xff] %v6119
        %6152 = vst [vmem:[%s325 + $0x18] sm:$0xff] %v6120
        %6153 = vst [vmem:[%s325 + $0x20] sm:$0xff] %v6121
        %6154 = vst [vmem:[%s325 + $0x28] sm:$0xff] %v6122
        %6155 = vst [vmem:[%s325 + $0x30] sm:$0xff] %v6123
        %6156 = vst [vmem:[%s325 + $0x38] sm:$0xff] %v6124
        %6157 = vst [vmem:[%s325 + $0x40] sm:$0xff] %v6125
        %6158 = vst [vmem:[%s325 + $0x48] sm:$0xff] %v6126
        %6159 = vst [vmem:[%s325 + $0x50] sm:$0xff] %v6127
        %6160 = vst [vmem:[%s325 + $0x58] sm:$0xff] %v6128
        %6161 = vst [vmem:[%s325 + $0x60] sm:$0xff] %v6129
        %6162 = vst [vmem:[%s325 + $0x68] sm:$0xff] %v6130
        %6163 = vst [vmem:[%s325 + $0x70] sm:$0xff] %v6131
        %6164 = vst [vmem:[%s325 + $0x78] sm:$0xff] %v6132
        %6165 = vst [vmem:[%s325 + $0x80] sm:$0xff] %v6133
        %6166 = vst [vmem:[%s325 + $0x88] sm:$0xff] %v6134
        %6167 = vst [vmem:[%s325 + $0x90] sm:$0xff] %v6135
        %6168 = vst [vmem:[%s325 + $0x98] sm:$0xff] %v6136
        %6169 = vst [vmem:[%s325 + $0xa0] sm:$0xff] %v6137
        %6170 = vst [vmem:[%s325 + $0xa8] sm:$0xff] %v6138
        %6171 = vst [vmem:[%s325 + $0xb0] sm:$0xff] %v6139
        %6172 = vst [vmem:[%s325 + $0xb8] sm:$0xff] %v6140
        %6173 = vst [vmem:[%s325 + $0xc0] sm:$0xff] %v6141
        %6174 = vst [vmem:[%s325 + $0xc8] sm:$0xff] %v6142
        %6175 = vst [vmem:[%s325 + $0xd0] sm:$0xff] %v6143
        %6176 = vst [vmem:[%s325 + $0xd8] sm:$0xff] %v6144
        %6177 = vst [vmem:[%s325 + $0xe0] sm:$0xff] %v6145
        %6178 = vst [vmem:[%s325 + $0xe8] sm:$0xff] %v6146
        %6179 = vst [vmem:[%s325 + $0xf0] sm:$0xff] %v6147
        %6180 = vst [vmem:[%s325 + $0xf8] sm:$0xff] %v6148
        %s6181 = sand.u32 %s185, 1
        %s6182 = scalar_lea.sflag [#allocation6], %s6181
        %s6183 = sand.u32 %s185, 1
        %s6184 = smul.addr %s6183, 256
        %s6185 = scalar_lea.vmem [#allocation10], %s6184
        // Predicated region
        $region61: #{tpu_custom_call.1} parent=47 // pred_check
          %p6186 = pneg %p195
        $region62: #{tpu_custom_call.1} parent=47 // pred_check_branch
          %6188 = sbr.rel (%p6186) target = $region64
        $region63: #{tpu_custom_call.1} parent=47 // pred_region
          %s6190 = ssub.s32 4096, 4096
          %6191 = vsyncadd %s6182, %s6190
          %s6192 = smul.addr %s25, 32
          %s6193 = smul.addr %s6192, 128
          %s6194 = scalar_lea.hbm %s7, %s6193
          %s6195 = sshll.u32 %s6185, 4
          %s6196 = int_to_ptr.vmem [resolvable:$true] %s6195
          %6201 = dma.vmem_to_hbm [thread:$0]  %s6196, 4096, %s6194, %s6182, 128, 128, 8
        $region64: #{tpu_custom_call.1} parent=47 // pred_fallthru
          _
      $region48: #{tpu_custom_call.1} parent=5 // pred_fallthru
        _
      %p6202 = scmp.le.s32.totalorder 2, %s20
      // Predicated region
      $region65: #{tpu_custom_call.1} parent=5 // pred_check
        %p6203 = pneg %p6202
      $region66: #{tpu_custom_call.1} parent=5 // pred_check_branch
        %6205 = sbr.rel (%p6203) target = $region68
      $region67: #{tpu_custom_call.1} parent=5 // pred_region
        %s6206 = ssub.s32 %s20, 2
        // Predicated region
        $region69: #{tpu_custom_call.1} parent=67 // pred_check
          %p6207 = pneg %p201
        $region70: #{tpu_custom_call.1} parent=67 // pred_check_branch
          %6209 = sbr.rel (%p6207) target = $region72
        $region71: #{tpu_custom_call.1} parent=67 // pred_region
          %s6210 = sand.u32 %s186, 1
          %s6211 = scalar_lea.sflag [#allocation6], %s6210
          %s6212 = sand.u32 %s186, 1
          %s6213 = smul.addr %s6212, 256
          %s6214 = scalar_lea.vmem [#allocation10], %s6213
          %6215 = dma.done %s6211, 4096
        $region72: #{tpu_custom_call.1} parent=67 // pred_fallthru
          _
      $region68: #{tpu_custom_call.1} parent=5 // pred_fallthru
        _
    $region6: #{tpu_custom_call.1} parent=1 // loop_footer
      %s24 = sadd.s32 1, %s20
    $region7: #{tpu_custom_call.1} parent=1 // loop_footer_branch
      %19 = sbr.rel target = $region3
    $region8: #{tpu_custom_call.1} parent=1 // loop_exit
      _
    %6216 = vsyncpa [#allocation5], 1
    %s6217 = scalar_lea.sflag [#allocation5], 1
    %6218 = vsyncpa %s6217, 1
    %6219 = vsyncpa [#allocation8], 1
    %6220 = vsyncpa [#allocation6], 1
    %s6221 = scalar_lea.sflag [#allocation6], 1
    %6222 = vsyncpa %s6221, 1

</llo_original>
